<compile_context>
chip_gen: v6e
topology: v6e:2x2x1
jax: 0.10.0
libtpu: 0.0.40
codegen_flags: <defaults>
</compile_context>

<pallas_src>
import functools

import jax
import jax.numpy as jnp
from jax.experimental import pallas as pl
from jax.experimental.pallas import tpu as pltpu

IMAGE_EMBEDDING = 1280   # CFG.image_embedding
LANE = 128

C1, C1P = 32, 128        # stem / block1 channels (logical, lane-padded)
MID1 = 16                # block1 pw output (lives only inside the fused kernel)
C2, C2P = 96, 128        # block2 expanded channels (logical, lane-padded)
MID2 = 24                # block2 pw output (lives only inside the fused kernel)
SE1_R, SE2_R = 8, 4      # squeeze-excite hidden dims


# ------------------------------ small helpers ------------------------------ #

def _round_up(x, m):
    return ((x + m - 1) // m) * m


def _cp(dim_sem, block_bytes):
    # double-buffered blocks + headroom; stay well under v7x's 64 MiB physical VMEM.
    est = 2 * int(sum(block_bytes)) + (4 << 20)
    return pltpu.CompilerParams(
        dimension_semantics=tuple(dim_sem),
        vmem_limit_bytes=int(min(max(est, 32 << 20), 56 << 20)),
    )


def _silu(y):
    # y * sigmoid(y); reciprocal routed to the EUP slot (approx vrcp).
    return y * pl.reciprocal(1.0 + jnp.exp(-y), approx=True)


def _sigmoid(y):
    return pl.reciprocal(1.0 + jnp.exp(-y), approx=True)


def _pad_axis(a, axis, target, value=0.0):
    pad = target - a.shape[axis]
    if pad <= 0:
        return a
    widths = [(0, 0)] * a.ndim
    widths[axis] = (0, pad)
    return jnp.pad(a, widths, constant_values=value)


# ----------------------------- Pallas kernels ------------------------------ #

def _gemm_bn_act_kernel(x_ref, w_ref, scale_ref, bias_ref, o_ref, *, act):
    # x: [tm, K] f32, w: [K, N] bf16 (resident), scale/bias: [1, N] -> o: [tm, N] f32
    acc = jnp.dot(x_ref[...].astype(jnp.bfloat16), w_ref[...],
                  preferred_element_type=jnp.float32)
    y = acc * scale_ref[...] + bias_ref[...]
    if act == "silu":
        y = _silu(y)
    o_ref[...] = y


def _dwconv_bn_silu_kernel(x_ref, w_ref, scale_ref, bias_ref, o_ref, *, stride, ho, wo):
    # x: [1, s*s, Hq, Wq, C] phase-decomposed padded input; w: [9, C]; scale/bias: [1, C]
    # 9 unrolled FMA taps -> one accumulator (no [9, M, C] product materialized).
    s = stride
    acc = None
    for di in range(3):
        for dj in range(3):
            ph = (di % s) * s + (dj % s)
            tap = x_ref[0, ph, pl.ds(di // s, ho), pl.ds(dj // s, wo), :]
            term = tap * w_ref[di * 3 + dj]
            acc = term if acc is None else acc + term
    y = acc * scale_ref[0] + bias_ref[0]
    o_ref[0] = _silu(y)


def _se_kernel(x_ref, w1_ref, b1_ref, w2_ref, b2_ref, o_ref, acc_ref, *, hw):
    # Fused squeeze-excite: tiled GAP (VMEM accumulator) + FC1 + SiLU + FC2 + sigmoid.
    # x: [1, tm, C]; output gate: [1, 1, C].  Zero-padded rows contribute 0 to the sum.
    @pl.when(pl.program_id(1) == 0)
    def _():
        acc_ref[...] = jnp.zeros_like(acc_ref)

    acc_ref[...] += jnp.sum(x_ref[0], axis=0, keepdims=True)

    pooled = acc_ref[...] * (1.0 / float(hw))                        # [1, C]
    h = jnp.dot(pooled, w1_ref[...], preferred_element_type=jnp.float32) + b1_ref[...]
    h = _silu(h)
    g = jnp.dot(h, w2_ref[...], preferred_element_type=jnp.float32) + b2_ref[...]
    o_ref[0] = _sigmoid(g)                                           # final step's value wins


def _pw_expand_kernel(x_ref, se_ref, w1_ref, s1_ref, b1_ref, w2_ref, s2_ref, b2_ref, o_ref):
    # (x * se_gate) @ Wpw * s + b  (no act, 16-wide intermediate stays in registers/VMEM)
    # then @ Wexpand * s + b, SiLU.  Output lane-dense (128).
    xb = x_ref[0] * se_ref[0]                                        # [tm, C]
    h = jnp.dot(xb.astype(jnp.bfloat16), w1_ref[...],
                preferred_element_type=jnp.float32)
    h = h * s1_ref[...] + b1_ref[...]                                # [tm, MID1]
    z = jnp.dot(h.astype(jnp.bfloat16), w2_ref[...],
                preferred_element_type=jnp.float32)
    z = z * s2_ref[...] + b2_ref[...]
    o_ref[0] = _silu(z)


def _pw_head_gap_kernel(x_ref, se_ref, w1_ref, s1_ref, b1_ref, w2_ref, s2_ref, b2_ref,
                        o_ref, acc_ref, *, hw, tm, need_mask):
    # (x * se_gate) @ Wpw * s + b -> @ Whead * s + b -> SiLU -> global average pool.
    # The [B, HW, 1280] head activation never touches HBM.
    i = pl.program_id(1)

    @pl.when(i == 0)
    def _():
        acc_ref[...] = jnp.zeros_like(acc_ref)

    xb = x_ref[0] * se_ref[0]                                        # [tm, C]
    h = jnp.dot(xb.astype(jnp.bfloat16), w1_ref[...],
                preferred_element_type=jnp.float32)
    h = h * s1_ref[...] + b1_ref[...]                                # [tm, MID2]
    z = jnp.dot(h.astype(jnp.bfloat16), w2_ref[...],
                preferred_element_type=jnp.float32)
    z = z * s2_ref[...] + b2_ref[...]
    z = _silu(z)                                                     # [tm, 1280]
    if need_mask:
        rows = i * tm + jax.lax.broadcasted_iota(jnp.int32, (tm, 1), 0)
        z = jnp.where(rows < hw, z, 0.0)
    acc_ref[...] += jnp.sum(z, axis=0, keepdims=True)
    o_ref[0] = acc_ref[...] * (1.0 / float(hw))                      # final step's value wins


# ------------------------------ wrappers ----------------------------------- #

def matmul_bn_act(x, w_bf16, scale, bias, act="none", row_tile=512):
    # x: [M, K] f32, w: [K, N] bf16 (resident).  Grid over M rows.
    M, K = x.shape
    N = w_bf16.shape[1]
    tm = min(row_tile, _round_up(M, 8))
    Mp = _round_up(M, tm)
    if Mp != M:
        x = jnp.pad(x, ((0, Mp - M), (0, 0)))
    out = pl.pallas_call(
        functools.partial(_gemm_bn_act_kernel, act=act),
        grid=(Mp // tm,),
        in_specs=[
            pl.BlockSpec((tm, K), lambda i: (i, 0)),
            pl.BlockSpec((K, N), lambda i: (0, 0)),
            pl.BlockSpec((1, N), lambda i: (0, 0)),
            pl.BlockSpec((1, N), lambda i: (0, 0)),
        ],
        out_specs=pl.BlockSpec((tm, N), lambda i: (i, 0)),
        out_shape=jax.ShapeDtypeStruct((Mp, N), jnp.float32),
        compiler_params=_cp(("parallel",),
                            [tm * K * 4, K * N * 2, tm * N * 4]),
    )(x, w_bf16, scale.reshape(1, N), bias.reshape(1, N))
    return out[:M] if Mp != M else out


def dwconv_bn_silu(x, w9, scale, bias, stride):
    # Depthwise 3x3 conv + BN + SiLU.  x: [B, H, W, C]; w9: [9, C].
    # The padded input is phase-decomposed so all in-kernel tap slices are contiguous.
    # TODO(synk): at very high resolution add output-row tiling with a halo DMA; the
    #             per-batch-element block here is sized for the small feature maps used.
    B, H, W, C = x.shape
    s = stride
    xp = jnp.pad(x, ((0, 0), (1, 1), (1, 1), (0, 0)))
    Hp, Wp = H + 2, W + 2
    Ho = (Hp - 3) // s + 1
    Wo = (Wp - 3) // s + 1
    Hpp, Wpp = _round_up(Hp, s), _round_up(Wp, s)
    if (Hpp, Wpp) != (Hp, Wp):
        xp = jnp.pad(xp, ((0, 0), (0, Hpp - Hp), (0, Wpp - Wp), (0, 0)))
    Hq, Wq = Hpp // s, Wpp // s
    phases = xp.reshape(B, Hq, s, Wq, s, C).transpose(0, 2, 4, 1, 3, 5)
    phases = phases.reshape(B, s * s, Hq, Wq, C)

    kernel = functools.partial(_dwconv_bn_silu_kernel, stride=s, ho=Ho, wo=Wo)
    out = pl.pallas_call(
        kernel,
        grid=(B,),
        in_specs=[
            pl.BlockSpec((1, s * s, Hq, Wq, C), lambda b: (b, 0, 0, 0, 0)),
            pl.BlockSpec((9, C), lambda b: (0, 0)),
            pl.BlockSpec((1, C), lambda b: (0, 0)),
            pl.BlockSpec((1, C), lambda b: (0, 0)),
        ],
        out_specs=pl.BlockSpec((1, Ho, Wo, C), lambda b: (b, 0, 0, 0)),
        out_shape=jax.ShapeDtypeStruct((B, Ho, Wo, C), jnp.float32),
        compiler_params=_cp(("parallel",),
                            [s * s * Hq * Wq * C * 4, Ho * Wo * C * 4]),
    )(phases, w9, scale.reshape(1, C), bias.reshape(1, C))
    return out


def se_gate(xf, w1, b1, w2, b2, row_tile=512):
    # Fused squeeze-excite gate.  xf: [B, HW, C] -> [B, 1, C].
    B, HW, C = xf.shape
    r = w1.shape[1]
    tm = min(row_tile, _round_up(HW, 8))
    HWp = _round_up(HW, tm)
    if HWp != HW:
        xf = jnp.pad(xf, ((0, 0), (0, HWp - HW), (0, 0)))
    kernel = functools.partial(_se_kernel, hw=HW)
    return pl.pallas_call(
        kernel,
        grid=(B, HWp // tm),
        in_specs=[
            pl.BlockSpec((1, tm, C), lambda b, i: (b, i, 0)),
            pl.BlockSpec((C, r), lambda b, i: (0, 0)),
            pl.BlockSpec((1, r), lambda b, i: (0, 0)),
            pl.BlockSpec((r, C), lambda b, i: (0, 0)),
            pl.BlockSpec((1, C), lambda b, i: (0, 0)),
        ],
        out_specs=pl.BlockSpec((1, 1, C), lambda b, i: (b, 0, 0)),
        out_shape=jax.ShapeDtypeStruct((B, 1, C), jnp.float32),
        scratch_shapes=[pltpu.VMEM((1, C), jnp.float32)],
        compiler_params=_cp(("parallel", "arbitrary"),
                            [tm * C * 4, C * r * 4, r * C * 4, C * 4]),
    )(xf, w1, b1.reshape(1, r), w2, b2.reshape(1, C))


def pw_expand(xf, se, w_pw, s_pw, b_pw, w_ex, s_ex, b_ex, row_tile=512):
    # Fused: SE scale -> pw 1x1 + BN -> expand 1x1 + BN + SiLU.  xf: [B, HW, C].
    B, HW, C = xf.shape
    Cm, Ce = w_pw.shape[1], w_ex.shape[1]
    tm = min(row_tile, _round_up(HW, 8))
    HWp = _round_up(HW, tm)
    if HWp != HW:
        xf = jnp.pad(xf, ((0, 0), (0, HWp - HW), (0, 0)))
    out = pl.pallas_call(
        _pw_expand_kernel,
        grid=(B, HWp // tm),
        in_specs=[
            pl.BlockSpec((1, tm, C), lambda b, i: (b, i, 0)),
            pl.BlockSpec((1, 1, C), lambda b, i: (b, 0, 0)),
            pl.BlockSpec((C, Cm), lambda b, i: (0, 0)),
            pl.BlockSpec((1, Cm), lambda b, i: (0, 0)),
            pl.BlockSpec((1, Cm), lambda b, i: (0, 0)),
            pl.BlockSpec((Cm, Ce), lambda b, i: (0, 0)),
            pl.BlockSpec((1, Ce), lambda b, i: (0, 0)),
            pl.BlockSpec((1, Ce), lambda b, i: (0, 0)),
        ],
        out_specs=pl.BlockSpec((1, tm, Ce), lambda b, i: (b, i, 0)),
        out_shape=jax.ShapeDtypeStruct((B, HWp, Ce), jnp.float32),
        compiler_params=_cp(("parallel", "parallel"),
                            [tm * C * 4, tm * Ce * 4, C * Cm * 2, Cm * Ce * 2]),
    )(xf, se, w_pw, s_pw.reshape(1, Cm), b_pw.reshape(1, Cm),
      w_ex, s_ex.reshape(1, Ce), b_ex.reshape(1, Ce))
    return out[:, :HW, :] if HWp != HW else out


def pw_head_gap(xf, se, w_pw, s_pw, b_pw, w_h, s_h, b_h, row_tile=512):
    # Fused: SE scale -> pw 1x1 + BN -> head 1x1 + BN + SiLU -> global average pool.
    B, HW, C = xf.shape
    Cm, N = w_pw.shape[1], w_h.shape[1]
    tm = min(row_tile, _round_up(HW, 8))
    HWp = _round_up(HW, tm)
    if HWp != HW:
        xf = jnp.pad(xf, ((0, 0), (0, HWp - HW), (0, 0)))
    kernel = functools.partial(_pw_head_gap_kernel, hw=HW, tm=tm, need_mask=(HWp != HW))
    out = pl.pallas_call(
        kernel,
        grid=(B, HWp // tm),
        in_specs=[
            pl.BlockSpec((1, tm, C), lambda b, i: (b, i, 0)),
            pl.BlockSpec((1, 1, C), lambda b, i: (b, 0, 0)),
            pl.BlockSpec((C, Cm), lambda b, i: (0, 0)),
            pl.BlockSpec((1, Cm), lambda b, i: (0, 0)),
            pl.BlockSpec((1, Cm), lambda b, i: (0, 0)),
            pl.BlockSpec((Cm, N), lambda b, i: (0, 0)),
            pl.BlockSpec((1, N), lambda b, i: (0, 0)),
            pl.BlockSpec((1, N), lambda b, i: (0, 0)),
        ],
        out_specs=pl.BlockSpec((1, 1, N), lambda b, i: (b, 0, 0)),
        out_shape=jax.ShapeDtypeStruct((B, 1, N), jnp.float32),
        scratch_shapes=[pltpu.VMEM((1, N), jnp.float32)],
        compiler_params=_cp(("parallel", "arbitrary"),
                            [tm * C * 4, tm * N * 4, C * Cm * 2, Cm * N * 2, N * 4]),
    )(xf, se, w_pw, s_pw.reshape(1, Cm), b_pw.reshape(1, Cm),
      w_h, s_h.reshape(1, N), b_h.reshape(1, N))
    return out.reshape(B, N)


def _extract_patches(x, ksize, stride, pad):
    # im2col glue (plain JAX): x [B, H, W, C] -> [B, Ho, Wo, k*k*C]
    B, H, W, C = x.shape
    xp = jnp.pad(x, ((0, 0), (pad, pad), (pad, pad), (0, 0)))
    Ho = (H + 2 * pad - ksize) // stride + 1
    Wo = (W + 2 * pad - ksize) // stride + 1
    cols = []
    for di in range(ksize):
        for dj in range(ksize):
            cols.append(xp[:, di:di + stride * Ho:stride, dj:dj + stride * Wo:stride, :])
    return jnp.concatenate(cols, axis=-1), Ho, Wo


# --------------------------- params + forward ------------------------------ #

def init_params(key):
    keys = iter(jax.random.split(key, 32))

    def w(shape, fan_in):
        return jax.random.normal(next(keys), shape, jnp.float32) / jnp.sqrt(float(fan_in))

    def bn(n, npad):
        s = 1.0 + 0.1 * jax.random.normal(next(keys), (n,), jnp.float32)
        b = 0.1 * jax.random.normal(next(keys), (n,), jnp.float32)
        return _pad_axis(s, 0, npad, 1.0), _pad_axis(b, 0, npad, 0.0)

    p = {}
    # stem conv3x3/s2: [3,3,3,32] -> [27, 128] (zero-padded output lanes), bf16 for the MXU
    p["stem_w"] = _pad_axis(w((27, C1), 27), 1, C1P).astype(jnp.bfloat16)
    p["stem_s"], p["stem_b"] = bn(C1, C1P)

    # MBConv1: dw(32) -> SE(32->8->32) -> pw(32->16)
    p["b1_dw_w"] = _pad_axis(w((9, C1), 9), 1, C1P)
    p["b1_dw_s"], p["b1_dw_b"] = bn(C1, C1P)
    p["b1_se_w1"] = _pad_axis(w((C1, SE1_R), C1), 0, C1P)
    p["b1_se_b1"] = jnp.zeros((SE1_R,), jnp.float32)
    p["b1_se_w2"] = _pad_axis(w((SE1_R, C1), SE1_R), 1, C1P)
    p["b1_se_b2"] = jnp.zeros((C1P,), jnp.float32)
    p["b1_pw_w"] = _pad_axis(w((C1, MID1), C1), 0, C1P).astype(jnp.bfloat16)
    p["b1_pw_s"], p["b1_pw_b"] = bn(MID1, MID1)

    # MBConv6: expand(16->96) -> dw(96, s2) -> SE(96->4->96) -> pw(96->24)
    p["b2_ex_w"] = _pad_axis(w((MID1, C2), MID1), 1, C2P).astype(jnp.bfloat16)
    p["b2_ex_s"], p["b2_ex_b"] = bn(C2, C2P)
    p["b2_dw_w"] = _pad_axis(w((9, C2), 9), 1, C2P)
    p["b2_dw_s"], p["b2_dw_b"] = bn(C2, C2P)
    p["b2_se_w1"] = _pad_axis(w((C2, SE2_R), C2), 0, C2P)
    p["b2_se_b1"] = jnp.zeros((SE2_R,), jnp.float32)
    p["b2_se_w2"] = _pad_axis(w((SE2_R, C2), SE2_R), 1, C2P)
    p["b2_se_b2"] = jnp.zeros((C2P,), jnp.float32)
    p["b2_pw_w"] = _pad_axis(w((C2, MID2), C2), 0, C2P).astype(jnp.bfloat16)
    p["b2_pw_s"], p["b2_pw_b"] = bn(MID2, MID2)

    # head conv 1x1 -> 1280
    p["head_w"] = w((MID2, IMAGE_EMBEDDING), MID2).astype(jnp.bfloat16)
    p["head_s"], p["head_b"] = bn(IMAGE_EMBEDDING, IMAGE_EMBEDDING)
    return p


def image_encoder_forward(params, x_nchw):
    """x_nchw: [B, 3, H, W] float32  ->  [B, 1280] float32"""
    p = params
    x = jnp.transpose(x_nchw, (0, 2, 3, 1))  # NCHW -> NHWC (channels on the lane axis)
    B = x.shape[0]

    # stem conv3x3/s2 + BN + SiLU  (im2col glue + tiled GEMM, lane-dense 128-ch output)
    patches, Ho, Wo = _extract_patches(x, 3, 2, 1)
    x = matmul_bn_act(patches.reshape(B * Ho * Wo, -1), p["stem_w"],
                      p["stem_s"], p["stem_b"], act="silu")
    x = x.reshape(B, Ho, Wo, C1P)

    # MBConv1: dw3x3/s1 + BN + SiLU -> SE -> (pw + BN) fused with block2 (expand + BN + SiLU)
    x = dwconv_bn_silu(x, p["b1_dw_w"], p["b1_dw_s"], p["b1_dw_b"], stride=1)
    B, H, W, C = x.shape
    xf = x.reshape(B, H * W, C)
    se1 = se_gate(xf, p["b1_se_w1"], p["b1_se_b1"], p["b1_se_w2"], p["b1_se_b2"])
    y = pw_expand(xf, se1, p["b1_pw_w"], p["b1_pw_s"], p["b1_pw_b"],
                  p["b2_ex_w"], p["b2_ex_s"], p["b2_ex_b"])
    y = y.reshape(B, H, W, C2P)

    # MBConv6 middle: dw3x3/s2 + BN + SiLU -> SE -> (pw + BN) + (head + BN + SiLU) + GAP fused
    y = dwconv_bn_silu(y, p["b2_dw_w"], p["b2_dw_s"], p["b2_dw_b"], stride=2)
    B, H2, W2, C2p = y.shape
    yf = y.reshape(B, H2 * W2, C2p)
    se2 = se_gate(yf, p["b2_se_w1"], p["b2_se_b1"], p["b2_se_w2"], p["b2_se_b2"])
    out = pw_head_gap(yf, se2, p["b2_pw_w"], p["b2_pw_s"], p["b2_pw_b"],
                      p["head_w"], p["head_s"], p["head_b"])
    return out  # [B, 1280]


if __name__ == "__main__":
    key = jax.random.PRNGKey(0)
    k_params, k_x = jax.random.split(key)
    params = init_params(k_params)

    # small image batch: B=2, C=3, H=W=32 (CFG.size=224 in the original; scaled down)
    x = jax.random.normal(k_x, (2, 3, 32, 32), jnp.float32)

    out = jax.jit(image_encoder_forward)(params, x)
    out = jax.block_until_ready(out)

    assert out.shape == (2, IMAGE_EMBEDDING), out.shape
    assert out.dtype == jnp.float32
    assert bool(jnp.all(jnp.isfinite(out)))
    print("KERNEL_OK")
</pallas_src>

<mosaic_0001>
module attributes {stable_mosaic.version = 11 : i64} {
  func.func @_gemm_bn_act_kernel(%arg0: i32, %arg1: memref<512x27xf32, #tpu.memory_space<vmem>>, %arg2: memref<27x128xbf16, #tpu.memory_space<vmem>>, %arg3: memref<1x128xf32, #tpu.memory_space<vmem>>, %arg4: memref<1x128xf32, #tpu.memory_space<vmem>>, %arg5: memref<512x128xf32, #tpu.memory_space<vmem>>) attributes {dimension_semantics = [#tpu.dimension_semantics<parallel>], iteration_bounds = array<i64: 1>, scalar_prefetch = 0 : i64, scratch_operands = 0 : i64, tpu.core_type = #tpu.core_type<tc>, window_params = [{transform_indices = @transform_0, window_bounds = array<i64: 512, 27>}, {pipeline_mode = #tpu.pipeline_mode<synchronous>, transform_indices = @transform_1, window_bounds = array<i64: 27, 128>}, {pipeline_mode = #tpu.pipeline_mode<synchronous>, transform_indices = @transform_2, window_bounds = array<i64: 1, 128>}, {pipeline_mode = #tpu.pipeline_mode<synchronous>, transform_indices = @transform_3, window_bounds = array<i64: 1, 128>}, {transform_indices = @transform_4, window_bounds = array<i64: 512, 128>}]} {
    %c0 = arith.constant 0 : index
    %c0_0 = arith.constant 0 : index
    %0 = vector.load %arg1[%c0, %c0_0] : memref<512x27xf32, #tpu.memory_space<vmem>>, vector<512x27xf32>
    %1 = arith.truncf %0 : vector<512x27xf32> to vector<512x27xbf16>
    %c0_1 = arith.constant 0 : index
    %c0_2 = arith.constant 0 : index
    %2 = vector.load %arg2[%c0_1, %c0_2] : memref<27x128xbf16, #tpu.memory_space<vmem>>, vector<27x128xbf16>
    %cst = arith.constant dense<0.000000e+00> : vector<512x128xf32>
    %3 = tpu.matmul %1, %2, %cst {dimension_numbers = #tpu.dot_dimension_numbers<[1], [0], [0], [1], [0, 0, 1, 1], [], []>} : vector<512x27xbf16>, vector<27x128xbf16>, vector<512x128xf32> -> vector<512x128xf32>
    %c0_3 = arith.constant 0 : index
    %c0_4 = arith.constant 0 : index
    %4 = vector.load %arg3[%c0_3, %c0_4] : memref<1x128xf32, #tpu.memory_space<vmem>>, vector<1x128xf32>
    %5 = vector.broadcast %4 : vector<1x128xf32> to vector<512x128xf32>
    %6 = arith.mulf %3, %5 : vector<512x128xf32>
    %c0_5 = arith.constant 0 : index
    %c0_6 = arith.constant 0 : index
    %7 = vector.load %arg4[%c0_5, %c0_6] : memref<1x128xf32, #tpu.memory_space<vmem>>, vector<1x128xf32>
    %8 = vector.broadcast %7 : vector<1x128xf32> to vector<512x128xf32>
    %9 = arith.addf %6, %8 : vector<512x128xf32>
    %cst_7 = arith.constant 0.000000e+00 : f32
    %10 = vector.broadcast %cst_7 : f32 to vector<512x128xf32>
    %11 = arith.subf %10, %9 : vector<512x128xf32>
    %12 = math.exp %11 : vector<512x128xf32>
    %cst_8 = arith.constant 1.000000e+00 : f32
    %13 = vector.broadcast %cst_8 : f32 to vector<512x128xf32>
    %14 = arith.addf %13, %12 : vector<512x128xf32>
    %15 = tpu.reciprocal %14 {approx = true} : vector<512x128xf32> -> vector<512x128xf32>
    %16 = arith.mulf %9, %15 : vector<512x128xf32>
    %c0_9 = arith.constant 0 : index
    %c0_10 = arith.constant 0 : index
    %17 = vector.load %arg5[%c0_9, %c0_10] : memref<512x128xf32, #tpu.memory_space<vmem>>, vector<512x128xf32>
    tpu.vector_store %arg5[%c0_9, %c0_10], %16 {strides = array<i32>} : memref<512x128xf32, #tpu.memory_space<vmem>>, vector<512x128xf32>,
    return
  }
  func.func @transform_0(%arg0: i32) -> (i32, i32) {
    %c0_i32 = arith.constant 0 : i32
    %c0_i32_0 = arith.constant 0 : i32
    return %arg0, %c0_i32 : i32, i32
  }
  func.func @transform_1(%arg0: i32) -> (i32, i32) {
    %c0_i32 = arith.constant 0 : i32
    %c0_i32_0 = arith.constant 0 : i32
    %c0_i32_1 = arith.constant 0 : i32
    return %c0_i32, %c0_i32_0 : i32, i32
  }
  func.func @transform_2(%arg0: i32) -> (i32, i32) {
    %c0_i32 = arith.constant 0 : i32
    %c0_i32_0 = arith.constant 0 : i32
    %c0_i32_1 = arith.constant 0 : i32
    return %c0_i32, %c0_i32_0 : i32, i32
  }
  func.func @transform_3(%arg0: i32) -> (i32, i32) {
    %c0_i32 = arith.constant 0 : i32
    %c0_i32_0 = arith.constant 0 : i32
    %c0_i32_1 = arith.constant 0 : i32
    return %c0_i32, %c0_i32_0 : i32, i32
  }
  func.func @transform_4(%arg0: i32) -> (i32, i32) {
    %c0_i32 = arith.constant 0 : i32
    %c0_i32_0 = arith.constant 0 : i32
    return %arg0, %c0_i32 : i32, i32
  }
}

module attributes {stable_mosaic.version = 11 : i64} {
  func.func @_dwconv_bn_silu_kernel(%arg0: i32, %arg1: memref<1x1x18x18x128xf32, #tpu.memory_space<vmem>>, %arg2: memref<9x128xf32, #tpu.memory_space<vmem>>, %arg3: memref<1x128xf32, #tpu.memory_space<vmem>>, %arg4: memref<1x128xf32, #tpu.memory_space<vmem>>, %arg5: memref<1x16x16x128xf32, #tpu.memory_space<vmem>>) attributes {dimension_semantics = [#tpu.dimension_semantics<parallel>], iteration_bounds = array<i64: 2>, scalar_prefetch = 0 : i64, scratch_operands = 0 : i64, tpu.core_type = #tpu.core_type<tc>, window_params = [{transform_indices = @transform_0, window_bounds = array<i64: 1, 1, 18, 18, 128>}, {pipeline_mode = #tpu.pipeline_mode<synchronous>, transform_indices = @transform_1, window_bounds = array<i64: 9, 128>}, {pipeline_mode = #tpu.pipeline_mode<synchronous>, transform_indices = @transform_2, window_bounds = array<i64: 1, 128>}, {pipeline_mode = #tpu.pipeline_mode<synchronous>, transform_indices = @transform_3, window_bounds = array<i64: 1, 128>}, {transform_indices = @transform_4, window_bounds = array<i64: 1, 16, 16, 128>}]} {
    %c0 = arith.constant 0 : index
    %c0_0 = arith.constant 0 : index
    %c0_1 = arith.constant 0 : index
    %c0_2 = arith.constant 0 : index
    %c0_3 = arith.constant 0 : index
    %0 = vector.load %arg1[%c0, %c0_0, %c0_1, %c0_2, %c0_3] : memref<1x1x18x18x128xf32, #tpu.memory_space<vmem>>, vector<1x1x16x16x128xf32>
    %1 = vector.shape_cast %0 : vector<1x1x16x16x128xf32> to vector<16x16x128xf32>
    %c0_4 = arith.constant 0 : index
    %c0_5 = arith.constant 0 : index
    %2 = vector.load %arg2[%c0_4, %c0_5] : memref<9x128xf32, #tpu.memory_space<vmem>>, vector<1x128xf32>
    %3 = vector.shape_cast %2 : vector<1x128xf32> to vector<128xf32>
    %4 = vector.shape_cast %3 : vector<128xf32> to vector<1x1x128xf32>
    %5 = vector.broadcast %4 : vector<1x1x128xf32> to vector<16x16x128xf32>
    %6 = arith.mulf %1, %5 : vector<16x16x128xf32>
    %c0_6 = arith.constant 0 : index
    %c0_7 = arith.constant 0 : index
    %c0_8 = arith.constant 0 : index
    %c1 = arith.constant 1 : index
    %c0_9 = arith.constant 0 : index
    %7 = vector.load %arg1[%c0_6, %c0_7, %c0_8, %c1, %c0_9] : memref<1x1x18x18x128xf32, #tpu.memory_space<vmem>>, vector<1x1x16x16x128xf32>
    %8 = vector.shape_cast %7 : vector<1x1x16x16x128xf32> to vector<16x16x128xf32>
    %c1_10 = arith.constant 1 : index
    %c0_11 = arith.constant 0 : index
    %9 = vector.load %arg2[%c1_10, %c0_11] : memref<9x128xf32, #tpu.memory_space<vmem>>, vector<1x128xf32>
    %10 = vector.shape_cast %9 : vector<1x128xf32> to vector<128xf32>
    %11 = vector.shape_cast %10 : vector<128xf32> to vector<1x1x128xf32>
    %12 = vector.broadcast %11 : vector<1x1x128xf32> to vector<16x16x128xf32>
    %13 = arith.mulf %8, %12 : vector<16x16x128xf32>
    %14 = arith.addf %6, %13 : vector<16x16x128xf32>
    %c0_12 = arith.constant 0 : index
    %c0_13 = arith.constant 0 : index
    %c0_14 = arith.constant 0 : index
    %c2 = arith.constant 2 : index
    %c0_15 = arith.constant 0 : index
    %15 = vector.load %arg1[%c0_12, %c0_13, %c0_14, %c2, %c0_15] : memref<1x1x18x18x128xf32, #tpu.memory_space<vmem>>, vector<1x1x16x16x128xf32>
    %16 = vector.shape_cast %15 : vector<1x1x16x16x128xf32> to vector<16x16x128xf32>
    %c2_16 = arith.constant 2 : index
    %c0_17 = arith.constant 0 : index
    %17 = vector.load %arg2[%c2_16, %c0_17] : memref<9x128xf32, #tpu.memory_space<vmem>>, vector<1x128xf32>
    %18 = vector.shape_cast %17 : vector<1x128xf32> to vector<128xf32>
    %19 = vector.shape_cast %18 : vector<128xf32> to vector<1x1x128xf32>
    %20 = vector.broadcast %19 : vector<1x1x128xf32> to vector<16x16x128xf32>
    %21 = arith.mulf %16, %20 : vector<16x16x128xf32>
    %22 = arith.addf %14, %21 : vector<16x16x128xf32>
    %c0_18 = arith.constant 0 : index
    %c0_19 = arith.constant 0 : index
    %c1_20 = arith.constant 1 : index
    %c0_21 = arith.constant 0 : index
    %c0_22 = arith.constant 0 : index
    %23 = vector.load %arg1[%c0_18, %c0_19, %c1_20, %c0_21, %c0_22] : memref<1x1x18x18x128xf32, #tpu.memory_space<vmem>>, vector<1x1x16x16x128xf32>
    %24 = vector.shape_cast %23 : vector<1x1x16x16x128xf32> to vector<16x16x128xf32>
    %c3 = arith.constant 3 : index
    %c0_23 = arith.constant 0 : index
    %25 = vector.load %arg2[%c3, %c0_23] : memref<9x128xf32, #tpu.memory_space<vmem>>, vector<1x128xf32>
    %26 = vector.shape_cast %25 : vector<1x128xf32> to vector<128xf32>
    %27 = vector.shape_cast %26 : vector<128xf32> to vector<1x1x128xf32>
    %28 = vector.broadcast %27 : vector<1x1x128xf32> to vector<16x16x128xf32>
    %29 = arith.mulf %24, %28 : vector<16x16x128xf32>
    %30 = arith.addf %22, %29 : vector<16x16x128xf32>
    %c0_24 = arith.constant 0 : index
    %c0_25 = arith.constant 0 : index
    %c1_26 = arith.constant 1 : index
    %c1_27 = arith.constant 1 : index
    %c0_28 = arith.constant 0 : index
    %31 = vector.load %arg1[%c0_24, %c0_25, %c1_26, %c1_27, %c0_28] : memref<1x1x18x18x128xf32, #tpu.memory_space<vmem>>, vector<1x1x16x16x128xf32>
    %32 = vector.shape_cast %31 : vector<1x1x16x16x128xf32> to vector<16x16x128xf32>
    %c4 = arith.constant 4 : index
    %c0_29 = arith.constant 0 : index
    %33 = vector.load %arg2[%c4, %c0_29] : memref<9x128xf32, #tpu.memory_space<vmem>>, vector<1x128xf32>
    %34 = vector.shape_cast %33 : vector<1x128xf32> to vector<128xf32>
    %35 = vector.shape_cast %34 : vector<128xf32> to vector<1x1x128xf32>
    %36 = vector.broadcast %35 : vector<1x1x128xf32> to vector<16x16x128xf32>
    %37 = arith.mulf %32, %36 : vector<16x16x128xf32>
    %38 = arith.addf %30, %37 : vector<16x16x128xf32>
    %c0_30 = arith.constant 0 : index
    %c0_31 = arith.constant 0 : index
    %c1_32 = arith.constant 1 : index
    %c2_33 = arith.constant 2 : index
    %c0_34 = arith.constant 0 : index
    %39 = vector.load %arg1[%c0_30, %c0_31, %c1_32, %c2_33, %c0_34] : memref<1x1x18x18x128xf32, #tpu.memory_space<vmem>>, vector<1x1x16x16x128xf32>
    %40 = vector.shape_cast %39 : vector<1x1x16x16x128xf32> to vector<16x16x128xf32>
    %c5 = arith.constant 5 : index
    %c0_35 = arith.constant 0 : index
    %41 = vector.load %arg2[%c5, %c0_35] : memref<9x128xf32, #tpu.memory_space<vmem>>, vector<1x128xf32>
    %42 = vector.shape_cast %41 : vector<1x128xf32> to vector<128xf32>
    %43 = vector.shape_cast %42 : vector<128xf32> to vector<1x1x128xf32>
    %44 = vector.broadcast %43 : vector<1x1x128xf32> to vector<16x16x128xf32>
    %45 = arith.mulf %40, %44 : vector<16x16x128xf32>
    %46 = arith.addf %38, %45 : vector<16x16x128xf32>
    %c0_36 = arith.constant 0 : index
    %c0_37 = arith.constant 0 : index
    %c2_38 = arith.constant 2 : index
    %c0_39 = arith.constant 0 : index
    %c0_40 = arith.constant 0 : index
    %47 = vector.load %arg1[%c0_36, %c0_37, %c2_38, %c0_39, %c0_40] : memref<1x1x18x18x128xf32, #tpu.memory_space<vmem>>, vector<1x1x16x16x128xf32>
    %48 = vector.shape_cast %47 : vector<1x1x16x16x128xf32> to vector<16x16x128xf32>
    %c6 = arith.constant 6 : index
    %c0_41 = arith.constant 0 : index
    %49 = vector.load %arg2[%c6, %c0_41] : memref<9x128xf32, #tpu.memory_space<vmem>>, vector<1x128xf32>
    %50 = vector.shape_cast %49 : vector<1x128xf32> to vector<128xf32>
    %51 = vector.shape_cast %50 : vector<128xf32> to vector<1x1x128xf32>
    %52 = vector.broadcast %51 : vector<1x1x128xf32> to vector<16x16x128xf32>
    %53 = arith.mulf %48, %52 : vector<16x16x128xf32>
    %54 = arith.addf %46, %53 : vector<16x16x128xf32>
    %c0_42 = arith.constant 0 : index
    %c0_43 = arith.constant 0 : index
    %c2_44 = arith.constant 2 : index
    %c1_45 = arith.constant 1 : index
    %c0_46 = arith.constant 0 : index
    %55 = vector.load %arg1[%c0_42, %c0_43, %c2_44, %c1_45, %c0_46] : memref<1x1x18x18x128xf32, #tpu.memory_space<vmem>>, vector<1x1x16x16x128xf32>
    %56 = vector.shape_cast %55 : vector<1x1x16x16x128xf32> to vector<16x16x128xf32>
    %c7 = arith.constant 7 : index
    %c0_47 = arith.constant 0 : index
    %57 = vector.load %arg2[%c7, %c0_47] : memref<9x128xf32, #tpu.memory_space<vmem>>, vector<1x128xf32>
    %58 = vector.shape_cast %57 : vector<1x128xf32> to vector<128xf32>
    %59 = vector.shape_cast %58 : vector<128xf32> to vector<1x1x128xf32>
    %60 = vector.broadcast %59 : vector<1x1x128xf32> to vector<16x16x128xf32>
    %61 = arith.mulf %56, %60 : vector<16x16x128xf32>
    %62 = arith.addf %54, %61 : vector<16x16x128xf32>
    %c0_48 = arith.constant 0 : index
    %c0_49 = arith.constant 0 : index
    %c2_50 = arith.constant 2 : index
    %c2_51 = arith.constant 2 : index
    %c0_52 = arith.constant 0 : index
    %63 = vector.load %arg1[%c0_48, %c0_49, %c2_50, %c2_51, %c0_52] : memref<1x1x18x18x128xf32, #tpu.memory_space<vmem>>, vector<1x1x16x16x128xf32>
    %64 = vector.shape_cast %63 : vector<1x1x16x16x128xf32> to vector<16x16x128xf32>
    %c8 = arith.constant 8 : index
    %c0_53 = arith.constant 0 : index
    %65 = vector.load %arg2[%c8, %c0_53] : memref<9x128xf32, #tpu.memory_space<vmem>>, vector<1x128xf32>
    %66 = vector.shape_cast %65 : vector<1x128xf32> to vector<128xf32>
    %67 = vector.shape_cast %66 : vector<128xf32> to vector<1x1x128xf32>
    %68 = vector.broadcast %67 : vector<1x1x128xf32> to vector<16x16x128xf32>
    %69 = arith.mulf %64, %68 : vector<16x16x128xf32>
    %70 = arith.addf %62, %69 : vector<16x16x128xf32>
    %c0_54 = arith.constant 0 : index
    %c0_55 = arith.constant 0 : index
    %71 = vector.load %arg3[%c0_54, %c0_55] : memref<1x128xf32, #tpu.memory_space<vmem>>, vector<1x128xf32>
    %72 = vector.shape_cast %71 : vector<1x128xf32> to vector<128xf32>
    %73 = vector.shape_cast %72 : vector<128xf32> to vector<1x1x128xf32>
    %74 = vector.broadcast %73 : vector<1x1x128xf32> to vector<16x16x128xf32>
    %75 = arith.mulf %70, %74 : vector<16x16x128xf32>
    %c0_56 = arith.constant 0 : index
    %c0_57 = arith.constant 0 : index
    %76 = vector.load %arg4[%c0_56, %c0_57] : memref<1x128xf32, #tpu.memory_space<vmem>>, vector<1x128xf32>
    %77 = vector.shape_cast %76 : vector<1x128xf32> to vector<128xf32>
    %78 = vector.shape_cast %77 : vector<128xf32> to vector<1x1x128xf32>
    %79 = vector.broadcast %78 : vector<1x1x128xf32> to vector<16x16x128xf32>
    %80 = arith.addf %75, %79 : vector<16x16x128xf32>
    %cst = arith.constant 0.000000e+00 : f32
    %81 = vector.broadcast %cst : f32 to vector<16x16x128xf32>
    %82 = arith.subf %81, %80 : vector<16x16x128xf32>
    %83 = math.exp %82 : vector<16x16x128xf32>
    %cst_58 = arith.constant 1.000000e+00 : f32
    %84 = vector.broadcast %cst_58 : f32 to vector<16x16x128xf32>
    %85 = arith.addf %84, %83 : vector<16x16x128xf32>
    %86 = tpu.reciprocal %85 {approx = true} : vector<16x16x128xf32> -> vector<16x16x128xf32>
    %87 = arith.mulf %80, %86 : vector<16x16x128xf32>
    %c0_59 = arith.constant 0 : index
    %c0_60 = arith.constant 0 : index
    %c0_61 = arith.constant 0 : index
    %c0_62 = arith.constant 0 : index
    %88 = vector.load %arg5[%c0_59, %c0_60, %c0_61, %c0_62] : memref<1x16x16x128xf32, #tpu.memory_space<vmem>>, vector<1x16x16x128xf32>
    %89 = vector.shape_cast %88 : vector<1x16x16x128xf32> to vector<16x16x128xf32>
    %90 = vector.shape_cast %87 : vector<16x16x128xf32> to vector<1x16x16x128xf32>
    tpu.vector_store %arg5[%c0_59, %c0_60, %c0_61, %c0_62], %90 {strides = array<i32>} : memref<1x16x16x128xf32, #tpu.memory_space<vmem>>, vector<1x16x16x128xf32>,
    return
  }
  func.func @transform_0(%arg0: i32) -> (i32, i32, i32, i32, i32) {
    %c0_i32 = arith.constant 0 : i32
    %c0_i32_0 = arith.constant 0 : i32
    %c0_i32_1 = arith.constant 0 : i32
    %c0_i32_2 = arith.constant 0 : i32
    %c0_i32_3 = arith.constant 0 : i32
    return %arg0, %c0_i32, %c0_i32_0, %c0_i32_1, %c0_i32_2 : i32, i32, i32, i32, i32
  }
  func.func @transform_1(%arg0: i32) -> (i32, i32) {
    %c0_i32 = arith.constant 0 : i32
    %c0_i32_0 = arith.constant 0 : i32
    %c0_i32_1 = arith.constant 0 : i32
    return %c0_i32, %c0_i32_0 : i32, i32
  }
  func.func @transform_2(%arg0: i32) -> (i32, i32) {
    %c0_i32 = arith.constant 0 : i32
    %c0_i32_0 = arith.constant 0 : i32
    %c0_i32_1 = arith.constant 0 : i32
    return %c0_i32, %c0_i32_0 : i32, i32
  }
  func.func @transform_3(%arg0: i32) -> (i32, i32) {
    %c0_i32 = arith.constant 0 : i32
    %c0_i32_0 = arith.constant 0 : i32
    %c0_i32_1 = arith.constant 0 : i32
    return %c0_i32, %c0_i32_0 : i32, i32
  }
  func.func @transform_4(%arg0: i32) -> (i32, i32, i32, i32) {
    %c0_i32 = arith.constant 0 : i32
    %c0_i32_0 = arith.constant 0 : i32
    %c0_i32_1 = arith.constant 0 : i32
    %c0_i32_2 = arith.constant 0 : i32
    return %arg0, %c0_i32, %c0_i32_0, %c0_i32_1 : i32, i32, i32, i32
  }
}

module attributes {stable_mosaic.version = 11 : i64} {
  func.func @_se_kernel(%arg0: i32, %arg1: i32, %arg2: memref<1x256x128xf32, #tpu.memory_space<vmem>>, %arg3: memref<128x8xf32, #tpu.memory_space<vmem>>, %arg4: memref<1x8xf32, #tpu.memory_space<vmem>>, %arg5: memref<8x128xf32, #tpu.memory_space<vmem>>, %arg6: memref<1x128xf32, #tpu.memory_space<vmem>>, %arg7: memref<1x1x128xf32, #tpu.memory_space<vmem>>, %arg8: memref<1x128xf32, #tpu.memory_space<vmem>>) attributes {dimension_semantics = [#tpu.dimension_semantics<parallel>, #tpu.dimension_semantics<arbitrary>], iteration_bounds = array<i64: 2, 1>, scalar_prefetch = 0 : i64, scratch_operands = 1 : i64, tpu.core_type = #tpu.core_type<tc>, window_params = [{transform_indices = @transform_0, window_bounds = array<i64: 1, 256, 128>}, {pipeline_mode = #tpu.pipeline_mode<synchronous>, transform_indices = @transform_1, window_bounds = array<i64: 128, 8>}, {pipeline_mode = #tpu.pipeline_mode<synchronous>, transform_indices = @transform_2, window_bounds = array<i64: 1, 8>}, {pipeline_mode = #tpu.pipeline_mode<synchronous>, transform_indices = @transform_3, window_bounds = array<i64: 8, 128>}, {pipeline_mode = #tpu.pipeline_mode<synchronous>, transform_indices = @transform_4, window_bounds = array<i64: 1, 128>}, {transform_indices = @transform_5, window_bounds = array<i64: 1, 1, 128>}]} {
    %c0_i32 = arith.constant 0 : i32
    %0 = arith.cmpi eq, %arg1, %c0_i32 : i32
    %1 = arith.extui %0 : i1 to i32
    %c0_i32_0 = arith.constant 0 : i32
    %2 = arith.cmpi ne, %1, %c0_i32_0 : i32
    scf.if %2 {
      %cst_27 = arith.constant 0.000000e+00 : f32
      %37 = vector.broadcast %cst_27 : f32 to vector<1x128xf32>
      %c0_28 = arith.constant 0 : index
      %c0_29 = arith.constant 0 : index
      %38 = vector.load %arg8[%c0_28, %c0_29] : memref<1x128xf32, #tpu.memory_space<vmem>>, vector<1x128xf32>
      tpu.vector_store %arg8[%c0_28, %c0_29], %37 {strides = array<i32>} : memref<1x128xf32, #tpu.memory_space<vmem>>, vector<1x128xf32>,
    } else {
    }
    %c0 = arith.constant 0 : index
    %c0_1 = arith.constant 0 : index
    %3 = vector.load %arg8[%c0, %c0_1] : memref<1x128xf32, #tpu.memory_space<vmem>>, vector<1x128xf32>
    %c0_2 = arith.constant 0 : index
    %c0_3 = arith.constant 0 : index
    %c0_4 = arith.constant 0 : index
    %4 = vector.load %arg2[%c0_2, %c0_3, %c0_4] : memref<1x256x128xf32, #tpu.memory_space<vmem>>, vector<1x256x128xf32>
    %5 = vector.shape_cast %4 : vector<1x256x128xf32> to vector<256x128xf32>
    %cst = arith.constant dense<0.000000e+00> : vector<128xf32>
    %6 = vector.multi_reduction <add>, %5, %cst [0] : vector<256x128xf32> to vector<128xf32>
    %7 = vector.shape_cast %6 : vector<128xf32> to vector<1x128xf32>
    %8 = arith.addf %3, %7 : vector<1x128xf32>
    %c0_5 = arith.constant 0 : index
    %c0_6 = arith.constant 0 : index
    %9 = vector.load %arg8[%c0_5, %c0_6] : memref<1x128xf32, #tpu.memory_space<vmem>>, vector<1x128xf32>
    tpu.vector_store %arg8[%c0_5, %c0_6], %8 {strides = array<i32>} : memref<1x128xf32, #tpu.memory_space<vmem>>, vector<1x128xf32>,
    %c0_7 = arith.constant 0 : index
    %c0_8 = arith.constant 0 : index
    %10 = vector.load %arg8[%c0_7, %c0_8] : memref<1x128xf32, #tpu.memory_space<vmem>>, vector<1x128xf32>
    %cst_9 = arith.constant 3.906250e-03 : f32
    %11 = vector.broadcast %cst_9 : f32 to vector<1x128xf32>
    %12 = arith.mulf %10, %11 : vector<1x128xf32>
    %c0_10 = arith.constant 0 : index
    %c0_11 = arith.constant 0 : index
    %13 = vector.load %arg3[%c0_10, %c0_11] : memref<128x8xf32, #tpu.memory_space<vmem>>, vector<128x8xf32>
    %cst_12 = arith.constant dense<0.000000e+00> : vector<1x8xf32>
    %14 = tpu.matmul %12, %13, %cst_12 {dimension_numbers = #tpu.dot_dimension_numbers<[1], [0], [0], [1], [0, 0, 1, 1], [], []>} : vector<1x128xf32>, vector<128x8xf32>, vector<1x8xf32> -> vector<1x8xf32>
    %c0_13 = arith.constant 0 : index
    %c0_14 = arith.constant 0 : index
    %15 = vector.load %arg4[%c0_13, %c0_14] : memref<1x8xf32, #tpu.memory_space<vmem>>, vector<1x8xf32>
    %16 = arith.addf %14, %15 : vector<1x8xf32>
    %cst_15 = arith.constant 0.000000e+00 : f32
    %17 = vector.broadcast %cst_15 : f32 to vector<1x8xf32>
    %18 = arith.subf %17, %16 : vector<1x8xf32>
    %19 = math.exp %18 : vector<1x8xf32>
    %cst_16 = arith.constant 1.000000e+00 : f32
    %20 = vector.broadcast %cst_16 : f32 to vector<1x8xf32>
    %21 = arith.addf %20, %19 : vector<1x8xf32>
    %22 = tpu.reciprocal %21 {approx = true} : vector<1x8xf32> -> vector<1x8xf32>
    %23 = arith.mulf %16, %22 : vector<1x8xf32>
    %c0_17 = arith.constant 0 : index
    %c0_18 = arith.constant 0 : index
    %24 = vector.load %arg5[%c0_17, %c0_18] : memref<8x128xf32, #tpu.memory_space<vmem>>, vector<8x128xf32>
    %cst_19 = arith.constant dense<0.000000e+00> : vector<1x128xf32>
    %25 = tpu.matmul %23, %24, %cst_19 {dimension_numbers = #tpu.dot_dimension_numbers<[1], [0], [0], [1], [0, 0, 1, 1], [], []>} : vector<1x8xf32>, vector<8x128xf32>, vector<1x128xf32> -> vector<1x128xf32>
    %c0_20 = arith.constant 0 : index
    %c0_21 = arith.constant 0 : index
    %26 = vector.load %arg6[%c0_20, %c0_21] : memref<1x128xf32, #tpu.memory_space<vmem>>, vector<1x128xf32>
    %27 = arith.addf %25, %26 : vector<1x128xf32>
    %cst_22 = arith.constant 0.000000e+00 : f32
    %28 = vector.broadcast %cst_22 : f32 to vector<1x128xf32>
    %29 = arith.subf %28, %27 : vector<1x128xf32>
    %30 = math.exp %29 : vector<1x128xf32>
    %cst_23 = arith.constant 1.000000e+00 : f32
    %31 = vector.broadcast %cst_23 : f32 to vector<1x128xf32>
    %32 = arith.addf %31, %30 : vector<1x128xf32>
    %33 = tpu.reciprocal %32 {approx = true} : vector<1x128xf32> -> vector<1x128xf32>
    %c0_24 = arith.constant 0 : index
    %c0_25 = arith.constant 0 : index
    %c0_26 = arith.constant 0 : index
    %34 = vector.load %arg7[%c0_24, %c0_25, %c0_26] : memref<1x1x128xf32, #tpu.memory_space<vmem>>, vector<1x1x128xf32>
    %35 = vector.shape_cast %34 : vector<1x1x128xf32> to vector<1x128xf32>
    %36 = vector.shape_cast %33 : vector<1x128xf32> to vector<1x1x128xf32>
    tpu.vector_store %arg7[%c0_24, %c0_25, %c0_26], %36 {strides = array<i32>} : memref<1x1x128xf32, #tpu.memory_space<vmem>>, vector<1x1x128xf32>,
    return
  }
  func.func @transform_0(%arg0: i32, %arg1: i32) -> (i32, i32, i32) {
    %c0_i32 = arith.constant 0 : i32
    %c0_i32_0 = arith.constant 0 : i32
    return %arg0, %arg1, %c0_i32 : i32, i32, i32
  }
  func.func @transform_1(%arg0: i32, %arg1: i32) -> (i32, i32) {
    %c0_i32 = arith.constant 0 : i32
    %c0_i32_0 = arith.constant 0 : i32
    %c0_i32_1 = arith.constant 0 : i32
    return %c0_i32, %c0_i32_0 : i32, i32
  }
  func.func @transform_2(%arg0: i32, %arg1: i32) -> (i32, i32) {
    %c0_i32 = arith.constant 0 : i32
    %c0_i32_0 = arith.constant 0 : i32
    %c0_i32_1 = arith.constant 0 : i32
    return %c0_i32, %c0_i32_0 : i32, i32
  }
  func.func @transform_3(%arg0: i32, %arg1: i32) -> (i32, i32) {
    %c0_i32 = arith.constant 0 : i32
    %c0_i32_0 = arith.constant 0 : i32
    %c0_i32_1 = arith.constant 0 : i32
    return %c0_i32, %c0_i32_0 : i32, i32
  }
  func.func @transform_4(%arg0: i32, %arg1: i32) -> (i32, i32) {
    %c0_i32 = arith.constant 0 : i32
    %c0_i32_0 = arith.constant 0 : i32
    %c0_i32_1 = arith.constant 0 : i32
    return %c0_i32, %c0_i32_0 : i32, i32
  }
  func.func @transform_5(%arg0: i32, %arg1: i32) -> (i32, i32, i32) {
    %c0_i32 = arith.constant 0 : i32
    %c0_i32_0 = arith.constant 0 : i32
    %c0_i32_1 = arith.constant 0 : i32
    return %arg0, %c0_i32, %c0_i32_0 : i32, i32, i32
  }
}

module attributes {stable_mosaic.version = 11 : i64} {
  func.func @_pw_expand_kernel(%arg0: i32, %arg1: i32, %arg2: memref<1x256x128xf32, #tpu.memory_space<vmem>>, %arg3: memref<1x1x128xf32, #tpu.memory_space<vmem>>, %arg4: memref<128x16xbf16, #tpu.memory_space<vmem>>, %arg5: memref<1x16xf32, #tpu.memory_space<vmem>>, %arg6: memref<1x16xf32, #tpu.memory_space<vmem>>, %arg7: memref<16x128xbf16, #tpu.memory_space<vmem>>, %arg8: memref<1x128xf32, #tpu.memory_space<vmem>>, %arg9: memref<1x128xf32, #tpu.memory_space<vmem>>, %arg10: memref<1x256x128xf32, #tpu.memory_space<vmem>>) attributes {dimension_semantics = [#tpu.dimension_semantics<parallel>, #tpu.dimension_semantics<parallel>], iteration_bounds = array<i64: 2, 1>, scalar_prefetch = 0 : i64, scratch_operands = 0 : i64, tpu.core_type = #tpu.core_type<tc>, window_params = [{transform_indices = @transform_0, window_bounds = array<i64: 1, 256, 128>}, {transform_indices = @transform_1, window_bounds = array<i64: 1, 1, 128>}, {pipeline_mode = #tpu.pipeline_mode<synchronous>, transform_indices = @transform_2, window_bounds = array<i64: 128, 16>}, {pipeline_mode = #tpu.pipeline_mode<synchronous>, transform_indices = @transform_3, window_bounds = array<i64: 1, 16>}, {pipeline_mode = #tpu.pipeline_mode<synchronous>, transform_indices = @transform_4, window_bounds = array<i64: 1, 16>}, {pipeline_mode = #tpu.pipeline_mode<synchronous>, transform_indices = @transform_5, window_bounds = array<i64: 16, 128>}, {pipeline_mode = #tpu.pipeline_mode<synchronous>, transform_indices = @transform_6, window_bounds = array<i64: 1, 128>}, {pipeline_mode = #tpu.pipeline_mode<synchronous>, transform_indices = @transform_7, window_bounds = array<i64: 1, 128>}, {transform_indices = @transform_8, window_bounds = array<i64: 1, 256, 128>}]} {
    %c0 = arith.constant 0 : index
    %c0_0 = arith.constant 0 : index
    %c0_1 = arith.constant 0 : index
    %0 = vector.load %arg2[%c0, %c0_0, %c0_1] : memref<1x256x128xf32, #tpu.memory_space<vmem>>, vector<1x256x128xf32>
    %1 = vector.shape_cast %0 : vector<1x256x128xf32> to vector<256x128xf32>
    %c0_2 = arith.constant 0 : index
    %c0_3 = arith.constant 0 : index
    %c0_4 = arith.constant 0 : index
    %2 = vector.load %arg3[%c0_2, %c0_3, %c0_4] : memref<1x1x128xf32, #tpu.memory_space<vmem>>, vector<1x1x128xf32>
    %3 = vector.shape_cast %2 : vector<1x1x128xf32> to vector<1x128xf32>
    %4 = vector.broadcast %3 : vector<1x128xf32> to vector<256x128xf32>
    %5 = arith.mulf %1, %4 : vector<256x128xf32>
    %6 = arith.truncf %5 : vector<256x128xf32> to vector<256x128xbf16>
    %c0_5 = arith.constant 0 : index
    %c0_6 = arith.constant 0 : index
    %7 = vector.load %arg4[%c0_5, %c0_6] : memref<128x16xbf16, #tpu.memory_space<vmem>>, vector<128x16xbf16>
    %cst = arith.constant dense<0.000000e+00> : vector<256x16xf32>
    %8 = tpu.matmul %6, %7, %cst {dimension_numbers = #tpu.dot_dimension_numbers<[1], [0], [0], [1], [0, 0, 1, 1], [], []>} : vector<256x128xbf16>, vector<128x16xbf16>, vector<256x16xf32> -> vector<256x16xf32>
    %c0_7 = arith.constant 0 : index
    %c0_8 = arith.constant 0 : index
    %9 = vector.load %arg5[%c0_7, %c0_8] : memref<1x16xf32, #tpu.memory_space<vmem>>, vector<1x16xf32>
    %10 = vector.broadcast %9 : vector<1x16xf32> to vector<256x16xf32>
    %11 = arith.mulf %8, %10 : vector<256x16xf32>
    %c0_9 = arith.constant 0 : index
    %c0_10 = arith.constant 0 : index
    %12 = vector.load %arg6[%c0_9, %c0_10] : memref<1x16xf32, #tpu.memory_space<vmem>>, vector<1x16xf32>
    %13 = vector.broadcast %12 : vector<1x16xf32> to vector<256x16xf32>
    %14 = arith.addf %11, %13 : vector<256x16xf32>
    %15 = arith.truncf %14 : vector<256x16xf32> to vector<256x16xbf16>
    %c0_11 = arith.constant 0 : index
    %c0_12 = arith.constant 0 : index
    %16 = vector.load %arg7[%c0_11, %c0_12] : memref<16x128xbf16, #tpu.memory_space<vmem>>, vector<16x128xbf16>
    %cst_13 = arith.constant dense<0.000000e+00> : vector<256x128xf32>
    %17 = tpu.matmul %15, %16, %cst_13 {dimension_numbers = #tpu.dot_dimension_numbers<[1], [0], [0], [1], [0, 0, 1, 1], [], []>} : vector<256x16xbf16>, vector<16x128xbf16>, vector<256x128xf32> -> vector<256x128xf32>
    %c0_14 = arith.constant 0 : index
    %c0_15 = arith.constant 0 : index
    %18 = vector.load %arg8[%c0_14, %c0_15] : memref<1x128xf32, #tpu.memory_space<vmem>>, vector<1x128xf32>
    %19 = vector.broadcast %18 : vector<1x128xf32> to vector<256x128xf32>
    %20 = arith.mulf %17, %19 : vector<256x128xf32>
    %c0_16 = arith.constant 0 : index
    %c0_17 = arith.constant 0 : index
    %21 = vector.load %arg9[%c0_16, %c0_17] : memref<1x128xf32, #tpu.memory_space<vmem>>, vector<1x128xf32>
    %22 = vector.broadcast %21 : vector<1x128xf32> to vector<256x128xf32>
    %23 = arith.addf %20, %22 : vector<256x128xf32>
    %cst_18 = arith.constant 0.000000e+00 : f32
    %24 = vector.broadcast %cst_18 : f32 to vector<256x128xf32>
    %25 = arith.subf %24, %23 : vector<256x128xf32>
    %26 = math.exp %25 : vector<256x128xf32>
    %cst_19 = arith.constant 1.000000e+00 : f32
    %27 = vector.broadcast %cst_19 : f32 to vector<256x128xf32>
    %28 = arith.addf %27, %26 : vector<256x128xf32>
    %29 = tpu.reciprocal %28 {approx = true} : vector<256x128xf32> -> vector<256x128xf32>
    %30 = arith.mulf %23, %29 : vector<256x128xf32>
    %c0_20 = arith.constant 0 : index
    %c0_21 = arith.constant 0 : index
    %c0_22 = arith.constant 0 : index
    %31 = vector.load %arg10[%c0_20, %c0_21, %c0_22] : memref<1x256x128xf32, #tpu.memory_space<vmem>>, vector<1x256x128xf32>
    %32 = vector.shape_cast %31 : vector<1x256x128xf32> to vector<256x128xf32>
    %33 = vector.shape_cast %30 : vector<256x128xf32> to vector<1x256x128xf32>
    tpu.vector_store %arg10[%c0_20, %c0_21, %c0_22], %33 {strides = array<i32>} : memref<1x256x128xf32, #tpu.memory_space<vmem>>, vector<1x256x128xf32>,
    return
  }
  func.func @transform_0(%arg0: i32, %arg1: i32) -> (i32, i32, i32) {
    %c0_i32 = arith.constant 0 : i32
    %c0_i32_0 = arith.constant 0 : i32
    return %arg0, %arg1, %c0_i32 : i32, i32, i32
  }
  func.func @transform_1(%arg0: i32, %arg1: i32) -> (i32, i32, i32) {
    %c0_i32 = arith.constant 0 : i32
    %c0_i32_0 = arith.constant 0 : i32
    %c0_i32_1 = arith.constant 0 : i32
    return %arg0, %c0_i32, %c0_i32_0 : i32, i32, i32
  }
  func.func @transform_2(%arg0: i32, %arg1: i32) -> (i32, i32) {
    %c0_i32 = arith.constant 0 : i32
    %c0_i32_0 = arith.constant 0 : i32
    %c0_i32_1 = arith.constant 0 : i32
    return %c0_i32, %c0_i32_0 : i32, i32
  }
  func.func @transform_3(%arg0: i32, %arg1: i32) -> (i32, i32) {
    %c0_i32 = arith.constant 0 : i32
    %c0_i32_0 = arith.constant 0 : i32
    %c0_i32_1 = arith.constant 0 : i32
    return %c0_i32, %c0_i32_0 : i32, i32
  }
  func.func @transform_4(%arg0: i32, %arg1: i32) -> (i32, i32) {
    %c0_i32 = arith.constant 0 : i32
    %c0_i32_0 = arith.constant 0 : i32
    %c0_i32_1 = arith.constant 0 : i32
    return %c0_i32, %c0_i32_0 : i32, i32
  }
  func.func @transform_5(%arg0: i32, %arg1: i32) -> (i32, i32) {
    %c0_i32 = arith.constant 0 : i32
    %c0_i32_0 = arith.constant 0 : i32
    %c0_i32_1 = arith.constant 0 : i32
    return %c0_i32, %c0_i32_0 : i32, i32
  }
  func.func @transform_6(%arg0: i32, %arg1: i32) -> (i32, i32) {
    %c0_i32 = arith.constant 0 : i32
    %c0_i32_0 = arith.constant 0 : i32
    %c0_i32_1 = arith.constant 0 : i32
    return %c0_i32, %c0_i32_0 : i32, i32
  }
  func.func @transform_7(%arg0: i32, %arg1: i32) -> (i32, i32) {
    %c0_i32 = arith.constant 0 : i32
    %c0_i32_0 = arith.constant 0 : i32
    %c0_i32_1 = arith.constant 0 : i32
    return %c0_i32, %c0_i32_0 : i32, i32
  }
  func.func @transform_8(%arg0: i32, %arg1: i32) -> (i32, i32, i32) {
    %c0_i32 = arith.constant 0 : i32
    %c0_i32_0 = arith.constant 0 : i32
    return %arg0, %arg1, %c0_i32 : i32, i32, i32
  }
}

module attributes {stable_mosaic.version = 11 : i64} {
  func.func @_dwconv_bn_silu_kernel(%arg0: i32, %arg1: memref<1x4x9x9x128xf32, #tpu.memory_space<vmem>>, %arg2: memref<9x128xf32, #tpu.memory_space<vmem>>, %arg3: memref<1x128xf32, #tpu.memory_space<vmem>>, %arg4: memref<1x128xf32, #tpu.memory_space<vmem>>, %arg5: memref<1x8x8x128xf32, #tpu.memory_space<vmem>>) attributes {dimension_semantics = [#tpu.dimension_semantics<parallel>], iteration_bounds = array<i64: 2>, scalar_prefetch = 0 : i64, scratch_operands = 0 : i64, tpu.core_type = #tpu.core_type<tc>, window_params = [{transform_indices = @transform_0, window_bounds = array<i64: 1, 4, 9, 9, 128>}, {pipeline_mode = #tpu.pipeline_mode<synchronous>, transform_indices = @transform_1, window_bounds = array<i64: 9, 128>}, {pipeline_mode = #tpu.pipeline_mode<synchronous>, transform_indices = @transform_2, window_bounds = array<i64: 1, 128>}, {pipeline_mode = #tpu.pipeline_mode<synchronous>, transform_indices = @transform_3, window_bounds = array<i64: 1, 128>}, {transform_indices = @transform_4, window_bounds = array<i64: 1, 8, 8, 128>}]} {
    %c0 = arith.constant 0 : index
    %c0_0 = arith.constant 0 : index
    %c0_1 = arith.constant 0 : index
    %c0_2 = arith.constant 0 : index
    %c0_3 = arith.constant 0 : index
    %0 = vector.load %arg1[%c0, %c0_0, %c0_1, %c0_2, %c0_3] : memref<1x4x9x9x128xf32, #tpu.memory_space<vmem>>, vector<1x1x8x8x128xf32>
    %1 = vector.shape_cast %0 : vector<1x1x8x8x128xf32> to vector<8x8x128xf32>
    %c0_4 = arith.constant 0 : index
    %c0_5 = arith.constant 0 : index
    %2 = vector.load %arg2[%c0_4, %c0_5] : memref<9x128xf32, #tpu.memory_space<vmem>>, vector<1x128xf32>
    %3 = vector.shape_cast %2 : vector<1x128xf32> to vector<128xf32>
    %4 = vector.shape_cast %3 : vector<128xf32> to vector<1x1x128xf32>
    %5 = vector.broadcast %4 : vector<1x1x128xf32> to vector<8x8x128xf32>
    %6 = arith.mulf %1, %5 : vector<8x8x128xf32>
    %c0_6 = arith.constant 0 : index
    %c1 = arith.constant 1 : index
    %c0_7 = arith.constant 0 : index
    %c0_8 = arith.constant 0 : index
    %c0_9 = arith.constant 0 : index
    %7 = vector.load %arg1[%c0_6, %c1, %c0_7, %c0_8, %c0_9] : memref<1x4x9x9x128xf32, #tpu.memory_space<vmem>>, vector<1x1x8x8x128xf32>
    %8 = vector.shape_cast %7 : vector<1x1x8x8x128xf32> to vector<8x8x128xf32>
    %c1_10 = arith.constant 1 : index
    %c0_11 = arith.constant 0 : index
    %9 = vector.load %arg2[%c1_10, %c0_11] : memref<9x128xf32, #tpu.memory_space<vmem>>, vector<1x128xf32>
    %10 = vector.shape_cast %9 : vector<1x128xf32> to vector<128xf32>
    %11 = vector.shape_cast %10 : vector<128xf32> to vector<1x1x128xf32>
    %12 = vector.broadcast %11 : vector<1x1x128xf32> to vector<8x8x128xf32>
    %13 = arith.mulf %8, %12 : vector<8x8x128xf32>
    %14 = arith.addf %6, %13 : vector<8x8x128xf32>
    %c0_12 = arith.constant 0 : index
    %c0_13 = arith.constant 0 : index
    %c0_14 = arith.constant 0 : index
    %c1_15 = arith.constant 1 : index
    %c0_16 = arith.constant 0 : index
    %15 = vector.load %arg1[%c0_12, %c0_13, %c0_14, %c1_15, %c0_16] : memref<1x4x9x9x128xf32, #tpu.memory_space<vmem>>, vector<1x1x8x8x128xf32>
    %16 = vector.shape_cast %15 : vector<1x1x8x8x128xf32> to vector<8x8x128xf32>
    %c2 = arith.constant 2 : index
    %c0_17 = arith.constant 0 : index
    %17 = vector.load %arg2[%c2, %c0_17] : memref<9x128xf32, #tpu.memory_space<vmem>>, vector<1x128xf32>
    %18 = vector.shape_cast %17 : vector<1x128xf32> to vector<128xf32>
    %19 = vector.shape_cast %18 : vector<128xf32> to vector<1x1x128xf32>
    %20 = vector.broadcast %19 : vector<1x1x128xf32> to vector<8x8x128xf32>
    %21 = arith.mulf %16, %20 : vector<8x8x128xf32>
    %22 = arith.addf %14, %21 : vector<8x8x128xf32>
    %c0_18 = arith.constant 0 : index
    %c2_19 = arith.constant 2 : index
    %c0_20 = arith.constant 0 : index
    %c0_21 = arith.constant 0 : index
    %c0_22 = arith.constant 0 : index
    %23 = vector.load %arg1[%c0_18, %c2_19, %c0_20, %c0_21, %c0_22] : memref<1x4x9x9x128xf32, #tpu.memory_space<vmem>>, vector<1x1x8x8x128xf32>
    %24 = vector.shape_cast %23 : vector<1x1x8x8x128xf32> to vector<8x8x128xf32>
    %c3 = arith.constant 3 : index
    %c0_23 = arith.constant 0 : index
    %25 = vector.load %arg2[%c3, %c0_23] : memref<9x128xf32, #tpu.memory_space<vmem>>, vector<1x128xf32>
    %26 = vector.shape_cast %25 : vector<1x128xf32> to vector<128xf32>
    %27 = vector.shape_cast %26 : vector<128xf32> to vector<1x1x128xf32>
    %28 = vector.broadcast %27 : vector<1x1x128xf32> to vector<8x8x128xf32>
    %29 = arith.mulf %24, %28 : vector<8x8x128xf32>
    %30 = arith.addf %22, %29 : vector<8x8x128xf32>
    %c0_24 = arith.constant 0 : index
    %c3_25 = arith.constant 3 : index
    %c0_26 = arith.constant 0 : index
    %c0_27 = arith.constant 0 : index
    %c0_28 = arith.constant 0 : index
    %31 = vector.load %arg1[%c0_24, %c3_25, %c0_26, %c0_27, %c0_28] : memref<1x4x9x9x128xf32, #tpu.memory_space<vmem>>, vector<1x1x8x8x128xf32>
    %32 = vector.shape_cast %31 : vector<1x1x8x8x128xf32> to vector<8x8x128xf32>
    %c4 = arith.constant 4 : index
    %c0_29 = arith.constant 0 : index
    %33 = vector.load %arg2[%c4, %c0_29] : memref<9x128xf32, #tpu.memory_space<vmem>>, vector<1x128xf32>
    %34 = vector.shape_cast %33 : vector<1x128xf32> to vector<128xf32>
    %35 = vector.shape_cast %34 : vector<128xf32> to vector<1x1x128xf32>
    %36 = vector.broadcast %35 : vector<1x1x128xf32> to vector<8x8x128xf32>
    %37 = arith.mulf %32, %36 : vector<8x8x128xf32>
    %38 = arith.addf %30, %37 : vector<8x8x128xf32>
    %c0_30 = arith.constant 0 : index
    %c2_31 = arith.constant 2 : index
    %c0_32 = arith.constant 0 : index
    %c1_33 = arith.constant 1 : index
    %c0_34 = arith.constant 0 : index
    %39 = vector.load %arg1[%c0_30, %c2_31, %c0_32, %c1_33, %c0_34] : memref<1x4x9x9x128xf32, #tpu.memory_space<vmem>>, vector<1x1x8x8x128xf32>
    %40 = vector.shape_cast %39 : vector<1x1x8x8x128xf32> to vector<8x8x128xf32>
    %c5 = arith.constant 5 : index
    %c0_35 = arith.constant 0 : index
    %41 = vector.load %arg2[%c5, %c0_35] : memref<9x128xf32, #tpu.memory_space<vmem>>, vector<1x128xf32>
    %42 = vector.shape_cast %41 : vector<1x128xf32> to vector<128xf32>
    %43 = vector.shape_cast %42 : vector<128xf32> to vector<1x1x128xf32>
    %44 = vector.broadcast %43 : vector<1x1x128xf32> to vector<8x8x128xf32>
    %45 = arith.mulf %40, %44 : vector<8x8x128xf32>
    %46 = arith.addf %38, %45 : vector<8x8x128xf32>
    %c0_36 = arith.constant 0 : index
    %c0_37 = arith.constant 0 : index
    %c1_38 = arith.constant 1 : index
    %c0_39 = arith.constant 0 : index
    %c0_40 = arith.constant 0 : index
    %47 = vector.load %arg1[%c0_36, %c0_37, %c1_38, %c0_39, %c0_40] : memref<1x4x9x9x128xf32, #tpu.memory_space<vmem>>, vector<1x1x8x8x128xf32>
    %48 = vector.shape_cast %47 : vector<1x1x8x8x128xf32> to vector<8x8x128xf32>
    %c6 = arith.constant 6 : index
    %c0_41 = arith.constant 0 : index
    %49 = vector.load %arg2[%c6, %c0_41] : memref<9x128xf32, #tpu.memory_space<vmem>>, vector<1x128xf32>
    %50 = vector.shape_cast %49 : vector<1x128xf32> to vector<128xf32>
    %51 = vector.shape_cast %50 : vector<128xf32> to vector<1x1x128xf32>
    %52 = vector.broadcast %51 : vector<1x1x128xf32> to vector<8x8x128xf32>
    %53 = arith.mulf %48, %52 : vector<8x8x128xf32>
    %54 = arith.addf %46, %53 : vector<8x8x128xf32>
    %c0_42 = arith.constant 0 : index
    %c1_43 = arith.constant 1 : index
    %c1_44 = arith.constant 1 : index
    %c0_45 = arith.constant 0 : index
    %c0_46 = arith.constant 0 : index
    %55 = vector.load %arg1[%c0_42, %c1_43, %c1_44, %c0_45, %c0_46] : memref<1x4x9x9x128xf32, #tpu.memory_space<vmem>>, vector<1x1x8x8x128xf32>
    %56 = vector.shape_cast %55 : vector<1x1x8x8x128xf32> to vector<8x8x128xf32>
    %c7 = arith.constant 7 : index
    %c0_47 = arith.constant 0 : index
    %57 = vector.load %arg2[%c7, %c0_47] : memref<9x128xf32, #tpu.memory_space<vmem>>, vector<1x128xf32>
    %58 = vector.shape_cast %57 : vector<1x128xf32> to vector<128xf32>
    %59 = vector.shape_cast %58 : vector<128xf32> to vector<1x1x128xf32>
    %60 = vector.broadcast %59 : vector<1x1x128xf32> to vector<8x8x128xf32>
    %61 = arith.mulf %56, %60 : vector<8x8x128xf32>
    %62 = arith.addf %54, %61 : vector<8x8x128xf32>
    %c0_48 = arith.constant 0 : index
    %c0_49 = arith.constant 0 : index
    %c1_50 = arith.constant 1 : index
    %c1_51 = arith.constant 1 : index
    %c0_52 = arith.constant 0 : index
    %63 = vector.load %arg1[%c0_48, %c0_49, %c1_50, %c1_51, %c0_52] : memref<1x4x9x9x128xf32, #tpu.memory_space<vmem>>, vector<1x1x8x8x128xf32>
    %64 = vector.shape_cast %63 : vector<1x1x8x8x128xf32> to vector<8x8x128xf32>
    %c8 = arith.constant 8 : index
    %c0_53 = arith.constant 0 : index
    %65 = vector.load %arg2[%c8, %c0_53] : memref<9x128xf32, #tpu.memory_space<vmem>>, vector<1x128xf32>
    %66 = vector.shape_cast %65 : vector<1x128xf32> to vector<128xf32>
    %67 = vector.shape_cast %66 : vector<128xf32> to vector<1x1x128xf32>
    %68 = vector.broadcast %67 : vector<1x1x128xf32> to vector<8x8x128xf32>
    %69 = arith.mulf %64, %68 : vector<8x8x128xf32>
    %70 = arith.addf %62, %69 : vector<8x8x128xf32>
    %c0_54 = arith.constant 0 : index
    %c0_55 = arith.constant 0 : index
    %71 = vector.load %arg3[%c0_54, %c0_55] : memref<1x128xf32, #tpu.memory_space<vmem>>, vector<1x128xf32>
    %72 = vector.shape_cast %71 : vector<1x128xf32> to vector<128xf32>
    %73 = vector.shape_cast %72 : vector<128xf32> to vector<1x1x128xf32>
    %74 = vector.broadcast %73 : vector<1x1x128xf32> to vector<8x8x128xf32>
    %75 = arith.mulf %70, %74 : vector<8x8x128xf32>
    %c0_56 = arith.constant 0 : index
    %c0_57 = arith.constant 0 : index
    %76 = vector.load %arg4[%c0_56, %c0_57] : memref<1x128xf32, #tpu.memory_space<vmem>>, vector<1x128xf32>
    %77 = vector.shape_cast %76 : vector<1x128xf32> to vector<128xf32>
    %78 = vector.shape_cast %77 : vector<128xf32> to vector<1x1x128xf32>
    %79 = vector.broadcast %78 : vector<1x1x128xf32> to vector<8x8x128xf32>
    %80 = arith.addf %75, %79 : vector<8x8x128xf32>
    %cst = arith.constant 0.000000e+00 : f32
    %81 = vector.broadcast %cst : f32 to vector<8x8x128xf32>
    %82 = arith.subf %81, %80 : vector<8x8x128xf32>
    %83 = math.exp %82 : vector<8x8x128xf32>
    %cst_58 = arith.constant 1.000000e+00 : f32
    %84 = vector.broadcast %cst_58 : f32 to vector<8x8x128xf32>
    %85 = arith.addf %84, %83 : vector<8x8x128xf32>
    %86 = tpu.reciprocal %85 {approx = true} : vector<8x8x128xf32> -> vector<8x8x128xf32>
    %87 = arith.mulf %80, %86 : vector<8x8x128xf32>
    %c0_59 = arith.constant 0 : index
    %c0_60 = arith.constant 0 : index
    %c0_61 = arith.constant 0 : index
    %c0_62 = arith.constant 0 : index
    %88 = vector.load %arg5[%c0_59, %c0_60, %c0_61, %c0_62] : memref<1x8x8x128xf32, #tpu.memory_space<vmem>>, vector<1x8x8x128xf32>
    %89 = vector.shape_cast %88 : vector<1x8x8x128xf32> to vector<8x8x128xf32>
    %90 = vector.shape_cast %87 : vector<8x8x128xf32> to vector<1x8x8x128xf32>
    tpu.vector_store %arg5[%c0_59, %c0_60, %c0_61, %c0_62], %90 {strides = array<i32>} : memref<1x8x8x128xf32, #tpu.memory_space<vmem>>, vector<1x8x8x128xf32>,
    return
  }
  func.func @transform_0(%arg0: i32) -> (i32, i32, i32, i32, i32) {
    %c0_i32 = arith.constant 0 : i32
    %c0_i32_0 = arith.constant 0 : i32
    %c0_i32_1 = arith.constant 0 : i32
    %c0_i32_2 = arith.constant 0 : i32
    %c0_i32_3 = arith.constant 0 : i32
    return %arg0, %c0_i32, %c0_i32_0, %c0_i32_1, %c0_i32_2 : i32, i32, i32, i32, i32
  }
  func.func @transform_1(%arg0: i32) -> (i32, i32) {
    %c0_i32 = arith.constant 0 : i32
    %c0_i32_0 = arith.constant 0 : i32
    %c0_i32_1 = arith.constant 0 : i32
    return %c0_i32, %c0_i32_0 : i32, i32
  }
  func.func @transform_2(%arg0: i32) -> (i32, i32) {
    %c0_i32 = arith.constant 0 : i32
    %c0_i32_0 = arith.constant 0 : i32
    %c0_i32_1 = arith.constant 0 : i32
    return %c0_i32, %c0_i32_0 : i32, i32
  }
  func.func @transform_3(%arg0: i32) -> (i32, i32) {
    %c0_i32 = arith.constant 0 : i32
    %c0_i32_0 = arith.constant 0 : i32
    %c0_i32_1 = arith.constant 0 : i32
    return %c0_i32, %c0_i32_0 : i32, i32
  }
  func.func @transform_4(%arg0: i32) -> (i32, i32, i32, i32) {
    %c0_i32 = arith.constant 0 : i32
    %c0_i32_0 = arith.constant 0 : i32
    %c0_i32_1 = arith.constant 0 : i32
    %c0_i32_2 = arith.constant 0 : i32
    return %arg0, %c0_i32, %c0_i32_0, %c0_i32_1 : i32, i32, i32, i32
  }
}

module attributes {stable_mosaic.version = 11 : i64} {
  func.func @_se_kernel(%arg0: i32, %arg1: i32, %arg2: memref<1x64x128xf32, #tpu.memory_space<vmem>>, %arg3: memref<128x4xf32, #tpu.memory_space<vmem>>, %arg4: memref<1x4xf32, #tpu.memory_space<vmem>>, %arg5: memref<4x128xf32, #tpu.memory_space<vmem>>, %arg6: memref<1x128xf32, #tpu.memory_space<vmem>>, %arg7: memref<1x1x128xf32, #tpu.memory_space<vmem>>, %arg8: memref<1x128xf32, #tpu.memory_space<vmem>>) attributes {dimension_semantics = [#tpu.dimension_semantics<parallel>, #tpu.dimension_semantics<arbitrary>], iteration_bounds = array<i64: 2, 1>, scalar_prefetch = 0 : i64, scratch_operands = 1 : i64, tpu.core_type = #tpu.core_type<tc>, window_params = [{transform_indices = @transform_0, window_bounds = array<i64: 1, 64, 128>}, {pipeline_mode = #tpu.pipeline_mode<synchronous>, transform_indices = @transform_1, window_bounds = array<i64: 128, 4>}, {pipeline_mode = #tpu.pipeline_mode<synchronous>, transform_indices = @transform_2, window_bounds = array<i64: 1, 4>}, {pipeline_mode = #tpu.pipeline_mode<synchronous>, transform_indices = @transform_3, window_bounds = array<i64: 4, 128>}, {pipeline_mode = #tpu.pipeline_mode<synchronous>, transform_indices = @transform_4, window_bounds = array<i64: 1, 128>}, {transform_indices = @transform_5, window_bounds = array<i64: 1, 1, 128>}]} {
    %c0_i32 = arith.constant 0 : i32
    %0 = arith.cmpi eq, %arg1, %c0_i32 : i32
    %1 = arith.extui %0 : i1 to i32
    %c0_i32_0 = arith.constant 0 : i32
    %2 = arith.cmpi ne, %1, %c0_i32_0 : i32
    scf.if %2 {
      %cst_27 = arith.constant 0.000000e+00 : f32
      %37 = vector.broadcast %cst_27 : f32 to vector<1x128xf32>
      %c0_28 = arith.constant 0 : index
      %c0_29 = arith.constant 0 : index
      %38 = vector.load %arg8[%c0_28, %c0_29] : memref<1x128xf32, #tpu.memory_space<vmem>>, vector<1x128xf32>
      tpu.vector_store %arg8[%c0_28, %c0_29], %37 {strides = array<i32>} : memref<1x128xf32, #tpu.memory_space<vmem>>, vector<1x128xf32>,
    } else {
    }
    %c0 = arith.constant 0 : index
    %c0_1 = arith.constant 0 : index
    %3 = vector.load %arg8[%c0, %c0_1] : memref<1x128xf32, #tpu.memory_space<vmem>>, vector<1x128xf32>
    %c0_2 = arith.constant 0 : index
    %c0_3 = arith.constant 0 : index
    %c0_4 = arith.constant 0 : index
    %4 = vector.load %arg2[%c0_2, %c0_3, %c0_4] : memref<1x64x128xf32, #tpu.memory_space<vmem>>, vector<1x64x128xf32>
    %5 = vector.shape_cast %4 : vector<1x64x128xf32> to vector<64x128xf32>
    %cst = arith.constant dense<0.000000e+00> : vector<128xf32>
    %6 = vector.multi_reduction <add>, %5, %cst [0] : vector<64x128xf32> to vector<128xf32>
    %7 = vector.shape_cast %6 : vector<128xf32> to vector<1x128xf32>
    %8 = arith.addf %3, %7 : vector<1x128xf32>
    %c0_5 = arith.constant 0 : index
    %c0_6 = arith.constant 0 : index
    %9 = vector.load %arg8[%c0_5, %c0_6] : memref<1x128xf32, #tpu.memory_space<vmem>>, vector<1x128xf32>
    tpu.vector_store %arg8[%c0_5, %c0_6], %8 {strides = array<i32>} : memref<1x128xf32, #tpu.memory_space<vmem>>, vector<1x128xf32>,
    %c0_7 = arith.constant 0 : index
    %c0_8 = arith.constant 0 : index
    %10 = vector.load %arg8[%c0_7, %c0_8] : memref<1x128xf32, #tpu.memory_space<vmem>>, vector<1x128xf32>
    %cst_9 = arith.constant 1.562500e-02 : f32
    %11 = vector.broadcast %cst_9 : f32 to vector<1x128xf32>
    %12 = arith.mulf %10, %11 : vector<1x128xf32>
    %c0_10 = arith.constant 0 : index
    %c0_11 = arith.constant 0 : index
    %13 = vector.load %arg3[%c0_10, %c0_11] : memref<128x4xf32, #tpu.memory_space<vmem>>, vector<128x4xf32>
    %cst_12 = arith.constant dense<0.000000e+00> : vector<1x4xf32>
    %14 = tpu.matmul %12, %13, %cst_12 {dimension_numbers = #tpu.dot_dimension_numbers<[1], [0], [0], [1], [0, 0, 1, 1], [], []>} : vector<1x128xf32>, vector<128x4xf32>, vector<1x4xf32> -> vector<1x4xf32>
    %c0_13 = arith.constant 0 : index
    %c0_14 = arith.constant 0 : index
    %15 = vector.load %arg4[%c0_13, %c0_14] : memref<1x4xf32, #tpu.memory_space<vmem>>, vector<1x4xf32>
    %16 = arith.addf %14, %15 : vector<1x4xf32>
    %cst_15 = arith.constant 0.000000e+00 : f32
    %17 = vector.broadcast %cst_15 : f32 to vector<1x4xf32>
    %18 = arith.subf %17, %16 : vector<1x4xf32>
    %19 = math.exp %18 : vector<1x4xf32>
    %cst_16 = arith.constant 1.000000e+00 : f32
    %20 = vector.broadcast %cst_16 : f32 to vector<1x4xf32>
    %21 = arith.addf %20, %19 : vector<1x4xf32>
    %22 = tpu.reciprocal %21 {approx = true} : vector<1x4xf32> -> vector<1x4xf32>
    %23 = arith.mulf %16, %22 : vector<1x4xf32>
    %c0_17 = arith.constant 0 : index
    %c0_18 = arith.constant 0 : index
    %24 = vector.load %arg5[%c0_17, %c0_18] : memref<4x128xf32, #tpu.memory_space<vmem>>, vector<4x128xf32>
    %cst_19 = arith.constant dense<0.000000e+00> : vector<1x128xf32>
    %25 = tpu.matmul %23, %24, %cst_19 {dimension_numbers = #tpu.dot_dimension_numbers<[1], [0], [0], [1], [0, 0, 1, 1], [], []>} : vector<1x4xf32>, vector<4x128xf32>, vector<1x128xf32> -> vector<1x128xf32>
    %c0_20 = arith.constant 0 : index
    %c0_21 = arith.constant 0 : index
    %26 = vector.load %arg6[%c0_20, %c0_21] : memref<1x128xf32, #tpu.memory_space<vmem>>, vector<1x128xf32>
    %27 = arith.addf %25, %26 : vector<1x128xf32>
    %cst_22 = arith.constant 0.000000e+00 : f32
    %28 = vector.broadcast %cst_22 : f32 to vector<1x128xf32>
    %29 = arith.subf %28, %27 : vector<1x128xf32>
    %30 = math.exp %29 : vector<1x128xf32>
    %cst_23 = arith.constant 1.000000e+00 : f32
    %31 = vector.broadcast %cst_23 : f32 to vector<1x128xf32>
    %32 = arith.addf %31, %30 : vector<1x128xf32>
    %33 = tpu.reciprocal %32 {approx = true} : vector<1x128xf32> -> vector<1x128xf32>
    %c0_24 = arith.constant 0 : index
    %c0_25 = arith.constant 0 : index
    %c0_26 = arith.constant 0 : index
    %34 = vector.load %arg7[%c0_24, %c0_25, %c0_26] : memref<1x1x128xf32, #tpu.memory_space<vmem>>, vector<1x1x128xf32>
    %35 = vector.shape_cast %34 : vector<1x1x128xf32> to vector<1x128xf32>
    %36 = vector.shape_cast %33 : vector<1x128xf32> to vector<1x1x128xf32>
    tpu.vector_store %arg7[%c0_24, %c0_25, %c0_26], %36 {strides = array<i32>} : memref<1x1x128xf32, #tpu.memory_space<vmem>>, vector<1x1x128xf32>,
    return
  }
  func.func @transform_0(%arg0: i32, %arg1: i32) -> (i32, i32, i32) {
    %c0_i32 = arith.constant 0 : i32
    %c0_i32_0 = arith.constant 0 : i32
    return %arg0, %arg1, %c0_i32 : i32, i32, i32
  }
  func.func @transform_1(%arg0: i32, %arg1: i32) -> (i32, i32) {
    %c0_i32 = arith.constant 0 : i32
    %c0_i32_0 = arith.constant 0 : i32
    %c0_i32_1 = arith.constant 0 : i32
    return %c0_i32, %c0_i32_0 : i32, i32
  }
  func.func @transform_2(%arg0: i32, %arg1: i32) -> (i32, i32) {
    %c0_i32 = arith.constant 0 : i32
    %c0_i32_0 = arith.constant 0 : i32
    %c0_i32_1 = arith.constant 0 : i32
    return %c0_i32, %c0_i32_0 : i32, i32
  }
  func.func @transform_3(%arg0: i32, %arg1: i32) -> (i32, i32) {
    %c0_i32 = arith.constant 0 : i32
    %c0_i32_0 = arith.constant 0 : i32
    %c0_i32_1 = arith.constant 0 : i32
    return %c0_i32, %c0_i32_0 : i32, i32
  }
  func.func @transform_4(%arg0: i32, %arg1: i32) -> (i32, i32) {
    %c0_i32 = arith.constant 0 : i32
    %c0_i32_0 = arith.constant 0 : i32
    %c0_i32_1 = arith.constant 0 : i32
    return %c0_i32, %c0_i32_0 : i32, i32
  }
  func.func @transform_5(%arg0: i32, %arg1: i32) -> (i32, i32, i32) {
    %c0_i32 = arith.constant 0 : i32
    %c0_i32_0 = arith.constant 0 : i32
    %c0_i32_1 = arith.constant 0 : i32
    return %arg0, %c0_i32, %c0_i32_0 : i32, i32, i32
  }
}

module attributes {stable_mosaic.version = 11 : i64} {
  func.func @_pw_head_gap_kernel(%arg0: i32, %arg1: i32, %arg2: memref<1x64x128xf32, #tpu.memory_space<vmem>>, %arg3: memref<1x1x128xf32, #tpu.memory_space<vmem>>, %arg4: memref<128x24xbf16, #tpu.memory_space<vmem>>, %arg5: memref<1x24xf32, #tpu.memory_space<vmem>>, %arg6: memref<1x24xf32, #tpu.memory_space<vmem>>, %arg7: memref<24x1280xbf16, #tpu.memory_space<vmem>>, %arg8: memref<1x1280xf32, #tpu.memory_space<vmem>>, %arg9: memref<1x1280xf32, #tpu.memory_space<vmem>>, %arg10: memref<1x1x1280xf32, #tpu.memory_space<vmem>>, %arg11: memref<1x1280xf32, #tpu.memory_space<vmem>>) attributes {dimension_semantics = [#tpu.dimension_semantics<parallel>, #tpu.dimension_semantics<arbitrary>], iteration_bounds = array<i64: 2, 1>, scalar_prefetch = 0 : i64, scratch_operands = 1 : i64, tpu.core_type = #tpu.core_type<tc>, window_params = [{transform_indices = @transform_0, window_bounds = array<i64: 1, 64, 128>}, {transform_indices = @transform_1, window_bounds = array<i64: 1, 1, 128>}, {pipeline_mode = #tpu.pipeline_mode<synchronous>, transform_indices = @transform_2, window_bounds = array<i64: 128, 24>}, {pipeline_mode = #tpu.pipeline_mode<synchronous>, transform_indices = @transform_3, window_bounds = array<i64: 1, 24>}, {pipeline_mode = #tpu.pipeline_mode<synchronous>, transform_indices = @transform_4, window_bounds = array<i64: 1, 24>}, {pipeline_mode = #tpu.pipeline_mode<synchronous>, transform_indices = @transform_5, window_bounds = array<i64: 24, 1280>}, {pipeline_mode = #tpu.pipeline_mode<synchronous>, transform_indices = @transform_6, window_bounds = array<i64: 1, 1280>}, {pipeline_mode = #tpu.pipeline_mode<synchronous>, transform_indices = @transform_7, window_bounds = array<i64: 1, 1280>}, {transform_indices = @transform_8, window_bounds = array<i64: 1, 1, 1280>}]} {
    %c0_i32 = arith.constant 0 : i32
    %0 = arith.cmpi eq, %arg1, %c0_i32 : i32
    %1 = arith.extui %0 : i1 to i32
    %c0_i32_0 = arith.constant 0 : i32
    %2 = arith.cmpi ne, %1, %c0_i32_0 : i32
    scf.if %2 {
      %cst_32 = arith.constant 0.000000e+00 : f32
      %45 = vector.broadcast %cst_32 : f32 to vector<1x1280xf32>
      %c0_33 = arith.constant 0 : index
      %c0_34 = arith.constant 0 : index
      %46 = vector.load %arg11[%c0_33, %c0_34] : memref<1x1280xf32, #tpu.memory_space<vmem>>, vector<1x1280xf32>
      tpu.vector_store %arg11[%c0_33, %c0_34], %45 {strides = array<i32>} : memref<1x1280xf32, #tpu.memory_space<vmem>>, vector<1x1280xf32>,
    } else {
    }
    %c0 = arith.constant 0 : index
    %c0_1 = arith.constant 0 : index
    %c0_2 = arith.constant 0 : index
    %3 = vector.load %arg2[%c0, %c0_1, %c0_2] : memref<1x64x128xf32, #tpu.memory_space<vmem>>, vector<1x64x128xf32>
    %4 = vector.shape_cast %3 : vector<1x64x128xf32> to vector<64x128xf32>
    %c0_3 = arith.constant 0 : index
    %c0_4 = arith.constant 0 : index
    %c0_5 = arith.constant 0 : index
    %5 = vector.load %arg3[%c0_3, %c0_4, %c0_5] : memref<1x1x128xf32, #tpu.memory_space<vmem>>, vector<1x1x128xf32>
    %6 = vector.shape_cast %5 : vector<1x1x128xf32> to vector<1x128xf32>
    %7 = vector.broadcast %6 : vector<1x128xf32> to vector<64x128xf32>
    %8 = arith.mulf %4, %7 : vector<64x128xf32>
    %9 = arith.truncf %8 : vector<64x128xf32> to vector<64x128xbf16>
    %c0_6 = arith.constant 0 : index
    %c0_7 = arith.constant 0 : index
    %10 = vector.load %arg4[%c0_6, %c0_7] : memref<128x24xbf16, #tpu.memory_space<vmem>>, vector<128x24xbf16>
    %cst = arith.constant dense<0.000000e+00> : vector<64x24xf32>
    %11 = tpu.matmul %9, %10, %cst {dimension_numbers = #tpu.dot_dimension_numbers<[1], [0], [0], [1], [0, 0, 1, 1], [], []>} : vector<64x128xbf16>, vector<128x24xbf16>, vector<64x24xf32> -> vector<64x24xf32>
    %c0_8 = arith.constant 0 : index
    %c0_9 = arith.constant 0 : index
    %12 = vector.load %arg5[%c0_8, %c0_9] : memref<1x24xf32, #tpu.memory_space<vmem>>, vector<1x24xf32>
    %13 = vector.broadcast %12 : vector<1x24xf32> to vector<64x24xf32>
    %14 = arith.mulf %11, %13 : vector<64x24xf32>
    %c0_10 = arith.constant 0 : index
    %c0_11 = arith.constant 0 : index
    %15 = vector.load %arg6[%c0_10, %c0_11] : memref<1x24xf32, #tpu.memory_space<vmem>>, vector<1x24xf32>
    %16 = vector.broadcast %15 : vector<1x24xf32> to vector<64x24xf32>
    %17 = arith.addf %14, %16 : vector<64x24xf32>
    %18 = arith.truncf %17 : vector<64x24xf32> to vector<64x24xbf16>
    %c0_12 = arith.constant 0 : index
    %c0_13 = arith.constant 0 : index
    %19 = vector.load %arg7[%c0_12, %c0_13] : memref<24x1280xbf16, #tpu.memory_space<vmem>>, vector<24x1280xbf16>
    %cst_14 = arith.constant dense<0.000000e+00> : vector<64x1280xf32>
    %20 = tpu.matmul %18, %19, %cst_14 {dimension_numbers = #tpu.dot_dimension_numbers<[1], [0], [0], [1], [0, 0, 1, 1], [], []>} : vector<64x24xbf16>, vector<24x1280xbf16>, vector<64x1280xf32> -> vector<64x1280xf32>
    %c0_15 = arith.constant 0 : index
    %c0_16 = arith.constant 0 : index
    %21 = vector.load %arg8[%c0_15, %c0_16] : memref<1x1280xf32, #tpu.memory_space<vmem>>, vector<1x1280xf32>
    %22 = vector.broadcast %21 : vector<1x1280xf32> to vector<64x1280xf32>
    %23 = arith.mulf %20, %22 : vector<64x1280xf32>
    %c0_17 = arith.constant 0 : index
    %c0_18 = arith.constant 0 : index
    %24 = vector.load %arg9[%c0_17, %c0_18] : memref<1x1280xf32, #tpu.memory_space<vmem>>, vector<1x1280xf32>
    %25 = vector.broadcast %24 : vector<1x1280xf32> to vector<64x1280xf32>
    %26 = arith.addf %23, %25 : vector<64x1280xf32>
    %cst_19 = arith.constant 0.000000e+00 : f32
    %27 = vector.broadcast %cst_19 : f32 to vector<64x1280xf32>
    %28 = arith.subf %27, %26 : vector<64x1280xf32>
    %29 = math.exp %28 : vector<64x1280xf32>
    %cst_20 = arith.constant 1.000000e+00 : f32
    %30 = vector.broadcast %cst_20 : f32 to vector<64x1280xf32>
    %31 = arith.addf %30, %29 : vector<64x1280xf32>
    %32 = tpu.reciprocal %31 {approx = true} : vector<64x1280xf32> -> vector<64x1280xf32>
    %33 = arith.mulf %26, %32 : vector<64x1280xf32>
    %c0_21 = arith.constant 0 : index
    %c0_22 = arith.constant 0 : index
    %34 = vector.load %arg11[%c0_21, %c0_22] : memref<1x1280xf32, #tpu.memory_space<vmem>>, vector<1x1280xf32>
    %cst_23 = arith.constant dense<0.000000e+00> : vector<1280xf32>
    %35 = vector.multi_reduction <add>, %33, %cst_23 [0] : vector<64x1280xf32> to vector<1280xf32>
    %36 = vector.shape_cast %35 : vector<1280xf32> to vector<1x1280xf32>
    %37 = arith.addf %34, %36 : vector<1x1280xf32>
    %c0_24 = arith.constant 0 : index
    %c0_25 = arith.constant 0 : index
    %38 = vector.load %arg11[%c0_24, %c0_25] : memref<1x1280xf32, #tpu.memory_space<vmem>>, vector<1x1280xf32>
    tpu.vector_store %arg11[%c0_24, %c0_25], %37 {strides = array<i32>} : memref<1x1280xf32, #tpu.memory_space<vmem>>, vector<1x1280xf32>,
    %c0_26 = arith.constant 0 : index
    %c0_27 = arith.constant 0 : index
    %39 = vector.load %arg11[%c0_26, %c0_27] : memref<1x1280xf32, #tpu.memory_space<vmem>>, vector<1x1280xf32>
    %cst_28 = arith.constant 1.562500e-02 : f32
    %40 = vector.broadcast %cst_28 : f32 to vector<1x1280xf32>
    %41 = arith.mulf %39, %40 : vector<1x1280xf32>
    %c0_29 = arith.constant 0 : index
    %c0_30 = arith.constant 0 : index
    %c0_31 = arith.constant 0 : index
    %42 = vector.load %arg10[%c0_29, %c0_30, %c0_31] : memref<1x1x1280xf32, #tpu.memory_space<vmem>>, vector<1x1x1280xf32>
    %43 = vector.shape_cast %42 : vector<1x1x1280xf32> to vector<1x1280xf32>
    %44 = vector.shape_cast %41 : vector<1x1280xf32> to vector<1x1x1280xf32>
    tpu.vector_store %arg10[%c0_29, %c0_30, %c0_31], %44 {strides = array<i32>} : memref<1x1x1280xf32, #tpu.memory_space<vmem>>, vector<1x1x1280xf32>,
    return
  }
  func.func @transform_0(%arg0: i32, %arg1: i32) -> (i32, i32, i32) {
    %c0_i32 = arith.constant 0 : i32
    %c0_i32_0 = arith.constant 0 : i32
    return %arg0, %arg1, %c0_i32 : i32, i32, i32
  }
  func.func @transform_1(%arg0: i32, %arg1: i32) -> (i32, i32, i32) {
    %c0_i32 = arith.constant 0 : i32
    %c0_i32_0 = arith.constant 0 : i32
    %c0_i32_1 = arith.constant 0 : i32
    return %arg0, %c0_i32, %c0_i32_0 : i32, i32, i32
  }
  func.func @transform_2(%arg0: i32, %arg1: i32) -> (i32, i32) {
    %c0_i32 = arith.constant 0 : i32
    %c0_i32_0 = arith.constant 0 : i32
    %c0_i32_1 = arith.constant 0 : i32
    return %c0_i32, %c0_i32_0 : i32, i32
  }
  func.func @transform_3(%arg0: i32, %arg1: i32) -> (i32, i32) {
    %c0_i32 = arith.constant 0 : i32
    %c0_i32_0 = arith.constant 0 : i32
    %c0_i32_1 = arith.constant 0 : i32
    return %c0_i32, %c0_i32_0 : i32, i32
  }
  func.func @transform_4(%arg0: i32, %arg1: i32) -> (i32, i32) {
    %c0_i32 = arith.constant 0 : i32
    %c0_i32_0 = arith.constant 0 : i32
    %c0_i32_1 = arith.constant 0 : i32
    return %c0_i32, %c0_i32_0 : i32, i32
  }
  func.func @transform_5(%arg0: i32, %arg1: i32) -> (i32, i32) {
    %c0_i32 = arith.constant 0 : i32
    %c0_i32_0 = arith.constant 0 : i32
    %c0_i32_1 = arith.constant 0 : i32
    return %c0_i32, %c0_i32_0 : i32, i32
  }
  func.func @transform_6(%arg0: i32, %arg1: i32) -> (i32, i32) {
    %c0_i32 = arith.constant 0 : i32
    %c0_i32_0 = arith.constant 0 : i32
    %c0_i32_1 = arith.constant 0 : i32
    return %c0_i32, %c0_i32_0 : i32, i32
  }
  func.func @transform_7(%arg0: i32, %arg1: i32) -> (i32, i32) {
    %c0_i32 = arith.constant 0 : i32
    %c0_i32_0 = arith.constant 0 : i32
    %c0_i32_1 = arith.constant 0 : i32
    return %c0_i32, %c0_i32_0 : i32, i32
  }
  func.func @transform_8(%arg0: i32, %arg1: i32) -> (i32, i32, i32) {
    %c0_i32 = arith.constant 0 : i32
    %c0_i32_0 = arith.constant 0 : i32
    %c0_i32_1 = arith.constant 0 : i32
    return %arg0, %c0_i32, %c0_i32_0 : i32, i32, i32
  }
}

</mosaic_0001>

<llo_original>
// kernel: image_encoder_forward.9
$region0: #{image_encoder_forward.9}
  #allocation0 [shape = 'u32[]', space=smem, size = 0x4, offset = 0x4, fixed_abs, tag = 'smem constant byte address 0x4 - core index']
  #allocation1 [shape = 'u32[144,128]{1,0:T(1,128)}', space=vmem, size = 0x12000, scoped, tag = 'internal scratch']
  #allocation2 [shape = 'f32[1,128]{1,0:T(1,128)}', space=vmem, size = 0x200, scoped, tag = 'scratch operand']
  %s0 = inlined_call_operand.vmem [shape: f32[2,256,128], index: 0, kind: input, shape index: {}]
  %s1 = inlined_call_operand.vmem [shape: f32[128,8], index: 1, kind: input, shape index: {}]
  %s2 = inlined_call_operand.vmem [shape: f32[1,8], index: 2, kind: input, shape index: {}]
  %s3 = inlined_call_operand.vmem [shape: f32[8,128], index: 3, kind: input, shape index: {}]
  %s4 = inlined_call_operand.vmem [shape: f32[1,128], index: 4, kind: input, shape index: {}]
  %s5 = inlined_call_operand.vmem [shape: f32[2,1,128], index: 5, kind: output, shape index: {}]
  %s6 = sld [smem:[#allocation0]]
  $region57: #{image_encoder_forward.9} parent=0
    _
  %s8 = ssub.s32 1, %s6
  %s9 = scalar_select 0, %s8, %s6
  loop: start=0, step=1, limit=4
  $region2: #{image_encoder_forward.9} parent=0 // loop_pre_header
    _
  $region3: #{image_encoder_forward.9} parent=0 // loop_header
    %s11 = sphi 0, %s15
    %p12 = scmp.ge.s32.totalorder %s11, 4
    %s18 = sphi 0, %s30
    %s19 = sphi 0, %s26
    %s20 = sphi 0, %s18
    %s21 = sphi 0, %s19
    %s22 = sphi 0, %s20
    %s23 = sphi 0, %s21
    %s35 = sphi 0, %s37
    %s38 = sphi 0, %s35
    %s39 = sphi 0, %s38
    %s55 = sphi 0, %s39
    %s59 = sphi 0, %s59
    %s61 = sphi 0, %s59
    %s62 = sphi 0, %s61
    %s76 = sphi 0, %s62
    %s80 = sphi 0, %s80
    %s82 = sphi 0, %s80
    %s83 = sphi 0, %s82
    %s97 = sphi 0, %s83
    %s101 = sphi 0, %s101
    %s103 = sphi 0, %s101
    %s104 = sphi 0, %s103
    %s118 = sphi 0, %s104
    %s122 = sphi 0, %s122
    %s124 = sphi 0, %s122
    %s125 = sphi 0, %s124
    %s139 = sphi 0, %s125
    %s145 = sphi 0, %s147
    %s148 = sphi 0, %s145
    %s149 = sphi 0, %s148
    %s165 = sphi 0, %s149
  $region4: #{image_encoder_forward.9} parent=0 // loop_header_branch
    %14 = sbr.rel (%p12) target = $region8
  $region5: #{image_encoder_forward.9} parent=0 // loop_body
    %s16 = ssub.s32 %s11, 1
    %s17 = ssub.s32 %s11, 2
    %s24 = sadd.s32 1, %s19
    %p25 = scmp.ge.s32.totalorder %s24, 1
    %s26 = scalar_select %p25, 0, %s24
    %s27 = sadd.s32 1, %s18
    %s28 = scalar_select %p25, %s27, %s18
    %p29 = scmp.ge.s32.totalorder %s28, 2
    %s30 = scalar_select %p29, 0, %s28
    %s31 = ssub.s32 %s18, %s30
    %s32 = ssub.s32 %s19, %s26
    %s33 = sor.u32 %s31, %s32
    %p34 = scmp.eq.s32.totalorder %s33, 0
    %s36 = sadd.s32 %s35, 1
    %s37 = scalar_select %p34, %s35, %s36
    %p40 = pneg %p34
    %p41 = scmp.eq.s32.totalorder %s11, 1
    %p42 = por %p40, %p41
    %p43 = scmp.ne.s32.totalorder %s35, %s38
    %p44 = scmp.eq.s32.totalorder %s11, 0
    %p45 = por %p43, %p44
    %p46 = scmp.ne.s32.totalorder %s35, %s38
    %p47 = scmp.eq.s32.totalorder %s16, 1
    %p48 = por %p46, %p47
    %p49 = scmp.ne.s32.totalorder %s38, %s39
    %p50 = scmp.eq.s32.totalorder %s16, 0
    %p51 = por %p49, %p50
    %p52 = scmp.ne.s32.totalorder %s38, %s39
    %p53 = scmp.eq.s32.totalorder %s17, 1
    %p54 = por %p52, %p53
    %p56 = scmp.ne.s32.totalorder %s39, %s55
    %p57 = scmp.eq.s32.totalorder %s17, 0
    %p58 = por %p56, %p57
    %s60 = sadd.s32 %s59, 1
    %p63 = scmp.eq.s32.totalorder %s11, 1
    %p64 = scmp.ne.s32.totalorder %s59, %s61
    %p65 = scmp.eq.s32.totalorder %s11, 0
    %p66 = por %p64, %p65
    %p67 = scmp.ne.s32.totalorder %s59, %s61
    %p68 = scmp.eq.s32.totalorder %s16, 1
    %p69 = por %p67, %p68
    %p70 = scmp.ne.s32.totalorder %s61, %s62
    %p71 = scmp.eq.s32.totalorder %s16, 0
    %p72 = por %p70, %p71
    %p73 = scmp.ne.s32.totalorder %s61, %s62
    %p74 = scmp.eq.s32.totalorder %s17, 1
    %p75 = por %p73, %p74
    %p77 = scmp.ne.s32.totalorder %s62, %s76
    %p78 = scmp.eq.s32.totalorder %s17, 0
    %p79 = por %p77, %p78
    %s81 = sadd.s32 %s80, 1
    %p84 = scmp.eq.s32.totalorder %s11, 1
    %p85 = scmp.ne.s32.totalorder %s80, %s82
    %p86 = scmp.eq.s32.totalorder %s11, 0
    %p87 = por %p85, %p86
    %p88 = scmp.ne.s32.totalorder %s80, %s82
    %p89 = scmp.eq.s32.totalorder %s16, 1
    %p90 = por %p88, %p89
    %p91 = scmp.ne.s32.totalorder %s82, %s83
    %p92 = scmp.eq.s32.totalorder %s16, 0
    %p93 = por %p91, %p92
    %p94 = scmp.ne.s32.totalorder %s82, %s83
    %p95 = scmp.eq.s32.totalorder %s17, 1
    %p96 = por %p94, %p95
    %p98 = scmp.ne.s32.totalorder %s83, %s97
    %p99 = scmp.eq.s32.totalorder %s17, 0
    %p100 = por %p98, %p99
    %s102 = sadd.s32 %s101, 1
    %p105 = scmp.eq.s32.totalorder %s11, 1
    %p106 = scmp.ne.s32.totalorder %s101, %s103
    %p107 = scmp.eq.s32.totalorder %s11, 0
    %p108 = por %p106, %p107
    %p109 = scmp.ne.s32.totalorder %s101, %s103
    %p110 = scmp.eq.s32.totalorder %s16, 1
    %p111 = por %p109, %p110
    %p112 = scmp.ne.s32.totalorder %s103, %s104
    %p113 = scmp.eq.s32.totalorder %s16, 0
    %p114 = por %p112, %p113
    %p115 = scmp.ne.s32.totalorder %s103, %s104
    %p116 = scmp.eq.s32.totalorder %s17, 1
    %p117 = por %p115, %p116
    %p119 = scmp.ne.s32.totalorder %s104, %s118
    %p120 = scmp.eq.s32.totalorder %s17, 0
    %p121 = por %p119, %p120
    %s123 = sadd.s32 %s122, 1
    %p126 = scmp.eq.s32.totalorder %s11, 1
    %p127 = scmp.ne.s32.totalorder %s122, %s124
    %p128 = scmp.eq.s32.totalorder %s11, 0
    %p129 = por %p127, %p128
    %p130 = scmp.ne.s32.totalorder %s122, %s124
    %p131 = scmp.eq.s32.totalorder %s16, 1
    %p132 = por %p130, %p131
    %p133 = scmp.ne.s32.totalorder %s124, %s125
    %p134 = scmp.eq.s32.totalorder %s16, 0
    %p135 = por %p133, %p134
    %p136 = scmp.ne.s32.totalorder %s124, %s125
    %p137 = scmp.eq.s32.totalorder %s17, 1
    %p138 = por %p136, %p137
    %p140 = scmp.ne.s32.totalorder %s125, %s139
    %p141 = scmp.eq.s32.totalorder %s17, 0
    %p142 = por %p140, %p141
    %s143 = ssub.s32 %s18, %s30
    %p144 = scmp.eq.s32.totalorder %s143, 0
    %s146 = sadd.s32 %s145, 1
    %s147 = scalar_select %p144, %s145, %s146
    %p150 = pneg %p144
    %p151 = scmp.eq.s32.totalorder %s11, 1
    %p152 = por %p150, %p151
    %p153 = scmp.ne.s32.totalorder %s145, %s148
    %p154 = scmp.eq.s32.totalorder %s11, 0
    %p155 = por %p153, %p154
    %p156 = scmp.ne.s32.totalorder %s145, %s148
    %p157 = scmp.eq.s32.totalorder %s16, 1
    %p158 = por %p156, %p157
    %p159 = scmp.ne.s32.totalorder %s148, %s149
    %p160 = scmp.eq.s32.totalorder %s16, 0
    %p161 = por %p159, %p160
    %p162 = scmp.ne.s32.totalorder %s148, %s149
    %p163 = scmp.eq.s32.totalorder %s17, 1
    %p164 = por %p162, %p163
    %p166 = scmp.ne.s32.totalorder %s149, %s165
    %p167 = scmp.eq.s32.totalorder %s17, 0
    %p168 = por %p166, %p167
    %p169 = scmp.le.s32.totalorder 1, %s11
    %p170 = scmp.lt.s32.totalorder %s11, 3
    %p171 = pnand %p169, %p170
    %p172 = pneg %p171
    // Predicated region
    $region9: #{image_encoder_forward.9} parent=5 // pred_check
      _
    $region10: #{image_encoder_forward.9} parent=5 // pred_check_branch
      %174 = sbr.rel (%p171) target = $region12
    $region11: #{image_encoder_forward.9} parent=5 // pred_region
      %s175 = ssub.s32 %s11, 1
      // Predicated region
      $region13: #{image_encoder_forward.9} parent=11 // pred_check
        %p176 = pneg %p72
      $region14: #{image_encoder_forward.9} parent=11 // pred_check_branch
        %178 = sbr.rel (%p176) target = $region16
      $region15: #{image_encoder_forward.9} parent=11 // pred_region
        _
      $region16: #{image_encoder_forward.9} parent=11 // pred_fallthru
        _
      // Predicated region
      $region17: #{image_encoder_forward.9} parent=11 // pred_check
        %p179 = pneg %p93
      $region18: #{image_encoder_forward.9} parent=11 // pred_check_branch
        %181 = sbr.rel (%p179) target = $region20
      $region19: #{image_encoder_forward.9} parent=11 // pred_region
        _
      $region20: #{image_encoder_forward.9} parent=11 // pred_fallthru
        _
      // Predicated region
      $region21: #{image_encoder_forward.9} parent=11 // pred_check
        %p182 = pneg %p114
      $region22: #{image_encoder_forward.9} parent=11 // pred_check_branch
        %184 = sbr.rel (%p182) target = $region24
      $region23: #{image_encoder_forward.9} parent=11 // pred_region
        _
      $region24: #{image_encoder_forward.9} parent=11 // pred_fallthru
        _
      // Predicated region
      $region25: #{image_encoder_forward.9} parent=11 // pred_check
        %p185 = pneg %p135
      $region26: #{image_encoder_forward.9} parent=11 // pred_check_branch
        %187 = sbr.rel (%p185) target = $region28
      $region27: #{image_encoder_forward.9} parent=11 // pred_region
        _
      $region28: #{image_encoder_forward.9} parent=11 // pred_fallthru
        _
    $region12: #{image_encoder_forward.9} parent=5 // pred_fallthru
      _
    %p188 = scmp.lt.s32.totalorder %s11, 2
    // Predicated region
    $region29: #{image_encoder_forward.9} parent=5 // pred_check
      %p189 = pneg %p188
    $region30: #{image_encoder_forward.9} parent=5 // pred_check_branch
      %191 = sbr.rel (%p189) target = $region32
    $region31: #{image_encoder_forward.9} parent=5 // pred_region
      // Predicated region
      $region33: #{image_encoder_forward.9} parent=31 // pred_check
        %p192 = pneg %p45
      $region34: #{image_encoder_forward.9} parent=31 // pred_check_branch
        %194 = sbr.rel (%p192) target = $region36
      $region35: #{image_encoder_forward.9} parent=31 // pred_region
        %s195 = smul.u32 32, %s19
        %p196 = scmp.lt.s32.totalorder %s18, 1
        %s197 = scalar_select %p196, %s18, 1
        %p198 = scmp.lt.s32.totalorder %s195, 31
        %s199 = scalar_select %p198, %s195, 31
        %s200 = smul.addr %s197, 32
        %s201 = sadd.s32 %s199, %s200
        %s202 = smul.addr %s201, 8
        %s203 = scalar_lea.vmem %s0, %s202
        %s204 = smul.u32 32, %s19
      $region36: #{image_encoder_forward.9} parent=31 // pred_fallthru
        _
    $region32: #{image_encoder_forward.9} parent=5 // pred_fallthru
      _
    %p205 = scmp.le.s32.totalorder 1, %s11
    %p206 = scmp.lt.s32.totalorder %s11, 3
    %p207 = pnand %p205, %p206
    %p208 = pneg %p207
    // Predicated region
    $region37: #{image_encoder_forward.9} parent=5 // pred_check
      _
    $region38: #{image_encoder_forward.9} parent=5 // pred_check_branch
      %210 = sbr.rel (%p207) target = $region40
    $region39: #{image_encoder_forward.9} parent=5 // pred_region
      %s211 = ssub.s32 %s11, 1
      %s212 = smul.u32 32, %s21
      %p213 = scmp.lt.s32.totalorder %s20, 1
      %s214 = scalar_select %p213, %s20, 1
      %p215 = scmp.lt.s32.totalorder %s212, 31
      %s216 = scalar_select %p215, %s212, 31
      %s217 = smul.addr %s214, 32
      %s218 = sadd.s32 %s216, %s217
      %s219 = smul.addr %s218, 8
      %s220 = scalar_lea.vmem %s0, %s219
      %p221 = pneg %p51
      %p222 = pneg %p48
      %p223 = pneg %p72
      %p224 = pneg %p69
      %p225 = pneg %p93
      %p226 = pneg %p90
      %p227 = pneg %p114
      %p228 = pneg %p111
      %p229 = pneg %p135
      %p230 = pneg %p132
      %p231 = pneg %p161
      %p232 = pneg %p158
      %p233 = scmp.lt.s32.totalorder %s20, 1
      %s234 = scalar_select %p233, %s20, 1
      %s235 = scalar_lea.vmem %s5, %s234
      %s236 = smul.u32 32, %s21
      %p237 = scmp.lt.s32.totalorder %s20, 1
      %s238 = scalar_select %p237, %s20, 1
      %p239 = scmp.lt.s32.totalorder %s236, 31
      %s240 = scalar_select %p239, %s236, 31
      %s241 = smul.addr %s238, 32
      %s242 = sadd.s32 %s240, %s241
      %s243 = smul.addr %s242, 8
      %s244 = scalar_lea.vmem %s0, %s243
      %s245 = smul.u32 32, %s21
      %p246 = scmp.lt.s32.totalorder %s20, 1
      %s247 = scalar_select %p246, %s20, 1
      %s248 = scalar_lea.vmem %s5, %s247
      %p249 = scmp.eq.s32.totalorder %s21, 0
      // Predicated region
      $region41: #{image_encoder_forward.9} parent=39 // pred_check
        %p250 = pneg %p249
      $region42: #{image_encoder_forward.9} parent=39 // pred_check_branch
        %252 = sbr.rel (%p250) target = $region44
      $region43: #{image_encoder_forward.9} parent=39 // pred_region
        %253 = vst [vmem:[#allocation2] sm:$0x1] 0.0
      $region44: #{image_encoder_forward.9} parent=39 // pred_fallthru
        _
      %v254 = vld [vmem:[#allocation2] sm:$0x1]
      %v255 = vld [vmem:[%s244] sm:$0xff]
      %v256 = vld [vmem:[%s244 + $0x8] sm:$0xff]
      %v257 = vld [vmem:[%s244 + $0x10] sm:$0xff]
      %v258 = vld [vmem:[%s244 + $0x18] sm:$0xff]
      %v259 = vld [vmem:[%s244 + $0x20] sm:$0xff]
      %v260 = vld [vmem:[%s244 + $0x28] sm:$0xff]
      %v261 = vld [vmem:[%s244 + $0x30] sm:$0xff]
      %v262 = vld [vmem:[%s244 + $0x38] sm:$0xff]
      %v263 = vld [vmem:[%s244 + $0x40] sm:$0xff]
      %v264 = vld [vmem:[%s244 + $0x48] sm:$0xff]
      %v265 = vld [vmem:[%s244 + $0x50] sm:$0xff]
      %v266 = vld [vmem:[%s244 + $0x58] sm:$0xff]
      %v267 = vld [vmem:[%s244 + $0x60] sm:$0xff]
      %v268 = vld [vmem:[%s244 + $0x68] sm:$0xff]
      %v269 = vld [vmem:[%s244 + $0x70] sm:$0xff]
      %v270 = vld [vmem:[%s244 + $0x78] sm:$0xff]
      %v271 = vld [vmem:[%s244 + $0x80] sm:$0xff]
      %v272 = vld [vmem:[%s244 + $0x88] sm:$0xff]
      %v273 = vld [vmem:[%s244 + $0x90] sm:$0xff]
      %v274 = vld [vmem:[%s244 + $0x98] sm:$0xff]
      %v275 = vld [vmem:[%s244 + $0xa0] sm:$0xff]
      %v276 = vld [vmem:[%s244 + $0xa8] sm:$0xff]
      %v277 = vld [vmem:[%s244 + $0xb0] sm:$0xff]
      %v278 = vld [vmem:[%s244 + $0xb8] sm:$0xff]
      %v279 = vld [vmem:[%s244 + $0xc0] sm:$0xff]
      %v280 = vld [vmem:[%s244 + $0xc8] sm:$0xff]
      %v281 = vld [vmem:[%s244 + $0xd0] sm:$0xff]
      %v282 = vld [vmem:[%s244 + $0xd8] sm:$0xff]
      %v283 = vld [vmem:[%s244 + $0xe0] sm:$0xff]
      %v284 = vld [vmem:[%s244 + $0xe8] sm:$0xff]
      %v285 = vld [vmem:[%s244 + $0xf0] sm:$0xff]
      %v286 = vld [vmem:[%s244 + $0xf8] sm:$0xff]
      %v287 = vadd.f32 %v255, %v256
      %v288 = vadd.f32 %v287, %v257
      %v289 = vadd.f32 %v288, %v258
      %v290 = vadd.f32 %v289, %v259
      %v291 = vadd.f32 %v290, %v260
      %v292 = vadd.f32 %v291, %v261
      %v293 = vadd.f32 %v292, %v262
      %v294 = vadd.f32 %v293, %v263
      %v295 = vadd.f32 %v294, %v264
      %v296 = vadd.f32 %v295, %v265
      %v297 = vadd.f32 %v296, %v266
      %v298 = vadd.f32 %v297, %v267
      %v299 = vadd.f32 %v298, %v268
      %v300 = vadd.f32 %v299, %v269
      %v301 = vadd.f32 %v300, %v270
      %v302 = vadd.f32 %v301, %v271
      %v303 = vadd.f32 %v302, %v272
      %v304 = vadd.f32 %v303, %v273
      %v305 = vadd.f32 %v304, %v274
      %v306 = vadd.f32 %v305, %v275
      %v307 = vadd.f32 %v306, %v276
      %v308 = vadd.f32 %v307, %v277
      %v309 = vadd.f32 %v308, %v278
      %v310 = vadd.f32 %v309, %v279
      %v311 = vadd.f32 %v310, %v280
      %v312 = vadd.f32 %v311, %v281
      %v313 = vadd.f32 %v312, %v282
      %v314 = vadd.f32 %v313, %v283
      %v315 = vadd.f32 %v314, %v284
      %v316 = vadd.f32 %v315, %v285
      %v317 = vadd.f32 %v316, %v286
      %v318 = vrot.slane %v317, 4
      %v319 = vadd.f32 %v317, %v318
      %v320 = vrot.slane %v319, 2
      %v321 = vadd.f32 %v319, %v320
      %v322 = vrot.slane %v321, 1
      %v323 = vadd.f32 %v321, %v322
      %v324 = vadd.f32 %v254, %v323
      %325 = vst [vmem:[#allocation2] sm:$0x1] %v324
      %v326 = vld [vmem:[#allocation2] sm:$0x1]
      %v327 = vmul.f32 %v326, 0.00390625
      %v328 = vld [vmem:[%s1] sm:$0xff]
      %v329 = vld [vmem:[%s1 + $0x8] sm:$0xff]
      %v330 = vld [vmem:[%s1 + $0x10] sm:$0xff]
      %v331 = vld [vmem:[%s1 + $0x18] sm:$0xff]
      %v332 = vld [vmem:[%s1 + $0x20] sm:$0xff]
      %v333 = vld [vmem:[%s1 + $0x28] sm:$0xff]
      %v334 = vld [vmem:[%s1 + $0x30] sm:$0xff]
      %v335 = vld [vmem:[%s1 + $0x38] sm:$0xff]
      %v336 = vld [vmem:[%s1 + $0x40] sm:$0xff]
      %v337 = vld [vmem:[%s1 + $0x48] sm:$0xff]
      %v338 = vld [vmem:[%s1 + $0x50] sm:$0xff]
      %v339 = vld [vmem:[%s1 + $0x58] sm:$0xff]
      %v340 = vld [vmem:[%s1 + $0x60] sm:$0xff]
      %v341 = vld [vmem:[%s1 + $0x68] sm:$0xff]
      %v342 = vld [vmem:[%s1 + $0x70] sm:$0xff]
      %v343 = vld [vmem:[%s1 + $0x78] sm:$0xff]
      %v344 = vld [vmem:[%s2] sm:$0x1]
      %345 = vmatprep.subr.mxu0 0.0
      %346 = vmatpush1.msra.mxu0 %v343
      %347 = vmatprep.subr.mxu0 0.0
      %348 = vmatpush1.msra.mxu0 %v342
      %349 = vmatprep.subr.mxu0 0.0
      %350 = vmatpush1.msra.mxu0 %v341
      %351 = vmatprep.subr.mxu0 0.0
      %352 = vmatpush1.msra.mxu0 %v340
      %353 = vmatprep.subr.mxu0 0.0
      %354 = vmatpush1.msra.mxu0 %v339
      %355 = vmatprep.subr.mxu0 0.0
      %356 = vmatpush1.msra.mxu0 %v338
      %357 = vmatprep.subr.mxu0 0.0
      %358 = vmatpush1.msra.mxu0 %v337
      %359 = vmatprep.subr.mxu0 0.0
      %360 = vmatpush1.msra.mxu0 %v336
      %361 = vmatprep.subr.mxu0 0.0
      %362 = vmatpush1.msra.mxu0 %v335
      %363 = vmatprep.subr.mxu0 0.0
      %364 = vmatpush1.msra.mxu0 %v334
      %365 = vmatprep.subr.mxu0 0.0
      %366 = vmatpush1.msra.mxu0 %v333
      %367 = vmatprep.subr.mxu0 0.0
      %368 = vmatpush1.msra.mxu0 %v332
      %369 = vmatprep.subr.mxu0 0.0
      %370 = vmatpush1.msra.mxu0 %v331
      %371 = vmatprep.subr.mxu0 0.0
      %372 = vmatpush1.msra.mxu0 %v330
      %373 = vmatprep.subr.mxu0 0.0
      %374 = vmatpush1.msra.mxu0 %v329
      %375 = vmatprep.subr.mxu0 0.0
      %376 = vmatpush1.msra.mxu0 %v328
      %377 = vmatprep.subr.mxu0 0.0
      %378 = vmatpush2.msra.mxu0 0.0
      %379 = vmatprep.subr.mxu0 0.0
      %380 = vmatpush2.msra.mxu0 0.0
      %381 = vmatprep.subr.mxu0 0.0
      %382 = vmatpush2.msra.mxu0 0.0
      %383 = vmatprep.subr.mxu0 0.0
      %384 = vmatpush2.msra.mxu0 0.0
      %385 = vmatprep.subr.mxu0 0.0
      %386 = vmatpush2.msra.mxu0 0.0
      %387 = vmatprep.subr.mxu0 0.0
      %388 = vmatpush2.msra.mxu0 0.0
      %389 = vmatprep.subr.mxu0 0.0
      %390 = vmatpush2.msra.mxu0 0.0
      %391 = vmatprep.subr.mxu0 0.0
      %392 = vmatpush2.msra.mxu0 0.0
      %393 = vmatprep.subr.mxu0 0.0
      %394 = vmatpush2.msra.mxu0 0.0
      %395 = vmatprep.subr.mxu0 0.0
      %396 = vmatpush2.msra.mxu0 0.0
      %397 = vmatprep.subr.mxu0 0.0
      %398 = vmatpush2.msra.mxu0 0.0
      %399 = vmatprep.subr.mxu0 0.0
      %400 = vmatpush2.msra.mxu0 0.0
      %401 = vmatprep.subr.mxu0 0.0
      %402 = vmatpush2.msra.mxu0 0.0
      %403 = vmatprep.subr.mxu0 0.0
      %404 = vmatpush2.msra.mxu0 0.0
      %405 = vmatprep.subr.mxu0 0.0
      %406 = vmatpush2.msra.mxu0 0.0
      %407 = vmatprep.subr.mxu0 0.0
      %408 = vmatpush2.msra.mxu0 0.0
      %409 = vmatprep.mubr.f32.mxu0 0.0
      %410 = vmatmul.mubr.f32.gmra.mxu0 %v327
      %v411 = vpop.f32.mrf.mxu0
      %v412 = vadd.f32 %v344, %v411
      %v413 = vpop.f32.mrf.mxu0
      %414 = vdwg.mxu0
      %v415 = vsub.f32 0.0, %v412
      %v416 = vmul.f32 %v415, 1.442695
      %v417 = vpow.pop %v416
      %v418 = vadd.f32 %v417, 1.0
      %v419 = vrcp.pop %v418
      %v420 = vmul.f32 %v412, %v419
      %v421 = vld [vmem:[%s3] sm:$0xff]
      %v422 = vld [vmem:[%s4] sm:$0x1]
      %vm423 = vcmask 64512
      %v425 = vsel %vm423, %v420, 0
      %427 = vmatprep.subr.mxu0 0.0
      %428 = vmatpush1.msra.mxu0 0.0
      %429 = vmatprep.subr.mxu0 0.0
      %430 = vmatpush1.msra.mxu0 0.0
      %431 = vmatprep.subr.mxu0 0.0
      %432 = vmatpush1.msra.mxu0 0.0
      %433 = vmatprep.subr.mxu0 0.0
      %434 = vmatpush1.msra.mxu0 0.0
      %435 = vmatprep.subr.mxu0 0.0
      %436 = vmatpush1.msra.mxu0 0.0
      %437 = vmatprep.subr.mxu0 0.0
      %438 = vmatpush1.msra.mxu0 0.0
      %439 = vmatprep.subr.mxu0 0.0
      %440 = vmatpush1.msra.mxu0 0.0
      %441 = vmatprep.subr.mxu0 0.0
      %442 = vmatpush1.msra.mxu0 0.0
      %443 = vmatprep.subr.mxu0 0.0
      %444 = vmatpush1.msra.mxu0 0.0
      %445 = vmatprep.subr.mxu0 0.0
      %446 = vmatpush1.msra.mxu0 0.0
      %447 = vmatprep.subr.mxu0 0.0
      %448 = vmatpush1.msra.mxu0 0.0
      %449 = vmatprep.subr.mxu0 0.0
      %450 = vmatpush1.msra.mxu0 0.0
      %451 = vmatprep.subr.mxu0 0.0
      %452 = vmatpush1.msra.mxu0 0.0
      %453 = vmatprep.subr.mxu0 0.0
      %454 = vmatpush1.msra.mxu0 0.0
      %455 = vmatprep.subr.mxu0 0.0
      %456 = vmatpush1.msra.mxu0 0.0
      %457 = vmatprep.subr.mxu0 0.0
      %458 = vmatpush1.msra.mxu0 %v421
      %459 = vmatprep.subr.mxu0 0.0
      %460 = vmatpush2.msra.mxu0 0.0
      %461 = vmatprep.subr.mxu0 0.0
      %462 = vmatpush2.msra.mxu0 0.0
      %463 = vmatprep.subr.mxu0 0.0
      %464 = vmatpush2.msra.mxu0 0.0
      %465 = vmatprep.subr.mxu0 0.0
      %466 = vmatpush2.msra.mxu0 0.0
      %467 = vmatprep.subr.mxu0 0.0
      %468 = vmatpush2.msra.mxu0 0.0
      %469 = vmatprep.subr.mxu0 0.0
      %470 = vmatpush2.msra.mxu0 0.0
      %471 = vmatprep.subr.mxu0 0.0
      %472 = vmatpush2.msra.mxu0 0.0
      %473 = vmatprep.subr.mxu0 0.0
      %474 = vmatpush2.msra.mxu0 0.0
      %475 = vmatprep.subr.mxu0 0.0
      %476 = vmatpush2.msra.mxu0 0.0
      %477 = vmatprep.subr.mxu0 0.0
      %478 = vmatpush2.msra.mxu0 0.0
      %479 = vmatprep.subr.mxu0 0.0
      %480 = vmatpush2.msra.mxu0 0.0
      %481 = vmatprep.subr.mxu0 0.0
      %482 = vmatpush2.msra.mxu0 0.0
      %483 = vmatprep.subr.mxu0 0.0
      %484 = vmatpush2.msra.mxu0 0.0
      %485 = vmatprep.subr.mxu0 0.0
      %486 = vmatpush2.msra.mxu0 0.0
      %487 = vmatprep.subr.mxu0 0.0
      %488 = vmatpush2.msra.mxu0 0.0
      %489 = vmatprep.subr.mxu0 0.0
      %490 = vmatpush2.msra.mxu0 0.0
      %491 = vmatprep.mubr.f32.mxu0 0.0
      %492 = vmatmul.mubr.f32.gmra.mxu0 %v425
      %v493 = vpop.f32.mrf.mxu0
      %v494 = vadd.f32 %v422, %v493
      %v495 = vpop.f32.mrf.mxu0
      %496 = vdwg.mxu0
      %v497 = vsub.f32 0.0, %v494
      %v498 = vmul.f32 %v497, 1.442695
      %v499 = vpow.pop %v498
      %v500 = vadd.f32 %v499, 1.0
      %v501 = vrcp.pop %v500
      %502 = vst [vmem:[%s248] sm:$0x1] %v501
      %p503 = scmp.lt.s32.totalorder %s20, 1
      %s504 = scalar_select %p503, %s20, 1
      %s505 = scalar_lea.vmem %s5, %s504
      // Predicated region
      $region45: #{image_encoder_forward.9} parent=39 // pred_check
        %p506 = pneg %p158
      $region46: #{image_encoder_forward.9} parent=39 // pred_check_branch
        %508 = sbr.rel (%p506) target = $region48
      $region47: #{image_encoder_forward.9} parent=39 // pred_region
        _
      $region48: #{image_encoder_forward.9} parent=39 // pred_fallthru
        _
    $region40: #{image_encoder_forward.9} parent=5 // pred_fallthru
      _
    %p509 = scmp.le.s32.totalorder 2, %s11
    // Predicated region
    $region49: #{image_encoder_forward.9} parent=5 // pred_check
      %p510 = pneg %p509
    $region50: #{image_encoder_forward.9} parent=5 // pred_check_branch
      %512 = sbr.rel (%p510) target = $region52
    $region51: #{image_encoder_forward.9} parent=5 // pred_region
      %s513 = ssub.s32 %s11, 2
      // Predicated region
      $region53: #{image_encoder_forward.9} parent=51 // pred_check
        %p514 = pneg %p164
      $region54: #{image_encoder_forward.9} parent=51 // pred_check_branch
        %516 = sbr.rel (%p514) target = $region56
      $region55: #{image_encoder_forward.9} parent=51 // pred_region
        %p517 = scmp.lt.s32.totalorder %s22, 1
        %s518 = scalar_select %p517, %s22, 1
        %s519 = scalar_lea.vmem %s5, %s518
      $region56: #{image_encoder_forward.9} parent=51 // pred_fallthru
        _
    $region52: #{image_encoder_forward.9} parent=5 // pred_fallthru
      _
  $region6: #{image_encoder_forward.9} parent=0 // loop_footer
    %s15 = sadd.s32 1, %s11
  $region7: #{image_encoder_forward.9} parent=0 // loop_footer_branch
    %10 = sbr.rel target = $region3
  $region8: #{image_encoder_forward.9} parent=0 // loop_exit
    _

// kernel: image_encoder_forward.7
$region0: #{image_encoder_forward.7}
  #allocation0 [shape = 'u32[]', space=smem, size = 0x4, offset = 0x4, fixed_abs, tag = 'smem constant byte address 0x4 - core index']
  #allocation1 [shape = 'u32[144,128]{1,0:T(1,128)}', space=vmem, size = 0x12000, scoped, tag = 'internal scratch']
  %s0 = inlined_call_operand.vmem [shape: f32[512,27], index: 0, kind: input, shape index: {}]
  %s1 = inlined_call_operand.vmem [shape: bf16[27,128], index: 1, kind: input, shape index: {}]
  %s2 = inlined_call_operand.vmem [shape: f32[1,128], index: 2, kind: input, shape index: {}]
  %s3 = inlined_call_operand.vmem [shape: f32[1,128], index: 3, kind: input, shape index: {}]
  %s4 = inlined_call_operand.vmem [shape: f32[512,128], index: 4, kind: output, shape index: {}]
  %s5 = sld [smem:[#allocation0]]
  $region26: #{image_encoder_forward.7} parent=0
    _
  %s7 = ssub.s32 1, %s5
  %s8 = scalar_select 0, %s7, %s5
  // Predicated region
  $region2: #{image_encoder_forward.7} parent=0 // pred_check
    _
  $region3: #{image_encoder_forward.7} parent=0 // pred_check_branch
    %10 = sbr.rel (0) target = $region5
  $region4: #{image_encoder_forward.7} parent=0 // pred_region
    _
  $region5: #{image_encoder_forward.7} parent=0 // pred_fallthru
    _
  // Predicated region
  $region6: #{image_encoder_forward.7} parent=0 // pred_check
    _
  $region7: #{image_encoder_forward.7} parent=0 // pred_check_branch
    %12 = sbr.rel (0) target = $region9
  $region8: #{image_encoder_forward.7} parent=0 // pred_region
    _
  $region9: #{image_encoder_forward.7} parent=0 // pred_fallthru
    _
  // Predicated region
  $region10: #{image_encoder_forward.7} parent=0 // pred_check
    _
  $region11: #{image_encoder_forward.7} parent=0 // pred_check_branch
    %14 = sbr.rel (0) target = $region13
  $region12: #{image_encoder_forward.7} parent=0 // pred_region
    _
  $region13: #{image_encoder_forward.7} parent=0 // pred_fallthru
    _
  // Predicated region
  $region14: #{image_encoder_forward.7} parent=0 // pred_check
    _
  $region15: #{image_encoder_forward.7} parent=0 // pred_check_branch
    %16 = sbr.rel (0) target = $region17
  $region16: #{image_encoder_forward.7} parent=0 // pred_region
    _
  $region17: #{image_encoder_forward.7} parent=0 // pred_fallthru
    _
  %v18 = vld [vmem:[%s0] sm:$0xff]
  %v19 = vld [vmem:[%s0 + $0x8] sm:$0xff]
  %v20 = vld [vmem:[%s0 + $0x10] sm:$0xff]
  %v21 = vld [vmem:[%s0 + $0x18] sm:$0xff]
  %v22 = vld [vmem:[%s0 + $0x20] sm:$0xff]
  %v23 = vld [vmem:[%s0 + $0x28] sm:$0xff]
  %v24 = vld [vmem:[%s0 + $0x30] sm:$0xff]
  %v25 = vld [vmem:[%s0 + $0x38] sm:$0xff]
  %v26 = vld [vmem:[%s0 + $0x40] sm:$0xff]
  %v27 = vld [vmem:[%s0 + $0x48] sm:$0xff]
  %v28 = vld [vmem:[%s0 + $0x50] sm:$0xff]
  %v29 = vld [vmem:[%s0 + $0x58] sm:$0xff]
  %v30 = vld [vmem:[%s0 + $0x60] sm:$0xff]
  %v31 = vld [vmem:[%s0 + $0x68] sm:$0xff]
  %v32 = vld [vmem:[%s0 + $0x70] sm:$0xff]
  %v33 = vld [vmem:[%s0 + $0x78] sm:$0xff]
  %v34 = vld [vmem:[%s0 + $0x80] sm:$0xff]
  %v35 = vld [vmem:[%s0 + $0x88] sm:$0xff]
  %v36 = vld [vmem:[%s0 + $0x90] sm:$0xff]
  %v37 = vld [vmem:[%s0 + $0x98] sm:$0xff]
  %v38 = vld [vmem:[%s0 + $0xa0] sm:$0xff]
  %v39 = vld [vmem:[%s0 + $0xa8] sm:$0xff]
  %v40 = vld [vmem:[%s0 + $0xb0] sm:$0xff]
  %v41 = vld [vmem:[%s0 + $0xb8] sm:$0xff]
  %v42 = vld [vmem:[%s0 + $0xc0] sm:$0xff]
  %v43 = vld [vmem:[%s0 + $0xc8] sm:$0xff]
  %v44 = vld [vmem:[%s0 + $0xd0] sm:$0xff]
  %v45 = vld [vmem:[%s0 + $0xd8] sm:$0xff]
  %v46 = vld [vmem:[%s0 + $0xe0] sm:$0xff]
  %v47 = vld [vmem:[%s0 + $0xe8] sm:$0xff]
  %v48 = vld [vmem:[%s0 + $0xf0] sm:$0xff]
  %v49 = vld [vmem:[%s0 + $0xf8] sm:$0xff]
  %v50 = vld [vmem:[%s0 + $0x100] sm:$0xff]
  %v51 = vld [vmem:[%s0 + $0x108] sm:$0xff]
  %v52 = vld [vmem:[%s0 + $0x110] sm:$0xff]
  %v53 = vld [vmem:[%s0 + $0x118] sm:$0xff]
  %v54 = vld [vmem:[%s0 + $0x120] sm:$0xff]
  %v55 = vld [vmem:[%s0 + $0x128] sm:$0xff]
  %v56 = vld [vmem:[%s0 + $0x130] sm:$0xff]
  %v57 = vld [vmem:[%s0 + $0x138] sm:$0xff]
  %v58 = vld [vmem:[%s0 + $0x140] sm:$0xff]
  %v59 = vld [vmem:[%s0 + $0x148] sm:$0xff]
  %v60 = vld [vmem:[%s0 + $0x150] sm:$0xff]
  %v61 = vld [vmem:[%s0 + $0x158] sm:$0xff]
  %v62 = vld [vmem:[%s0 + $0x160] sm:$0xff]
  %v63 = vld [vmem:[%s0 + $0x168] sm:$0xff]
  %v64 = vld [vmem:[%s0 + $0x170] sm:$0xff]
  %v65 = vld [vmem:[%s0 + $0x178] sm:$0xff]
  %v66 = vld [vmem:[%s0 + $0x180] sm:$0xff]
  %v67 = vld [vmem:[%s0 + $0x188] sm:$0xff]
  %v68 = vld [vmem:[%s0 + $0x190] sm:$0xff]
  %v69 = vld [vmem:[%s0 + $0x198] sm:$0xff]
  %v70 = vld [vmem:[%s0 + $0x1a0] sm:$0xff]
  %v71 = vld [vmem:[%s0 + $0x1a8] sm:$0xff]
  %v72 = vld [vmem:[%s0 + $0x1b0] sm:$0xff]
  %v73 = vld [vmem:[%s0 + $0x1b8] sm:$0xff]
  %v74 = vld [vmem:[%s0 + $0x1c0] sm:$0xff]
  %v75 = vld [vmem:[%s0 + $0x1c8] sm:$0xff]
  %v76 = vld [vmem:[%s0 + $0x1d0] sm:$0xff]
  %v77 = vld [vmem:[%s0 + $0x1d8] sm:$0xff]
  %v78 = vld [vmem:[%s0 + $0x1e0] sm:$0xff]
  %v79 = vld [vmem:[%s0 + $0x1e8] sm:$0xff]
  %v80 = vld [vmem:[%s0 + $0x1f0] sm:$0xff]
  %v81 = vld [vmem:[%s0 + $0x1f8] sm:$0xff]
  %v82 = vpack.c.bf16 %v19, %v18
  %v83 = vpack.c.bf16 %v21, %v20
  %v84 = vpack.c.bf16 %v23, %v22
  %v85 = vpack.c.bf16 %v25, %v24
  %v86 = vpack.c.bf16 %v27, %v26
  %v87 = vpack.c.bf16 %v29, %v28
  %v88 = vpack.c.bf16 %v31, %v30
  %v89 = vpack.c.bf16 %v33, %v32
  %v90 = vpack.c.bf16 %v35, %v34
  %v91 = vpack.c.bf16 %v37, %v36
  %v92 = vpack.c.bf16 %v39, %v38
  %v93 = vpack.c.bf16 %v41, %v40
  %v94 = vpack.c.bf16 %v43, %v42
  %v95 = vpack.c.bf16 %v45, %v44
  %v96 = vpack.c.bf16 %v47, %v46
  %v97 = vpack.c.bf16 %v49, %v48
  %v98 = vpack.c.bf16 %v51, %v50
  %v99 = vpack.c.bf16 %v53, %v52
  %v100 = vpack.c.bf16 %v55, %v54
  %v101 = vpack.c.bf16 %v57, %v56
  %v102 = vpack.c.bf16 %v59, %v58
  %v103 = vpack.c.bf16 %v61, %v60
  %v104 = vpack.c.bf16 %v63, %v62
  %v105 = vpack.c.bf16 %v65, %v64
  %v106 = vpack.c.bf16 %v67, %v66
  %v107 = vpack.c.bf16 %v69, %v68
  %v108 = vpack.c.bf16 %v71, %v70
  %v109 = vpack.c.bf16 %v73, %v72
  %v110 = vpack.c.bf16 %v75, %v74
  %v111 = vpack.c.bf16 %v77, %v76
  %v112 = vpack.c.bf16 %v79, %v78
  %v113 = vpack.c.bf16 %v81, %v80
  %v114 = vld [vmem:[%s1] sm:$0xf]
  %v115 = vld [vmem:[%s1 + $0x4] sm:$0xf]
  %v116 = vld [vmem:[%s1 + $0x8] sm:$0xf]
  %v117 = vld [vmem:[%s1 + $0xc] sm:$0x3]
  %v122 = vunpack.c.l.b16 %v114
  %v123 = vunpack.c.l.b16 %v115
  %v124 = vunpack.c.l.b16 %v116
  %v125 = vunpack.c.l.b16 %v117
  %v126 = vpack.c.b16 %v123, %v122
  %v127 = vpack.c.b16 %v125, %v124
  %vm129 = vcmask 220160
  %v131 = vsel %vm129, %v82, 0
  %v134 = vsel %vm129, %v83, 0
  %v137 = vsel %vm129, %v84, 0
  %v140 = vsel %vm129, %v85, 0
  %v143 = vsel %vm129, %v86, 0
  %v146 = vsel %vm129, %v87, 0
  %v149 = vsel %vm129, %v88, 0
  %v152 = vsel %vm129, %v89, 0
  %v155 = vsel %vm129, %v90, 0
  %v158 = vsel %vm129, %v91, 0
  %v161 = vsel %vm129, %v92, 0
  %v164 = vsel %vm129, %v93, 0
  %v167 = vsel %vm129, %v94, 0
  %v170 = vsel %vm129, %v95, 0
  %v173 = vsel %vm129, %v96, 0
  %v176 = vsel %vm129, %v97, 0
  %v179 = vsel %vm129, %v98, 0
  %v182 = vsel %vm129, %v99, 0
  %v185 = vsel %vm129, %v100, 0
  %v188 = vsel %vm129, %v101, 0
  %v191 = vsel %vm129, %v102, 0
  %v194 = vsel %vm129, %v103, 0
  %v197 = vsel %vm129, %v104, 0
  %v200 = vsel %vm129, %v105, 0
  %v203 = vsel %vm129, %v106, 0
  %v206 = vsel %vm129, %v107, 0
  %v209 = vsel %vm129, %v108, 0
  %v212 = vsel %vm129, %v109, 0
  %v215 = vsel %vm129, %v110, 0
  %v218 = vsel %vm129, %v111, 0
  %v221 = vsel %vm129, %v112, 0
  %v224 = vsel %vm129, %v113, 0
  %vm226 = vcmask 1044480
  %vm227 = vcmask 1045504
  %v228 = vsel %vm226, 4294967295, 65535
  %v229 = vsel %vm227, %v228, 0
  %v231 = vand.u32 %v127, %v229
  %233 = vmatprep.subr.bf16.mxu0 0
  %234 = vmatpush1.bf16.msra.mxu0 0
  %235 = vmatprep.subr.bf16.mxu0 0
  %236 = vmatpush1.bf16.msra.mxu0 0
  %237 = vmatprep.subr.bf16.mxu0 0
  %238 = vmatpush1.bf16.msra.mxu0 0
  %239 = vmatprep.subr.bf16.mxu0 0
  %240 = vmatpush1.bf16.msra.mxu0 0
  %241 = vmatprep.subr.bf16.mxu0 0
  %242 = vmatpush1.bf16.msra.mxu0 0
  %243 = vmatprep.subr.bf16.mxu0 0
  %244 = vmatpush1.bf16.msra.mxu0 0
  %245 = vmatprep.subr.bf16.mxu0 0
  %246 = vmatpush1.bf16.msra.mxu0 %v231
  %247 = vmatprep.subr.bf16.mxu0 0
  %248 = vmatpush1.bf16.msra.mxu0 %v126
  %249 = vmatprep.subr.bf16.mxu0 0
  %250 = vmatpush2.bf16.msra.mxu0 0
  %251 = vmatprep.subr.bf16.mxu0 0
  %252 = vmatpush2.bf16.msra.mxu0 0
  %253 = vmatprep.subr.bf16.mxu0 0
  %254 = vmatpush2.bf16.msra.mxu0 0
  %255 = vmatprep.subr.bf16.mxu0 0
  %256 = vmatpush2.bf16.msra.mxu0 0
  %257 = vmatprep.subr.bf16.mxu0 0
  %258 = vmatpush2.bf16.msra.mxu0 0
  %259 = vmatprep.subr.bf16.mxu0 0
  %260 = vmatpush2.bf16.msra.mxu0 0
  %261 = vmatprep.subr.bf16.mxu0 0
  %262 = vmatpush2.bf16.msra.mxu0 0
  %263 = vmatprep.subr.bf16.mxu0 0
  %264 = vmatpush2.bf16.msra.mxu0 0
  %265 = vmatprep.mubr.bf16.mxu0 0
  %266 = vmatmul.mubr.bf16.gmra.mxu0 %v131
  %v267 = vpop.f32.mrf.mxu0
  %v268 = vadd.f32 0.0, %v267
  %v269 = vpop.f32.mrf.mxu0
  %v270 = vpop.f32.mrf.mxu0
  %v271 = vadd.f32 0.0, %v270
  %v272 = vpop.f32.mrf.mxu0
  %273 = vmatprep.mubr.bf16.mxu0 0
  %274 = vmatmul.mubr.bf16.gmra.mxu0 %v134
  %v275 = vpop.f32.mrf.mxu0
  %v276 = vadd.f32 0.0, %v275
  %v277 = vpop.f32.mrf.mxu0
  %v278 = vpop.f32.mrf.mxu0
  %v279 = vadd.f32 0.0, %v278
  %v280 = vpop.f32.mrf.mxu0
  %281 = vmatprep.mubr.bf16.mxu0 0
  %282 = vmatmul.mubr.bf16.gmra.mxu0 %v137
  %v283 = vpop.f32.mrf.mxu0
  %v284 = vadd.f32 0.0, %v283
  %v285 = vpop.f32.mrf.mxu0
  %v286 = vpop.f32.mrf.mxu0
  %v287 = vadd.f32 0.0, %v286
  %v288 = vpop.f32.mrf.mxu0
  %289 = vmatprep.mubr.bf16.mxu0 0
  %290 = vmatmul.mubr.bf16.gmra.mxu0 %v140
  %v291 = vpop.f32.mrf.mxu0
  %v292 = vadd.f32 0.0, %v291
  %v293 = vpop.f32.mrf.mxu0
  %v294 = vpop.f32.mrf.mxu0
  %v295 = vadd.f32 0.0, %v294
  %v296 = vpop.f32.mrf.mxu0
  %297 = vmatprep.mubr.bf16.mxu0 0
  %298 = vmatmul.mubr.bf16.gmra.mxu0 %v143
  %v299 = vpop.f32.mrf.mxu0
  %v300 = vadd.f32 0.0, %v299
  %v301 = vpop.f32.mrf.mxu0
  %v302 = vpop.f32.mrf.mxu0
  %v303 = vadd.f32 0.0, %v302
  %v304 = vpop.f32.mrf.mxu0
  %305 = vmatprep.mubr.bf16.mxu0 0
  %306 = vmatmul.mubr.bf16.gmra.mxu0 %v146
  %v307 = vpop.f32.mrf.mxu0
  %v308 = vadd.f32 0.0, %v307
  %v309 = vpop.f32.mrf.mxu0
  %v310 = vpop.f32.mrf.mxu0
  %v311 = vadd.f32 0.0, %v310
  %v312 = vpop.f32.mrf.mxu0
  %313 = vmatprep.mubr.bf16.mxu0 0
  %314 = vmatmul.mubr.bf16.gmra.mxu0 %v149
  %v315 = vpop.f32.mrf.mxu0
  %v316 = vadd.f32 0.0, %v315
  %v317 = vpop.f32.mrf.mxu0
  %v318 = vpop.f32.mrf.mxu0
  %v319 = vadd.f32 0.0, %v318
  %v320 = vpop.f32.mrf.mxu0
  %321 = vmatprep.mubr.bf16.mxu0 0
  %322 = vmatmul.mubr.bf16.gmra.mxu0 %v152
  %v323 = vpop.f32.mrf.mxu0
  %v324 = vadd.f32 0.0, %v323
  %v325 = vpop.f32.mrf.mxu0
  %v326 = vpop.f32.mrf.mxu0
  %v327 = vadd.f32 0.0, %v326
  %v328 = vpop.f32.mrf.mxu0
  %329 = vmatprep.mubr.bf16.mxu0 0
  %330 = vmatmul.mubr.bf16.gmra.mxu0 %v155
  %v331 = vpop.f32.mrf.mxu0
  %v332 = vadd.f32 0.0, %v331
  %v333 = vpop.f32.mrf.mxu0
  %v334 = vpop.f32.mrf.mxu0
  %v335 = vadd.f32 0.0, %v334
  %v336 = vpop.f32.mrf.mxu0
  %337 = vmatprep.mubr.bf16.mxu0 0
  %338 = vmatmul.mubr.bf16.gmra.mxu0 %v158
  %v339 = vpop.f32.mrf.mxu0
  %v340 = vadd.f32 0.0, %v339
  %v341 = vpop.f32.mrf.mxu0
  %v342 = vpop.f32.mrf.mxu0
  %v343 = vadd.f32 0.0, %v342
  %v344 = vpop.f32.mrf.mxu0
  %345 = vmatprep.mubr.bf16.mxu0 0
  %346 = vmatmul.mubr.bf16.gmra.mxu0 %v161
  %v347 = vpop.f32.mrf.mxu0
  %v348 = vadd.f32 0.0, %v347
  %v349 = vpop.f32.mrf.mxu0
  %v350 = vpop.f32.mrf.mxu0
  %v351 = vadd.f32 0.0, %v350
  %v352 = vpop.f32.mrf.mxu0
  %353 = vmatprep.mubr.bf16.mxu0 0
  %354 = vmatmul.mubr.bf16.gmra.mxu0 %v164
  %v355 = vpop.f32.mrf.mxu0
  %v356 = vadd.f32 0.0, %v355
  %v357 = vpop.f32.mrf.mxu0
  %v358 = vpop.f32.mrf.mxu0
  %v359 = vadd.f32 0.0, %v358
  %v360 = vpop.f32.mrf.mxu0
  %361 = vmatprep.mubr.bf16.mxu0 0
  %362 = vmatmul.mubr.bf16.gmra.mxu0 %v167
  %v363 = vpop.f32.mrf.mxu0
  %v364 = vadd.f32 0.0, %v363
  %v365 = vpop.f32.mrf.mxu0
  %v366 = vpop.f32.mrf.mxu0
  %v367 = vadd.f32 0.0, %v366
  %v368 = vpop.f32.mrf.mxu0
  %369 = vmatprep.mubr.bf16.mxu0 0
  %370 = vmatmul.mubr.bf16.gmra.mxu0 %v170
  %v371 = vpop.f32.mrf.mxu0
  %v372 = vadd.f32 0.0, %v371
  %v373 = vpop.f32.mrf.mxu0
  %v374 = vpop.f32.mrf.mxu0
  %v375 = vadd.f32 0.0, %v374
  %v376 = vpop.f32.mrf.mxu0
  %377 = vmatprep.mubr.bf16.mxu0 0
  %378 = vmatmul.mubr.bf16.gmra.mxu0 %v173
  %v379 = vpop.f32.mrf.mxu0
  %v380 = vadd.f32 0.0, %v379
  %v381 = vpop.f32.mrf.mxu0
  %v382 = vpop.f32.mrf.mxu0
  %v383 = vadd.f32 0.0, %v382
  %v384 = vpop.f32.mrf.mxu0
  %385 = vmatprep.mubr.bf16.mxu0 0
  %386 = vmatmul.mubr.bf16.gmra.mxu0 %v176
  %v387 = vpop.f32.mrf.mxu0
  %v388 = vadd.f32 0.0, %v387
  %v389 = vpop.f32.mrf.mxu0
  %v390 = vpop.f32.mrf.mxu0
  %v391 = vadd.f32 0.0, %v390
  %v392 = vpop.f32.mrf.mxu0
  %393 = vmatprep.mubr.bf16.mxu0 0
  %394 = vmatmul.mubr.bf16.gmra.mxu0 %v179
  %v395 = vpop.f32.mrf.mxu0
  %v396 = vadd.f32 0.0, %v395
  %v397 = vpop.f32.mrf.mxu0
  %v398 = vpop.f32.mrf.mxu0
  %v399 = vadd.f32 0.0, %v398
  %v400 = vpop.f32.mrf.mxu0
  %401 = vmatprep.mubr.bf16.mxu0 0
  %402 = vmatmul.mubr.bf16.gmra.mxu0 %v182
  %v403 = vpop.f32.mrf.mxu0
  %v404 = vadd.f32 0.0, %v403
  %v405 = vpop.f32.mrf.mxu0
  %v406 = vpop.f32.mrf.mxu0
  %v407 = vadd.f32 0.0, %v406
  %v408 = vpop.f32.mrf.mxu0
  %409 = vmatprep.mubr.bf16.mxu0 0
  %410 = vmatmul.mubr.bf16.gmra.mxu0 %v185
  %v411 = vpop.f32.mrf.mxu0
  %v412 = vadd.f32 0.0, %v411
  %v413 = vpop.f32.mrf.mxu0
  %v414 = vpop.f32.mrf.mxu0
  %v415 = vadd.f32 0.0, %v414
  %v416 = vpop.f32.mrf.mxu0
  %417 = vmatprep.mubr.bf16.mxu0 0
  %418 = vmatmul.mubr.bf16.gmra.mxu0 %v188
  %v419 = vpop.f32.mrf.mxu0
  %v420 = vadd.f32 0.0, %v419
  %v421 = vpop.f32.mrf.mxu0
  %v422 = vpop.f32.mrf.mxu0
  %v423 = vadd.f32 0.0, %v422
  %v424 = vpop.f32.mrf.mxu0
  %425 = vmatprep.mubr.bf16.mxu0 0
  %426 = vmatmul.mubr.bf16.gmra.mxu0 %v191
  %v427 = vpop.f32.mrf.mxu0
  %v428 = vadd.f32 0.0, %v427
  %v429 = vpop.f32.mrf.mxu0
  %v430 = vpop.f32.mrf.mxu0
  %v431 = vadd.f32 0.0, %v430
  %v432 = vpop.f32.mrf.mxu0
  %433 = vmatprep.mubr.bf16.mxu0 0
  %434 = vmatmul.mubr.bf16.gmra.mxu0 %v194
  %v435 = vpop.f32.mrf.mxu0
  %v436 = vadd.f32 0.0, %v435
  %v437 = vpop.f32.mrf.mxu0
  %v438 = vpop.f32.mrf.mxu0
  %v439 = vadd.f32 0.0, %v438
  %v440 = vpop.f32.mrf.mxu0
  %441 = vmatprep.mubr.bf16.mxu0 0
  %442 = vmatmul.mubr.bf16.gmra.mxu0 %v197
  %v443 = vpop.f32.mrf.mxu0
  %v444 = vadd.f32 0.0, %v443
  %v445 = vpop.f32.mrf.mxu0
  %v446 = vpop.f32.mrf.mxu0
  %v447 = vadd.f32 0.0, %v446
  %v448 = vpop.f32.mrf.mxu0
  %449 = vmatprep.mubr.bf16.mxu0 0
  %450 = vmatmul.mubr.bf16.gmra.mxu0 %v200
  %v451 = vpop.f32.mrf.mxu0
  %v452 = vadd.f32 0.0, %v451
  %v453 = vpop.f32.mrf.mxu0
  %v454 = vpop.f32.mrf.mxu0
  %v455 = vadd.f32 0.0, %v454
  %v456 = vpop.f32.mrf.mxu0
  %457 = vmatprep.mubr.bf16.mxu0 0
  %458 = vmatmul.mubr.bf16.gmra.mxu0 %v203
  %v459 = vpop.f32.mrf.mxu0
  %v460 = vadd.f32 0.0, %v459
  %v461 = vpop.f32.mrf.mxu0
  %v462 = vpop.f32.mrf.mxu0
  %v463 = vadd.f32 0.0, %v462
  %v464 = vpop.f32.mrf.mxu0
  %465 = vmatprep.mubr.bf16.mxu0 0
  %466 = vmatmul.mubr.bf16.gmra.mxu0 %v206
  %v467 = vpop.f32.mrf.mxu0
  %v468 = vadd.f32 0.0, %v467
  %v469 = vpop.f32.mrf.mxu0
  %v470 = vpop.f32.mrf.mxu0
  %v471 = vadd.f32 0.0, %v470
  %v472 = vpop.f32.mrf.mxu0
  %473 = vmatprep.mubr.bf16.mxu0 0
  %474 = vmatmul.mubr.bf16.gmra.mxu0 %v209
  %v475 = vpop.f32.mrf.mxu0
  %v476 = vadd.f32 0.0, %v475
  %v477 = vpop.f32.mrf.mxu0
  %v478 = vpop.f32.mrf.mxu0
  %v479 = vadd.f32 0.0, %v478
  %v480 = vpop.f32.mrf.mxu0
  %481 = vmatprep.mubr.bf16.mxu0 0
  %482 = vmatmul.mubr.bf16.gmra.mxu0 %v212
  %v483 = vpop.f32.mrf.mxu0
  %v484 = vadd.f32 0.0, %v483
  %v485 = vpop.f32.mrf.mxu0
  %v486 = vpop.f32.mrf.mxu0
  %v487 = vadd.f32 0.0, %v486
  %v488 = vpop.f32.mrf.mxu0
  %489 = vmatprep.mubr.bf16.mxu0 0
  %490 = vmatmul.mubr.bf16.gmra.mxu0 %v215
  %v491 = vpop.f32.mrf.mxu0
  %v492 = vadd.f32 0.0, %v491
  %v493 = vpop.f32.mrf.mxu0
  %v494 = vpop.f32.mrf.mxu0
  %v495 = vadd.f32 0.0, %v494
  %v496 = vpop.f32.mrf.mxu0
  %497 = vmatprep.mubr.bf16.mxu0 0
  %498 = vmatmul.mubr.bf16.gmra.mxu0 %v218
  %v499 = vpop.f32.mrf.mxu0
  %v500 = vadd.f32 0.0, %v499
  %v501 = vpop.f32.mrf.mxu0
  %v502 = vpop.f32.mrf.mxu0
  %v503 = vadd.f32 0.0, %v502
  %v504 = vpop.f32.mrf.mxu0
  %505 = vmatprep.mubr.bf16.mxu0 0
  %506 = vmatmul.mubr.bf16.gmra.mxu0 %v221
  %v507 = vpop.f32.mrf.mxu0
  %v508 = vadd.f32 0.0, %v507
  %v509 = vpop.f32.mrf.mxu0
  %v510 = vpop.f32.mrf.mxu0
  %v511 = vadd.f32 0.0, %v510
  %v512 = vpop.f32.mrf.mxu0
  %513 = vmatprep.mubr.bf16.mxu0 0
  %514 = vmatmul.mubr.bf16.gmra.mxu0 %v224
  %v515 = vpop.f32.mrf.mxu0
  %v516 = vadd.f32 0.0, %v515
  %v517 = vpop.f32.mrf.mxu0
  %v518 = vpop.f32.mrf.mxu0
  %v519 = vadd.f32 0.0, %v518
  %v520 = vpop.f32.mrf.mxu0
  %521 = vdwg.mxu0
  %v522 = vld [vmem:[%s2] sm:$0x1]
  %v524 = vlaneseq
  %v525 = vshrl.u32 %v524, 7
  %v526 = vsub.s32 0, %v525
  %v527 = vrot.slane %v522, %v526
  %v529 = vmul.f32 %v268, %v527
  %v530 = vmul.f32 %v271, %v527
  %v531 = vmul.f32 %v276, %v527
  %v532 = vmul.f32 %v279, %v527
  %v533 = vmul.f32 %v284, %v527
  %v534 = vmul.f32 %v287, %v527
  %v535 = vmul.f32 %v292, %v527
  %v536 = vmul.f32 %v295, %v527
  %v537 = vmul.f32 %v300, %v527
  %v538 = vmul.f32 %v303, %v527
  %v539 = vmul.f32 %v308, %v527
  %v540 = vmul.f32 %v311, %v527
  %v541 = vmul.f32 %v316, %v527
  %v542 = vmul.f32 %v319, %v527
  %v543 = vmul.f32 %v324, %v527
  %v544 = vmul.f32 %v327, %v527
  %v545 = vmul.f32 %v332, %v527
  %v546 = vmul.f32 %v335, %v527
  %v547 = vmul.f32 %v340, %v527
  %v548 = vmul.f32 %v343, %v527
  %v549 = vmul.f32 %v348, %v527
  %v550 = vmul.f32 %v351, %v527
  %v551 = vmul.f32 %v356, %v527
  %v552 = vmul.f32 %v359, %v527
  %v553 = vmul.f32 %v364, %v527
  %v554 = vmul.f32 %v367, %v527
  %v555 = vmul.f32 %v372, %v527
  %v556 = vmul.f32 %v375, %v527
  %v557 = vmul.f32 %v380, %v527
  %v558 = vmul.f32 %v383, %v527
  %v559 = vmul.f32 %v388, %v527
  %v560 = vmul.f32 %v391, %v527
  %v561 = vmul.f32 %v396, %v527
  %v562 = vmul.f32 %v399, %v527
  %v563 = vmul.f32 %v404, %v527
  %v564 = vmul.f32 %v407, %v527
  %v565 = vmul.f32 %v412, %v527
  %v566 = vmul.f32 %v415, %v527
  %v567 = vmul.f32 %v420, %v527
  %v568 = vmul.f32 %v423, %v527
  %v569 = vmul.f32 %v428, %v527
  %v570 = vmul.f32 %v431, %v527
  %v571 = vmul.f32 %v436, %v527
  %v572 = vmul.f32 %v439, %v527
  %v573 = vmul.f32 %v444, %v527
  %v574 = vmul.f32 %v447, %v527
  %v575 = vmul.f32 %v452, %v527
  %v576 = vmul.f32 %v455, %v527
  %v577 = vmul.f32 %v460, %v527
  %v578 = vmul.f32 %v463, %v527
  %v579 = vmul.f32 %v468, %v527
  %v580 = vmul.f32 %v471, %v527
  %v581 = vmul.f32 %v476, %v527
  %v582 = vmul.f32 %v479, %v527
  %v583 = vmul.f32 %v484, %v527
  %v584 = vmul.f32 %v487, %v527
  %v585 = vmul.f32 %v492, %v527
  %v586 = vmul.f32 %v495, %v527
  %v587 = vmul.f32 %v500, %v527
  %v588 = vmul.f32 %v503, %v527
  %v589 = vmul.f32 %v508, %v527
  %v590 = vmul.f32 %v511, %v527
  %v591 = vmul.f32 %v516, %v527
  %v592 = vmul.f32 %v519, %v527
  %v593 = vld [vmem:[%s3] sm:$0x1]
  %v595 = vlaneseq
  %v596 = vshrl.u32 %v595, 7
  %v597 = vsub.s32 0, %v596
  %v598 = vrot.slane %v593, %v597
  %v600 = vadd.f32 %v529, %v598
  %v601 = vadd.f32 %v530, %v598
  %v602 = vadd.f32 %v531, %v598
  %v603 = vadd.f32 %v532, %v598
  %v604 = vadd.f32 %v533, %v598
  %v605 = vadd.f32 %v534, %v598
  %v606 = vadd.f32 %v535, %v598
  %v607 = vadd.f32 %v536, %v598
  %v608 = vadd.f32 %v537, %v598
  %v609 = vadd.f32 %v538, %v598
  %v610 = vadd.f32 %v539, %v598
  %v611 = vadd.f32 %v540, %v598
  %v612 = vadd.f32 %v541, %v598
  %v613 = vadd.f32 %v542, %v598
  %v614 = vadd.f32 %v543, %v598
  %v615 = vadd.f32 %v544, %v598
  %v616 = vadd.f32 %v545, %v598
  %v617 = vadd.f32 %v546, %v598
  %v618 = vadd.f32 %v547, %v598
  %v619 = vadd.f32 %v548, %v598
  %v620 = vadd.f32 %v549, %v598
  %v621 = vadd.f32 %v550, %v598
  %v622 = vadd.f32 %v551, %v598
  %v623 = vadd.f32 %v552, %v598
  %v624 = vadd.f32 %v553, %v598
  %v625 = vadd.f32 %v554, %v598
  %v626 = vadd.f32 %v555, %v598
  %v627 = vadd.f32 %v556, %v598
  %v628 = vadd.f32 %v557, %v598
  %v629 = vadd.f32 %v558, %v598
  %v630 = vadd.f32 %v559, %v598
  %v631 = vadd.f32 %v560, %v598
  %v632 = vadd.f32 %v561, %v598
  %v633 = vadd.f32 %v562, %v598
  %v634 = vadd.f32 %v563, %v598
  %v635 = vadd.f32 %v564, %v598
  %v636 = vadd.f32 %v565, %v598
  %v637 = vadd.f32 %v566, %v598
  %v638 = vadd.f32 %v567, %v598
  %v639 = vadd.f32 %v568, %v598
  %v640 = vadd.f32 %v569, %v598
  %v641 = vadd.f32 %v570, %v598
  %v642 = vadd.f32 %v571, %v598
  %v643 = vadd.f32 %v572, %v598
  %v644 = vadd.f32 %v573, %v598
  %v645 = vadd.f32 %v574, %v598
  %v646 = vadd.f32 %v575, %v598
  %v647 = vadd.f32 %v576, %v598
  %v648 = vadd.f32 %v577, %v598
  %v649 = vadd.f32 %v578, %v598
  %v650 = vadd.f32 %v579, %v598
  %v651 = vadd.f32 %v580, %v598
  %v652 = vadd.f32 %v581, %v598
  %v653 = vadd.f32 %v582, %v598
  %v654 = vadd.f32 %v583, %v598
  %v655 = vadd.f32 %v584, %v598
  %v656 = vadd.f32 %v585, %v598
  %v657 = vadd.f32 %v586, %v598
  %v658 = vadd.f32 %v587, %v598
  %v659 = vadd.f32 %v588, %v598
  %v660 = vadd.f32 %v589, %v598
  %v661 = vadd.f32 %v590, %v598
  %v662 = vadd.f32 %v591, %v598
  %v663 = vadd.f32 %v592, %v598
  %v664 = vsub.f32 0.0, %v600
  %v665 = vsub.f32 0.0, %v601
  %v666 = vsub.f32 0.0, %v602
  %v667 = vsub.f32 0.0, %v603
  %v668 = vsub.f32 0.0, %v604
  %v669 = vsub.f32 0.0, %v605
  %v670 = vsub.f32 0.0, %v606
  %v671 = vsub.f32 0.0, %v607
  %v672 = vsub.f32 0.0, %v608
  %v673 = vsub.f32 0.0, %v609
  %v674 = vsub.f32 0.0, %v610
  %v675 = vsub.f32 0.0, %v611
  %v676 = vsub.f32 0.0, %v612
  %v677 = vsub.f32 0.0, %v613
  %v678 = vsub.f32 0.0, %v614
  %v679 = vsub.f32 0.0, %v615
  %v680 = vsub.f32 0.0, %v616
  %v681 = vsub.f32 0.0, %v617
  %v682 = vsub.f32 0.0, %v618
  %v683 = vsub.f32 0.0, %v619
  %v684 = vsub.f32 0.0, %v620
  %v685 = vsub.f32 0.0, %v621
  %v686 = vsub.f32 0.0, %v622
  %v687 = vsub.f32 0.0, %v623
  %v688 = vsub.f32 0.0, %v624
  %v689 = vsub.f32 0.0, %v625
  %v690 = vsub.f32 0.0, %v626
  %v691 = vsub.f32 0.0, %v627
  %v692 = vsub.f32 0.0, %v628
  %v693 = vsub.f32 0.0, %v629
  %v694 = vsub.f32 0.0, %v630
  %v695 = vsub.f32 0.0, %v631
  %v696 = vsub.f32 0.0, %v632
  %v697 = vsub.f32 0.0, %v633
  %v698 = vsub.f32 0.0, %v634
  %v699 = vsub.f32 0.0, %v635
  %v700 = vsub.f32 0.0, %v636
  %v701 = vsub.f32 0.0, %v637
  %v702 = vsub.f32 0.0, %v638
  %v703 = vsub.f32 0.0, %v639
  %v704 = vsub.f32 0.0, %v640
  %v705 = vsub.f32 0.0, %v641
  %v706 = vsub.f32 0.0, %v642
  %v707 = vsub.f32 0.0, %v643
  %v708 = vsub.f32 0.0, %v644
  %v709 = vsub.f32 0.0, %v645
  %v710 = vsub.f32 0.0, %v646
  %v711 = vsub.f32 0.0, %v647
  %v712 = vsub.f32 0.0, %v648
  %v713 = vsub.f32 0.0, %v649
  %v714 = vsub.f32 0.0, %v650
  %v715 = vsub.f32 0.0, %v651
  %v716 = vsub.f32 0.0, %v652
  %v717 = vsub.f32 0.0, %v653
  %v718 = vsub.f32 0.0, %v654
  %v719 = vsub.f32 0.0, %v655
  %v720 = vsub.f32 0.0, %v656
  %v721 = vsub.f32 0.0, %v657
  %v722 = vsub.f32 0.0, %v658
  %v723 = vsub.f32 0.0, %v659
  %v724 = vsub.f32 0.0, %v660
  %v725 = vsub.f32 0.0, %v661
  %v726 = vsub.f32 0.0, %v662
  %v727 = vsub.f32 0.0, %v663
  %v728 = vmul.f32 %v664, 1.442695
  %v729 = vpow.pop %v728
  %v730 = vmul.f32 %v665, 1.442695
  %v731 = vpow.pop %v730
  %v732 = vmul.f32 %v666, 1.442695
  %v733 = vpow.pop %v732
  %v734 = vmul.f32 %v667, 1.442695
  %v735 = vpow.pop %v734
  %v736 = vmul.f32 %v668, 1.442695
  %v737 = vpow.pop %v736
  %v738 = vmul.f32 %v669, 1.442695
  %v739 = vpow.pop %v738
  %v740 = vmul.f32 %v670, 1.442695
  %v741 = vpow.pop %v740
  %v742 = vmul.f32 %v671, 1.442695
  %v743 = vpow.pop %v742
  %v744 = vmul.f32 %v672, 1.442695
  %v745 = vpow.pop %v744
  %v746 = vmul.f32 %v673, 1.442695
  %v747 = vpow.pop %v746
  %v748 = vmul.f32 %v674, 1.442695
  %v749 = vpow.pop %v748
  %v750 = vmul.f32 %v675, 1.442695
  %v751 = vpow.pop %v750
  %v752 = vmul.f32 %v676, 1.442695
  %v753 = vpow.pop %v752
  %v754 = vmul.f32 %v677, 1.442695
  %v755 = vpow.pop %v754
  %v756 = vmul.f32 %v678, 1.442695
  %v757 = vpow.pop %v756
  %v758 = vmul.f32 %v679, 1.442695
  %v759 = vpow.pop %v758
  %v760 = vmul.f32 %v680, 1.442695
  %v761 = vpow.pop %v760
  %v762 = vmul.f32 %v681, 1.442695
  %v763 = vpow.pop %v762
  %v764 = vmul.f32 %v682, 1.442695
  %v765 = vpow.pop %v764
  %v766 = vmul.f32 %v683, 1.442695
  %v767 = vpow.pop %v766
  %v768 = vmul.f32 %v684, 1.442695
  %v769 = vpow.pop %v768
  %v770 = vmul.f32 %v685, 1.442695
  %v771 = vpow.pop %v770
  %v772 = vmul.f32 %v686, 1.442695
  %v773 = vpow.pop %v772
  %v774 = vmul.f32 %v687, 1.442695
  %v775 = vpow.pop %v774
  %v776 = vmul.f32 %v688, 1.442695
  %v777 = vpow.pop %v776
  %v778 = vmul.f32 %v689, 1.442695
  %v779 = vpow.pop %v778
  %v780 = vmul.f32 %v690, 1.442695
  %v781 = vpow.pop %v780
  %v782 = vmul.f32 %v691, 1.442695
  %v783 = vpow.pop %v782
  %v784 = vmul.f32 %v692, 1.442695
  %v785 = vpow.pop %v784
  %v786 = vmul.f32 %v693, 1.442695
  %v787 = vpow.pop %v786
  %v788 = vmul.f32 %v694, 1.442695
  %v789 = vpow.pop %v788
  %v790 = vmul.f32 %v695, 1.442695
  %v791 = vpow.pop %v790
  %v792 = vmul.f32 %v696, 1.442695
  %v793 = vpow.pop %v792
  %v794 = vmul.f32 %v697, 1.442695
  %v795 = vpow.pop %v794
  %v796 = vmul.f32 %v698, 1.442695
  %v797 = vpow.pop %v796
  %v798 = vmul.f32 %v699, 1.442695
  %v799 = vpow.pop %v798
  %v800 = vmul.f32 %v700, 1.442695
  %v801 = vpow.pop %v800
  %v802 = vmul.f32 %v701, 1.442695
  %v803 = vpow.pop %v802
  %v804 = vmul.f32 %v702, 1.442695
  %v805 = vpow.pop %v804
  %v806 = vmul.f32 %v703, 1.442695
  %v807 = vpow.pop %v806
  %v808 = vmul.f32 %v704, 1.442695
  %v809 = vpow.pop %v808
  %v810 = vmul.f32 %v705, 1.442695
  %v811 = vpow.pop %v810
  %v812 = vmul.f32 %v706, 1.442695
  %v813 = vpow.pop %v812
  %v814 = vmul.f32 %v707, 1.442695
  %v815 = vpow.pop %v814
  %v816 = vmul.f32 %v708, 1.442695
  %v817 = vpow.pop %v816
  %v818 = vmul.f32 %v709, 1.442695
  %v819 = vpow.pop %v818
  %v820 = vmul.f32 %v710, 1.442695
  %v821 = vpow.pop %v820
  %v822 = vmul.f32 %v711, 1.442695
  %v823 = vpow.pop %v822
  %v824 = vmul.f32 %v712, 1.442695
  %v825 = vpow.pop %v824
  %v826 = vmul.f32 %v713, 1.442695
  %v827 = vpow.pop %v826
  %v828 = vmul.f32 %v714, 1.442695
  %v829 = vpow.pop %v828
  %v830 = vmul.f32 %v715, 1.442695
  %v831 = vpow.pop %v830
  %v832 = vmul.f32 %v716, 1.442695
  %v833 = vpow.pop %v832
  %v834 = vmul.f32 %v717, 1.442695
  %v835 = vpow.pop %v834
  %v836 = vmul.f32 %v718, 1.442695
  %v837 = vpow.pop %v836
  %v838 = vmul.f32 %v719, 1.442695
  %v839 = vpow.pop %v838
  %v840 = vmul.f32 %v720, 1.442695
  %v841 = vpow.pop %v840
  %v842 = vmul.f32 %v721, 1.442695
  %v843 = vpow.pop %v842
  %v844 = vmul.f32 %v722, 1.442695
  %v845 = vpow.pop %v844
  %v846 = vmul.f32 %v723, 1.442695
  %v847 = vpow.pop %v846
  %v848 = vmul.f32 %v724, 1.442695
  %v849 = vpow.pop %v848
  %v850 = vmul.f32 %v725, 1.442695
  %v851 = vpow.pop %v850
  %v852 = vmul.f32 %v726, 1.442695
  %v853 = vpow.pop %v852
  %v854 = vmul.f32 %v727, 1.442695
  %v855 = vpow.pop %v854
  %v856 = vadd.f32 %v729, 1.0
  %v857 = vadd.f32 %v731, 1.0
  %v858 = vadd.f32 %v733, 1.0
  %v859 = vadd.f32 %v735, 1.0
  %v860 = vadd.f32 %v737, 1.0
  %v861 = vadd.f32 %v739, 1.0
  %v862 = vadd.f32 %v741, 1.0
  %v863 = vadd.f32 %v743, 1.0
  %v864 = vadd.f32 %v745, 1.0
  %v865 = vadd.f32 %v747, 1.0
  %v866 = vadd.f32 %v749, 1.0
  %v867 = vadd.f32 %v751, 1.0
  %v868 = vadd.f32 %v753, 1.0
  %v869 = vadd.f32 %v755, 1.0
  %v870 = vadd.f32 %v757, 1.0
  %v871 = vadd.f32 %v759, 1.0
  %v872 = vadd.f32 %v761, 1.0
  %v873 = vadd.f32 %v763, 1.0
  %v874 = vadd.f32 %v765, 1.0
  %v875 = vadd.f32 %v767, 1.0
  %v876 = vadd.f32 %v769, 1.0
  %v877 = vadd.f32 %v771, 1.0
  %v878 = vadd.f32 %v773, 1.0
  %v879 = vadd.f32 %v775, 1.0
  %v880 = vadd.f32 %v777, 1.0
  %v881 = vadd.f32 %v779, 1.0
  %v882 = vadd.f32 %v781, 1.0
  %v883 = vadd.f32 %v783, 1.0
  %v884 = vadd.f32 %v785, 1.0
  %v885 = vadd.f32 %v787, 1.0
  %v886 = vadd.f32 %v789, 1.0
  %v887 = vadd.f32 %v791, 1.0
  %v888 = vadd.f32 %v793, 1.0
  %v889 = vadd.f32 %v795, 1.0
  %v890 = vadd.f32 %v797, 1.0
  %v891 = vadd.f32 %v799, 1.0
  %v892 = vadd.f32 %v801, 1.0
  %v893 = vadd.f32 %v803, 1.0
  %v894 = vadd.f32 %v805, 1.0
  %v895 = vadd.f32 %v807, 1.0
  %v896 = vadd.f32 %v809, 1.0
  %v897 = vadd.f32 %v811, 1.0
  %v898 = vadd.f32 %v813, 1.0
  %v899 = vadd.f32 %v815, 1.0
  %v900 = vadd.f32 %v817, 1.0
  %v901 = vadd.f32 %v819, 1.0
  %v902 = vadd.f32 %v821, 1.0
  %v903 = vadd.f32 %v823, 1.0
  %v904 = vadd.f32 %v825, 1.0
  %v905 = vadd.f32 %v827, 1.0
  %v906 = vadd.f32 %v829, 1.0
  %v907 = vadd.f32 %v831, 1.0
  %v908 = vadd.f32 %v833, 1.0
  %v909 = vadd.f32 %v835, 1.0
  %v910 = vadd.f32 %v837, 1.0
  %v911 = vadd.f32 %v839, 1.0
  %v912 = vadd.f32 %v841, 1.0
  %v913 = vadd.f32 %v843, 1.0
  %v914 = vadd.f32 %v845, 1.0
  %v915 = vadd.f32 %v847, 1.0
  %v916 = vadd.f32 %v849, 1.0
  %v917 = vadd.f32 %v851, 1.0
  %v918 = vadd.f32 %v853, 1.0
  %v919 = vadd.f32 %v855, 1.0
  %v920 = vrcp.pop %v856
  %v921 = vrcp.pop %v857
  %v922 = vrcp.pop %v858
  %v923 = vrcp.pop %v859
  %v924 = vrcp.pop %v860
  %v925 = vrcp.pop %v861
  %v926 = vrcp.pop %v862
  %v927 = vrcp.pop %v863
  %v928 = vrcp.pop %v864
  %v929 = vrcp.pop %v865
  %v930 = vrcp.pop %v866
  %v931 = vrcp.pop %v867
  %v932 = vrcp.pop %v868
  %v933 = vrcp.pop %v869
  %v934 = vrcp.pop %v870
  %v935 = vrcp.pop %v871
  %v936 = vrcp.pop %v872
  %v937 = vrcp.pop %v873
  %v938 = vrcp.pop %v874
  %v939 = vrcp.pop %v875
  %v940 = vrcp.pop %v876
  %v941 = vrcp.pop %v877
  %v942 = vrcp.pop %v878
  %v943 = vrcp.pop %v879
  %v944 = vrcp.pop %v880
  %v945 = vrcp.pop %v881
  %v946 = vrcp.pop %v882
  %v947 = vrcp.pop %v883
  %v948 = vrcp.pop %v884
  %v949 = vrcp.pop %v885
  %v950 = vrcp.pop %v886
  %v951 = vrcp.pop %v887
  %v952 = vrcp.pop %v888
  %v953 = vrcp.pop %v889
  %v954 = vrcp.pop %v890
  %v955 = vrcp.pop %v891
  %v956 = vrcp.pop %v892
  %v957 = vrcp.pop %v893
  %v958 = vrcp.pop %v894
  %v959 = vrcp.pop %v895
  %v960 = vrcp.pop %v896
  %v961 = vrcp.pop %v897
  %v962 = vrcp.pop %v898
  %v963 = vrcp.pop %v899
  %v964 = vrcp.pop %v900
  %v965 = vrcp.pop %v901
  %v966 = vrcp.pop %v902
  %v967 = vrcp.pop %v903
  %v968 = vrcp.pop %v904
  %v969 = vrcp.pop %v905
  %v970 = vrcp.pop %v906
  %v971 = vrcp.pop %v907
  %v972 = vrcp.pop %v908
  %v973 = vrcp.pop %v909
  %v974 = vrcp.pop %v910
  %v975 = vrcp.pop %v911
  %v976 = vrcp.pop %v912
  %v977 = vrcp.pop %v913
  %v978 = vrcp.pop %v914
  %v979 = vrcp.pop %v915
  %v980 = vrcp.pop %v916
  %v981 = vrcp.pop %v917
  %v982 = vrcp.pop %v918
  %v983 = vrcp.pop %v919
  %v984 = vmul.f32 %v600, %v920
  %v985 = vmul.f32 %v601, %v921
  %v986 = vmul.f32 %v602, %v922
  %v987 = vmul.f32 %v603, %v923
  %v988 = vmul.f32 %v604, %v924
  %v989 = vmul.f32 %v605, %v925
  %v990 = vmul.f32 %v606, %v926
  %v991 = vmul.f32 %v607, %v927
  %v992 = vmul.f32 %v608, %v928
  %v993 = vmul.f32 %v609, %v929
  %v994 = vmul.f32 %v610, %v930
  %v995 = vmul.f32 %v611, %v931
  %v996 = vmul.f32 %v612, %v932
  %v997 = vmul.f32 %v613, %v933
  %v998 = vmul.f32 %v614, %v934
  %v999 = vmul.f32 %v615, %v935
  %v1000 = vmul.f32 %v616, %v936
  %v1001 = vmul.f32 %v617, %v937
  %v1002 = vmul.f32 %v618, %v938
  %v1003 = vmul.f32 %v619, %v939
  %v1004 = vmul.f32 %v620, %v940
  %v1005 = vmul.f32 %v621, %v941
  %v1006 = vmul.f32 %v622, %v942
  %v1007 = vmul.f32 %v623, %v943
  %v1008 = vmul.f32 %v624, %v944
  %v1009 = vmul.f32 %v625, %v945
  %v1010 = vmul.f32 %v626, %v946
  %v1011 = vmul.f32 %v627, %v947
  %v1012 = vmul.f32 %v628, %v948
  %v1013 = vmul.f32 %v629, %v949
  %v1014 = vmul.f32 %v630, %v950
  %v1015 = vmul.f32 %v631, %v951
  %v1016 = vmul.f32 %v632, %v952
  %v1017 = vmul.f32 %v633, %v953
  %v1018 = vmul.f32 %v634, %v954
  %v1019 = vmul.f32 %v635, %v955
  %v1020 = vmul.f32 %v636, %v956
  %v1021 = vmul.f32 %v637, %v957
  %v1022 = vmul.f32 %v638, %v958
  %v1023 = vmul.f32 %v639, %v959
  %v1024 = vmul.f32 %v640, %v960
  %v1025 = vmul.f32 %v641, %v961
  %v1026 = vmul.f32 %v642, %v962
  %v1027 = vmul.f32 %v643, %v963
  %v1028 = vmul.f32 %v644, %v964
  %v1029 = vmul.f32 %v645, %v965
  %v1030 = vmul.f32 %v646, %v966
  %v1031 = vmul.f32 %v647, %v967
  %v1032 = vmul.f32 %v648, %v968
  %v1033 = vmul.f32 %v649, %v969
  %v1034 = vmul.f32 %v650, %v970
  %v1035 = vmul.f32 %v651, %v971
  %v1036 = vmul.f32 %v652, %v972
  %v1037 = vmul.f32 %v653, %v973
  %v1038 = vmul.f32 %v654, %v974
  %v1039 = vmul.f32 %v655, %v975
  %v1040 = vmul.f32 %v656, %v976
  %v1041 = vmul.f32 %v657, %v977
  %v1042 = vmul.f32 %v658, %v978
  %v1043 = vmul.f32 %v659, %v979
  %v1044 = vmul.f32 %v660, %v980
  %v1045 = vmul.f32 %v661, %v981
  %v1046 = vmul.f32 %v662, %v982
  %v1047 = vmul.f32 %v663, %v983
  %1048 = vst [vmem:[%s4] sm:$0xff] %v984
  %1049 = vst [vmem:[%s4 + $0x8] sm:$0xff] %v985
  %1050 = vst [vmem:[%s4 + $0x10] sm:$0xff] %v986
  %1051 = vst [vmem:[%s4 + $0x18] sm:$0xff] %v987
  %1052 = vst [vmem:[%s4 + $0x20] sm:$0xff] %v988
  %1053 = vst [vmem:[%s4 + $0x28] sm:$0xff] %v989
  %1054 = vst [vmem:[%s4 + $0x30] sm:$0xff] %v990
  %1055 = vst [vmem:[%s4 + $0x38] sm:$0xff] %v991
  %1056 = vst [vmem:[%s4 + $0x40] sm:$0xff] %v992
  %1057 = vst [vmem:[%s4 + $0x48] sm:$0xff] %v993
  %1058 = vst [vmem:[%s4 + $0x50] sm:$0xff] %v994
  %1059 = vst [vmem:[%s4 + $0x58] sm:$0xff] %v995
  %1060 = vst [vmem:[%s4 + $0x60] sm:$0xff] %v996
  %1061 = vst [vmem:[%s4 + $0x68] sm:$0xff] %v997
  %1062 = vst [vmem:[%s4 + $0x70] sm:$0xff] %v998
  %1063 = vst [vmem:[%s4 + $0x78] sm:$0xff] %v999
  %1064 = vst [vmem:[%s4 + $0x80] sm:$0xff] %v1000
  %1065 = vst [vmem:[%s4 + $0x88] sm:$0xff] %v1001
  %1066 = vst [vmem:[%s4 + $0x90] sm:$0xff] %v1002
  %1067 = vst [vmem:[%s4 + $0x98] sm:$0xff] %v1003
  %1068 = vst [vmem:[%s4 + $0xa0] sm:$0xff] %v1004
  %1069 = vst [vmem:[%s4 + $0xa8] sm:$0xff] %v1005
  %1070 = vst [vmem:[%s4 + $0xb0] sm:$0xff] %v1006
  %1071 = vst [vmem:[%s4 + $0xb8] sm:$0xff] %v1007
  %1072 = vst [vmem:[%s4 + $0xc0] sm:$0xff] %v1008
  %1073 = vst [vmem:[%s4 + $0xc8] sm:$0xff] %v1009
  %1074 = vst [vmem:[%s4 + $0xd0] sm:$0xff] %v1010
  %1075 = vst [vmem:[%s4 + $0xd8] sm:$0xff] %v1011
  %1076 = vst [vmem:[%s4 + $0xe0] sm:$0xff] %v1012
  %1077 = vst [vmem:[%s4 + $0xe8] sm:$0xff] %v1013
  %1078 = vst [vmem:[%s4 + $0xf0] sm:$0xff] %v1014
  %1079 = vst [vmem:[%s4 + $0xf8] sm:$0xff] %v1015
  %1080 = vst [vmem:[%s4 + $0x100] sm:$0xff] %v1016
  %1081 = vst [vmem:[%s4 + $0x108] sm:$0xff] %v1017
  %1082 = vst [vmem:[%s4 + $0x110] sm:$0xff] %v1018
  %1083 = vst [vmem:[%s4 + $0x118] sm:$0xff] %v1019
  %1084 = vst [vmem:[%s4 + $0x120] sm:$0xff] %v1020
  %1085 = vst [vmem:[%s4 + $0x128] sm:$0xff] %v1021
  %1086 = vst [vmem:[%s4 + $0x130] sm:$0xff] %v1022
  %1087 = vst [vmem:[%s4 + $0x138] sm:$0xff] %v1023
  %1088 = vst [vmem:[%s4 + $0x140] sm:$0xff] %v1024
  %1089 = vst [vmem:[%s4 + $0x148] sm:$0xff] %v1025
  %1090 = vst [vmem:[%s4 + $0x150] sm:$0xff] %v1026
  %1091 = vst [vmem:[%s4 + $0x158] sm:$0xff] %v1027
  %1092 = vst [vmem:[%s4 + $0x160] sm:$0xff] %v1028
  %1093 = vst [vmem:[%s4 + $0x168] sm:$0xff] %v1029
  %1094 = vst [vmem:[%s4 + $0x170] sm:$0xff] %v1030
  %1095 = vst [vmem:[%s4 + $0x178] sm:$0xff] %v1031
  %1096 = vst [vmem:[%s4 + $0x180] sm:$0xff] %v1032
  %1097 = vst [vmem:[%s4 + $0x188] sm:$0xff] %v1033
  %1098 = vst [vmem:[%s4 + $0x190] sm:$0xff] %v1034
  %1099 = vst [vmem:[%s4 + $0x198] sm:$0xff] %v1035
  %1100 = vst [vmem:[%s4 + $0x1a0] sm:$0xff] %v1036
  %1101 = vst [vmem:[%s4 + $0x1a8] sm:$0xff] %v1037
  %1102 = vst [vmem:[%s4 + $0x1b0] sm:$0xff] %v1038
  %1103 = vst [vmem:[%s4 + $0x1b8] sm:$0xff] %v1039
  %1104 = vst [vmem:[%s4 + $0x1c0] sm:$0xff] %v1040
  %1105 = vst [vmem:[%s4 + $0x1c8] sm:$0xff] %v1041
  %1106 = vst [vmem:[%s4 + $0x1d0] sm:$0xff] %v1042
  %1107 = vst [vmem:[%s4 + $0x1d8] sm:$0xff] %v1043
  %1108 = vst [vmem:[%s4 + $0x1e0] sm:$0xff] %v1044
  %1109 = vst [vmem:[%s4 + $0x1e8] sm:$0xff] %v1045
  %1110 = vst [vmem:[%s4 + $0x1f0] sm:$0xff] %v1046
  %1111 = vst [vmem:[%s4 + $0x1f8] sm:$0xff] %v1047
  // Predicated region
  $region18: #{image_encoder_forward.7} parent=0 // pred_check
    _
  $region19: #{image_encoder_forward.7} parent=0 // pred_check_branch
    %1113 = sbr.rel (0) target = $region21
  $region20: #{image_encoder_forward.7} parent=0 // pred_region
    _
  $region21: #{image_encoder_forward.7} parent=0 // pred_fallthru
    _
  // Predicated region
  $region22: #{image_encoder_forward.7} parent=0 // pred_check
    _
  $region23: #{image_encoder_forward.7} parent=0 // pred_check_branch
    %1115 = sbr.rel (0) target = $region25
  $region24: #{image_encoder_forward.7} parent=0 // pred_region
    _
  $region25: #{image_encoder_forward.7} parent=0 // pred_fallthru
    _

// kernel: image_encoder_forward.10
$region0: #{image_encoder_forward.10}
  #allocation0 [shape = 'u32[]', space=smem, size = 0x4, offset = 0x4, fixed_abs, tag = 'smem constant byte address 0x4 - core index']
  #allocation1 [shape = 'u32[144,128]{1,0:T(1,128)}', space=vmem, size = 0x12000, scoped, tag = 'internal scratch']
  %s0 = inlined_call_operand.vmem [shape: f32[2,256,128], index: 0, kind: input, shape index: {}]
  %s1 = inlined_call_operand.vmem [shape: f32[2,1,128], index: 1, kind: input, shape index: {}]
  %s2 = inlined_call_operand.vmem [shape: bf16[128,16], index: 2, kind: input, shape index: {}]
  %s3 = inlined_call_operand.vmem [shape: f32[1,16], index: 3, kind: input, shape index: {}]
  %s4 = inlined_call_operand.vmem [shape: f32[1,16], index: 4, kind: input, shape index: {}]
  %s5 = inlined_call_operand.vmem [shape: bf16[16,128], index: 5, kind: input, shape index: {}]
  %s6 = inlined_call_operand.vmem [shape: f32[1,128], index: 6, kind: input, shape index: {}]
  %s7 = inlined_call_operand.vmem [shape: f32[1,128], index: 7, kind: input, shape index: {}]
  %s8 = inlined_call_operand.vmem [shape: f32[2,256,128], index: 8, kind: output, shape index: {}]
  %s9 = sld [smem:[#allocation0]]
  $region65: #{image_encoder_forward.10} parent=0
    _
  %s11 = ssub.s32 1, %s9
  %s12 = scalar_select 0, %s11, %s9
  loop: start=0, step=1, limit=4
  $region2: #{image_encoder_forward.10} parent=0 // loop_pre_header
    _
  $region3: #{image_encoder_forward.10} parent=0 // loop_header
    %s14 = sphi 0, %s18
    %p15 = scmp.ge.s32.totalorder %s14, 4
    %s21 = sphi 0, %s33
    %s22 = sphi 0, %s29
    %s23 = sphi 0, %s21
    %s24 = sphi 0, %s22
    %s25 = sphi 0, %s23
    %s26 = sphi 0, %s24
    %s38 = sphi 0, %s40
    %s41 = sphi 0, %s38
    %s42 = sphi 0, %s41
    %s58 = sphi 0, %s42
    %s64 = sphi 0, %s66
    %s67 = sphi 0, %s64
    %s68 = sphi 0, %s67
    %s84 = sphi 0, %s68
    %s88 = sphi 0, %s88
    %s90 = sphi 0, %s88
    %s91 = sphi 0, %s90
    %s105 = sphi 0, %s91
    %s109 = sphi 0, %s109
    %s111 = sphi 0, %s109
    %s112 = sphi 0, %s111
    %s126 = sphi 0, %s112
    %s130 = sphi 0, %s130
    %s132 = sphi 0, %s130
    %s133 = sphi 0, %s132
    %s147 = sphi 0, %s133
    %s151 = sphi 0, %s151
    %s153 = sphi 0, %s151
    %s154 = sphi 0, %s153
    %s168 = sphi 0, %s154
    %s172 = sphi 0, %s172
    %s174 = sphi 0, %s172
    %s175 = sphi 0, %s174
    %s189 = sphi 0, %s175
    %s193 = sphi 0, %s193
    %s195 = sphi 0, %s193
    %s196 = sphi 0, %s195
    %s210 = sphi 0, %s196
    %s218 = sphi 0, %s220
    %s221 = sphi 0, %s218
    %s222 = sphi 0, %s221
    %s238 = sphi 0, %s222
  $region4: #{image_encoder_forward.10} parent=0 // loop_header_branch
    %17 = sbr.rel (%p15) target = $region8
  $region5: #{image_encoder_forward.10} parent=0 // loop_body
    %s19 = ssub.s32 %s14, 1
    %s20 = ssub.s32 %s14, 2
    %s27 = sadd.s32 1, %s22
    %p28 = scmp.ge.s32.totalorder %s27, 1
    %s29 = scalar_select %p28, 0, %s27
    %s30 = sadd.s32 1, %s21
    %s31 = scalar_select %p28, %s30, %s21
    %p32 = scmp.ge.s32.totalorder %s31, 2
    %s33 = scalar_select %p32, 0, %s31
    %s34 = ssub.s32 %s21, %s33
    %s35 = ssub.s32 %s22, %s29
    %s36 = sor.u32 %s34, %s35
    %p37 = scmp.eq.s32.totalorder %s36, 0
    %s39 = sadd.s32 %s38, 1
    %s40 = scalar_select %p37, %s38, %s39
    %p43 = pneg %p37
    %p44 = scmp.eq.s32.totalorder %s14, 1
    %p45 = por %p43, %p44
    %p46 = scmp.ne.s32.totalorder %s38, %s41
    %p47 = scmp.eq.s32.totalorder %s14, 0
    %p48 = por %p46, %p47
    %p49 = scmp.ne.s32.totalorder %s38, %s41
    %p50 = scmp.eq.s32.totalorder %s19, 1
    %p51 = por %p49, %p50
    %p52 = scmp.ne.s32.totalorder %s41, %s42
    %p53 = scmp.eq.s32.totalorder %s19, 0
    %p54 = por %p52, %p53
    %p55 = scmp.ne.s32.totalorder %s41, %s42
    %p56 = scmp.eq.s32.totalorder %s20, 1
    %p57 = por %p55, %p56
    %p59 = scmp.ne.s32.totalorder %s42, %s58
    %p60 = scmp.eq.s32.totalorder %s20, 0
    %p61 = por %p59, %p60
    %s62 = ssub.s32 %s21, %s33
    %p63 = scmp.eq.s32.totalorder %s62, 0
    %s65 = sadd.s32 %s64, 1
    %s66 = scalar_select %p63, %s64, %s65
    %p69 = pneg %p63
    %p70 = scmp.eq.s32.totalorder %s14, 1
    %p71 = por %p69, %p70
    %p72 = scmp.ne.s32.totalorder %s64, %s67
    %p73 = scmp.eq.s32.totalorder %s14, 0
    %p74 = por %p72, %p73
    %p75 = scmp.ne.s32.totalorder %s64, %s67
    %p76 = scmp.eq.s32.totalorder %s19, 1
    %p77 = por %p75, %p76
    %p78 = scmp.ne.s32.totalorder %s67, %s68
    %p79 = scmp.eq.s32.totalorder %s19, 0
    %p80 = por %p78, %p79
    %p81 = scmp.ne.s32.totalorder %s67, %s68
    %p82 = scmp.eq.s32.totalorder %s20, 1
    %p83 = por %p81, %p82
    %p85 = scmp.ne.s32.totalorder %s68, %s84
    %p86 = scmp.eq.s32.totalorder %s20, 0
    %p87 = por %p85, %p86
    %s89 = sadd.s32 %s88, 1
    %p92 = scmp.eq.s32.totalorder %s14, 1
    %p93 = scmp.ne.s32.totalorder %s88, %s90
    %p94 = scmp.eq.s32.totalorder %s14, 0
    %p95 = por %p93, %p94
    %p96 = scmp.ne.s32.totalorder %s88, %s90
    %p97 = scmp.eq.s32.totalorder %s19, 1
    %p98 = por %p96, %p97
    %p99 = scmp.ne.s32.totalorder %s90, %s91
    %p100 = scmp.eq.s32.totalorder %s19, 0
    %p101 = por %p99, %p100
    %p102 = scmp.ne.s32.totalorder %s90, %s91
    %p103 = scmp.eq.s32.totalorder %s20, 1
    %p104 = por %p102, %p103
    %p106 = scmp.ne.s32.totalorder %s91, %s105
    %p107 = scmp.eq.s32.totalorder %s20, 0
    %p108 = por %p106, %p107
    %s110 = sadd.s32 %s109, 1
    %p113 = scmp.eq.s32.totalorder %s14, 1
    %p114 = scmp.ne.s32.totalorder %s109, %s111
    %p115 = scmp.eq.s32.totalorder %s14, 0
    %p116 = por %p114, %p115
    %p117 = scmp.ne.s32.totalorder %s109, %s111
    %p118 = scmp.eq.s32.totalorder %s19, 1
    %p119 = por %p117, %p118
    %p120 = scmp.ne.s32.totalorder %s111, %s112
    %p121 = scmp.eq.s32.totalorder %s19, 0
    %p122 = por %p120, %p121
    %p123 = scmp.ne.s32.totalorder %s111, %s112
    %p124 = scmp.eq.s32.totalorder %s20, 1
    %p125 = por %p123, %p124
    %p127 = scmp.ne.s32.totalorder %s112, %s126
    %p128 = scmp.eq.s32.totalorder %s20, 0
    %p129 = por %p127, %p128
    %s131 = sadd.s32 %s130, 1
    %p134 = scmp.eq.s32.totalorder %s14, 1
    %p135 = scmp.ne.s32.totalorder %s130, %s132
    %p136 = scmp.eq.s32.totalorder %s14, 0
    %p137 = por %p135, %p136
    %p138 = scmp.ne.s32.totalorder %s130, %s132
    %p139 = scmp.eq.s32.totalorder %s19, 1
    %p140 = por %p138, %p139
    %p141 = scmp.ne.s32.totalorder %s132, %s133
    %p142 = scmp.eq.s32.totalorder %s19, 0
    %p143 = por %p141, %p142
    %p144 = scmp.ne.s32.totalorder %s132, %s133
    %p145 = scmp.eq.s32.totalorder %s20, 1
    %p146 = por %p144, %p145
    %p148 = scmp.ne.s32.totalorder %s133, %s147
    %p149 = scmp.eq.s32.totalorder %s20, 0
    %p150 = por %p148, %p149
    %s152 = sadd.s32 %s151, 1
    %p155 = scmp.eq.s32.totalorder %s14, 1
    %p156 = scmp.ne.s32.totalorder %s151, %s153
    %p157 = scmp.eq.s32.totalorder %s14, 0
    %p158 = por %p156, %p157
    %p159 = scmp.ne.s32.totalorder %s151, %s153
    %p160 = scmp.eq.s32.totalorder %s19, 1
    %p161 = por %p159, %p160
    %p162 = scmp.ne.s32.totalorder %s153, %s154
    %p163 = scmp.eq.s32.totalorder %s19, 0
    %p164 = por %p162, %p163
    %p165 = scmp.ne.s32.totalorder %s153, %s154
    %p166 = scmp.eq.s32.totalorder %s20, 1
    %p167 = por %p165, %p166
    %p169 = scmp.ne.s32.totalorder %s154, %s168
    %p170 = scmp.eq.s32.totalorder %s20, 0
    %p171 = por %p169, %p170
    %s173 = sadd.s32 %s172, 1
    %p176 = scmp.eq.s32.totalorder %s14, 1
    %p177 = scmp.ne.s32.totalorder %s172, %s174
    %p178 = scmp.eq.s32.totalorder %s14, 0
    %p179 = por %p177, %p178
    %p180 = scmp.ne.s32.totalorder %s172, %s174
    %p181 = scmp.eq.s32.totalorder %s19, 1
    %p182 = por %p180, %p181
    %p183 = scmp.ne.s32.totalorder %s174, %s175
    %p184 = scmp.eq.s32.totalorder %s19, 0
    %p185 = por %p183, %p184
    %p186 = scmp.ne.s32.totalorder %s174, %s175
    %p187 = scmp.eq.s32.totalorder %s20, 1
    %p188 = por %p186, %p187
    %p190 = scmp.ne.s32.totalorder %s175, %s189
    %p191 = scmp.eq.s32.totalorder %s20, 0
    %p192 = por %p190, %p191
    %s194 = sadd.s32 %s193, 1
    %p197 = scmp.eq.s32.totalorder %s14, 1
    %p198 = scmp.ne.s32.totalorder %s193, %s195
    %p199 = scmp.eq.s32.totalorder %s14, 0
    %p200 = por %p198, %p199
    %p201 = scmp.ne.s32.totalorder %s193, %s195
    %p202 = scmp.eq.s32.totalorder %s19, 1
    %p203 = por %p201, %p202
    %p204 = scmp.ne.s32.totalorder %s195, %s196
    %p205 = scmp.eq.s32.totalorder %s19, 0
    %p206 = por %p204, %p205
    %p207 = scmp.ne.s32.totalorder %s195, %s196
    %p208 = scmp.eq.s32.totalorder %s20, 1
    %p209 = por %p207, %p208
    %p211 = scmp.ne.s32.totalorder %s196, %s210
    %p212 = scmp.eq.s32.totalorder %s20, 0
    %p213 = por %p211, %p212
    %s214 = ssub.s32 %s21, %s33
    %s215 = ssub.s32 %s22, %s29
    %s216 = sor.u32 %s214, %s215
    %p217 = scmp.eq.s32.totalorder %s216, 0
    %s219 = sadd.s32 %s218, 1
    %s220 = scalar_select %p217, %s218, %s219
    %p223 = pneg %p217
    %p224 = scmp.eq.s32.totalorder %s14, 1
    %p225 = por %p223, %p224
    %p226 = scmp.ne.s32.totalorder %s218, %s221
    %p227 = scmp.eq.s32.totalorder %s14, 0
    %p228 = por %p226, %p227
    %p229 = scmp.ne.s32.totalorder %s218, %s221
    %p230 = scmp.eq.s32.totalorder %s19, 1
    %p231 = por %p229, %p230
    %p232 = scmp.ne.s32.totalorder %s221, %s222
    %p233 = scmp.eq.s32.totalorder %s19, 0
    %p234 = por %p232, %p233
    %p235 = scmp.ne.s32.totalorder %s221, %s222
    %p236 = scmp.eq.s32.totalorder %s20, 1
    %p237 = por %p235, %p236
    %p239 = scmp.ne.s32.totalorder %s222, %s238
    %p240 = scmp.eq.s32.totalorder %s20, 0
    %p241 = por %p239, %p240
    %p242 = scmp.le.s32.totalorder 1, %s14
    %p243 = scmp.lt.s32.totalorder %s14, 3
    %p244 = pnand %p242, %p243
    %p245 = pneg %p244
    // Predicated region
    $region9: #{image_encoder_forward.10} parent=5 // pred_check
      _
    $region10: #{image_encoder_forward.10} parent=5 // pred_check_branch
      %247 = sbr.rel (%p244) target = $region12
    $region11: #{image_encoder_forward.10} parent=5 // pred_region
      %s248 = ssub.s32 %s14, 1
      // Predicated region
      $region13: #{image_encoder_forward.10} parent=11 // pred_check
        %p249 = pneg %p101
      $region14: #{image_encoder_forward.10} parent=11 // pred_check_branch
        %251 = sbr.rel (%p249) target = $region16
      $region15: #{image_encoder_forward.10} parent=11 // pred_region
        _
      $region16: #{image_encoder_forward.10} parent=11 // pred_fallthru
        _
      // Predicated region
      $region17: #{image_encoder_forward.10} parent=11 // pred_check
        %p252 = pneg %p122
      $region18: #{image_encoder_forward.10} parent=11 // pred_check_branch
        %254 = sbr.rel (%p252) target = $region20
      $region19: #{image_encoder_forward.10} parent=11 // pred_region
        _
      $region20: #{image_encoder_forward.10} parent=11 // pred_fallthru
        _
      // Predicated region
      $region21: #{image_encoder_forward.10} parent=11 // pred_check
        %p255 = pneg %p143
      $region22: #{image_encoder_forward.10} parent=11 // pred_check_branch
        %257 = sbr.rel (%p255) target = $region24
      $region23: #{image_encoder_forward.10} parent=11 // pred_region
        _
      $region24: #{image_encoder_forward.10} parent=11 // pred_fallthru
        _
      // Predicated region
      $region25: #{image_encoder_forward.10} parent=11 // pred_check
        %p258 = pneg %p164
      $region26: #{image_encoder_forward.10} parent=11 // pred_check_branch
        %260 = sbr.rel (%p258) target = $region28
      $region27: #{image_encoder_forward.10} parent=11 // pred_region
        _
      $region28: #{image_encoder_forward.10} parent=11 // pred_fallthru
        _
      // Predicated region
      $region29: #{image_encoder_forward.10} parent=11 // pred_check
        %p261 = pneg %p185
      $region30: #{image_encoder_forward.10} parent=11 // pred_check_branch
        %263 = sbr.rel (%p261) target = $region32
      $region31: #{image_encoder_forward.10} parent=11 // pred_region
        _
      $region32: #{image_encoder_forward.10} parent=11 // pred_fallthru
        _
      // Predicated region
      $region33: #{image_encoder_forward.10} parent=11 // pred_check
        %p264 = pneg %p206
      $region34: #{image_encoder_forward.10} parent=11 // pred_check_branch
        %266 = sbr.rel (%p264) target = $region36
      $region35: #{image_encoder_forward.10} parent=11 // pred_region
        _
      $region36: #{image_encoder_forward.10} parent=11 // pred_fallthru
        _
    $region12: #{image_encoder_forward.10} parent=5 // pred_fallthru
      _
    %p267 = scmp.lt.s32.totalorder %s14, 2
    // Predicated region
    $region37: #{image_encoder_forward.10} parent=5 // pred_check
      %p268 = pneg %p267
    $region38: #{image_encoder_forward.10} parent=5 // pred_check_branch
      %270 = sbr.rel (%p268) target = $region40
    $region39: #{image_encoder_forward.10} parent=5 // pred_region
      // Predicated region
      $region41: #{image_encoder_forward.10} parent=39 // pred_check
        %p271 = pneg %p48
      $region42: #{image_encoder_forward.10} parent=39 // pred_check_branch
        %273 = sbr.rel (%p271) target = $region44
      $region43: #{image_encoder_forward.10} parent=39 // pred_region
        %s274 = smul.u32 32, %s22
        %p275 = scmp.lt.s32.totalorder %s21, 1
        %s276 = scalar_select %p275, %s21, 1
        %p277 = scmp.lt.s32.totalorder %s274, 31
        %s278 = scalar_select %p277, %s274, 31
        %s279 = smul.addr %s276, 32
        %s280 = sadd.s32 %s278, %s279
        %s281 = smul.addr %s280, 8
        %s282 = scalar_lea.vmem %s0, %s281
        %s283 = smul.u32 32, %s22
      $region44: #{image_encoder_forward.10} parent=39 // pred_fallthru
        _
      // Predicated region
      $region45: #{image_encoder_forward.10} parent=39 // pred_check
        %p284 = pneg %p74
      $region46: #{image_encoder_forward.10} parent=39 // pred_check_branch
        %286 = sbr.rel (%p284) target = $region48
      $region47: #{image_encoder_forward.10} parent=39 // pred_region
        %p287 = scmp.lt.s32.totalorder %s21, 1
        %s288 = scalar_select %p287, %s21, 1
        %s289 = scalar_lea.vmem %s1, %s288
      $region48: #{image_encoder_forward.10} parent=39 // pred_fallthru
        _
    $region40: #{image_encoder_forward.10} parent=5 // pred_fallthru
      _
    %p290 = scmp.le.s32.totalorder 1, %s14
    %p291 = scmp.lt.s32.totalorder %s14, 3
    %p292 = pnand %p290, %p291
    %p293 = pneg %p292
    // Predicated region
    $region49: #{image_encoder_forward.10} parent=5 // pred_check
      _
    $region50: #{image_encoder_forward.10} parent=5 // pred_check_branch
      %295 = sbr.rel (%p292) target = $region52
    $region51: #{image_encoder_forward.10} parent=5 // pred_region
      %s296 = ssub.s32 %s14, 1
      %s297 = smul.u32 32, %s24
      %p298 = scmp.lt.s32.totalorder %s23, 1
      %s299 = scalar_select %p298, %s23, 1
      %p300 = scmp.lt.s32.totalorder %s297, 31
      %s301 = scalar_select %p300, %s297, 31
      %s302 = smul.addr %s299, 32
      %s303 = sadd.s32 %s301, %s302
      %s304 = smul.addr %s303, 8
      %s305 = scalar_lea.vmem %s0, %s304
      %p306 = pneg %p54
      %p307 = pneg %p51
      %p308 = scmp.lt.s32.totalorder %s23, 1
      %s309 = scalar_select %p308, %s23, 1
      %s310 = scalar_lea.vmem %s1, %s309
      %p311 = pneg %p80
      %p312 = pneg %p77
      %p313 = pneg %p101
      %p314 = pneg %p98
      %p315 = pneg %p122
      %p316 = pneg %p119
      %p317 = pneg %p143
      %p318 = pneg %p140
      %p319 = pneg %p164
      %p320 = pneg %p161
      %p321 = pneg %p185
      %p322 = pneg %p182
      %p323 = pneg %p206
      %p324 = pneg %p203
      %p325 = pneg %p234
      %p326 = pneg %p231
      %s327 = smul.u32 32, %s24
      %p328 = scmp.lt.s32.totalorder %s23, 1
      %s329 = scalar_select %p328, %s23, 1
      %p330 = scmp.lt.s32.totalorder %s327, 31
      %s331 = scalar_select %p330, %s327, 31
      %s332 = smul.addr %s329, 32
      %s333 = sadd.s32 %s331, %s332
      %s334 = smul.addr %s333, 8
      %s335 = scalar_lea.vmem %s8, %s334
      %s336 = smul.u32 32, %s24
      %p337 = scmp.lt.s32.totalorder %s23, 1
      %s338 = scalar_select %p337, %s23, 1
      %p339 = scmp.lt.s32.totalorder %s336, 31
      %s340 = scalar_select %p339, %s336, 31
      %s341 = smul.addr %s338, 32
      %s342 = sadd.s32 %s340, %s341
      %s343 = smul.addr %s342, 8
      %s344 = scalar_lea.vmem %s0, %s343
      %s345 = smul.u32 32, %s24
      %p346 = scmp.lt.s32.totalorder %s23, 1
      %s347 = scalar_select %p346, %s23, 1
      %s348 = scalar_lea.vmem %s1, %s347
      %s349 = smul.u32 32, %s24
      %p350 = scmp.lt.s32.totalorder %s23, 1
      %s351 = scalar_select %p350, %s23, 1
      %p352 = scmp.lt.s32.totalorder %s349, 31
      %s353 = scalar_select %p352, %s349, 31
      %s354 = smul.addr %s351, 32
      %s355 = sadd.s32 %s353, %s354
      %s356 = smul.addr %s355, 8
      %s357 = scalar_lea.vmem %s8, %s356
      %s358 = smul.u32 32, %s24
      %v360 = vld [vmem:[%s344] sm:$0xff]
      %v361 = vld [vmem:[%s344 + $0x8] sm:$0xff]
      %v362 = vld [vmem:[%s344 + $0x10] sm:$0xff]
      %v363 = vld [vmem:[%s344 + $0x18] sm:$0xff]
      %v364 = vld [vmem:[%s344 + $0x20] sm:$0xff]
      %v365 = vld [vmem:[%s344 + $0x28] sm:$0xff]
      %v366 = vld [vmem:[%s344 + $0x30] sm:$0xff]
      %v367 = vld [vmem:[%s344 + $0x38] sm:$0xff]
      %v368 = vld [vmem:[%s344 + $0x40] sm:$0xff]
      %v369 = vld [vmem:[%s344 + $0x48] sm:$0xff]
      %v370 = vld [vmem:[%s344 + $0x50] sm:$0xff]
      %v371 = vld [vmem:[%s344 + $0x58] sm:$0xff]
      %v372 = vld [vmem:[%s344 + $0x60] sm:$0xff]
      %v373 = vld [vmem:[%s344 + $0x68] sm:$0xff]
      %v374 = vld [vmem:[%s344 + $0x70] sm:$0xff]
      %v375 = vld [vmem:[%s344 + $0x78] sm:$0xff]
      %v376 = vld [vmem:[%s344 + $0x80] sm:$0xff]
      %v377 = vld [vmem:[%s344 + $0x88] sm:$0xff]
      %v378 = vld [vmem:[%s344 + $0x90] sm:$0xff]
      %v379 = vld [vmem:[%s344 + $0x98] sm:$0xff]
      %v380 = vld [vmem:[%s344 + $0xa0] sm:$0xff]
      %v381 = vld [vmem:[%s344 + $0xa8] sm:$0xff]
      %v382 = vld [vmem:[%s344 + $0xb0] sm:$0xff]
      %v383 = vld [vmem:[%s344 + $0xb8] sm:$0xff]
      %v384 = vld [vmem:[%s344 + $0xc0] sm:$0xff]
      %v385 = vld [vmem:[%s344 + $0xc8] sm:$0xff]
      %v386 = vld [vmem:[%s344 + $0xd0] sm:$0xff]
      %v387 = vld [vmem:[%s344 + $0xd8] sm:$0xff]
      %v388 = vld [vmem:[%s344 + $0xe0] sm:$0xff]
      %v389 = vld [vmem:[%s344 + $0xe8] sm:$0xff]
      %v390 = vld [vmem:[%s344 + $0xf0] sm:$0xff]
      %v391 = vld [vmem:[%s344 + $0xf8] sm:$0xff]
      %v392 = vld [vmem:[%s348] sm:$0x1]
      %v394 = vlaneseq
      %v395 = vshrl.u32 %v394, 7
      %v396 = vsub.s32 0, %v395
      %v397 = vrot.slane %v392, %v396
      %v399 = vmul.f32 %v360, %v397
      %v400 = vmul.f32 %v361, %v397
      %v401 = vmul.f32 %v362, %v397
      %v402 = vmul.f32 %v363, %v397
      %v403 = vmul.f32 %v364, %v397
      %v404 = vmul.f32 %v365, %v397
      %v405 = vmul.f32 %v366, %v397
      %v406 = vmul.f32 %v367, %v397
      %v407 = vmul.f32 %v368, %v397
      %v408 = vmul.f32 %v369, %v397
      %v409 = vmul.f32 %v370, %v397
      %v410 = vmul.f32 %v371, %v397
      %v411 = vmul.f32 %v372, %v397
      %v412 = vmul.f32 %v373, %v397
      %v413 = vmul.f32 %v374, %v397
      %v414 = vmul.f32 %v375, %v397
      %v415 = vmul.f32 %v376, %v397
      %v416 = vmul.f32 %v377, %v397
      %v417 = vmul.f32 %v378, %v397
      %v418 = vmul.f32 %v379, %v397
      %v419 = vmul.f32 %v380, %v397
      %v420 = vmul.f32 %v381, %v397
      %v421 = vmul.f32 %v382, %v397
      %v422 = vmul.f32 %v383, %v397
      %v423 = vmul.f32 %v384, %v397
      %v424 = vmul.f32 %v385, %v397
      %v425 = vmul.f32 %v386, %v397
      %v426 = vmul.f32 %v387, %v397
      %v427 = vmul.f32 %v388, %v397
      %v428 = vmul.f32 %v389, %v397
      %v429 = vmul.f32 %v390, %v397
      %v430 = vmul.f32 %v391, %v397
      %v431 = vpack.c.bf16 %v400, %v399
      %v432 = vpack.c.bf16 %v402, %v401
      %v433 = vpack.c.bf16 %v404, %v403
      %v434 = vpack.c.bf16 %v406, %v405
      %v435 = vpack.c.bf16 %v408, %v407
      %v436 = vpack.c.bf16 %v410, %v409
      %v437 = vpack.c.bf16 %v412, %v411
      %v438 = vpack.c.bf16 %v414, %v413
      %v439 = vpack.c.bf16 %v416, %v415
      %v440 = vpack.c.bf16 %v418, %v417
      %v441 = vpack.c.bf16 %v420, %v419
      %v442 = vpack.c.bf16 %v422, %v421
      %v443 = vpack.c.bf16 %v424, %v423
      %v444 = vpack.c.bf16 %v426, %v425
      %v445 = vpack.c.bf16 %v428, %v427
      %v446 = vpack.c.bf16 %v430, %v429
      %v447 = vld [vmem:[%s2] sm:$0xf]
      %v448 = vld [vmem:[%s2 + $0x4] sm:$0xf]
      %v449 = vld [vmem:[%s2 + $0x8] sm:$0xf]
      %v450 = vld [vmem:[%s2 + $0xc] sm:$0xf]
      %v451 = vld [vmem:[%s2 + $0x10] sm:$0xf]
      %v452 = vld [vmem:[%s2 + $0x14] sm:$0xf]
      %v453 = vld [vmem:[%s2 + $0x18] sm:$0xf]
      %v454 = vld [vmem:[%s2 + $0x1c] sm:$0xf]
      %v455 = vld [vmem:[%s2 + $0x20] sm:$0xf]
      %v456 = vld [vmem:[%s2 + $0x24] sm:$0xf]
      %v457 = vld [vmem:[%s2 + $0x28] sm:$0xf]
      %v458 = vld [vmem:[%s2 + $0x2c] sm:$0xf]
      %v459 = vld [vmem:[%s2 + $0x30] sm:$0xf]
      %v460 = vld [vmem:[%s2 + $0x34] sm:$0xf]
      %v461 = vld [vmem:[%s2 + $0x38] sm:$0xf]
      %v462 = vld [vmem:[%s2 + $0x3c] sm:$0xf]
      %v479 = vunpack.c.l.b16 %v447
      %v480 = vunpack.c.l.b16 %v448
      %v481 = vunpack.c.l.b16 %v449
      %v482 = vunpack.c.l.b16 %v450
      %v483 = vunpack.c.l.b16 %v451
      %v484 = vunpack.c.l.b16 %v452
      %v485 = vunpack.c.l.b16 %v453
      %v486 = vunpack.c.l.b16 %v454
      %v487 = vunpack.c.l.b16 %v455
      %v488 = vunpack.c.l.b16 %v456
      %v489 = vunpack.c.l.b16 %v457
      %v490 = vunpack.c.l.b16 %v458
      %v491 = vunpack.c.l.b16 %v459
      %v492 = vunpack.c.l.b16 %v460
      %v493 = vunpack.c.l.b16 %v461
      %v494 = vunpack.c.l.b16 %v462
      %v495 = vpack.c.b16 %v480, %v479
      %v496 = vpack.c.b16 %v482, %v481
      %v497 = vpack.c.b16 %v484, %v483
      %v498 = vpack.c.b16 %v486, %v485
      %v499 = vpack.c.b16 %v488, %v487
      %v500 = vpack.c.b16 %v490, %v489
      %v501 = vpack.c.b16 %v492, %v491
      %v502 = vpack.c.b16 %v494, %v493
      %511 = vmatprep.subr.bf16.mxu0 0
      %512 = vmatpush1.bf16.msra.mxu0 %v502
      %513 = vmatprep.subr.bf16.mxu0 0
      %514 = vmatpush1.bf16.msra.mxu0 %v501
      %515 = vmatprep.subr.bf16.mxu0 0
      %516 = vmatpush1.bf16.msra.mxu0 %v500
      %517 = vmatprep.subr.bf16.mxu0 0
      %518 = vmatpush1.bf16.msra.mxu0 %v499
      %519 = vmatprep.subr.bf16.mxu0 0
      %520 = vmatpush1.bf16.msra.mxu0 %v498
      %521 = vmatprep.subr.bf16.mxu0 0
      %522 = vmatpush1.bf16.msra.mxu0 %v497
      %523 = vmatprep.subr.bf16.mxu0 0
      %524 = vmatpush1.bf16.msra.mxu0 %v496
      %525 = vmatprep.subr.bf16.mxu0 0
      %526 = vmatpush1.bf16.msra.mxu0 %v495
      %527 = vmatprep.subr.bf16.mxu0 0
      %528 = vmatpush2.bf16.msra.mxu0 0
      %529 = vmatprep.subr.bf16.mxu0 0
      %530 = vmatpush2.bf16.msra.mxu0 0
      %531 = vmatprep.subr.bf16.mxu0 0
      %532 = vmatpush2.bf16.msra.mxu0 0
      %533 = vmatprep.subr.bf16.mxu0 0
      %534 = vmatpush2.bf16.msra.mxu0 0
      %535 = vmatprep.subr.bf16.mxu0 0
      %536 = vmatpush2.bf16.msra.mxu0 0
      %537 = vmatprep.subr.bf16.mxu0 0
      %538 = vmatpush2.bf16.msra.mxu0 0
      %539 = vmatprep.subr.bf16.mxu0 0
      %540 = vmatpush2.bf16.msra.mxu0 0
      %541 = vmatprep.subr.bf16.mxu0 0
      %542 = vmatpush2.bf16.msra.mxu0 0
      %543 = vmatprep.mubr.bf16.mxu0 0
      %544 = vmatmul.mubr.bf16.gmra.mxu0 %v431
      %v545 = vpop.f32.mrf.mxu0
      %v546 = vadd.f32 0.0, %v545
      %v547 = vpop.f32.mrf.mxu0
      %v548 = vpop.f32.mrf.mxu0
      %v549 = vadd.f32 0.0, %v548
      %v550 = vpop.f32.mrf.mxu0
      %551 = vmatprep.mubr.bf16.mxu0 0
      %552 = vmatmul.mubr.bf16.gmra.mxu0 %v432
      %v553 = vpop.f32.mrf.mxu0
      %v554 = vadd.f32 0.0, %v553
      %v555 = vpop.f32.mrf.mxu0
      %v556 = vpop.f32.mrf.mxu0
      %v557 = vadd.f32 0.0, %v556
      %v558 = vpop.f32.mrf.mxu0
      %559 = vmatprep.mubr.bf16.mxu0 0
      %560 = vmatmul.mubr.bf16.gmra.mxu0 %v433
      %v561 = vpop.f32.mrf.mxu0
      %v562 = vadd.f32 0.0, %v561
      %v563 = vpop.f32.mrf.mxu0
      %v564 = vpop.f32.mrf.mxu0
      %v565 = vadd.f32 0.0, %v564
      %v566 = vpop.f32.mrf.mxu0
      %567 = vmatprep.mubr.bf16.mxu0 0
      %568 = vmatmul.mubr.bf16.gmra.mxu0 %v434
      %v569 = vpop.f32.mrf.mxu0
      %v570 = vadd.f32 0.0, %v569
      %v571 = vpop.f32.mrf.mxu0
      %v572 = vpop.f32.mrf.mxu0
      %v573 = vadd.f32 0.0, %v572
      %v574 = vpop.f32.mrf.mxu0
      %575 = vmatprep.mubr.bf16.mxu0 0
      %576 = vmatmul.mubr.bf16.gmra.mxu0 %v435
      %v577 = vpop.f32.mrf.mxu0
      %v578 = vadd.f32 0.0, %v577
      %v579 = vpop.f32.mrf.mxu0
      %v580 = vpop.f32.mrf.mxu0
      %v581 = vadd.f32 0.0, %v580
      %v582 = vpop.f32.mrf.mxu0
      %583 = vmatprep.mubr.bf16.mxu0 0
      %584 = vmatmul.mubr.bf16.gmra.mxu0 %v436
      %v585 = vpop.f32.mrf.mxu0
      %v586 = vadd.f32 0.0, %v585
      %v587 = vpop.f32.mrf.mxu0
      %v588 = vpop.f32.mrf.mxu0
      %v589 = vadd.f32 0.0, %v588
      %v590 = vpop.f32.mrf.mxu0
      %591 = vmatprep.mubr.bf16.mxu0 0
      %592 = vmatmul.mubr.bf16.gmra.mxu0 %v437
      %v593 = vpop.f32.mrf.mxu0
      %v594 = vadd.f32 0.0, %v593
      %v595 = vpop.f32.mrf.mxu0
      %v596 = vpop.f32.mrf.mxu0
      %v597 = vadd.f32 0.0, %v596
      %v598 = vpop.f32.mrf.mxu0
      %599 = vmatprep.mubr.bf16.mxu0 0
      %600 = vmatmul.mubr.bf16.gmra.mxu0 %v438
      %v601 = vpop.f32.mrf.mxu0
      %v602 = vadd.f32 0.0, %v601
      %v603 = vpop.f32.mrf.mxu0
      %v604 = vpop.f32.mrf.mxu0
      %v605 = vadd.f32 0.0, %v604
      %v606 = vpop.f32.mrf.mxu0
      %607 = vmatprep.mubr.bf16.mxu0 0
      %608 = vmatmul.mubr.bf16.gmra.mxu0 %v439
      %v609 = vpop.f32.mrf.mxu0
      %v610 = vadd.f32 0.0, %v609
      %v611 = vpop.f32.mrf.mxu0
      %v612 = vpop.f32.mrf.mxu0
      %v613 = vadd.f32 0.0, %v612
      %v614 = vpop.f32.mrf.mxu0
      %615 = vmatprep.mubr.bf16.mxu0 0
      %616 = vmatmul.mubr.bf16.gmra.mxu0 %v440
      %v617 = vpop.f32.mrf.mxu0
      %v618 = vadd.f32 0.0, %v617
      %v619 = vpop.f32.mrf.mxu0
      %v620 = vpop.f32.mrf.mxu0
      %v621 = vadd.f32 0.0, %v620
      %v622 = vpop.f32.mrf.mxu0
      %623 = vmatprep.mubr.bf16.mxu0 0
      %624 = vmatmul.mubr.bf16.gmra.mxu0 %v441
      %v625 = vpop.f32.mrf.mxu0
      %v626 = vadd.f32 0.0, %v625
      %v627 = vpop.f32.mrf.mxu0
      %v628 = vpop.f32.mrf.mxu0
      %v629 = vadd.f32 0.0, %v628
      %v630 = vpop.f32.mrf.mxu0
      %631 = vmatprep.mubr.bf16.mxu0 0
      %632 = vmatmul.mubr.bf16.gmra.mxu0 %v442
      %v633 = vpop.f32.mrf.mxu0
      %v634 = vadd.f32 0.0, %v633
      %v635 = vpop.f32.mrf.mxu0
      %v636 = vpop.f32.mrf.mxu0
      %v637 = vadd.f32 0.0, %v636
      %v638 = vpop.f32.mrf.mxu0
      %639 = vmatprep.mubr.bf16.mxu0 0
      %640 = vmatmul.mubr.bf16.gmra.mxu0 %v443
      %v641 = vpop.f32.mrf.mxu0
      %v642 = vadd.f32 0.0, %v641
      %v643 = vpop.f32.mrf.mxu0
      %v644 = vpop.f32.mrf.mxu0
      %v645 = vadd.f32 0.0, %v644
      %v646 = vpop.f32.mrf.mxu0
      %647 = vmatprep.mubr.bf16.mxu0 0
      %648 = vmatmul.mubr.bf16.gmra.mxu0 %v444
      %v649 = vpop.f32.mrf.mxu0
      %v650 = vadd.f32 0.0, %v649
      %v651 = vpop.f32.mrf.mxu0
      %v652 = vpop.f32.mrf.mxu0
      %v653 = vadd.f32 0.0, %v652
      %v654 = vpop.f32.mrf.mxu0
      %655 = vmatprep.mubr.bf16.mxu0 0
      %656 = vmatmul.mubr.bf16.gmra.mxu0 %v445
      %v657 = vpop.f32.mrf.mxu0
      %v658 = vadd.f32 0.0, %v657
      %v659 = vpop.f32.mrf.mxu0
      %v660 = vpop.f32.mrf.mxu0
      %v661 = vadd.f32 0.0, %v660
      %v662 = vpop.f32.mrf.mxu0
      %663 = vmatprep.mubr.bf16.mxu0 0
      %664 = vmatmul.mubr.bf16.gmra.mxu0 %v446
      %v665 = vpop.f32.mrf.mxu0
      %v666 = vadd.f32 0.0, %v665
      %v667 = vpop.f32.mrf.mxu0
      %v668 = vpop.f32.mrf.mxu0
      %v669 = vadd.f32 0.0, %v668
      %v670 = vpop.f32.mrf.mxu0
      %671 = vdwg.mxu0
      %v672 = vld [vmem:[%s3] sm:$0x1]
      %v674 = vlaneseq
      %v675 = vshrl.u32 %v674, 7
      %v676 = vsub.s32 0, %v675
      %v677 = vrot.slane %v672, %v676
      %v679 = vmul.f32 %v546, %v677
      %v680 = vmul.f32 %v549, %v677
      %v681 = vmul.f32 %v554, %v677
      %v682 = vmul.f32 %v557, %v677
      %v683 = vmul.f32 %v562, %v677
      %v684 = vmul.f32 %v565, %v677
      %v685 = vmul.f32 %v570, %v677
      %v686 = vmul.f32 %v573, %v677
      %v687 = vmul.f32 %v578, %v677
      %v688 = vmul.f32 %v581, %v677
      %v689 = vmul.f32 %v586, %v677
      %v690 = vmul.f32 %v589, %v677
      %v691 = vmul.f32 %v594, %v677
      %v692 = vmul.f32 %v597, %v677
      %v693 = vmul.f32 %v602, %v677
      %v694 = vmul.f32 %v605, %v677
      %v695 = vmul.f32 %v610, %v677
      %v696 = vmul.f32 %v613, %v677
      %v697 = vmul.f32 %v618, %v677
      %v698 = vmul.f32 %v621, %v677
      %v699 = vmul.f32 %v626, %v677
      %v700 = vmul.f32 %v629, %v677
      %v701 = vmul.f32 %v634, %v677
      %v702 = vmul.f32 %v637, %v677
      %v703 = vmul.f32 %v642, %v677
      %v704 = vmul.f32 %v645, %v677
      %v705 = vmul.f32 %v650, %v677
      %v706 = vmul.f32 %v653, %v677
      %v707 = vmul.f32 %v658, %v677
      %v708 = vmul.f32 %v661, %v677
      %v709 = vmul.f32 %v666, %v677
      %v710 = vmul.f32 %v669, %v677
      %v711 = vld [vmem:[%s4] sm:$0x1]
      %v713 = vlaneseq
      %v714 = vshrl.u32 %v713, 7
      %v715 = vsub.s32 0, %v714
      %v716 = vrot.slane %v711, %v715
      %v718 = vadd.f32 %v679, %v716
      %v719 = vadd.f32 %v680, %v716
      %v720 = vadd.f32 %v681, %v716
      %v721 = vadd.f32 %v682, %v716
      %v722 = vadd.f32 %v683, %v716
      %v723 = vadd.f32 %v684, %v716
      %v724 = vadd.f32 %v685, %v716
      %v725 = vadd.f32 %v686, %v716
      %v726 = vadd.f32 %v687, %v716
      %v727 = vadd.f32 %v688, %v716
      %v728 = vadd.f32 %v689, %v716
      %v729 = vadd.f32 %v690, %v716
      %v730 = vadd.f32 %v691, %v716
      %v731 = vadd.f32 %v692, %v716
      %v732 = vadd.f32 %v693, %v716
      %v733 = vadd.f32 %v694, %v716
      %v734 = vadd.f32 %v695, %v716
      %v735 = vadd.f32 %v696, %v716
      %v736 = vadd.f32 %v697, %v716
      %v737 = vadd.f32 %v698, %v716
      %v738 = vadd.f32 %v699, %v716
      %v739 = vadd.f32 %v700, %v716
      %v740 = vadd.f32 %v701, %v716
      %v741 = vadd.f32 %v702, %v716
      %v742 = vadd.f32 %v703, %v716
      %v743 = vadd.f32 %v704, %v716
      %v744 = vadd.f32 %v705, %v716
      %v745 = vadd.f32 %v706, %v716
      %v746 = vadd.f32 %v707, %v716
      %v747 = vadd.f32 %v708, %v716
      %v748 = vadd.f32 %v709, %v716
      %v749 = vadd.f32 %v710, %v716
      %v750 = vpack.c.bf16 %v719, %v718
      %v751 = vpack.c.bf16 %v721, %v720
      %v752 = vpack.c.bf16 %v723, %v722
      %v753 = vpack.c.bf16 %v725, %v724
      %v754 = vpack.c.bf16 %v727, %v726
      %v755 = vpack.c.bf16 %v729, %v728
      %v756 = vpack.c.bf16 %v731, %v730
      %v757 = vpack.c.bf16 %v733, %v732
      %v758 = vpack.c.bf16 %v735, %v734
      %v759 = vpack.c.bf16 %v737, %v736
      %v760 = vpack.c.bf16 %v739, %v738
      %v761 = vpack.c.bf16 %v741, %v740
      %v762 = vpack.c.bf16 %v743, %v742
      %v763 = vpack.c.bf16 %v745, %v744
      %v764 = vpack.c.bf16 %v747, %v746
      %v765 = vpack.c.bf16 %v749, %v748
      %v766 = vld [vmem:[%s5] sm:$0xf]
      %v767 = vld [vmem:[%s5 + $0x4] sm:$0xf]
      %v770 = vunpack.c.l.b16 %v766
      %v771 = vunpack.c.l.b16 %v767
      %v772 = vpack.c.b16 %v771, %v770
      %vm774 = vcmask 130048
      %v776 = vsel %vm774, %v750, 0
      %v779 = vsel %vm774, %v751, 0
      %v782 = vsel %vm774, %v752, 0
      %v785 = vsel %vm774, %v753, 0
      %v788 = vsel %vm774, %v754, 0
      %v791 = vsel %vm774, %v755, 0
      %v794 = vsel %vm774, %v756, 0
      %v797 = vsel %vm774, %v757, 0
      %v800 = vsel %vm774, %v758, 0
      %v803 = vsel %vm774, %v759, 0
      %v806 = vsel %vm774, %v760, 0
      %v809 = vsel %vm774, %v761, 0
      %v812 = vsel %vm774, %v762, 0
      %v815 = vsel %vm774, %v763, 0
      %v818 = vsel %vm774, %v764, 0
      %v821 = vsel %vm774, %v765, 0
      %823 = vmatprep.subr.bf16.mxu0 0
      %824 = vmatpush1.bf16.msra.mxu0 0
      %825 = vmatprep.subr.bf16.mxu0 0
      %826 = vmatpush1.bf16.msra.mxu0 0
      %827 = vmatprep.subr.bf16.mxu0 0
      %828 = vmatpush1.bf16.msra.mxu0 0
      %829 = vmatprep.subr.bf16.mxu0 0
      %830 = vmatpush1.bf16.msra.mxu0 0
      %831 = vmatprep.subr.bf16.mxu0 0
      %832 = vmatpush1.bf16.msra.mxu0 0
      %833 = vmatprep.subr.bf16.mxu0 0
      %834 = vmatpush1.bf16.msra.mxu0 0
      %835 = vmatprep.subr.bf16.mxu0 0
      %836 = vmatpush1.bf16.msra.mxu0 0
      %837 = vmatprep.subr.bf16.mxu0 0
      %838 = vmatpush1.bf16.msra.mxu0 %v772
      %839 = vmatprep.subr.bf16.mxu0 0
      %840 = vmatpush2.bf16.msra.mxu0 0
      %841 = vmatprep.subr.bf16.mxu0 0
      %842 = vmatpush2.bf16.msra.mxu0 0
      %843 = vmatprep.subr.bf16.mxu0 0
      %844 = vmatpush2.bf16.msra.mxu0 0
      %845 = vmatprep.subr.bf16.mxu0 0
      %846 = vmatpush2.bf16.msra.mxu0 0
      %847 = vmatprep.subr.bf16.mxu0 0
      %848 = vmatpush2.bf16.msra.mxu0 0
      %849 = vmatprep.subr.bf16.mxu0 0
      %850 = vmatpush2.bf16.msra.mxu0 0
      %851 = vmatprep.subr.bf16.mxu0 0
      %852 = vmatpush2.bf16.msra.mxu0 0
      %853 = vmatprep.subr.bf16.mxu0 0
      %854 = vmatpush2.bf16.msra.mxu0 0
      %855 = vmatprep.mubr.bf16.mxu0 0
      %856 = vmatmul.mubr.bf16.gmra.mxu0 %v776
      %v857 = vpop.f32.mrf.mxu0
      %v858 = vadd.f32 0.0, %v857
      %v859 = vpop.f32.mrf.mxu0
      %v860 = vpop.f32.mrf.mxu0
      %v861 = vadd.f32 0.0, %v860
      %v862 = vpop.f32.mrf.mxu0
      %863 = vmatprep.mubr.bf16.mxu0 0
      %864 = vmatmul.mubr.bf16.gmra.mxu0 %v779
      %v865 = vpop.f32.mrf.mxu0
      %v866 = vadd.f32 0.0, %v865
      %v867 = vpop.f32.mrf.mxu0
      %v868 = vpop.f32.mrf.mxu0
      %v869 = vadd.f32 0.0, %v868
      %v870 = vpop.f32.mrf.mxu0
      %871 = vmatprep.mubr.bf16.mxu0 0
      %872 = vmatmul.mubr.bf16.gmra.mxu0 %v782
      %v873 = vpop.f32.mrf.mxu0
      %v874 = vadd.f32 0.0, %v873
      %v875 = vpop.f32.mrf.mxu0
      %v876 = vpop.f32.mrf.mxu0
      %v877 = vadd.f32 0.0, %v876
      %v878 = vpop.f32.mrf.mxu0
      %879 = vmatprep.mubr.bf16.mxu0 0
      %880 = vmatmul.mubr.bf16.gmra.mxu0 %v785
      %v881 = vpop.f32.mrf.mxu0
      %v882 = vadd.f32 0.0, %v881
      %v883 = vpop.f32.mrf.mxu0
      %v884 = vpop.f32.mrf.mxu0
      %v885 = vadd.f32 0.0, %v884
      %v886 = vpop.f32.mrf.mxu0
      %887 = vmatprep.mubr.bf16.mxu0 0
      %888 = vmatmul.mubr.bf16.gmra.mxu0 %v788
      %v889 = vpop.f32.mrf.mxu0
      %v890 = vadd.f32 0.0, %v889
      %v891 = vpop.f32.mrf.mxu0
      %v892 = vpop.f32.mrf.mxu0
      %v893 = vadd.f32 0.0, %v892
      %v894 = vpop.f32.mrf.mxu0
      %895 = vmatprep.mubr.bf16.mxu0 0
      %896 = vmatmul.mubr.bf16.gmra.mxu0 %v791
      %v897 = vpop.f32.mrf.mxu0
      %v898 = vadd.f32 0.0, %v897
      %v899 = vpop.f32.mrf.mxu0
      %v900 = vpop.f32.mrf.mxu0
      %v901 = vadd.f32 0.0, %v900
      %v902 = vpop.f32.mrf.mxu0
      %903 = vmatprep.mubr.bf16.mxu0 0
      %904 = vmatmul.mubr.bf16.gmra.mxu0 %v794
      %v905 = vpop.f32.mrf.mxu0
      %v906 = vadd.f32 0.0, %v905
      %v907 = vpop.f32.mrf.mxu0
      %v908 = vpop.f32.mrf.mxu0
      %v909 = vadd.f32 0.0, %v908
      %v910 = vpop.f32.mrf.mxu0
      %911 = vmatprep.mubr.bf16.mxu0 0
      %912 = vmatmul.mubr.bf16.gmra.mxu0 %v797
      %v913 = vpop.f32.mrf.mxu0
      %v914 = vadd.f32 0.0, %v913
      %v915 = vpop.f32.mrf.mxu0
      %v916 = vpop.f32.mrf.mxu0
      %v917 = vadd.f32 0.0, %v916
      %v918 = vpop.f32.mrf.mxu0
      %919 = vmatprep.mubr.bf16.mxu0 0
      %920 = vmatmul.mubr.bf16.gmra.mxu0 %v800
      %v921 = vpop.f32.mrf.mxu0
      %v922 = vadd.f32 0.0, %v921
      %v923 = vpop.f32.mrf.mxu0
      %v924 = vpop.f32.mrf.mxu0
      %v925 = vadd.f32 0.0, %v924
      %v926 = vpop.f32.mrf.mxu0
      %927 = vmatprep.mubr.bf16.mxu0 0
      %928 = vmatmul.mubr.bf16.gmra.mxu0 %v803
      %v929 = vpop.f32.mrf.mxu0
      %v930 = vadd.f32 0.0, %v929
      %v931 = vpop.f32.mrf.mxu0
      %v932 = vpop.f32.mrf.mxu0
      %v933 = vadd.f32 0.0, %v932
      %v934 = vpop.f32.mrf.mxu0
      %935 = vmatprep.mubr.bf16.mxu0 0
      %936 = vmatmul.mubr.bf16.gmra.mxu0 %v806
      %v937 = vpop.f32.mrf.mxu0
      %v938 = vadd.f32 0.0, %v937
      %v939 = vpop.f32.mrf.mxu0
      %v940 = vpop.f32.mrf.mxu0
      %v941 = vadd.f32 0.0, %v940
      %v942 = vpop.f32.mrf.mxu0
      %943 = vmatprep.mubr.bf16.mxu0 0
      %944 = vmatmul.mubr.bf16.gmra.mxu0 %v809
      %v945 = vpop.f32.mrf.mxu0
      %v946 = vadd.f32 0.0, %v945
      %v947 = vpop.f32.mrf.mxu0
      %v948 = vpop.f32.mrf.mxu0
      %v949 = vadd.f32 0.0, %v948
      %v950 = vpop.f32.mrf.mxu0
      %951 = vmatprep.mubr.bf16.mxu0 0
      %952 = vmatmul.mubr.bf16.gmra.mxu0 %v812
      %v953 = vpop.f32.mrf.mxu0
      %v954 = vadd.f32 0.0, %v953
      %v955 = vpop.f32.mrf.mxu0
      %v956 = vpop.f32.mrf.mxu0
      %v957 = vadd.f32 0.0, %v956
      %v958 = vpop.f32.mrf.mxu0
      %959 = vmatprep.mubr.bf16.mxu0 0
      %960 = vmatmul.mubr.bf16.gmra.mxu0 %v815
      %v961 = vpop.f32.mrf.mxu0
      %v962 = vadd.f32 0.0, %v961
      %v963 = vpop.f32.mrf.mxu0
      %v964 = vpop.f32.mrf.mxu0
      %v965 = vadd.f32 0.0, %v964
      %v966 = vpop.f32.mrf.mxu0
      %967 = vmatprep.mubr.bf16.mxu0 0
      %968 = vmatmul.mubr.bf16.gmra.mxu0 %v818
      %v969 = vpop.f32.mrf.mxu0
      %v970 = vadd.f32 0.0, %v969
      %v971 = vpop.f32.mrf.mxu0
      %v972 = vpop.f32.mrf.mxu0
      %v973 = vadd.f32 0.0, %v972
      %v974 = vpop.f32.mrf.mxu0
      %975 = vmatprep.mubr.bf16.mxu0 0
      %976 = vmatmul.mubr.bf16.gmra.mxu0 %v821
      %v977 = vpop.f32.mrf.mxu0
      %v978 = vadd.f32 0.0, %v977
      %v979 = vpop.f32.mrf.mxu0
      %v980 = vpop.f32.mrf.mxu0
      %v981 = vadd.f32 0.0, %v980
      %v982 = vpop.f32.mrf.mxu0
      %983 = vdwg.mxu0
      %v984 = vld [vmem:[%s6] sm:$0x1]
      %v986 = vlaneseq
      %v987 = vshrl.u32 %v986, 7
      %v988 = vsub.s32 0, %v987
      %v989 = vrot.slane %v984, %v988
      %v991 = vmul.f32 %v858, %v989
      %v992 = vmul.f32 %v861, %v989
      %v993 = vmul.f32 %v866, %v989
      %v994 = vmul.f32 %v869, %v989
      %v995 = vmul.f32 %v874, %v989
      %v996 = vmul.f32 %v877, %v989
      %v997 = vmul.f32 %v882, %v989
      %v998 = vmul.f32 %v885, %v989
      %v999 = vmul.f32 %v890, %v989
      %v1000 = vmul.f32 %v893, %v989
      %v1001 = vmul.f32 %v898, %v989
      %v1002 = vmul.f32 %v901, %v989
      %v1003 = vmul.f32 %v906, %v989
      %v1004 = vmul.f32 %v909, %v989
      %v1005 = vmul.f32 %v914, %v989
      %v1006 = vmul.f32 %v917, %v989
      %v1007 = vmul.f32 %v922, %v989
      %v1008 = vmul.f32 %v925, %v989
      %v1009 = vmul.f32 %v930, %v989
      %v1010 = vmul.f32 %v933, %v989
      %v1011 = vmul.f32 %v938, %v989
      %v1012 = vmul.f32 %v941, %v989
      %v1013 = vmul.f32 %v946, %v989
      %v1014 = vmul.f32 %v949, %v989
      %v1015 = vmul.f32 %v954, %v989
      %v1016 = vmul.f32 %v957, %v989
      %v1017 = vmul.f32 %v962, %v989
      %v1018 = vmul.f32 %v965, %v989
      %v1019 = vmul.f32 %v970, %v989
      %v1020 = vmul.f32 %v973, %v989
      %v1021 = vmul.f32 %v978, %v989
      %v1022 = vmul.f32 %v981, %v989
      %v1023 = vld [vmem:[%s7] sm:$0x1]
      %v1025 = vlaneseq
      %v1026 = vshrl.u32 %v1025, 7
      %v1027 = vsub.s32 0, %v1026
      %v1028 = vrot.slane %v1023, %v1027
      %v1030 = vadd.f32 %v991, %v1028
      %v1031 = vadd.f32 %v992, %v1028
      %v1032 = vadd.f32 %v993, %v1028
      %v1033 = vadd.f32 %v994, %v1028
      %v1034 = vadd.f32 %v995, %v1028
      %v1035 = vadd.f32 %v996, %v1028
      %v1036 = vadd.f32 %v997, %v1028
      %v1037 = vadd.f32 %v998, %v1028
      %v1038 = vadd.f32 %v999, %v1028
      %v1039 = vadd.f32 %v1000, %v1028
      %v1040 = vadd.f32 %v1001, %v1028
      %v1041 = vadd.f32 %v1002, %v1028
      %v1042 = vadd.f32 %v1003, %v1028
      %v1043 = vadd.f32 %v1004, %v1028
      %v1044 = vadd.f32 %v1005, %v1028
      %v1045 = vadd.f32 %v1006, %v1028
      %v1046 = vadd.f32 %v1007, %v1028
      %v1047 = vadd.f32 %v1008, %v1028
      %v1048 = vadd.f32 %v1009, %v1028
      %v1049 = vadd.f32 %v1010, %v1028
      %v1050 = vadd.f32 %v1011, %v1028
      %v1051 = vadd.f32 %v1012, %v1028
      %v1052 = vadd.f32 %v1013, %v1028
      %v1053 = vadd.f32 %v1014, %v1028
      %v1054 = vadd.f32 %v1015, %v1028
      %v1055 = vadd.f32 %v1016, %v1028
      %v1056 = vadd.f32 %v1017, %v1028
      %v1057 = vadd.f32 %v1018, %v1028
      %v1058 = vadd.f32 %v1019, %v1028
      %v1059 = vadd.f32 %v1020, %v1028
      %v1060 = vadd.f32 %v1021, %v1028
      %v1061 = vadd.f32 %v1022, %v1028
      %v1062 = vsub.f32 0.0, %v1030
      %v1063 = vsub.f32 0.0, %v1031
      %v1064 = vsub.f32 0.0, %v1032
      %v1065 = vsub.f32 0.0, %v1033
      %v1066 = vsub.f32 0.0, %v1034
      %v1067 = vsub.f32 0.0, %v1035
      %v1068 = vsub.f32 0.0, %v1036
      %v1069 = vsub.f32 0.0, %v1037
      %v1070 = vsub.f32 0.0, %v1038
      %v1071 = vsub.f32 0.0, %v1039
      %v1072 = vsub.f32 0.0, %v1040
      %v1073 = vsub.f32 0.0, %v1041
      %v1074 = vsub.f32 0.0, %v1042
      %v1075 = vsub.f32 0.0, %v1043
      %v1076 = vsub.f32 0.0, %v1044
      %v1077 = vsub.f32 0.0, %v1045
      %v1078 = vsub.f32 0.0, %v1046
      %v1079 = vsub.f32 0.0, %v1047
      %v1080 = vsub.f32 0.0, %v1048
      %v1081 = vsub.f32 0.0, %v1049
      %v1082 = vsub.f32 0.0, %v1050
      %v1083 = vsub.f32 0.0, %v1051
      %v1084 = vsub.f32 0.0, %v1052
      %v1085 = vsub.f32 0.0, %v1053
      %v1086 = vsub.f32 0.0, %v1054
      %v1087 = vsub.f32 0.0, %v1055
      %v1088 = vsub.f32 0.0, %v1056
      %v1089 = vsub.f32 0.0, %v1057
      %v1090 = vsub.f32 0.0, %v1058
      %v1091 = vsub.f32 0.0, %v1059
      %v1092 = vsub.f32 0.0, %v1060
      %v1093 = vsub.f32 0.0, %v1061
      %v1094 = vmul.f32 %v1062, 1.442695
      %v1095 = vpow.pop %v1094
      %v1096 = vmul.f32 %v1063, 1.442695
      %v1097 = vpow.pop %v1096
      %v1098 = vmul.f32 %v1064, 1.442695
      %v1099 = vpow.pop %v1098
      %v1100 = vmul.f32 %v1065, 1.442695
      %v1101 = vpow.pop %v1100
      %v1102 = vmul.f32 %v1066, 1.442695
      %v1103 = vpow.pop %v1102
      %v1104 = vmul.f32 %v1067, 1.442695
      %v1105 = vpow.pop %v1104
      %v1106 = vmul.f32 %v1068, 1.442695
      %v1107 = vpow.pop %v1106
      %v1108 = vmul.f32 %v1069, 1.442695
      %v1109 = vpow.pop %v1108
      %v1110 = vmul.f32 %v1070, 1.442695
      %v1111 = vpow.pop %v1110
      %v1112 = vmul.f32 %v1071, 1.442695
      %v1113 = vpow.pop %v1112
      %v1114 = vmul.f32 %v1072, 1.442695
      %v1115 = vpow.pop %v1114
      %v1116 = vmul.f32 %v1073, 1.442695
      %v1117 = vpow.pop %v1116
      %v1118 = vmul.f32 %v1074, 1.442695
      %v1119 = vpow.pop %v1118
      %v1120 = vmul.f32 %v1075, 1.442695
      %v1121 = vpow.pop %v1120
      %v1122 = vmul.f32 %v1076, 1.442695
      %v1123 = vpow.pop %v1122
      %v1124 = vmul.f32 %v1077, 1.442695
      %v1125 = vpow.pop %v1124
      %v1126 = vmul.f32 %v1078, 1.442695
      %v1127 = vpow.pop %v1126
      %v1128 = vmul.f32 %v1079, 1.442695
      %v1129 = vpow.pop %v1128
      %v1130 = vmul.f32 %v1080, 1.442695
      %v1131 = vpow.pop %v1130
      %v1132 = vmul.f32 %v1081, 1.442695
      %v1133 = vpow.pop %v1132
      %v1134 = vmul.f32 %v1082, 1.442695
      %v1135 = vpow.pop %v1134
      %v1136 = vmul.f32 %v1083, 1.442695
      %v1137 = vpow.pop %v1136
      %v1138 = vmul.f32 %v1084, 1.442695
      %v1139 = vpow.pop %v1138
      %v1140 = vmul.f32 %v1085, 1.442695
      %v1141 = vpow.pop %v1140
      %v1142 = vmul.f32 %v1086, 1.442695
      %v1143 = vpow.pop %v1142
      %v1144 = vmul.f32 %v1087, 1.442695
      %v1145 = vpow.pop %v1144
      %v1146 = vmul.f32 %v1088, 1.442695
      %v1147 = vpow.pop %v1146
      %v1148 = vmul.f32 %v1089, 1.442695
      %v1149 = vpow.pop %v1148
      %v1150 = vmul.f32 %v1090, 1.442695
      %v1151 = vpow.pop %v1150
      %v1152 = vmul.f32 %v1091, 1.442695
      %v1153 = vpow.pop %v1152
      %v1154 = vmul.f32 %v1092, 1.442695
      %v1155 = vpow.pop %v1154
      %v1156 = vmul.f32 %v1093, 1.442695
      %v1157 = vpow.pop %v1156
      %v1158 = vadd.f32 %v1095, 1.0
      %v1159 = vadd.f32 %v1097, 1.0
      %v1160 = vadd.f32 %v1099, 1.0
      %v1161 = vadd.f32 %v1101, 1.0
      %v1162 = vadd.f32 %v1103, 1.0
      %v1163 = vadd.f32 %v1105, 1.0
      %v1164 = vadd.f32 %v1107, 1.0
      %v1165 = vadd.f32 %v1109, 1.0
      %v1166 = vadd.f32 %v1111, 1.0
      %v1167 = vadd.f32 %v1113, 1.0
      %v1168 = vadd.f32 %v1115, 1.0
      %v1169 = vadd.f32 %v1117, 1.0
      %v1170 = vadd.f32 %v1119, 1.0
      %v1171 = vadd.f32 %v1121, 1.0
      %v1172 = vadd.f32 %v1123, 1.0
      %v1173 = vadd.f32 %v1125, 1.0
      %v1174 = vadd.f32 %v1127, 1.0
      %v1175 = vadd.f32 %v1129, 1.0
      %v1176 = vadd.f32 %v1131, 1.0
      %v1177 = vadd.f32 %v1133, 1.0
      %v1178 = vadd.f32 %v1135, 1.0
      %v1179 = vadd.f32 %v1137, 1.0
      %v1180 = vadd.f32 %v1139, 1.0
      %v1181 = vadd.f32 %v1141, 1.0
      %v1182 = vadd.f32 %v1143, 1.0
      %v1183 = vadd.f32 %v1145, 1.0
      %v1184 = vadd.f32 %v1147, 1.0
      %v1185 = vadd.f32 %v1149, 1.0
      %v1186 = vadd.f32 %v1151, 1.0
      %v1187 = vadd.f32 %v1153, 1.0
      %v1188 = vadd.f32 %v1155, 1.0
      %v1189 = vadd.f32 %v1157, 1.0
      %v1190 = vrcp.pop %v1158
      %v1191 = vrcp.pop %v1159
      %v1192 = vrcp.pop %v1160
      %v1193 = vrcp.pop %v1161
      %v1194 = vrcp.pop %v1162
      %v1195 = vrcp.pop %v1163
      %v1196 = vrcp.pop %v1164
      %v1197 = vrcp.pop %v1165
      %v1198 = vrcp.pop %v1166
      %v1199 = vrcp.pop %v1167
      %v1200 = vrcp.pop %v1168
      %v1201 = vrcp.pop %v1169
      %v1202 = vrcp.pop %v1170
      %v1203 = vrcp.pop %v1171
      %v1204 = vrcp.pop %v1172
      %v1205 = vrcp.pop %v1173
      %v1206 = vrcp.pop %v1174
      %v1207 = vrcp.pop %v1175
      %v1208 = vrcp.pop %v1176
      %v1209 = vrcp.pop %v1177
      %v1210 = vrcp.pop %v1178
      %v1211 = vrcp.pop %v1179
      %v1212 = vrcp.pop %v1180
      %v1213 = vrcp.pop %v1181
      %v1214 = vrcp.pop %v1182
      %v1215 = vrcp.pop %v1183
      %v1216 = vrcp.pop %v1184
      %v1217 = vrcp.pop %v1185
      %v1218 = vrcp.pop %v1186
      %v1219 = vrcp.pop %v1187
      %v1220 = vrcp.pop %v1188
      %v1221 = vrcp.pop %v1189
      %v1222 = vmul.f32 %v1030, %v1190
      %v1223 = vmul.f32 %v1031, %v1191
      %v1224 = vmul.f32 %v1032, %v1192
      %v1225 = vmul.f32 %v1033, %v1193
      %v1226 = vmul.f32 %v1034, %v1194
      %v1227 = vmul.f32 %v1035, %v1195
      %v1228 = vmul.f32 %v1036, %v1196
      %v1229 = vmul.f32 %v1037, %v1197
      %v1230 = vmul.f32 %v1038, %v1198
      %v1231 = vmul.f32 %v1039, %v1199
      %v1232 = vmul.f32 %v1040, %v1200
      %v1233 = vmul.f32 %v1041, %v1201
      %v1234 = vmul.f32 %v1042, %v1202
      %v1235 = vmul.f32 %v1043, %v1203
      %v1236 = vmul.f32 %v1044, %v1204
      %v1237 = vmul.f32 %v1045, %v1205
      %v1238 = vmul.f32 %v1046, %v1206
      %v1239 = vmul.f32 %v1047, %v1207
      %v1240 = vmul.f32 %v1048, %v1208
      %v1241 = vmul.f32 %v1049, %v1209
      %v1242 = vmul.f32 %v1050, %v1210
      %v1243 = vmul.f32 %v1051, %v1211
      %v1244 = vmul.f32 %v1052, %v1212
      %v1245 = vmul.f32 %v1053, %v1213
      %v1246 = vmul.f32 %v1054, %v1214
      %v1247 = vmul.f32 %v1055, %v1215
      %v1248 = vmul.f32 %v1056, %v1216
      %v1249 = vmul.f32 %v1057, %v1217
      %v1250 = vmul.f32 %v1058, %v1218
      %v1251 = vmul.f32 %v1059, %v1219
      %v1252 = vmul.f32 %v1060, %v1220
      %v1253 = vmul.f32 %v1061, %v1221
      %1254 = vst [vmem:[%s357] sm:$0xff] %v1222
      %1255 = vst [vmem:[%s357 + $0x8] sm:$0xff] %v1223
      %1256 = vst [vmem:[%s357 + $0x10] sm:$0xff] %v1224
      %1257 = vst [vmem:[%s357 + $0x18] sm:$0xff] %v1225
      %1258 = vst [vmem:[%s357 + $0x20] sm:$0xff] %v1226
      %1259 = vst [vmem:[%s357 + $0x28] sm:$0xff] %v1227
      %1260 = vst [vmem:[%s357 + $0x30] sm:$0xff] %v1228
      %1261 = vst [vmem:[%s357 + $0x38] sm:$0xff] %v1229
      %1262 = vst [vmem:[%s357 + $0x40] sm:$0xff] %v1230
      %1263 = vst [vmem:[%s357 + $0x48] sm:$0xff] %v1231
      %1264 = vst [vmem:[%s357 + $0x50] sm:$0xff] %v1232
      %1265 = vst [vmem:[%s357 + $0x58] sm:$0xff] %v1233
      %1266 = vst [vmem:[%s357 + $0x60] sm:$0xff] %v1234
      %1267 = vst [vmem:[%s357 + $0x68] sm:$0xff] %v1235
      %1268 = vst [vmem:[%s357 + $0x70] sm:$0xff] %v1236
      %1269 = vst [vmem:[%s357 + $0x78] sm:$0xff] %v1237
      %1270 = vst [vmem:[%s357 + $0x80] sm:$0xff] %v1238
      %1271 = vst [vmem:[%s357 + $0x88] sm:$0xff] %v1239
      %1272 = vst [vmem:[%s357 + $0x90] sm:$0xff] %v1240
      %1273 = vst [vmem:[%s357 + $0x98] sm:$0xff] %v1241
      %1274 = vst [vmem:[%s357 + $0xa0] sm:$0xff] %v1242
      %1275 = vst [vmem:[%s357 + $0xa8] sm:$0xff] %v1243
      %1276 = vst [vmem:[%s357 + $0xb0] sm:$0xff] %v1244
      %1277 = vst [vmem:[%s357 + $0xb8] sm:$0xff] %v1245
      %1278 = vst [vmem:[%s357 + $0xc0] sm:$0xff] %v1246
      %1279 = vst [vmem:[%s357 + $0xc8] sm:$0xff] %v1247
      %1280 = vst [vmem:[%s357 + $0xd0] sm:$0xff] %v1248
      %1281 = vst [vmem:[%s357 + $0xd8] sm:$0xff] %v1249
      %1282 = vst [vmem:[%s357 + $0xe0] sm:$0xff] %v1250
      %1283 = vst [vmem:[%s357 + $0xe8] sm:$0xff] %v1251
      %1284 = vst [vmem:[%s357 + $0xf0] sm:$0xff] %v1252
      %1285 = vst [vmem:[%s357 + $0xf8] sm:$0xff] %v1253
      %s1286 = smul.u32 32, %s24
      %p1287 = scmp.lt.s32.totalorder %s23, 1
      %s1288 = scalar_select %p1287, %s23, 1
      %p1289 = scmp.lt.s32.totalorder %s1286, 31
      %s1290 = scalar_select %p1289, %s1286, 31
      %s1291 = smul.addr %s1288, 32
      %s1292 = sadd.s32 %s1290, %s1291
      %s1293 = smul.addr %s1292, 8
      %s1294 = scalar_lea.vmem %s8, %s1293
      // Predicated region
      $region53: #{image_encoder_forward.10} parent=51 // pred_check
        %p1295 = pneg %p231
      $region54: #{image_encoder_forward.10} parent=51 // pred_check_branch
        %1297 = sbr.rel (%p1295) target = $region56
      $region55: #{image_encoder_forward.10} parent=51 // pred_region
        %s1298 = smul.u32 32, %s24
      $region56: #{image_encoder_forward.10} parent=51 // pred_fallthru
        _
    $region52: #{image_encoder_forward.10} parent=5 // pred_fallthru
      _
    %p1299 = scmp.le.s32.totalorder 2, %s14
    // Predicated region
    $region57: #{image_encoder_forward.10} parent=5 // pred_check
      %p1300 = pneg %p1299
    $region58: #{image_encoder_forward.10} parent=5 // pred_check_branch
      %1302 = sbr.rel (%p1300) target = $region60
    $region59: #{image_encoder_forward.10} parent=5 // pred_region
      %s1303 = ssub.s32 %s14, 2
      // Predicated region
      $region61: #{image_encoder_forward.10} parent=59 // pred_check
        %p1304 = pneg %p237
      $region62: #{image_encoder_forward.10} parent=59 // pred_check_branch
        %1306 = sbr.rel (%p1304) target = $region64
      $region63: #{image_encoder_forward.10} parent=59 // pred_region
        %s1307 = smul.u32 32, %s26
        %p1308 = scmp.lt.s32.totalorder %s25, 1
        %s1309 = scalar_select %p1308, %s25, 1
        %p1310 = scmp.lt.s32.totalorder %s1307, 31
        %s1311 = scalar_select %p1310, %s1307, 31
        %s1312 = smul.addr %s1309, 32
        %s1313 = sadd.s32 %s1311, %s1312
        %s1314 = smul.addr %s1313, 8
        %s1315 = scalar_lea.vmem %s8, %s1314
      $region64: #{image_encoder_forward.10} parent=59 // pred_fallthru
        _
    $region60: #{image_encoder_forward.10} parent=5 // pred_fallthru
      _
  $region6: #{image_encoder_forward.10} parent=0 // loop_footer
    %s18 = sadd.s32 1, %s14
  $region7: #{image_encoder_forward.10} parent=0 // loop_footer_branch
    %13 = sbr.rel target = $region3
  $region8: #{image_encoder_forward.10} parent=0 // loop_exit
    _

// kernel: image_encoder_forward.8
$region0: #{image_encoder_forward.8}
  #allocation0 [shape = 'u32[]', space=smem, size = 0x4, offset = 0x4, fixed_abs, tag = 'smem constant byte address 0x4 - core index']
  #allocation1 [shape = 'u32[144,128]{1,0:T(1,128)}', space=vmem, size = 0x12000, scoped, tag = 'internal scratch']
  %s0 = inlined_call_operand.vmem [shape: f32[2,1,18,18,128], index: 0, kind: input, shape index: {}]
  %s1 = inlined_call_operand.vmem [shape: f32[9,128], index: 1, kind: input, shape index: {}]
  %s2 = inlined_call_operand.vmem [shape: f32[1,128], index: 2, kind: input, shape index: {}]
  %s3 = inlined_call_operand.vmem [shape: f32[1,128], index: 3, kind: input, shape index: {}]
  %s4 = inlined_call_operand.vmem [shape: f32[2,16,16,128], index: 4, kind: output, shape index: {}]
  %s5 = sld [smem:[#allocation0]]
  $region49: #{image_encoder_forward.8} parent=0
    _
  %s7 = ssub.s32 1, %s5
  %s8 = scalar_select 0, %s7, %s5
  loop: start=0, step=1, limit=4
  $region2: #{image_encoder_forward.8} parent=0 // loop_pre_header
    _
  $region3: #{image_encoder_forward.8} parent=0 // loop_header
    %s10 = sphi 0, %s14
    %p11 = scmp.ge.s32.totalorder %s10, 4
    %s20 = sphi 0, %s22
    %s23 = sphi 0, %s20
    %s24 = sphi 0, %s23
    %s40 = sphi 0, %s24
    %s44 = sphi 0, %s44
    %s46 = sphi 0, %s44
    %s47 = sphi 0, %s46
    %s61 = sphi 0, %s47
    %s65 = sphi 0, %s65
    %s67 = sphi 0, %s65
    %s68 = sphi 0, %s67
    %s82 = sphi 0, %s68
    %s86 = sphi 0, %s86
    %s88 = sphi 0, %s86
    %s89 = sphi 0, %s88
    %s103 = sphi 0, %s89
    %s109 = sphi 0, %s111
    %s112 = sphi 0, %s109
    %s113 = sphi 0, %s112
    %s129 = sphi 0, %s113
  $region4: #{image_encoder_forward.8} parent=0 // loop_header_branch
    %13 = sbr.rel (%p11) target = $region8
  $region5: #{image_encoder_forward.8} parent=0 // loop_body
    %s15 = ssub.s32 %s10, 1
    %s16 = ssub.s32 %s10, 2
    %s17 = sadd.s32 %s10, 1
    %s18 = ssub.s32 %s10, %s17
    %p19 = scmp.eq.s32.totalorder %s18, 0
    %s21 = sadd.s32 %s20, 1
    %s22 = scalar_select %p19, %s20, %s21
    %p25 = pneg %p19
    %p26 = scmp.eq.s32.totalorder %s10, 1
    %p27 = por %p25, %p26
    %p28 = scmp.ne.s32.totalorder %s20, %s23
    %p29 = scmp.eq.s32.totalorder %s10, 0
    %p30 = por %p28, %p29
    %p31 = scmp.ne.s32.totalorder %s20, %s23
    %p32 = scmp.eq.s32.totalorder %s15, 1
    %p33 = por %p31, %p32
    %p34 = scmp.ne.s32.totalorder %s23, %s24
    %p35 = scmp.eq.s32.totalorder %s15, 0
    %p36 = por %p34, %p35
    %p37 = scmp.ne.s32.totalorder %s23, %s24
    %p38 = scmp.eq.s32.totalorder %s16, 1
    %p39 = por %p37, %p38
    %p41 = scmp.ne.s32.totalorder %s24, %s40
    %p42 = scmp.eq.s32.totalorder %s16, 0
    %p43 = por %p41, %p42
    %s45 = sadd.s32 %s44, 1
    %p48 = scmp.eq.s32.totalorder %s10, 1
    %p49 = scmp.ne.s32.totalorder %s44, %s46
    %p50 = scmp.eq.s32.totalorder %s10, 0
    %p51 = por %p49, %p50
    %p52 = scmp.ne.s32.totalorder %s44, %s46
    %p53 = scmp.eq.s32.totalorder %s15, 1
    %p54 = por %p52, %p53
    %p55 = scmp.ne.s32.totalorder %s46, %s47
    %p56 = scmp.eq.s32.totalorder %s15, 0
    %p57 = por %p55, %p56
    %p58 = scmp.ne.s32.totalorder %s46, %s47
    %p59 = scmp.eq.s32.totalorder %s16, 1
    %p60 = por %p58, %p59
    %p62 = scmp.ne.s32.totalorder %s47, %s61
    %p63 = scmp.eq.s32.totalorder %s16, 0
    %p64 = por %p62, %p63
    %s66 = sadd.s32 %s65, 1
    %p69 = scmp.eq.s32.totalorder %s10, 1
    %p70 = scmp.ne.s32.totalorder %s65, %s67
    %p71 = scmp.eq.s32.totalorder %s10, 0
    %p72 = por %p70, %p71
    %p73 = scmp.ne.s32.totalorder %s65, %s67
    %p74 = scmp.eq.s32.totalorder %s15, 1
    %p75 = por %p73, %p74
    %p76 = scmp.ne.s32.totalorder %s67, %s68
    %p77 = scmp.eq.s32.totalorder %s15, 0
    %p78 = por %p76, %p77
    %p79 = scmp.ne.s32.totalorder %s67, %s68
    %p80 = scmp.eq.s32.totalorder %s16, 1
    %p81 = por %p79, %p80
    %p83 = scmp.ne.s32.totalorder %s68, %s82
    %p84 = scmp.eq.s32.totalorder %s16, 0
    %p85 = por %p83, %p84
    %s87 = sadd.s32 %s86, 1
    %p90 = scmp.eq.s32.totalorder %s10, 1
    %p91 = scmp.ne.s32.totalorder %s86, %s88
    %p92 = scmp.eq.s32.totalorder %s10, 0
    %p93 = por %p91, %p92
    %p94 = scmp.ne.s32.totalorder %s86, %s88
    %p95 = scmp.eq.s32.totalorder %s15, 1
    %p96 = por %p94, %p95
    %p97 = scmp.ne.s32.totalorder %s88, %s89
    %p98 = scmp.eq.s32.totalorder %s15, 0
    %p99 = por %p97, %p98
    %p100 = scmp.ne.s32.totalorder %s88, %s89
    %p101 = scmp.eq.s32.totalorder %s16, 1
    %p102 = por %p100, %p101
    %p104 = scmp.ne.s32.totalorder %s89, %s103
    %p105 = scmp.eq.s32.totalorder %s16, 0
    %p106 = por %p104, %p105
    %s107 = ssub.s32 %s10, %s17
    %p108 = scmp.eq.s32.totalorder %s107, 0
    %s110 = sadd.s32 %s109, 1
    %s111 = scalar_select %p108, %s109, %s110
    %p114 = pneg %p108
    %p115 = scmp.eq.s32.totalorder %s10, 1
    %p116 = por %p114, %p115
    %p117 = scmp.ne.s32.totalorder %s109, %s112
    %p118 = scmp.eq.s32.totalorder %s10, 0
    %p119 = por %p117, %p118
    %p120 = scmp.ne.s32.totalorder %s109, %s112
    %p121 = scmp.eq.s32.totalorder %s15, 1
    %p122 = por %p120, %p121
    %p123 = scmp.ne.s32.totalorder %s112, %s113
    %p124 = scmp.eq.s32.totalorder %s15, 0
    %p125 = por %p123, %p124
    %p126 = scmp.ne.s32.totalorder %s112, %s113
    %p127 = scmp.eq.s32.totalorder %s16, 1
    %p128 = por %p126, %p127
    %p130 = scmp.ne.s32.totalorder %s113, %s129
    %p131 = scmp.eq.s32.totalorder %s16, 0
    %p132 = por %p130, %p131
    %p133 = scmp.le.s32.totalorder 1, %s10
    %p134 = scmp.lt.s32.totalorder %s10, 3
    %p135 = pnand %p133, %p134
    %p136 = pneg %p135
    // Predicated region
    $region9: #{image_encoder_forward.8} parent=5 // pred_check
      _
    $region10: #{image_encoder_forward.8} parent=5 // pred_check_branch
      %138 = sbr.rel (%p135) target = $region12
    $region11: #{image_encoder_forward.8} parent=5 // pred_region
      %s139 = ssub.s32 %s10, 1
      // Predicated region
      $region13: #{image_encoder_forward.8} parent=11 // pred_check
        %p140 = pneg %p57
      $region14: #{image_encoder_forward.8} parent=11 // pred_check_branch
        %142 = sbr.rel (%p140) target = $region16
      $region15: #{image_encoder_forward.8} parent=11 // pred_region
        _
      $region16: #{image_encoder_forward.8} parent=11 // pred_fallthru
        _
      // Predicated region
      $region17: #{image_encoder_forward.8} parent=11 // pred_check
        %p143 = pneg %p78
      $region18: #{image_encoder_forward.8} parent=11 // pred_check_branch
        %145 = sbr.rel (%p143) target = $region20
      $region19: #{image_encoder_forward.8} parent=11 // pred_region
        _
      $region20: #{image_encoder_forward.8} parent=11 // pred_fallthru
        _
      // Predicated region
      $region21: #{image_encoder_forward.8} parent=11 // pred_check
        %p146 = pneg %p99
      $region22: #{image_encoder_forward.8} parent=11 // pred_check_branch
        %148 = sbr.rel (%p146) target = $region24
      $region23: #{image_encoder_forward.8} parent=11 // pred_region
        _
      $region24: #{image_encoder_forward.8} parent=11 // pred_fallthru
        _
    $region12: #{image_encoder_forward.8} parent=5 // pred_fallthru
      _
    %p149 = scmp.lt.s32.totalorder %s10, 2
    // Predicated region
    $region25: #{image_encoder_forward.8} parent=5 // pred_check
      %p150 = pneg %p149
    $region26: #{image_encoder_forward.8} parent=5 // pred_check_branch
      %152 = sbr.rel (%p150) target = $region28
    $region27: #{image_encoder_forward.8} parent=5 // pred_region
      // Predicated region
      $region29: #{image_encoder_forward.8} parent=27 // pred_check
        %p153 = pneg %p30
      $region30: #{image_encoder_forward.8} parent=27 // pred_check_branch
        %155 = sbr.rel (%p153) target = $region32
      $region31: #{image_encoder_forward.8} parent=27 // pred_region
        %p156 = scmp.lt.s32.totalorder %s10, 1
        %s157 = scalar_select %p156, %s10, 1
        %s158 = smul.addr %s157, 54
        %s159 = smul.addr %s158, 8
        %s160 = scalar_lea.vmem %s0, %s159
      $region32: #{image_encoder_forward.8} parent=27 // pred_fallthru
        _
    $region28: #{image_encoder_forward.8} parent=5 // pred_fallthru
      _
    %p161 = scmp.le.s32.totalorder 1, %s10
    %p162 = scmp.lt.s32.totalorder %s10, 3
    %p163 = pnand %p161, %p162
    %p164 = pneg %p163
    // Predicated region
    $region33: #{image_encoder_forward.8} parent=5 // pred_check
      _
    $region34: #{image_encoder_forward.8} parent=5 // pred_check_branch
      %166 = sbr.rel (%p163) target = $region36
    $region35: #{image_encoder_forward.8} parent=5 // pred_region
      %s167 = ssub.s32 %s10, 1
      %p168 = scmp.lt.s32.totalorder %s15, 1
      %s169 = scalar_select %p168, %s15, 1
      %s170 = smul.addr %s169, 54
      %s171 = smul.addr %s170, 8
      %s172 = scalar_lea.vmem %s0, %s171
      %p173 = pneg %p36
      %p174 = pneg %p33
      %p175 = pneg %p57
      %p176 = pneg %p54
      %p177 = pneg %p78
      %p178 = pneg %p75
      %p179 = pneg %p99
      %p180 = pneg %p96
      %p181 = pneg %p125
      %p182 = pneg %p122
      %p183 = scmp.lt.s32.totalorder %s15, 1
      %s184 = scalar_select %p183, %s15, 1
      %s185 = smul.addr %s184, 32
      %s186 = smul.addr %s185, 8
      %s187 = scalar_lea.vmem %s4, %s186
      %p188 = scmp.lt.s32.totalorder %s15, 1
      %s189 = scalar_select %p188, %s15, 1
      %s190 = smul.addr %s189, 54
      %s191 = smul.addr %s190, 8
      %s192 = scalar_lea.vmem %s0, %s191
      %p193 = scmp.lt.s32.totalorder %s15, 1
      %s194 = scalar_select %p193, %s15, 1
      %s195 = smul.addr %s194, 32
      %s196 = smul.addr %s195, 8
      %s197 = scalar_lea.vmem %s4, %s196
      %v198 = vld [vmem:[%s192] sm:$0xff]
      %v199 = vld [vmem:[%s192 + $0x8] sm:$0xff]
      %v200 = vld [vmem:[%s192 + $0x18] sm:$0xff]
      %v201 = vld [vmem:[%s192 + $0x20] sm:$0xff]
      %v202 = vld [vmem:[%s192 + $0x30] sm:$0xff]
      %v203 = vld [vmem:[%s192 + $0x38] sm:$0xff]
      %v204 = vld [vmem:[%s192 + $0x48] sm:$0xff]
      %v205 = vld [vmem:[%s192 + $0x50] sm:$0xff]
      %v206 = vld [vmem:[%s192 + $0x60] sm:$0xff]
      %v207 = vld [vmem:[%s192 + $0x68] sm:$0xff]
      %v208 = vld [vmem:[%s192 + $0x78] sm:$0xff]
      %v209 = vld [vmem:[%s192 + $0x80] sm:$0xff]
      %v210 = vld [vmem:[%s192 + $0x90] sm:$0xff]
      %v211 = vld [vmem:[%s192 + $0x98] sm:$0xff]
      %v212 = vld [vmem:[%s192 + $0xa8] sm:$0xff]
      %v213 = vld [vmem:[%s192 + $0xb0] sm:$0xff]
      %v214 = vld [vmem:[%s192 + $0xc0] sm:$0xff]
      %v215 = vld [vmem:[%s192 + $0xc8] sm:$0xff]
      %v216 = vld [vmem:[%s192 + $0xd8] sm:$0xff]
      %v217 = vld [vmem:[%s192 + $0xe0] sm:$0xff]
      %v218 = vld [vmem:[%s192 + $0xf0] sm:$0xff]
      %v219 = vld [vmem:[%s192 + $0xf8] sm:$0xff]
      %v220 = vld [vmem:[%s192 + $0x108] sm:$0xff]
      %v221 = vld [vmem:[%s192 + $0x110] sm:$0xff]
      %v222 = vld [vmem:[%s192 + $0x120] sm:$0xff]
      %v223 = vld [vmem:[%s192 + $0x128] sm:$0xff]
      %v224 = vld [vmem:[%s192 + $0x138] sm:$0xff]
      %v225 = vld [vmem:[%s192 + $0x140] sm:$0xff]
      %v226 = vld [vmem:[%s192 + $0x150] sm:$0xff]
      %v227 = vld [vmem:[%s192 + $0x158] sm:$0xff]
      %v228 = vld [vmem:[%s192 + $0x168] sm:$0xff]
      %v229 = vld [vmem:[%s192 + $0x170] sm:$0xff]
      %v230 = vld [vmem:[%s1] sm:$0x1]
      %v231 = vlaneseq
      %v232 = vshrl.u32 %v231, 7
      %v233 = vsub.s32 0, %v232
      %v234 = vrot.slane %v230, %v233
      %v235 = vmul.f32 %v198, %v234
      %v236 = vmul.f32 %v199, %v234
      %v237 = vmul.f32 %v200, %v234
      %v238 = vmul.f32 %v201, %v234
      %v239 = vmul.f32 %v202, %v234
      %v240 = vmul.f32 %v203, %v234
      %v241 = vmul.f32 %v204, %v234
      %v242 = vmul.f32 %v205, %v234
      %v243 = vmul.f32 %v206, %v234
      %v244 = vmul.f32 %v207, %v234
      %v245 = vmul.f32 %v208, %v234
      %v246 = vmul.f32 %v209, %v234
      %v247 = vmul.f32 %v210, %v234
      %v248 = vmul.f32 %v211, %v234
      %v249 = vmul.f32 %v212, %v234
      %v250 = vmul.f32 %v213, %v234
      %v251 = vmul.f32 %v214, %v234
      %v252 = vmul.f32 %v215, %v234
      %v253 = vmul.f32 %v216, %v234
      %v254 = vmul.f32 %v217, %v234
      %v255 = vmul.f32 %v218, %v234
      %v256 = vmul.f32 %v219, %v234
      %v257 = vmul.f32 %v220, %v234
      %v258 = vmul.f32 %v221, %v234
      %v259 = vmul.f32 %v222, %v234
      %v260 = vmul.f32 %v223, %v234
      %v261 = vmul.f32 %v224, %v234
      %v262 = vmul.f32 %v225, %v234
      %v263 = vmul.f32 %v226, %v234
      %v264 = vmul.f32 %v227, %v234
      %v265 = vmul.f32 %v228, %v234
      %v266 = vmul.f32 %v229, %v234
      %v267 = vld [vmem:[%s192 + $0x1] sm:$0xff]
      %v268 = vld [vmem:[%s192 + $0x9] sm:$0xff]
      %v269 = vld [vmem:[%s192 + $0x19] sm:$0xff]
      %v270 = vld [vmem:[%s192 + $0x21] sm:$0xff]
      %v271 = vld [vmem:[%s192 + $0x31] sm:$0xff]
      %v272 = vld [vmem:[%s192 + $0x39] sm:$0xff]
      %v273 = vld [vmem:[%s192 + $0x49] sm:$0xff]
      %v274 = vld [vmem:[%s192 + $0x51] sm:$0xff]
      %v275 = vld [vmem:[%s192 + $0x61] sm:$0xff]
      %v276 = vld [vmem:[%s192 + $0x69] sm:$0xff]
      %v277 = vld [vmem:[%s192 + $0x79] sm:$0xff]
      %v278 = vld [vmem:[%s192 + $0x81] sm:$0xff]
      %v279 = vld [vmem:[%s192 + $0x91] sm:$0xff]
      %v280 = vld [vmem:[%s192 + $0x99] sm:$0xff]
      %v281 = vld [vmem:[%s192 + $0xa9] sm:$0xff]
      %v282 = vld [vmem:[%s192 + $0xb1] sm:$0xff]
      %v283 = vld [vmem:[%s192 + $0xc1] sm:$0xff]
      %v284 = vld [vmem:[%s192 + $0xc9] sm:$0xff]
      %v285 = vld [vmem:[%s192 + $0xd9] sm:$0xff]
      %v286 = vld [vmem:[%s192 + $0xe1] sm:$0xff]
      %v287 = vld [vmem:[%s192 + $0xf1] sm:$0xff]
      %v288 = vld [vmem:[%s192 + $0xf9] sm:$0xff]
      %v289 = vld [vmem:[%s192 + $0x109] sm:$0xff]
      %v290 = vld [vmem:[%s192 + $0x111] sm:$0xff]
      %v291 = vld [vmem:[%s192 + $0x121] sm:$0xff]
      %v292 = vld [vmem:[%s192 + $0x129] sm:$0xff]
      %v293 = vld [vmem:[%s192 + $0x139] sm:$0xff]
      %v294 = vld [vmem:[%s192 + $0x141] sm:$0xff]
      %v295 = vld [vmem:[%s192 + $0x151] sm:$0xff]
      %v296 = vld [vmem:[%s192 + $0x159] sm:$0xff]
      %v297 = vld [vmem:[%s192 + $0x169] sm:$0xff]
      %v298 = vld [vmem:[%s192 + $0x171] sm:$0xff]
      %v299 = vld [vmem:[%s1 + $0x1] sm:$0x1]
      %v300 = vlaneseq
      %v301 = vshrl.u32 %v300, 7
      %v302 = vsub.s32 0, %v301
      %v303 = vrot.slane %v299, %v302
      %v304 = vmul.f32 %v267, %v303
      %v305 = vmul.f32 %v268, %v303
      %v306 = vmul.f32 %v269, %v303
      %v307 = vmul.f32 %v270, %v303
      %v308 = vmul.f32 %v271, %v303
      %v309 = vmul.f32 %v272, %v303
      %v310 = vmul.f32 %v273, %v303
      %v311 = vmul.f32 %v274, %v303
      %v312 = vmul.f32 %v275, %v303
      %v313 = vmul.f32 %v276, %v303
      %v314 = vmul.f32 %v277, %v303
      %v315 = vmul.f32 %v278, %v303
      %v316 = vmul.f32 %v279, %v303
      %v317 = vmul.f32 %v280, %v303
      %v318 = vmul.f32 %v281, %v303
      %v319 = vmul.f32 %v282, %v303
      %v320 = vmul.f32 %v283, %v303
      %v321 = vmul.f32 %v284, %v303
      %v322 = vmul.f32 %v285, %v303
      %v323 = vmul.f32 %v286, %v303
      %v324 = vmul.f32 %v287, %v303
      %v325 = vmul.f32 %v288, %v303
      %v326 = vmul.f32 %v289, %v303
      %v327 = vmul.f32 %v290, %v303
      %v328 = vmul.f32 %v291, %v303
      %v329 = vmul.f32 %v292, %v303
      %v330 = vmul.f32 %v293, %v303
      %v331 = vmul.f32 %v294, %v303
      %v332 = vmul.f32 %v295, %v303
      %v333 = vmul.f32 %v296, %v303
      %v334 = vmul.f32 %v297, %v303
      %v335 = vmul.f32 %v298, %v303
      %v336 = vadd.f32 %v235, %v304
      %v337 = vadd.f32 %v236, %v305
      %v338 = vadd.f32 %v237, %v306
      %v339 = vadd.f32 %v238, %v307
      %v340 = vadd.f32 %v239, %v308
      %v341 = vadd.f32 %v240, %v309
      %v342 = vadd.f32 %v241, %v310
      %v343 = vadd.f32 %v242, %v311
      %v344 = vadd.f32 %v243, %v312
      %v345 = vadd.f32 %v244, %v313
      %v346 = vadd.f32 %v245, %v314
      %v347 = vadd.f32 %v246, %v315
      %v348 = vadd.f32 %v247, %v316
      %v349 = vadd.f32 %v248, %v317
      %v350 = vadd.f32 %v249, %v318
      %v351 = vadd.f32 %v250, %v319
      %v352 = vadd.f32 %v251, %v320
      %v353 = vadd.f32 %v252, %v321
      %v354 = vadd.f32 %v253, %v322
      %v355 = vadd.f32 %v254, %v323
      %v356 = vadd.f32 %v255, %v324
      %v357 = vadd.f32 %v256, %v325
      %v358 = vadd.f32 %v257, %v326
      %v359 = vadd.f32 %v258, %v327
      %v360 = vadd.f32 %v259, %v328
      %v361 = vadd.f32 %v260, %v329
      %v362 = vadd.f32 %v261, %v330
      %v363 = vadd.f32 %v262, %v331
      %v364 = vadd.f32 %v263, %v332
      %v365 = vadd.f32 %v264, %v333
      %v366 = vadd.f32 %v265, %v334
      %v367 = vadd.f32 %v266, %v335
      %v368 = vld [vmem:[%s192 + $0x2] sm:$0xff]
      %v369 = vld [vmem:[%s192 + $0xa] sm:$0xff]
      %v370 = vld [vmem:[%s192 + $0x1a] sm:$0xff]
      %v371 = vld [vmem:[%s192 + $0x22] sm:$0xff]
      %v372 = vld [vmem:[%s192 + $0x32] sm:$0xff]
      %v373 = vld [vmem:[%s192 + $0x3a] sm:$0xff]
      %v374 = vld [vmem:[%s192 + $0x4a] sm:$0xff]
      %v375 = vld [vmem:[%s192 + $0x52] sm:$0xff]
      %v376 = vld [vmem:[%s192 + $0x62] sm:$0xff]
      %v377 = vld [vmem:[%s192 + $0x6a] sm:$0xff]
      %v378 = vld [vmem:[%s192 + $0x7a] sm:$0xff]
      %v379 = vld [vmem:[%s192 + $0x82] sm:$0xff]
      %v380 = vld [vmem:[%s192 + $0x92] sm:$0xff]
      %v381 = vld [vmem:[%s192 + $0x9a] sm:$0xff]
      %v382 = vld [vmem:[%s192 + $0xaa] sm:$0xff]
      %v383 = vld [vmem:[%s192 + $0xb2] sm:$0xff]
      %v384 = vld [vmem:[%s192 + $0xc2] sm:$0xff]
      %v385 = vld [vmem:[%s192 + $0xca] sm:$0xff]
      %v386 = vld [vmem:[%s192 + $0xda] sm:$0xff]
      %v387 = vld [vmem:[%s192 + $0xe2] sm:$0xff]
      %v388 = vld [vmem:[%s192 + $0xf2] sm:$0xff]
      %v389 = vld [vmem:[%s192 + $0xfa] sm:$0xff]
      %v390 = vld [vmem:[%s192 + $0x10a] sm:$0xff]
      %v391 = vld [vmem:[%s192 + $0x112] sm:$0xff]
      %v392 = vld [vmem:[%s192 + $0x122] sm:$0xff]
      %v393 = vld [vmem:[%s192 + $0x12a] sm:$0xff]
      %v394 = vld [vmem:[%s192 + $0x13a] sm:$0xff]
      %v395 = vld [vmem:[%s192 + $0x142] sm:$0xff]
      %v396 = vld [vmem:[%s192 + $0x152] sm:$0xff]
      %v397 = vld [vmem:[%s192 + $0x15a] sm:$0xff]
      %v398 = vld [vmem:[%s192 + $0x16a] sm:$0xff]
      %v399 = vld [vmem:[%s192 + $0x172] sm:$0xff]
      %v400 = vld [vmem:[%s1 + $0x2] sm:$0x1]
      %v401 = vlaneseq
      %v402 = vshrl.u32 %v401, 7
      %v403 = vsub.s32 0, %v402
      %v404 = vrot.slane %v400, %v403
      %v405 = vmul.f32 %v368, %v404
      %v406 = vmul.f32 %v369, %v404
      %v407 = vmul.f32 %v370, %v404
      %v408 = vmul.f32 %v371, %v404
      %v409 = vmul.f32 %v372, %v404
      %v410 = vmul.f32 %v373, %v404
      %v411 = vmul.f32 %v374, %v404
      %v412 = vmul.f32 %v375, %v404
      %v413 = vmul.f32 %v376, %v404
      %v414 = vmul.f32 %v377, %v404
      %v415 = vmul.f32 %v378, %v404
      %v416 = vmul.f32 %v379, %v404
      %v417 = vmul.f32 %v380, %v404
      %v418 = vmul.f32 %v381, %v404
      %v419 = vmul.f32 %v382, %v404
      %v420 = vmul.f32 %v383, %v404
      %v421 = vmul.f32 %v384, %v404
      %v422 = vmul.f32 %v385, %v404
      %v423 = vmul.f32 %v386, %v404
      %v424 = vmul.f32 %v387, %v404
      %v425 = vmul.f32 %v388, %v404
      %v426 = vmul.f32 %v389, %v404
      %v427 = vmul.f32 %v390, %v404
      %v428 = vmul.f32 %v391, %v404
      %v429 = vmul.f32 %v392, %v404
      %v430 = vmul.f32 %v393, %v404
      %v431 = vmul.f32 %v394, %v404
      %v432 = vmul.f32 %v395, %v404
      %v433 = vmul.f32 %v396, %v404
      %v434 = vmul.f32 %v397, %v404
      %v435 = vmul.f32 %v398, %v404
      %v436 = vmul.f32 %v399, %v404
      %v437 = vadd.f32 %v336, %v405
      %v438 = vadd.f32 %v337, %v406
      %v439 = vadd.f32 %v338, %v407
      %v440 = vadd.f32 %v339, %v408
      %v441 = vadd.f32 %v340, %v409
      %v442 = vadd.f32 %v341, %v410
      %v443 = vadd.f32 %v342, %v411
      %v444 = vadd.f32 %v343, %v412
      %v445 = vadd.f32 %v344, %v413
      %v446 = vadd.f32 %v345, %v414
      %v447 = vadd.f32 %v346, %v415
      %v448 = vadd.f32 %v347, %v416
      %v449 = vadd.f32 %v348, %v417
      %v450 = vadd.f32 %v349, %v418
      %v451 = vadd.f32 %v350, %v419
      %v452 = vadd.f32 %v351, %v420
      %v453 = vadd.f32 %v352, %v421
      %v454 = vadd.f32 %v353, %v422
      %v455 = vadd.f32 %v354, %v423
      %v456 = vadd.f32 %v355, %v424
      %v457 = vadd.f32 %v356, %v425
      %v458 = vadd.f32 %v357, %v426
      %v459 = vadd.f32 %v358, %v427
      %v460 = vadd.f32 %v359, %v428
      %v461 = vadd.f32 %v360, %v429
      %v462 = vadd.f32 %v361, %v430
      %v463 = vadd.f32 %v362, %v431
      %v464 = vadd.f32 %v363, %v432
      %v465 = vadd.f32 %v364, %v433
      %v466 = vadd.f32 %v365, %v434
      %v467 = vadd.f32 %v366, %v435
      %v468 = vadd.f32 %v367, %v436
      %s469 = scalar_lea.vmem %s192, 24
      %v470 = vld [vmem:[%s469] sm:$0xff]
      %v471 = vld [vmem:[%s469 + $0x8] sm:$0xff]
      %v472 = vld [vmem:[%s469 + $0x18] sm:$0xff]
      %v473 = vld [vmem:[%s469 + $0x20] sm:$0xff]
      %v474 = vld [vmem:[%s469 + $0x30] sm:$0xff]
      %v475 = vld [vmem:[%s469 + $0x38] sm:$0xff]
      %v476 = vld [vmem:[%s469 + $0x48] sm:$0xff]
      %v477 = vld [vmem:[%s469 + $0x50] sm:$0xff]
      %v478 = vld [vmem:[%s469 + $0x60] sm:$0xff]
      %v479 = vld [vmem:[%s469 + $0x68] sm:$0xff]
      %v480 = vld [vmem:[%s469 + $0x78] sm:$0xff]
      %v481 = vld [vmem:[%s469 + $0x80] sm:$0xff]
      %v482 = vld [vmem:[%s469 + $0x90] sm:$0xff]
      %v483 = vld [vmem:[%s469 + $0x98] sm:$0xff]
      %v484 = vld [vmem:[%s469 + $0xa8] sm:$0xff]
      %v485 = vld [vmem:[%s469 + $0xb0] sm:$0xff]
      %v486 = vld [vmem:[%s469 + $0xc0] sm:$0xff]
      %v487 = vld [vmem:[%s469 + $0xc8] sm:$0xff]
      %v488 = vld [vmem:[%s469 + $0xd8] sm:$0xff]
      %v489 = vld [vmem:[%s469 + $0xe0] sm:$0xff]
      %v490 = vld [vmem:[%s469 + $0xf0] sm:$0xff]
      %v491 = vld [vmem:[%s469 + $0xf8] sm:$0xff]
      %v492 = vld [vmem:[%s469 + $0x108] sm:$0xff]
      %v493 = vld [vmem:[%s469 + $0x110] sm:$0xff]
      %v494 = vld [vmem:[%s469 + $0x120] sm:$0xff]
      %v495 = vld [vmem:[%s469 + $0x128] sm:$0xff]
      %v496 = vld [vmem:[%s469 + $0x138] sm:$0xff]
      %v497 = vld [vmem:[%s469 + $0x140] sm:$0xff]
      %v498 = vld [vmem:[%s469 + $0x150] sm:$0xff]
      %v499 = vld [vmem:[%s469 + $0x158] sm:$0xff]
      %v500 = vld [vmem:[%s469 + $0x168] sm:$0xff]
      %v501 = vld [vmem:[%s469 + $0x170] sm:$0xff]
      %v502 = vld [vmem:[%s1 + $0x3] sm:$0x1]
      %v503 = vlaneseq
      %v504 = vshrl.u32 %v503, 7
      %v505 = vsub.s32 0, %v504
      %v506 = vrot.slane %v502, %v505
      %v507 = vmul.f32 %v470, %v506
      %v508 = vmul.f32 %v471, %v506
      %v509 = vmul.f32 %v472, %v506
      %v510 = vmul.f32 %v473, %v506
      %v511 = vmul.f32 %v474, %v506
      %v512 = vmul.f32 %v475, %v506
      %v513 = vmul.f32 %v476, %v506
      %v514 = vmul.f32 %v477, %v506
      %v515 = vmul.f32 %v478, %v506
      %v516 = vmul.f32 %v479, %v506
      %v517 = vmul.f32 %v480, %v506
      %v518 = vmul.f32 %v481, %v506
      %v519 = vmul.f32 %v482, %v506
      %v520 = vmul.f32 %v483, %v506
      %v521 = vmul.f32 %v484, %v506
      %v522 = vmul.f32 %v485, %v506
      %v523 = vmul.f32 %v486, %v506
      %v524 = vmul.f32 %v487, %v506
      %v525 = vmul.f32 %v488, %v506
      %v526 = vmul.f32 %v489, %v506
      %v527 = vmul.f32 %v490, %v506
      %v528 = vmul.f32 %v491, %v506
      %v529 = vmul.f32 %v492, %v506
      %v530 = vmul.f32 %v493, %v506
      %v531 = vmul.f32 %v494, %v506
      %v532 = vmul.f32 %v495, %v506
      %v533 = vmul.f32 %v496, %v506
      %v534 = vmul.f32 %v497, %v506
      %v535 = vmul.f32 %v498, %v506
      %v536 = vmul.f32 %v499, %v506
      %v537 = vmul.f32 %v500, %v506
      %v538 = vmul.f32 %v501, %v506
      %v539 = vadd.f32 %v437, %v507
      %v540 = vadd.f32 %v438, %v508
      %v541 = vadd.f32 %v439, %v509
      %v542 = vadd.f32 %v440, %v510
      %v543 = vadd.f32 %v441, %v511
      %v544 = vadd.f32 %v442, %v512
      %v545 = vadd.f32 %v443, %v513
      %v546 = vadd.f32 %v444, %v514
      %v547 = vadd.f32 %v445, %v515
      %v548 = vadd.f32 %v446, %v516
      %v549 = vadd.f32 %v447, %v517
      %v550 = vadd.f32 %v448, %v518
      %v551 = vadd.f32 %v449, %v519
      %v552 = vadd.f32 %v450, %v520
      %v553 = vadd.f32 %v451, %v521
      %v554 = vadd.f32 %v452, %v522
      %v555 = vadd.f32 %v453, %v523
      %v556 = vadd.f32 %v454, %v524
      %v557 = vadd.f32 %v455, %v525
      %v558 = vadd.f32 %v456, %v526
      %v559 = vadd.f32 %v457, %v527
      %v560 = vadd.f32 %v458, %v528
      %v561 = vadd.f32 %v459, %v529
      %v562 = vadd.f32 %v460, %v530
      %v563 = vadd.f32 %v461, %v531
      %v564 = vadd.f32 %v462, %v532
      %v565 = vadd.f32 %v463, %v533
      %v566 = vadd.f32 %v464, %v534
      %v567 = vadd.f32 %v465, %v535
      %v568 = vadd.f32 %v466, %v536
      %v569 = vadd.f32 %v467, %v537
      %v570 = vadd.f32 %v468, %v538
      %v571 = vld [vmem:[%s469 + $0x1] sm:$0xff]
      %v572 = vld [vmem:[%s469 + $0x9] sm:$0xff]
      %v573 = vld [vmem:[%s469 + $0x19] sm:$0xff]
      %v574 = vld [vmem:[%s469 + $0x21] sm:$0xff]
      %v575 = vld [vmem:[%s469 + $0x31] sm:$0xff]
      %v576 = vld [vmem:[%s469 + $0x39] sm:$0xff]
      %v577 = vld [vmem:[%s469 + $0x49] sm:$0xff]
      %v578 = vld [vmem:[%s469 + $0x51] sm:$0xff]
      %v579 = vld [vmem:[%s469 + $0x61] sm:$0xff]
      %v580 = vld [vmem:[%s469 + $0x69] sm:$0xff]
      %v581 = vld [vmem:[%s469 + $0x79] sm:$0xff]
      %v582 = vld [vmem:[%s469 + $0x81] sm:$0xff]
      %v583 = vld [vmem:[%s469 + $0x91] sm:$0xff]
      %v584 = vld [vmem:[%s469 + $0x99] sm:$0xff]
      %v585 = vld [vmem:[%s469 + $0xa9] sm:$0xff]
      %v586 = vld [vmem:[%s469 + $0xb1] sm:$0xff]
      %v587 = vld [vmem:[%s469 + $0xc1] sm:$0xff]
      %v588 = vld [vmem:[%s469 + $0xc9] sm:$0xff]
      %v589 = vld [vmem:[%s469 + $0xd9] sm:$0xff]
      %v590 = vld [vmem:[%s469 + $0xe1] sm:$0xff]
      %v591 = vld [vmem:[%s469 + $0xf1] sm:$0xff]
      %v592 = vld [vmem:[%s469 + $0xf9] sm:$0xff]
      %v593 = vld [vmem:[%s469 + $0x109] sm:$0xff]
      %v594 = vld [vmem:[%s469 + $0x111] sm:$0xff]
      %v595 = vld [vmem:[%s469 + $0x121] sm:$0xff]
      %v596 = vld [vmem:[%s469 + $0x129] sm:$0xff]
      %v597 = vld [vmem:[%s469 + $0x139] sm:$0xff]
      %v598 = vld [vmem:[%s469 + $0x141] sm:$0xff]
      %v599 = vld [vmem:[%s469 + $0x151] sm:$0xff]
      %v600 = vld [vmem:[%s469 + $0x159] sm:$0xff]
      %v601 = vld [vmem:[%s469 + $0x169] sm:$0xff]
      %v602 = vld [vmem:[%s469 + $0x171] sm:$0xff]
      %v603 = vld [vmem:[%s1 + $0x4] sm:$0x1]
      %v604 = vlaneseq
      %v605 = vshrl.u32 %v604, 7
      %v606 = vsub.s32 0, %v605
      %v607 = vrot.slane %v603, %v606
      %v608 = vmul.f32 %v571, %v607
      %v609 = vmul.f32 %v572, %v607
      %v610 = vmul.f32 %v573, %v607
      %v611 = vmul.f32 %v574, %v607
      %v612 = vmul.f32 %v575, %v607
      %v613 = vmul.f32 %v576, %v607
      %v614 = vmul.f32 %v577, %v607
      %v615 = vmul.f32 %v578, %v607
      %v616 = vmul.f32 %v579, %v607
      %v617 = vmul.f32 %v580, %v607
      %v618 = vmul.f32 %v581, %v607
      %v619 = vmul.f32 %v582, %v607
      %v620 = vmul.f32 %v583, %v607
      %v621 = vmul.f32 %v584, %v607
      %v622 = vmul.f32 %v585, %v607
      %v623 = vmul.f32 %v586, %v607
      %v624 = vmul.f32 %v587, %v607
      %v625 = vmul.f32 %v588, %v607
      %v626 = vmul.f32 %v589, %v607
      %v627 = vmul.f32 %v590, %v607
      %v628 = vmul.f32 %v591, %v607
      %v629 = vmul.f32 %v592, %v607
      %v630 = vmul.f32 %v593, %v607
      %v631 = vmul.f32 %v594, %v607
      %v632 = vmul.f32 %v595, %v607
      %v633 = vmul.f32 %v596, %v607
      %v634 = vmul.f32 %v597, %v607
      %v635 = vmul.f32 %v598, %v607
      %v636 = vmul.f32 %v599, %v607
      %v637 = vmul.f32 %v600, %v607
      %v638 = vmul.f32 %v601, %v607
      %v639 = vmul.f32 %v602, %v607
      %v640 = vadd.f32 %v539, %v608
      %v641 = vadd.f32 %v540, %v609
      %v642 = vadd.f32 %v541, %v610
      %v643 = vadd.f32 %v542, %v611
      %v644 = vadd.f32 %v543, %v612
      %v645 = vadd.f32 %v544, %v613
      %v646 = vadd.f32 %v545, %v614
      %v647 = vadd.f32 %v546, %v615
      %v648 = vadd.f32 %v547, %v616
      %v649 = vadd.f32 %v548, %v617
      %v650 = vadd.f32 %v549, %v618
      %v651 = vadd.f32 %v550, %v619
      %v652 = vadd.f32 %v551, %v620
      %v653 = vadd.f32 %v552, %v621
      %v654 = vadd.f32 %v553, %v622
      %v655 = vadd.f32 %v554, %v623
      %v656 = vadd.f32 %v555, %v624
      %v657 = vadd.f32 %v556, %v625
      %v658 = vadd.f32 %v557, %v626
      %v659 = vadd.f32 %v558, %v627
      %v660 = vadd.f32 %v559, %v628
      %v661 = vadd.f32 %v560, %v629
      %v662 = vadd.f32 %v561, %v630
      %v663 = vadd.f32 %v562, %v631
      %v664 = vadd.f32 %v563, %v632
      %v665 = vadd.f32 %v564, %v633
      %v666 = vadd.f32 %v565, %v634
      %v667 = vadd.f32 %v566, %v635
      %v668 = vadd.f32 %v567, %v636
      %v669 = vadd.f32 %v568, %v637
      %v670 = vadd.f32 %v569, %v638
      %v671 = vadd.f32 %v570, %v639
      %v672 = vld [vmem:[%s469 + $0x2] sm:$0xff]
      %v673 = vld [vmem:[%s469 + $0xa] sm:$0xff]
      %v674 = vld [vmem:[%s469 + $0x1a] sm:$0xff]
      %v675 = vld [vmem:[%s469 + $0x22] sm:$0xff]
      %v676 = vld [vmem:[%s469 + $0x32] sm:$0xff]
      %v677 = vld [vmem:[%s469 + $0x3a] sm:$0xff]
      %v678 = vld [vmem:[%s469 + $0x4a] sm:$0xff]
      %v679 = vld [vmem:[%s469 + $0x52] sm:$0xff]
      %v680 = vld [vmem:[%s469 + $0x62] sm:$0xff]
      %v681 = vld [vmem:[%s469 + $0x6a] sm:$0xff]
      %v682 = vld [vmem:[%s469 + $0x7a] sm:$0xff]
      %v683 = vld [vmem:[%s469 + $0x82] sm:$0xff]
      %v684 = vld [vmem:[%s469 + $0x92] sm:$0xff]
      %v685 = vld [vmem:[%s469 + $0x9a] sm:$0xff]
      %v686 = vld [vmem:[%s469 + $0xaa] sm:$0xff]
      %v687 = vld [vmem:[%s469 + $0xb2] sm:$0xff]
      %v688 = vld [vmem:[%s469 + $0xc2] sm:$0xff]
      %v689 = vld [vmem:[%s469 + $0xca] sm:$0xff]
      %v690 = vld [vmem:[%s469 + $0xda] sm:$0xff]
      %v691 = vld [vmem:[%s469 + $0xe2] sm:$0xff]
      %v692 = vld [vmem:[%s469 + $0xf2] sm:$0xff]
      %v693 = vld [vmem:[%s469 + $0xfa] sm:$0xff]
      %v694 = vld [vmem:[%s469 + $0x10a] sm:$0xff]
      %v695 = vld [vmem:[%s469 + $0x112] sm:$0xff]
      %v696 = vld [vmem:[%s469 + $0x122] sm:$0xff]
      %v697 = vld [vmem:[%s469 + $0x12a] sm:$0xff]
      %v698 = vld [vmem:[%s469 + $0x13a] sm:$0xff]
      %v699 = vld [vmem:[%s469 + $0x142] sm:$0xff]
      %v700 = vld [vmem:[%s469 + $0x152] sm:$0xff]
      %v701 = vld [vmem:[%s469 + $0x15a] sm:$0xff]
      %v702 = vld [vmem:[%s469 + $0x16a] sm:$0xff]
      %v703 = vld [vmem:[%s469 + $0x172] sm:$0xff]
      %v704 = vld [vmem:[%s1 + $0x5] sm:$0x1]
      %v705 = vlaneseq
      %v706 = vshrl.u32 %v705, 7
      %v707 = vsub.s32 0, %v706
      %v708 = vrot.slane %v704, %v707
      %v709 = vmul.f32 %v672, %v708
      %v710 = vmul.f32 %v673, %v708
      %v711 = vmul.f32 %v674, %v708
      %v712 = vmul.f32 %v675, %v708
      %v713 = vmul.f32 %v676, %v708
      %v714 = vmul.f32 %v677, %v708
      %v715 = vmul.f32 %v678, %v708
      %v716 = vmul.f32 %v679, %v708
      %v717 = vmul.f32 %v680, %v708
      %v718 = vmul.f32 %v681, %v708
      %v719 = vmul.f32 %v682, %v708
      %v720 = vmul.f32 %v683, %v708
      %v721 = vmul.f32 %v684, %v708
      %v722 = vmul.f32 %v685, %v708
      %v723 = vmul.f32 %v686, %v708
      %v724 = vmul.f32 %v687, %v708
      %v725 = vmul.f32 %v688, %v708
      %v726 = vmul.f32 %v689, %v708
      %v727 = vmul.f32 %v690, %v708
      %v728 = vmul.f32 %v691, %v708
      %v729 = vmul.f32 %v692, %v708
      %v730 = vmul.f32 %v693, %v708
      %v731 = vmul.f32 %v694, %v708
      %v732 = vmul.f32 %v695, %v708
      %v733 = vmul.f32 %v696, %v708
      %v734 = vmul.f32 %v697, %v708
      %v735 = vmul.f32 %v698, %v708
      %v736 = vmul.f32 %v699, %v708
      %v737 = vmul.f32 %v700, %v708
      %v738 = vmul.f32 %v701, %v708
      %v739 = vmul.f32 %v702, %v708
      %v740 = vmul.f32 %v703, %v708
      %v741 = vadd.f32 %v640, %v709
      %v742 = vadd.f32 %v641, %v710
      %v743 = vadd.f32 %v642, %v711
      %v744 = vadd.f32 %v643, %v712
      %v745 = vadd.f32 %v644, %v713
      %v746 = vadd.f32 %v645, %v714
      %v747 = vadd.f32 %v646, %v715
      %v748 = vadd.f32 %v647, %v716
      %v749 = vadd.f32 %v648, %v717
      %v750 = vadd.f32 %v649, %v718
      %v751 = vadd.f32 %v650, %v719
      %v752 = vadd.f32 %v651, %v720
      %v753 = vadd.f32 %v652, %v721
      %v754 = vadd.f32 %v653, %v722
      %v755 = vadd.f32 %v654, %v723
      %v756 = vadd.f32 %v655, %v724
      %v757 = vadd.f32 %v656, %v725
      %v758 = vadd.f32 %v657, %v726
      %v759 = vadd.f32 %v658, %v727
      %v760 = vadd.f32 %v659, %v728
      %v761 = vadd.f32 %v660, %v729
      %v762 = vadd.f32 %v661, %v730
      %v763 = vadd.f32 %v662, %v731
      %v764 = vadd.f32 %v663, %v732
      %v765 = vadd.f32 %v664, %v733
      %v766 = vadd.f32 %v665, %v734
      %v767 = vadd.f32 %v666, %v735
      %v768 = vadd.f32 %v667, %v736
      %v769 = vadd.f32 %v668, %v737
      %v770 = vadd.f32 %v669, %v738
      %v771 = vadd.f32 %v670, %v739
      %v772 = vadd.f32 %v671, %v740
      %s773 = scalar_lea.vmem %s192, 48
      %v774 = vld [vmem:[%s773] sm:$0xff]
      %v775 = vld [vmem:[%s773 + $0x8] sm:$0xff]
      %v776 = vld [vmem:[%s773 + $0x18] sm:$0xff]
      %v777 = vld [vmem:[%s773 + $0x20] sm:$0xff]
      %v778 = vld [vmem:[%s773 + $0x30] sm:$0xff]
      %v779 = vld [vmem:[%s773 + $0x38] sm:$0xff]
      %v780 = vld [vmem:[%s773 + $0x48] sm:$0xff]
      %v781 = vld [vmem:[%s773 + $0x50] sm:$0xff]
      %v782 = vld [vmem:[%s773 + $0x60] sm:$0xff]
      %v783 = vld [vmem:[%s773 + $0x68] sm:$0xff]
      %v784 = vld [vmem:[%s773 + $0x78] sm:$0xff]
      %v785 = vld [vmem:[%s773 + $0x80] sm:$0xff]
      %v786 = vld [vmem:[%s773 + $0x90] sm:$0xff]
      %v787 = vld [vmem:[%s773 + $0x98] sm:$0xff]
      %v788 = vld [vmem:[%s773 + $0xa8] sm:$0xff]
      %v789 = vld [vmem:[%s773 + $0xb0] sm:$0xff]
      %v790 = vld [vmem:[%s773 + $0xc0] sm:$0xff]
      %v791 = vld [vmem:[%s773 + $0xc8] sm:$0xff]
      %v792 = vld [vmem:[%s773 + $0xd8] sm:$0xff]
      %v793 = vld [vmem:[%s773 + $0xe0] sm:$0xff]
      %v794 = vld [vmem:[%s773 + $0xf0] sm:$0xff]
      %v795 = vld [vmem:[%s773 + $0xf8] sm:$0xff]
      %v796 = vld [vmem:[%s773 + $0x108] sm:$0xff]
      %v797 = vld [vmem:[%s773 + $0x110] sm:$0xff]
      %v798 = vld [vmem:[%s773 + $0x120] sm:$0xff]
      %v799 = vld [vmem:[%s773 + $0x128] sm:$0xff]
      %v800 = vld [vmem:[%s773 + $0x138] sm:$0xff]
      %v801 = vld [vmem:[%s773 + $0x140] sm:$0xff]
      %v802 = vld [vmem:[%s773 + $0x150] sm:$0xff]
      %v803 = vld [vmem:[%s773 + $0x158] sm:$0xff]
      %v804 = vld [vmem:[%s773 + $0x168] sm:$0xff]
      %v805 = vld [vmem:[%s773 + $0x170] sm:$0xff]
      %v806 = vld [vmem:[%s1 + $0x6] sm:$0x1]
      %v807 = vlaneseq
      %v808 = vshrl.u32 %v807, 7
      %v809 = vsub.s32 0, %v808
      %v810 = vrot.slane %v806, %v809
      %v811 = vmul.f32 %v774, %v810
      %v812 = vmul.f32 %v775, %v810
      %v813 = vmul.f32 %v776, %v810
      %v814 = vmul.f32 %v777, %v810
      %v815 = vmul.f32 %v778, %v810
      %v816 = vmul.f32 %v779, %v810
      %v817 = vmul.f32 %v780, %v810
      %v818 = vmul.f32 %v781, %v810
      %v819 = vmul.f32 %v782, %v810
      %v820 = vmul.f32 %v783, %v810
      %v821 = vmul.f32 %v784, %v810
      %v822 = vmul.f32 %v785, %v810
      %v823 = vmul.f32 %v786, %v810
      %v824 = vmul.f32 %v787, %v810
      %v825 = vmul.f32 %v788, %v810
      %v826 = vmul.f32 %v789, %v810
      %v827 = vmul.f32 %v790, %v810
      %v828 = vmul.f32 %v791, %v810
      %v829 = vmul.f32 %v792, %v810
      %v830 = vmul.f32 %v793, %v810
      %v831 = vmul.f32 %v794, %v810
      %v832 = vmul.f32 %v795, %v810
      %v833 = vmul.f32 %v796, %v810
      %v834 = vmul.f32 %v797, %v810
      %v835 = vmul.f32 %v798, %v810
      %v836 = vmul.f32 %v799, %v810
      %v837 = vmul.f32 %v800, %v810
      %v838 = vmul.f32 %v801, %v810
      %v839 = vmul.f32 %v802, %v810
      %v840 = vmul.f32 %v803, %v810
      %v841 = vmul.f32 %v804, %v810
      %v842 = vmul.f32 %v805, %v810
      %v843 = vadd.f32 %v741, %v811
      %v844 = vadd.f32 %v742, %v812
      %v845 = vadd.f32 %v743, %v813
      %v846 = vadd.f32 %v744, %v814
      %v847 = vadd.f32 %v745, %v815
      %v848 = vadd.f32 %v746, %v816
      %v849 = vadd.f32 %v747, %v817
      %v850 = vadd.f32 %v748, %v818
      %v851 = vadd.f32 %v749, %v819
      %v852 = vadd.f32 %v750, %v820
      %v853 = vadd.f32 %v751, %v821
      %v854 = vadd.f32 %v752, %v822
      %v855 = vadd.f32 %v753, %v823
      %v856 = vadd.f32 %v754, %v824
      %v857 = vadd.f32 %v755, %v825
      %v858 = vadd.f32 %v756, %v826
      %v859 = vadd.f32 %v757, %v827
      %v860 = vadd.f32 %v758, %v828
      %v861 = vadd.f32 %v759, %v829
      %v862 = vadd.f32 %v760, %v830
      %v863 = vadd.f32 %v761, %v831
      %v864 = vadd.f32 %v762, %v832
      %v865 = vadd.f32 %v763, %v833
      %v866 = vadd.f32 %v764, %v834
      %v867 = vadd.f32 %v765, %v835
      %v868 = vadd.f32 %v766, %v836
      %v869 = vadd.f32 %v767, %v837
      %v870 = vadd.f32 %v768, %v838
      %v871 = vadd.f32 %v769, %v839
      %v872 = vadd.f32 %v770, %v840
      %v873 = vadd.f32 %v771, %v841
      %v874 = vadd.f32 %v772, %v842
      %v875 = vld [vmem:[%s773 + $0x1] sm:$0xff]
      %v876 = vld [vmem:[%s773 + $0x9] sm:$0xff]
      %v877 = vld [vmem:[%s773 + $0x19] sm:$0xff]
      %v878 = vld [vmem:[%s773 + $0x21] sm:$0xff]
      %v879 = vld [vmem:[%s773 + $0x31] sm:$0xff]
      %v880 = vld [vmem:[%s773 + $0x39] sm:$0xff]
      %v881 = vld [vmem:[%s773 + $0x49] sm:$0xff]
      %v882 = vld [vmem:[%s773 + $0x51] sm:$0xff]
      %v883 = vld [vmem:[%s773 + $0x61] sm:$0xff]
      %v884 = vld [vmem:[%s773 + $0x69] sm:$0xff]
      %v885 = vld [vmem:[%s773 + $0x79] sm:$0xff]
      %v886 = vld [vmem:[%s773 + $0x81] sm:$0xff]
      %v887 = vld [vmem:[%s773 + $0x91] sm:$0xff]
      %v888 = vld [vmem:[%s773 + $0x99] sm:$0xff]
      %v889 = vld [vmem:[%s773 + $0xa9] sm:$0xff]
      %v890 = vld [vmem:[%s773 + $0xb1] sm:$0xff]
      %v891 = vld [vmem:[%s773 + $0xc1] sm:$0xff]
      %v892 = vld [vmem:[%s773 + $0xc9] sm:$0xff]
      %v893 = vld [vmem:[%s773 + $0xd9] sm:$0xff]
      %v894 = vld [vmem:[%s773 + $0xe1] sm:$0xff]
      %v895 = vld [vmem:[%s773 + $0xf1] sm:$0xff]
      %v896 = vld [vmem:[%s773 + $0xf9] sm:$0xff]
      %v897 = vld [vmem:[%s773 + $0x109] sm:$0xff]
      %v898 = vld [vmem:[%s773 + $0x111] sm:$0xff]
      %v899 = vld [vmem:[%s773 + $0x121] sm:$0xff]
      %v900 = vld [vmem:[%s773 + $0x129] sm:$0xff]
      %v901 = vld [vmem:[%s773 + $0x139] sm:$0xff]
      %v902 = vld [vmem:[%s773 + $0x141] sm:$0xff]
      %v903 = vld [vmem:[%s773 + $0x151] sm:$0xff]
      %v904 = vld [vmem:[%s773 + $0x159] sm:$0xff]
      %v905 = vld [vmem:[%s773 + $0x169] sm:$0xff]
      %v906 = vld [vmem:[%s773 + $0x171] sm:$0xff]
      %v907 = vld [vmem:[%s1 + $0x7] sm:$0x1]
      %v908 = vlaneseq
      %v909 = vshrl.u32 %v908, 7
      %v910 = vsub.s32 0, %v909
      %v911 = vrot.slane %v907, %v910
      %v912 = vmul.f32 %v875, %v911
      %v913 = vmul.f32 %v876, %v911
      %v914 = vmul.f32 %v877, %v911
      %v915 = vmul.f32 %v878, %v911
      %v916 = vmul.f32 %v879, %v911
      %v917 = vmul.f32 %v880, %v911
      %v918 = vmul.f32 %v881, %v911
      %v919 = vmul.f32 %v882, %v911
      %v920 = vmul.f32 %v883, %v911
      %v921 = vmul.f32 %v884, %v911
      %v922 = vmul.f32 %v885, %v911
      %v923 = vmul.f32 %v886, %v911
      %v924 = vmul.f32 %v887, %v911
      %v925 = vmul.f32 %v888, %v911
      %v926 = vmul.f32 %v889, %v911
      %v927 = vmul.f32 %v890, %v911
      %v928 = vmul.f32 %v891, %v911
      %v929 = vmul.f32 %v892, %v911
      %v930 = vmul.f32 %v893, %v911
      %v931 = vmul.f32 %v894, %v911
      %v932 = vmul.f32 %v895, %v911
      %v933 = vmul.f32 %v896, %v911
      %v934 = vmul.f32 %v897, %v911
      %v935 = vmul.f32 %v898, %v911
      %v936 = vmul.f32 %v899, %v911
      %v937 = vmul.f32 %v900, %v911
      %v938 = vmul.f32 %v901, %v911
      %v939 = vmul.f32 %v902, %v911
      %v940 = vmul.f32 %v903, %v911
      %v941 = vmul.f32 %v904, %v911
      %v942 = vmul.f32 %v905, %v911
      %v943 = vmul.f32 %v906, %v911
      %v944 = vadd.f32 %v843, %v912
      %v945 = vadd.f32 %v844, %v913
      %v946 = vadd.f32 %v845, %v914
      %v947 = vadd.f32 %v846, %v915
      %v948 = vadd.f32 %v847, %v916
      %v949 = vadd.f32 %v848, %v917
      %v950 = vadd.f32 %v849, %v918
      %v951 = vadd.f32 %v850, %v919
      %v952 = vadd.f32 %v851, %v920
      %v953 = vadd.f32 %v852, %v921
      %v954 = vadd.f32 %v853, %v922
      %v955 = vadd.f32 %v854, %v923
      %v956 = vadd.f32 %v855, %v924
      %v957 = vadd.f32 %v856, %v925
      %v958 = vadd.f32 %v857, %v926
      %v959 = vadd.f32 %v858, %v927
      %v960 = vadd.f32 %v859, %v928
      %v961 = vadd.f32 %v860, %v929
      %v962 = vadd.f32 %v861, %v930
      %v963 = vadd.f32 %v862, %v931
      %v964 = vadd.f32 %v863, %v932
      %v965 = vadd.f32 %v864, %v933
      %v966 = vadd.f32 %v865, %v934
      %v967 = vadd.f32 %v866, %v935
      %v968 = vadd.f32 %v867, %v936
      %v969 = vadd.f32 %v868, %v937
      %v970 = vadd.f32 %v869, %v938
      %v971 = vadd.f32 %v870, %v939
      %v972 = vadd.f32 %v871, %v940
      %v973 = vadd.f32 %v872, %v941
      %v974 = vadd.f32 %v873, %v942
      %v975 = vadd.f32 %v874, %v943
      %v976 = vld [vmem:[%s773 + $0x2] sm:$0xff]
      %v977 = vld [vmem:[%s773 + $0xa] sm:$0xff]
      %v978 = vld [vmem:[%s773 + $0x1a] sm:$0xff]
      %v979 = vld [vmem:[%s773 + $0x22] sm:$0xff]
      %v980 = vld [vmem:[%s773 + $0x32] sm:$0xff]
      %v981 = vld [vmem:[%s773 + $0x3a] sm:$0xff]
      %v982 = vld [vmem:[%s773 + $0x4a] sm:$0xff]
      %v983 = vld [vmem:[%s773 + $0x52] sm:$0xff]
      %v984 = vld [vmem:[%s773 + $0x62] sm:$0xff]
      %v985 = vld [vmem:[%s773 + $0x6a] sm:$0xff]
      %v986 = vld [vmem:[%s773 + $0x7a] sm:$0xff]
      %v987 = vld [vmem:[%s773 + $0x82] sm:$0xff]
      %v988 = vld [vmem:[%s773 + $0x92] sm:$0xff]
      %v989 = vld [vmem:[%s773 + $0x9a] sm:$0xff]
      %v990 = vld [vmem:[%s773 + $0xaa] sm:$0xff]
      %v991 = vld [vmem:[%s773 + $0xb2] sm:$0xff]
      %v992 = vld [vmem:[%s773 + $0xc2] sm:$0xff]
      %v993 = vld [vmem:[%s773 + $0xca] sm:$0xff]
      %v994 = vld [vmem:[%s773 + $0xda] sm:$0xff]
      %v995 = vld [vmem:[%s773 + $0xe2] sm:$0xff]
      %v996 = vld [vmem:[%s773 + $0xf2] sm:$0xff]
      %v997 = vld [vmem:[%s773 + $0xfa] sm:$0xff]
      %v998 = vld [vmem:[%s773 + $0x10a] sm:$0xff]
      %v999 = vld [vmem:[%s773 + $0x112] sm:$0xff]
      %v1000 = vld [vmem:[%s773 + $0x122] sm:$0xff]
      %v1001 = vld [vmem:[%s773 + $0x12a] sm:$0xff]
      %v1002 = vld [vmem:[%s773 + $0x13a] sm:$0xff]
      %v1003 = vld [vmem:[%s773 + $0x142] sm:$0xff]
      %v1004 = vld [vmem:[%s773 + $0x152] sm:$0xff]
      %v1005 = vld [vmem:[%s773 + $0x15a] sm:$0xff]
      %v1006 = vld [vmem:[%s773 + $0x16a] sm:$0xff]
      %v1007 = vld [vmem:[%s773 + $0x172] sm:$0xff]
      %v1008 = vld [vmem:[%s1 + $0x8] sm:$0x1]
      %v1009 = vlaneseq
      %v1010 = vshrl.u32 %v1009, 7
      %v1011 = vsub.s32 0, %v1010
      %v1012 = vrot.slane %v1008, %v1011
      %v1013 = vmul.f32 %v976, %v1012
      %v1014 = vmul.f32 %v977, %v1012
      %v1015 = vmul.f32 %v978, %v1012
      %v1016 = vmul.f32 %v979, %v1012
      %v1017 = vmul.f32 %v980, %v1012
      %v1018 = vmul.f32 %v981, %v1012
      %v1019 = vmul.f32 %v982, %v1012
      %v1020 = vmul.f32 %v983, %v1012
      %v1021 = vmul.f32 %v984, %v1012
      %v1022 = vmul.f32 %v985, %v1012
      %v1023 = vmul.f32 %v986, %v1012
      %v1024 = vmul.f32 %v987, %v1012
      %v1025 = vmul.f32 %v988, %v1012
      %v1026 = vmul.f32 %v989, %v1012
      %v1027 = vmul.f32 %v990, %v1012
      %v1028 = vmul.f32 %v991, %v1012
      %v1029 = vmul.f32 %v992, %v1012
      %v1030 = vmul.f32 %v993, %v1012
      %v1031 = vmul.f32 %v994, %v1012
      %v1032 = vmul.f32 %v995, %v1012
      %v1033 = vmul.f32 %v996, %v1012
      %v1034 = vmul.f32 %v997, %v1012
      %v1035 = vmul.f32 %v998, %v1012
      %v1036 = vmul.f32 %v999, %v1012
      %v1037 = vmul.f32 %v1000, %v1012
      %v1038 = vmul.f32 %v1001, %v1012
      %v1039 = vmul.f32 %v1002, %v1012
      %v1040 = vmul.f32 %v1003, %v1012
      %v1041 = vmul.f32 %v1004, %v1012
      %v1042 = vmul.f32 %v1005, %v1012
      %v1043 = vmul.f32 %v1006, %v1012
      %v1044 = vmul.f32 %v1007, %v1012
      %v1045 = vadd.f32 %v944, %v1013
      %v1046 = vadd.f32 %v945, %v1014
      %v1047 = vadd.f32 %v946, %v1015
      %v1048 = vadd.f32 %v947, %v1016
      %v1049 = vadd.f32 %v948, %v1017
      %v1050 = vadd.f32 %v949, %v1018
      %v1051 = vadd.f32 %v950, %v1019
      %v1052 = vadd.f32 %v951, %v1020
      %v1053 = vadd.f32 %v952, %v1021
      %v1054 = vadd.f32 %v953, %v1022
      %v1055 = vadd.f32 %v954, %v1023
      %v1056 = vadd.f32 %v955, %v1024
      %v1057 = vadd.f32 %v956, %v1025
      %v1058 = vadd.f32 %v957, %v1026
      %v1059 = vadd.f32 %v958, %v1027
      %v1060 = vadd.f32 %v959, %v1028
      %v1061 = vadd.f32 %v960, %v1029
      %v1062 = vadd.f32 %v961, %v1030
      %v1063 = vadd.f32 %v962, %v1031
      %v1064 = vadd.f32 %v963, %v1032
      %v1065 = vadd.f32 %v964, %v1033
      %v1066 = vadd.f32 %v965, %v1034
      %v1067 = vadd.f32 %v966, %v1035
      %v1068 = vadd.f32 %v967, %v1036
      %v1069 = vadd.f32 %v968, %v1037
      %v1070 = vadd.f32 %v969, %v1038
      %v1071 = vadd.f32 %v970, %v1039
      %v1072 = vadd.f32 %v971, %v1040
      %v1073 = vadd.f32 %v972, %v1041
      %v1074 = vadd.f32 %v973, %v1042
      %v1075 = vadd.f32 %v974, %v1043
      %v1076 = vadd.f32 %v975, %v1044
      %v1077 = vld [vmem:[%s2] sm:$0x1]
      %v1079 = vlaneseq
      %v1080 = vshrl.u32 %v1079, 7
      %v1081 = vsub.s32 0, %v1080
      %v1082 = vrot.slane %v1077, %v1081
      %v1084 = vmul.f32 %v1045, %v1082
      %v1085 = vmul.f32 %v1046, %v1082
      %v1086 = vmul.f32 %v1047, %v1082
      %v1087 = vmul.f32 %v1048, %v1082
      %v1088 = vmul.f32 %v1049, %v1082
      %v1089 = vmul.f32 %v1050, %v1082
      %v1090 = vmul.f32 %v1051, %v1082
      %v1091 = vmul.f32 %v1052, %v1082
      %v1092 = vmul.f32 %v1053, %v1082
      %v1093 = vmul.f32 %v1054, %v1082
      %v1094 = vmul.f32 %v1055, %v1082
      %v1095 = vmul.f32 %v1056, %v1082
      %v1096 = vmul.f32 %v1057, %v1082
      %v1097 = vmul.f32 %v1058, %v1082
      %v1098 = vmul.f32 %v1059, %v1082
      %v1099 = vmul.f32 %v1060, %v1082
      %v1100 = vmul.f32 %v1061, %v1082
      %v1101 = vmul.f32 %v1062, %v1082
      %v1102 = vmul.f32 %v1063, %v1082
      %v1103 = vmul.f32 %v1064, %v1082
      %v1104 = vmul.f32 %v1065, %v1082
      %v1105 = vmul.f32 %v1066, %v1082
      %v1106 = vmul.f32 %v1067, %v1082
      %v1107 = vmul.f32 %v1068, %v1082
      %v1108 = vmul.f32 %v1069, %v1082
      %v1109 = vmul.f32 %v1070, %v1082
      %v1110 = vmul.f32 %v1071, %v1082
      %v1111 = vmul.f32 %v1072, %v1082
      %v1112 = vmul.f32 %v1073, %v1082
      %v1113 = vmul.f32 %v1074, %v1082
      %v1114 = vmul.f32 %v1075, %v1082
      %v1115 = vmul.f32 %v1076, %v1082
      %v1116 = vld [vmem:[%s3] sm:$0x1]
      %v1118 = vlaneseq
      %v1119 = vshrl.u32 %v1118, 7
      %v1120 = vsub.s32 0, %v1119
      %v1121 = vrot.slane %v1116, %v1120
      %v1123 = vadd.f32 %v1084, %v1121
      %v1124 = vadd.f32 %v1085, %v1121
      %v1125 = vadd.f32 %v1086, %v1121
      %v1126 = vadd.f32 %v1087, %v1121
      %v1127 = vadd.f32 %v1088, %v1121
      %v1128 = vadd.f32 %v1089, %v1121
      %v1129 = vadd.f32 %v1090, %v1121
      %v1130 = vadd.f32 %v1091, %v1121
      %v1131 = vadd.f32 %v1092, %v1121
      %v1132 = vadd.f32 %v1093, %v1121
      %v1133 = vadd.f32 %v1094, %v1121
      %v1134 = vadd.f32 %v1095, %v1121
      %v1135 = vadd.f32 %v1096, %v1121
      %v1136 = vadd.f32 %v1097, %v1121
      %v1137 = vadd.f32 %v1098, %v1121
      %v1138 = vadd.f32 %v1099, %v1121
      %v1139 = vadd.f32 %v1100, %v1121
      %v1140 = vadd.f32 %v1101, %v1121
      %v1141 = vadd.f32 %v1102, %v1121
      %v1142 = vadd.f32 %v1103, %v1121
      %v1143 = vadd.f32 %v1104, %v1121
      %v1144 = vadd.f32 %v1105, %v1121
      %v1145 = vadd.f32 %v1106, %v1121
      %v1146 = vadd.f32 %v1107, %v1121
      %v1147 = vadd.f32 %v1108, %v1121
      %v1148 = vadd.f32 %v1109, %v1121
      %v1149 = vadd.f32 %v1110, %v1121
      %v1150 = vadd.f32 %v1111, %v1121
      %v1151 = vadd.f32 %v1112, %v1121
      %v1152 = vadd.f32 %v1113, %v1121
      %v1153 = vadd.f32 %v1114, %v1121
      %v1154 = vadd.f32 %v1115, %v1121
      %v1155 = vsub.f32 0.0, %v1123
      %v1156 = vsub.f32 0.0, %v1124
      %v1157 = vsub.f32 0.0, %v1125
      %v1158 = vsub.f32 0.0, %v1126
      %v1159 = vsub.f32 0.0, %v1127
      %v1160 = vsub.f32 0.0, %v1128
      %v1161 = vsub.f32 0.0, %v1129
      %v1162 = vsub.f32 0.0, %v1130
      %v1163 = vsub.f32 0.0, %v1131
      %v1164 = vsub.f32 0.0, %v1132
      %v1165 = vsub.f32 0.0, %v1133
      %v1166 = vsub.f32 0.0, %v1134
      %v1167 = vsub.f32 0.0, %v1135
      %v1168 = vsub.f32 0.0, %v1136
      %v1169 = vsub.f32 0.0, %v1137
      %v1170 = vsub.f32 0.0, %v1138
      %v1171 = vsub.f32 0.0, %v1139
      %v1172 = vsub.f32 0.0, %v1140
      %v1173 = vsub.f32 0.0, %v1141
      %v1174 = vsub.f32 0.0, %v1142
      %v1175 = vsub.f32 0.0, %v1143
      %v1176 = vsub.f32 0.0, %v1144
      %v1177 = vsub.f32 0.0, %v1145
      %v1178 = vsub.f32 0.0, %v1146
      %v1179 = vsub.f32 0.0, %v1147
      %v1180 = vsub.f32 0.0, %v1148
      %v1181 = vsub.f32 0.0, %v1149
      %v1182 = vsub.f32 0.0, %v1150
      %v1183 = vsub.f32 0.0, %v1151
      %v1184 = vsub.f32 0.0, %v1152
      %v1185 = vsub.f32 0.0, %v1153
      %v1186 = vsub.f32 0.0, %v1154
      %v1187 = vmul.f32 %v1155, 1.442695
      %v1188 = vpow.pop %v1187
      %v1189 = vmul.f32 %v1156, 1.442695
      %v1190 = vpow.pop %v1189
      %v1191 = vmul.f32 %v1157, 1.442695
      %v1192 = vpow.pop %v1191
      %v1193 = vmul.f32 %v1158, 1.442695
      %v1194 = vpow.pop %v1193
      %v1195 = vmul.f32 %v1159, 1.442695
      %v1196 = vpow.pop %v1195
      %v1197 = vmul.f32 %v1160, 1.442695
      %v1198 = vpow.pop %v1197
      %v1199 = vmul.f32 %v1161, 1.442695
      %v1200 = vpow.pop %v1199
      %v1201 = vmul.f32 %v1162, 1.442695
      %v1202 = vpow.pop %v1201
      %v1203 = vmul.f32 %v1163, 1.442695
      %v1204 = vpow.pop %v1203
      %v1205 = vmul.f32 %v1164, 1.442695
      %v1206 = vpow.pop %v1205
      %v1207 = vmul.f32 %v1165, 1.442695
      %v1208 = vpow.pop %v1207
      %v1209 = vmul.f32 %v1166, 1.442695
      %v1210 = vpow.pop %v1209
      %v1211 = vmul.f32 %v1167, 1.442695
      %v1212 = vpow.pop %v1211
      %v1213 = vmul.f32 %v1168, 1.442695
      %v1214 = vpow.pop %v1213
      %v1215 = vmul.f32 %v1169, 1.442695
      %v1216 = vpow.pop %v1215
      %v1217 = vmul.f32 %v1170, 1.442695
      %v1218 = vpow.pop %v1217
      %v1219 = vmul.f32 %v1171, 1.442695
      %v1220 = vpow.pop %v1219
      %v1221 = vmul.f32 %v1172, 1.442695
      %v1222 = vpow.pop %v1221
      %v1223 = vmul.f32 %v1173, 1.442695
      %v1224 = vpow.pop %v1223
      %v1225 = vmul.f32 %v1174, 1.442695
      %v1226 = vpow.pop %v1225
      %v1227 = vmul.f32 %v1175, 1.442695
      %v1228 = vpow.pop %v1227
      %v1229 = vmul.f32 %v1176, 1.442695
      %v1230 = vpow.pop %v1229
      %v1231 = vmul.f32 %v1177, 1.442695
      %v1232 = vpow.pop %v1231
      %v1233 = vmul.f32 %v1178, 1.442695
      %v1234 = vpow.pop %v1233
      %v1235 = vmul.f32 %v1179, 1.442695
      %v1236 = vpow.pop %v1235
      %v1237 = vmul.f32 %v1180, 1.442695
      %v1238 = vpow.pop %v1237
      %v1239 = vmul.f32 %v1181, 1.442695
      %v1240 = vpow.pop %v1239
      %v1241 = vmul.f32 %v1182, 1.442695
      %v1242 = vpow.pop %v1241
      %v1243 = vmul.f32 %v1183, 1.442695
      %v1244 = vpow.pop %v1243
      %v1245 = vmul.f32 %v1184, 1.442695
      %v1246 = vpow.pop %v1245
      %v1247 = vmul.f32 %v1185, 1.442695
      %v1248 = vpow.pop %v1247
      %v1249 = vmul.f32 %v1186, 1.442695
      %v1250 = vpow.pop %v1249
      %v1251 = vadd.f32 %v1188, 1.0
      %v1252 = vadd.f32 %v1190, 1.0
      %v1253 = vadd.f32 %v1192, 1.0
      %v1254 = vadd.f32 %v1194, 1.0
      %v1255 = vadd.f32 %v1196, 1.0
      %v1256 = vadd.f32 %v1198, 1.0
      %v1257 = vadd.f32 %v1200, 1.0
      %v1258 = vadd.f32 %v1202, 1.0
      %v1259 = vadd.f32 %v1204, 1.0
      %v1260 = vadd.f32 %v1206, 1.0
      %v1261 = vadd.f32 %v1208, 1.0
      %v1262 = vadd.f32 %v1210, 1.0
      %v1263 = vadd.f32 %v1212, 1.0
      %v1264 = vadd.f32 %v1214, 1.0
      %v1265 = vadd.f32 %v1216, 1.0
      %v1266 = vadd.f32 %v1218, 1.0
      %v1267 = vadd.f32 %v1220, 1.0
      %v1268 = vadd.f32 %v1222, 1.0
      %v1269 = vadd.f32 %v1224, 1.0
      %v1270 = vadd.f32 %v1226, 1.0
      %v1271 = vadd.f32 %v1228, 1.0
      %v1272 = vadd.f32 %v1230, 1.0
      %v1273 = vadd.f32 %v1232, 1.0
      %v1274 = vadd.f32 %v1234, 1.0
      %v1275 = vadd.f32 %v1236, 1.0
      %v1276 = vadd.f32 %v1238, 1.0
      %v1277 = vadd.f32 %v1240, 1.0
      %v1278 = vadd.f32 %v1242, 1.0
      %v1279 = vadd.f32 %v1244, 1.0
      %v1280 = vadd.f32 %v1246, 1.0
      %v1281 = vadd.f32 %v1248, 1.0
      %v1282 = vadd.f32 %v1250, 1.0
      %v1283 = vrcp.pop %v1251
      %v1284 = vrcp.pop %v1252
      %v1285 = vrcp.pop %v1253
      %v1286 = vrcp.pop %v1254
      %v1287 = vrcp.pop %v1255
      %v1288 = vrcp.pop %v1256
      %v1289 = vrcp.pop %v1257
      %v1290 = vrcp.pop %v1258
      %v1291 = vrcp.pop %v1259
      %v1292 = vrcp.pop %v1260
      %v1293 = vrcp.pop %v1261
      %v1294 = vrcp.pop %v1262
      %v1295 = vrcp.pop %v1263
      %v1296 = vrcp.pop %v1264
      %v1297 = vrcp.pop %v1265
      %v1298 = vrcp.pop %v1266
      %v1299 = vrcp.pop %v1267
      %v1300 = vrcp.pop %v1268
      %v1301 = vrcp.pop %v1269
      %v1302 = vrcp.pop %v1270
      %v1303 = vrcp.pop %v1271
      %v1304 = vrcp.pop %v1272
      %v1305 = vrcp.pop %v1273
      %v1306 = vrcp.pop %v1274
      %v1307 = vrcp.pop %v1275
      %v1308 = vrcp.pop %v1276
      %v1309 = vrcp.pop %v1277
      %v1310 = vrcp.pop %v1278
      %v1311 = vrcp.pop %v1279
      %v1312 = vrcp.pop %v1280
      %v1313 = vrcp.pop %v1281
      %v1314 = vrcp.pop %v1282
      %v1315 = vmul.f32 %v1123, %v1283
      %v1316 = vmul.f32 %v1124, %v1284
      %v1317 = vmul.f32 %v1125, %v1285
      %v1318 = vmul.f32 %v1126, %v1286
      %v1319 = vmul.f32 %v1127, %v1287
      %v1320 = vmul.f32 %v1128, %v1288
      %v1321 = vmul.f32 %v1129, %v1289
      %v1322 = vmul.f32 %v1130, %v1290
      %v1323 = vmul.f32 %v1131, %v1291
      %v1324 = vmul.f32 %v1132, %v1292
      %v1325 = vmul.f32 %v1133, %v1293
      %v1326 = vmul.f32 %v1134, %v1294
      %v1327 = vmul.f32 %v1135, %v1295
      %v1328 = vmul.f32 %v1136, %v1296
      %v1329 = vmul.f32 %v1137, %v1297
      %v1330 = vmul.f32 %v1138, %v1298
      %v1331 = vmul.f32 %v1139, %v1299
      %v1332 = vmul.f32 %v1140, %v1300
      %v1333 = vmul.f32 %v1141, %v1301
      %v1334 = vmul.f32 %v1142, %v1302
      %v1335 = vmul.f32 %v1143, %v1303
      %v1336 = vmul.f32 %v1144, %v1304
      %v1337 = vmul.f32 %v1145, %v1305
      %v1338 = vmul.f32 %v1146, %v1306
      %v1339 = vmul.f32 %v1147, %v1307
      %v1340 = vmul.f32 %v1148, %v1308
      %v1341 = vmul.f32 %v1149, %v1309
      %v1342 = vmul.f32 %v1150, %v1310
      %v1343 = vmul.f32 %v1151, %v1311
      %v1344 = vmul.f32 %v1152, %v1312
      %v1345 = vmul.f32 %v1153, %v1313
      %v1346 = vmul.f32 %v1154, %v1314
      %1347 = vst [vmem:[%s197] sm:$0xff] %v1315
      %1348 = vst [vmem:[%s197 + $0x8] sm:$0xff] %v1316
      %1349 = vst [vmem:[%s197 + $0x10] sm:$0xff] %v1317
      %1350 = vst [vmem:[%s197 + $0x18] sm:$0xff] %v1318
      %1351 = vst [vmem:[%s197 + $0x20] sm:$0xff] %v1319
      %1352 = vst [vmem:[%s197 + $0x28] sm:$0xff] %v1320
      %1353 = vst [vmem:[%s197 + $0x30] sm:$0xff] %v1321
      %1354 = vst [vmem:[%s197 + $0x38] sm:$0xff] %v1322
      %1355 = vst [vmem:[%s197 + $0x40] sm:$0xff] %v1323
      %1356 = vst [vmem:[%s197 + $0x48] sm:$0xff] %v1324
      %1357 = vst [vmem:[%s197 + $0x50] sm:$0xff] %v1325
      %1358 = vst [vmem:[%s197 + $0x58] sm:$0xff] %v1326
      %1359 = vst [vmem:[%s197 + $0x60] sm:$0xff] %v1327
      %1360 = vst [vmem:[%s197 + $0x68] sm:$0xff] %v1328
      %1361 = vst [vmem:[%s197 + $0x70] sm:$0xff] %v1329
      %1362 = vst [vmem:[%s197 + $0x78] sm:$0xff] %v1330
      %1363 = vst [vmem:[%s197 + $0x80] sm:$0xff] %v1331
      %1364 = vst [vmem:[%s197 + $0x88] sm:$0xff] %v1332
      %1365 = vst [vmem:[%s197 + $0x90] sm:$0xff] %v1333
      %1366 = vst [vmem:[%s197 + $0x98] sm:$0xff] %v1334
      %1367 = vst [vmem:[%s197 + $0xa0] sm:$0xff] %v1335
      %1368 = vst [vmem:[%s197 + $0xa8] sm:$0xff] %v1336
      %1369 = vst [vmem:[%s197 + $0xb0] sm:$0xff] %v1337
      %1370 = vst [vmem:[%s197 + $0xb8] sm:$0xff] %v1338
      %1371 = vst [vmem:[%s197 + $0xc0] sm:$0xff] %v1339
      %1372 = vst [vmem:[%s197 + $0xc8] sm:$0xff] %v1340
      %1373 = vst [vmem:[%s197 + $0xd0] sm:$0xff] %v1341
      %1374 = vst [vmem:[%s197 + $0xd8] sm:$0xff] %v1342
      %1375 = vst [vmem:[%s197 + $0xe0] sm:$0xff] %v1343
      %1376 = vst [vmem:[%s197 + $0xe8] sm:$0xff] %v1344
      %1377 = vst [vmem:[%s197 + $0xf0] sm:$0xff] %v1345
      %1378 = vst [vmem:[%s197 + $0xf8] sm:$0xff] %v1346
      %p1379 = scmp.lt.s32.totalorder %s15, 1
      %s1380 = scalar_select %p1379, %s15, 1
      %s1381 = smul.addr %s1380, 32
      %s1382 = smul.addr %s1381, 8
      %s1383 = scalar_lea.vmem %s4, %s1382
      // Predicated region
      $region37: #{image_encoder_forward.8} parent=35 // pred_check
        %p1384 = pneg %p122
      $region38: #{image_encoder_forward.8} parent=35 // pred_check_branch
        %1386 = sbr.rel (%p1384) target = $region40
      $region39: #{image_encoder_forward.8} parent=35 // pred_region
        _
      $region40: #{image_encoder_forward.8} parent=35 // pred_fallthru
        _
    $region36: #{image_encoder_forward.8} parent=5 // pred_fallthru
      _
    %p1387 = scmp.le.s32.totalorder 2, %s10
    // Predicated region
    $region41: #{image_encoder_forward.8} parent=5 // pred_check
      %p1388 = pneg %p1387
    $region42: #{image_encoder_forward.8} parent=5 // pred_check_branch
      %1390 = sbr.rel (%p1388) target = $region44
    $region43: #{image_encoder_forward.8} parent=5 // pred_region
      %s1391 = ssub.s32 %s10, 2
      // Predicated region
      $region45: #{image_encoder_forward.8} parent=43 // pred_check
        %p1392 = pneg %p128
      $region46: #{image_encoder_forward.8} parent=43 // pred_check_branch
        %1394 = sbr.rel (%p1392) target = $region48
      $region47: #{image_encoder_forward.8} parent=43 // pred_region
        %p1395 = scmp.lt.s32.totalorder %s16, 1
        %s1396 = scalar_select %p1395, %s16, 1
        %s1397 = smul.addr %s1396, 32
        %s1398 = smul.addr %s1397, 8
        %s1399 = scalar_lea.vmem %s4, %s1398
      $region48: #{image_encoder_forward.8} parent=43 // pred_fallthru
        _
    $region44: #{image_encoder_forward.8} parent=5 // pred_fallthru
      _
  $region6: #{image_encoder_forward.8} parent=0 // loop_footer
    %s14 = sadd.s32 1, %s10
  $region7: #{image_encoder_forward.8} parent=0 // loop_footer_branch
    %9 = sbr.rel target = $region3
  $region8: #{image_encoder_forward.8} parent=0 // loop_exit
    _

// kernel: image_encoder_forward.11
$region0: #{image_encoder_forward.11}
  #allocation0 [shape = 'u32[]', space=smem, size = 0x4, offset = 0x4, fixed_abs, tag = 'smem constant byte address 0x4 - core index']
  #allocation1 [shape = 'u32[144,128]{1,0:T(1,128)}', space=vmem, size = 0x12000, scoped, tag = 'internal scratch']
  %s0 = inlined_call_operand.vmem [shape: f32[2,4,9,9,128], index: 0, kind: input, shape index: {}]
  %s1 = inlined_call_operand.vmem [shape: f32[9,128], index: 1, kind: input, shape index: {}]
  %s2 = inlined_call_operand.vmem [shape: f32[1,128], index: 2, kind: input, shape index: {}]
  %s3 = inlined_call_operand.vmem [shape: f32[1,128], index: 3, kind: input, shape index: {}]
  %s4 = inlined_call_operand.vmem [shape: f32[2,8,8,128], index: 4, kind: output, shape index: {}]
  %s5 = sld [smem:[#allocation0]]
  $region49: #{image_encoder_forward.11} parent=0
    _
  %s7 = ssub.s32 1, %s5
  %s8 = scalar_select 0, %s7, %s5
  loop: start=0, step=1, limit=4
  $region2: #{image_encoder_forward.11} parent=0 // loop_pre_header
    _
  $region3: #{image_encoder_forward.11} parent=0 // loop_header
    %s10 = sphi 0, %s14
    %p11 = scmp.ge.s32.totalorder %s10, 4
    %s20 = sphi 0, %s22
    %s23 = sphi 0, %s20
    %s24 = sphi 0, %s23
    %s40 = sphi 0, %s24
    %s44 = sphi 0, %s44
    %s46 = sphi 0, %s44
    %s47 = sphi 0, %s46
    %s61 = sphi 0, %s47
    %s65 = sphi 0, %s65
    %s67 = sphi 0, %s65
    %s68 = sphi 0, %s67
    %s82 = sphi 0, %s68
    %s86 = sphi 0, %s86
    %s88 = sphi 0, %s86
    %s89 = sphi 0, %s88
    %s103 = sphi 0, %s89
    %s109 = sphi 0, %s111
    %s112 = sphi 0, %s109
    %s113 = sphi 0, %s112
    %s129 = sphi 0, %s113
  $region4: #{image_encoder_forward.11} parent=0 // loop_header_branch
    %13 = sbr.rel (%p11) target = $region8
  $region5: #{image_encoder_forward.11} parent=0 // loop_body
    %s15 = ssub.s32 %s10, 1
    %s16 = ssub.s32 %s10, 2
    %s17 = sadd.s32 %s10, 1
    %s18 = ssub.s32 %s10, %s17
    %p19 = scmp.eq.s32.totalorder %s18, 0
    %s21 = sadd.s32 %s20, 1
    %s22 = scalar_select %p19, %s20, %s21
    %p25 = pneg %p19
    %p26 = scmp.eq.s32.totalorder %s10, 1
    %p27 = por %p25, %p26
    %p28 = scmp.ne.s32.totalorder %s20, %s23
    %p29 = scmp.eq.s32.totalorder %s10, 0
    %p30 = por %p28, %p29
    %p31 = scmp.ne.s32.totalorder %s20, %s23
    %p32 = scmp.eq.s32.totalorder %s15, 1
    %p33 = por %p31, %p32
    %p34 = scmp.ne.s32.totalorder %s23, %s24
    %p35 = scmp.eq.s32.totalorder %s15, 0
    %p36 = por %p34, %p35
    %p37 = scmp.ne.s32.totalorder %s23, %s24
    %p38 = scmp.eq.s32.totalorder %s16, 1
    %p39 = por %p37, %p38
    %p41 = scmp.ne.s32.totalorder %s24, %s40
    %p42 = scmp.eq.s32.totalorder %s16, 0
    %p43 = por %p41, %p42
    %s45 = sadd.s32 %s44, 1
    %p48 = scmp.eq.s32.totalorder %s10, 1
    %p49 = scmp.ne.s32.totalorder %s44, %s46
    %p50 = scmp.eq.s32.totalorder %s10, 0
    %p51 = por %p49, %p50
    %p52 = scmp.ne.s32.totalorder %s44, %s46
    %p53 = scmp.eq.s32.totalorder %s15, 1
    %p54 = por %p52, %p53
    %p55 = scmp.ne.s32.totalorder %s46, %s47
    %p56 = scmp.eq.s32.totalorder %s15, 0
    %p57 = por %p55, %p56
    %p58 = scmp.ne.s32.totalorder %s46, %s47
    %p59 = scmp.eq.s32.totalorder %s16, 1
    %p60 = por %p58, %p59
    %p62 = scmp.ne.s32.totalorder %s47, %s61
    %p63 = scmp.eq.s32.totalorder %s16, 0
    %p64 = por %p62, %p63
    %s66 = sadd.s32 %s65, 1
    %p69 = scmp.eq.s32.totalorder %s10, 1
    %p70 = scmp.ne.s32.totalorder %s65, %s67
    %p71 = scmp.eq.s32.totalorder %s10, 0
    %p72 = por %p70, %p71
    %p73 = scmp.ne.s32.totalorder %s65, %s67
    %p74 = scmp.eq.s32.totalorder %s15, 1
    %p75 = por %p73, %p74
    %p76 = scmp.ne.s32.totalorder %s67, %s68
    %p77 = scmp.eq.s32.totalorder %s15, 0
    %p78 = por %p76, %p77
    %p79 = scmp.ne.s32.totalorder %s67, %s68
    %p80 = scmp.eq.s32.totalorder %s16, 1
    %p81 = por %p79, %p80
    %p83 = scmp.ne.s32.totalorder %s68, %s82
    %p84 = scmp.eq.s32.totalorder %s16, 0
    %p85 = por %p83, %p84
    %s87 = sadd.s32 %s86, 1
    %p90 = scmp.eq.s32.totalorder %s10, 1
    %p91 = scmp.ne.s32.totalorder %s86, %s88
    %p92 = scmp.eq.s32.totalorder %s10, 0
    %p93 = por %p91, %p92
    %p94 = scmp.ne.s32.totalorder %s86, %s88
    %p95 = scmp.eq.s32.totalorder %s15, 1
    %p96 = por %p94, %p95
    %p97 = scmp.ne.s32.totalorder %s88, %s89
    %p98 = scmp.eq.s32.totalorder %s15, 0
    %p99 = por %p97, %p98
    %p100 = scmp.ne.s32.totalorder %s88, %s89
    %p101 = scmp.eq.s32.totalorder %s16, 1
    %p102 = por %p100, %p101
    %p104 = scmp.ne.s32.totalorder %s89, %s103
    %p105 = scmp.eq.s32.totalorder %s16, 0
    %p106 = por %p104, %p105
    %s107 = ssub.s32 %s10, %s17
    %p108 = scmp.eq.s32.totalorder %s107, 0
    %s110 = sadd.s32 %s109, 1
    %s111 = scalar_select %p108, %s109, %s110
    %p114 = pneg %p108
    %p115 = scmp.eq.s32.totalorder %s10, 1
    %p116 = por %p114, %p115
    %p117 = scmp.ne.s32.totalorder %s109, %s112
    %p118 = scmp.eq.s32.totalorder %s10, 0
    %p119 = por %p117, %p118
    %p120 = scmp.ne.s32.totalorder %s109, %s112
    %p121 = scmp.eq.s32.totalorder %s15, 1
    %p122 = por %p120, %p121
    %p123 = scmp.ne.s32.totalorder %s112, %s113
    %p124 = scmp.eq.s32.totalorder %s15, 0
    %p125 = por %p123, %p124
    %p126 = scmp.ne.s32.totalorder %s112, %s113
    %p127 = scmp.eq.s32.totalorder %s16, 1
    %p128 = por %p126, %p127
    %p130 = scmp.ne.s32.totalorder %s113, %s129
    %p131 = scmp.eq.s32.totalorder %s16, 0
    %p132 = por %p130, %p131
    %p133 = scmp.le.s32.totalorder 1, %s10
    %p134 = scmp.lt.s32.totalorder %s10, 3
    %p135 = pnand %p133, %p134
    %p136 = pneg %p135
    // Predicated region
    $region9: #{image_encoder_forward.11} parent=5 // pred_check
      _
    $region10: #{image_encoder_forward.11} parent=5 // pred_check_branch
      %138 = sbr.rel (%p135) target = $region12
    $region11: #{image_encoder_forward.11} parent=5 // pred_region
      %s139 = ssub.s32 %s10, 1
      // Predicated region
      $region13: #{image_encoder_forward.11} parent=11 // pred_check
        %p140 = pneg %p57
      $region14: #{image_encoder_forward.11} parent=11 // pred_check_branch
        %142 = sbr.rel (%p140) target = $region16
      $region15: #{image_encoder_forward.11} parent=11 // pred_region
        _
      $region16: #{image_encoder_forward.11} parent=11 // pred_fallthru
        _
      // Predicated region
      $region17: #{image_encoder_forward.11} parent=11 // pred_check
        %p143 = pneg %p78
      $region18: #{image_encoder_forward.11} parent=11 // pred_check_branch
        %145 = sbr.rel (%p143) target = $region20
      $region19: #{image_encoder_forward.11} parent=11 // pred_region
        _
      $region20: #{image_encoder_forward.11} parent=11 // pred_fallthru
        _
      // Predicated region
      $region21: #{image_encoder_forward.11} parent=11 // pred_check
        %p146 = pneg %p99
      $region22: #{image_encoder_forward.11} parent=11 // pred_check_branch
        %148 = sbr.rel (%p146) target = $region24
      $region23: #{image_encoder_forward.11} parent=11 // pred_region
        _
      $region24: #{image_encoder_forward.11} parent=11 // pred_fallthru
        _
    $region12: #{image_encoder_forward.11} parent=5 // pred_fallthru
      _
    %p149 = scmp.lt.s32.totalorder %s10, 2
    // Predicated region
    $region25: #{image_encoder_forward.11} parent=5 // pred_check
      %p150 = pneg %p149
    $region26: #{image_encoder_forward.11} parent=5 // pred_check_branch
      %152 = sbr.rel (%p150) target = $region28
    $region27: #{image_encoder_forward.11} parent=5 // pred_region
      // Predicated region
      $region29: #{image_encoder_forward.11} parent=27 // pred_check
        %p153 = pneg %p30
      $region30: #{image_encoder_forward.11} parent=27 // pred_check_branch
        %155 = sbr.rel (%p153) target = $region32
      $region31: #{image_encoder_forward.11} parent=27 // pred_region
        %p156 = scmp.lt.s32.totalorder %s10, 1
        %s157 = scalar_select %p156, %s10, 1
        %s158 = smul.addr %s157, 72
        %s159 = smul.addr %s158, 8
        %s160 = scalar_lea.vmem %s0, %s159
      $region32: #{image_encoder_forward.11} parent=27 // pred_fallthru
        _
    $region28: #{image_encoder_forward.11} parent=5 // pred_fallthru
      _
    %p161 = scmp.le.s32.totalorder 1, %s10
    %p162 = scmp.lt.s32.totalorder %s10, 3
    %p163 = pnand %p161, %p162
    %p164 = pneg %p163
    // Predicated region
    $region33: #{image_encoder_forward.11} parent=5 // pred_check
      _
    $region34: #{image_encoder_forward.11} parent=5 // pred_check_branch
      %166 = sbr.rel (%p163) target = $region36
    $region35: #{image_encoder_forward.11} parent=5 // pred_region
      %s167 = ssub.s32 %s10, 1
      %p168 = scmp.lt.s32.totalorder %s15, 1
      %s169 = scalar_select %p168, %s15, 1
      %s170 = smul.addr %s169, 72
      %s171 = smul.addr %s170, 8
      %s172 = scalar_lea.vmem %s0, %s171
      %p173 = pneg %p36
      %p174 = pneg %p33
      %p175 = pneg %p57
      %p176 = pneg %p54
      %p177 = pneg %p78
      %p178 = pneg %p75
      %p179 = pneg %p99
      %p180 = pneg %p96
      %p181 = pneg %p125
      %p182 = pneg %p122
      %p183 = scmp.lt.s32.totalorder %s15, 1
      %s184 = scalar_select %p183, %s15, 1
      %s185 = smul.addr %s184, 8
      %s186 = smul.addr %s185, 8
      %s187 = scalar_lea.vmem %s4, %s186
      %p188 = scmp.lt.s32.totalorder %s15, 1
      %s189 = scalar_select %p188, %s15, 1
      %s190 = smul.addr %s189, 72
      %s191 = smul.addr %s190, 8
      %s192 = scalar_lea.vmem %s0, %s191
      %p193 = scmp.lt.s32.totalorder %s15, 1
      %s194 = scalar_select %p193, %s15, 1
      %s195 = smul.addr %s194, 8
      %s196 = smul.addr %s195, 8
      %s197 = scalar_lea.vmem %s4, %s196
      %v198 = vld [vmem:[%s192] sm:$0xff]
      %v199 = vld [vmem:[%s192 + $0x10] sm:$0xff]
      %v200 = vld [vmem:[%s192 + $0x20] sm:$0xff]
      %v201 = vld [vmem:[%s192 + $0x30] sm:$0xff]
      %v202 = vld [vmem:[%s192 + $0x40] sm:$0xff]
      %v203 = vld [vmem:[%s192 + $0x50] sm:$0xff]
      %v204 = vld [vmem:[%s192 + $0x60] sm:$0xff]
      %v205 = vld [vmem:[%s192 + $0x70] sm:$0xff]
      %v206 = vld [vmem:[%s1] sm:$0x1]
      %v207 = vlaneseq
      %v208 = vshrl.u32 %v207, 7
      %v209 = vsub.s32 0, %v208
      %v210 = vrot.slane %v206, %v209
      %v211 = vmul.f32 %v198, %v210
      %v212 = vmul.f32 %v199, %v210
      %v213 = vmul.f32 %v200, %v210
      %v214 = vmul.f32 %v201, %v210
      %v215 = vmul.f32 %v202, %v210
      %v216 = vmul.f32 %v203, %v210
      %v217 = vmul.f32 %v204, %v210
      %v218 = vmul.f32 %v205, %v210
      %s219 = scalar_lea.vmem %s192, 144
      %v220 = vld [vmem:[%s219] sm:$0xff]
      %v221 = vld [vmem:[%s219 + $0x10] sm:$0xff]
      %v222 = vld [vmem:[%s219 + $0x20] sm:$0xff]
      %v223 = vld [vmem:[%s219 + $0x30] sm:$0xff]
      %v224 = vld [vmem:[%s219 + $0x40] sm:$0xff]
      %v225 = vld [vmem:[%s219 + $0x50] sm:$0xff]
      %v226 = vld [vmem:[%s219 + $0x60] sm:$0xff]
      %v227 = vld [vmem:[%s219 + $0x70] sm:$0xff]
      %v228 = vld [vmem:[%s1 + $0x1] sm:$0x1]
      %v229 = vlaneseq
      %v230 = vshrl.u32 %v229, 7
      %v231 = vsub.s32 0, %v230
      %v232 = vrot.slane %v228, %v231
      %v233 = vmul.f32 %v220, %v232
      %v234 = vmul.f32 %v221, %v232
      %v235 = vmul.f32 %v222, %v232
      %v236 = vmul.f32 %v223, %v232
      %v237 = vmul.f32 %v224, %v232
      %v238 = vmul.f32 %v225, %v232
      %v239 = vmul.f32 %v226, %v232
      %v240 = vmul.f32 %v227, %v232
      %v241 = vadd.f32 %v211, %v233
      %v242 = vadd.f32 %v212, %v234
      %v243 = vadd.f32 %v213, %v235
      %v244 = vadd.f32 %v214, %v236
      %v245 = vadd.f32 %v215, %v237
      %v246 = vadd.f32 %v216, %v238
      %v247 = vadd.f32 %v217, %v239
      %v248 = vadd.f32 %v218, %v240
      %v249 = vld [vmem:[%s192 + $0x1] sm:$0xff]
      %v250 = vld [vmem:[%s192 + $0x11] sm:$0xff]
      %v251 = vld [vmem:[%s192 + $0x21] sm:$0xff]
      %v252 = vld [vmem:[%s192 + $0x31] sm:$0xff]
      %v253 = vld [vmem:[%s192 + $0x41] sm:$0xff]
      %v254 = vld [vmem:[%s192 + $0x51] sm:$0xff]
      %v255 = vld [vmem:[%s192 + $0x61] sm:$0xff]
      %v256 = vld [vmem:[%s192 + $0x71] sm:$0xff]
      %v257 = vld [vmem:[%s1 + $0x2] sm:$0x1]
      %v258 = vlaneseq
      %v259 = vshrl.u32 %v258, 7
      %v260 = vsub.s32 0, %v259
      %v261 = vrot.slane %v257, %v260
      %v262 = vmul.f32 %v249, %v261
      %v263 = vmul.f32 %v250, %v261
      %v264 = vmul.f32 %v251, %v261
      %v265 = vmul.f32 %v252, %v261
      %v266 = vmul.f32 %v253, %v261
      %v267 = vmul.f32 %v254, %v261
      %v268 = vmul.f32 %v255, %v261
      %v269 = vmul.f32 %v256, %v261
      %v270 = vadd.f32 %v241, %v262
      %v271 = vadd.f32 %v242, %v263
      %v272 = vadd.f32 %v243, %v264
      %v273 = vadd.f32 %v244, %v265
      %v274 = vadd.f32 %v245, %v266
      %v275 = vadd.f32 %v246, %v267
      %v276 = vadd.f32 %v247, %v268
      %v277 = vadd.f32 %v248, %v269
      %s278 = scalar_lea.vmem %s192, 288
      %v279 = vld [vmem:[%s278] sm:$0xff]
      %v280 = vld [vmem:[%s278 + $0x10] sm:$0xff]
      %v281 = vld [vmem:[%s278 + $0x20] sm:$0xff]
      %v282 = vld [vmem:[%s278 + $0x30] sm:$0xff]
      %v283 = vld [vmem:[%s278 + $0x40] sm:$0xff]
      %v284 = vld [vmem:[%s278 + $0x50] sm:$0xff]
      %v285 = vld [vmem:[%s278 + $0x60] sm:$0xff]
      %v286 = vld [vmem:[%s278 + $0x70] sm:$0xff]
      %v287 = vld [vmem:[%s1 + $0x3] sm:$0x1]
      %v288 = vlaneseq
      %v289 = vshrl.u32 %v288, 7
      %v290 = vsub.s32 0, %v289
      %v291 = vrot.slane %v287, %v290
      %v292 = vmul.f32 %v279, %v291
      %v293 = vmul.f32 %v280, %v291
      %v294 = vmul.f32 %v281, %v291
      %v295 = vmul.f32 %v282, %v291
      %v296 = vmul.f32 %v283, %v291
      %v297 = vmul.f32 %v284, %v291
      %v298 = vmul.f32 %v285, %v291
      %v299 = vmul.f32 %v286, %v291
      %v300 = vadd.f32 %v270, %v292
      %v301 = vadd.f32 %v271, %v293
      %v302 = vadd.f32 %v272, %v294
      %v303 = vadd.f32 %v273, %v295
      %v304 = vadd.f32 %v274, %v296
      %v305 = vadd.f32 %v275, %v297
      %v306 = vadd.f32 %v276, %v298
      %v307 = vadd.f32 %v277, %v299
      %s308 = scalar_lea.vmem %s192, 432
      %v309 = vld [vmem:[%s308] sm:$0xff]
      %v310 = vld [vmem:[%s308 + $0x10] sm:$0xff]
      %v311 = vld [vmem:[%s308 + $0x20] sm:$0xff]
      %v312 = vld [vmem:[%s308 + $0x30] sm:$0xff]
      %v313 = vld [vmem:[%s308 + $0x40] sm:$0xff]
      %v314 = vld [vmem:[%s308 + $0x50] sm:$0xff]
      %v315 = vld [vmem:[%s308 + $0x60] sm:$0xff]
      %v316 = vld [vmem:[%s308 + $0x70] sm:$0xff]
      %v317 = vld [vmem:[%s1 + $0x4] sm:$0x1]
      %v318 = vlaneseq
      %v319 = vshrl.u32 %v318, 7
      %v320 = vsub.s32 0, %v319
      %v321 = vrot.slane %v317, %v320
      %v322 = vmul.f32 %v309, %v321
      %v323 = vmul.f32 %v310, %v321
      %v324 = vmul.f32 %v311, %v321
      %v325 = vmul.f32 %v312, %v321
      %v326 = vmul.f32 %v313, %v321
      %v327 = vmul.f32 %v314, %v321
      %v328 = vmul.f32 %v315, %v321
      %v329 = vmul.f32 %v316, %v321
      %v330 = vadd.f32 %v300, %v322
      %v331 = vadd.f32 %v301, %v323
      %v332 = vadd.f32 %v302, %v324
      %v333 = vadd.f32 %v303, %v325
      %v334 = vadd.f32 %v304, %v326
      %v335 = vadd.f32 %v305, %v327
      %v336 = vadd.f32 %v306, %v328
      %v337 = vadd.f32 %v307, %v329
      %v338 = vld [vmem:[%s278 + $0x1] sm:$0xff]
      %v339 = vld [vmem:[%s278 + $0x11] sm:$0xff]
      %v340 = vld [vmem:[%s278 + $0x21] sm:$0xff]
      %v341 = vld [vmem:[%s278 + $0x31] sm:$0xff]
      %v342 = vld [vmem:[%s278 + $0x41] sm:$0xff]
      %v343 = vld [vmem:[%s278 + $0x51] sm:$0xff]
      %v344 = vld [vmem:[%s278 + $0x61] sm:$0xff]
      %v345 = vld [vmem:[%s278 + $0x71] sm:$0xff]
      %v346 = vld [vmem:[%s1 + $0x5] sm:$0x1]
      %v347 = vlaneseq
      %v348 = vshrl.u32 %v347, 7
      %v349 = vsub.s32 0, %v348
      %v350 = vrot.slane %v346, %v349
      %v351 = vmul.f32 %v338, %v350
      %v352 = vmul.f32 %v339, %v350
      %v353 = vmul.f32 %v340, %v350
      %v354 = vmul.f32 %v341, %v350
      %v355 = vmul.f32 %v342, %v350
      %v356 = vmul.f32 %v343, %v350
      %v357 = vmul.f32 %v344, %v350
      %v358 = vmul.f32 %v345, %v350
      %v359 = vadd.f32 %v330, %v351
      %v360 = vadd.f32 %v331, %v352
      %v361 = vadd.f32 %v332, %v353
      %v362 = vadd.f32 %v333, %v354
      %v363 = vadd.f32 %v334, %v355
      %v364 = vadd.f32 %v335, %v356
      %v365 = vadd.f32 %v336, %v357
      %v366 = vadd.f32 %v337, %v358
      %s367 = scalar_lea.vmem %s192, 16
      %v368 = vld [vmem:[%s367] sm:$0xff]
      %v369 = vld [vmem:[%s367 + $0x10] sm:$0xff]
      %v370 = vld [vmem:[%s367 + $0x20] sm:$0xff]
      %v371 = vld [vmem:[%s367 + $0x30] sm:$0xff]
      %v372 = vld [vmem:[%s367 + $0x40] sm:$0xff]
      %v373 = vld [vmem:[%s367 + $0x50] sm:$0xff]
      %v374 = vld [vmem:[%s367 + $0x60] sm:$0xff]
      %v375 = vld [vmem:[%s367 + $0x70] sm:$0xff]
      %v376 = vld [vmem:[%s1 + $0x6] sm:$0x1]
      %v377 = vlaneseq
      %v378 = vshrl.u32 %v377, 7
      %v379 = vsub.s32 0, %v378
      %v380 = vrot.slane %v376, %v379
      %v381 = vmul.f32 %v368, %v380
      %v382 = vmul.f32 %v369, %v380
      %v383 = vmul.f32 %v370, %v380
      %v384 = vmul.f32 %v371, %v380
      %v385 = vmul.f32 %v372, %v380
      %v386 = vmul.f32 %v373, %v380
      %v387 = vmul.f32 %v374, %v380
      %v388 = vmul.f32 %v375, %v380
      %v389 = vadd.f32 %v359, %v381
      %v390 = vadd.f32 %v360, %v382
      %v391 = vadd.f32 %v361, %v383
      %v392 = vadd.f32 %v362, %v384
      %v393 = vadd.f32 %v363, %v385
      %v394 = vadd.f32 %v364, %v386
      %v395 = vadd.f32 %v365, %v387
      %v396 = vadd.f32 %v366, %v388
      %s397 = scalar_lea.vmem %s192, 160
      %v398 = vld [vmem:[%s397] sm:$0xff]
      %v399 = vld [vmem:[%s397 + $0x10] sm:$0xff]
      %v400 = vld [vmem:[%s397 + $0x20] sm:$0xff]
      %v401 = vld [vmem:[%s397 + $0x30] sm:$0xff]
      %v402 = vld [vmem:[%s397 + $0x40] sm:$0xff]
      %v403 = vld [vmem:[%s397 + $0x50] sm:$0xff]
      %v404 = vld [vmem:[%s397 + $0x60] sm:$0xff]
      %v405 = vld [vmem:[%s397 + $0x70] sm:$0xff]
      %v406 = vld [vmem:[%s1 + $0x7] sm:$0x1]
      %v407 = vlaneseq
      %v408 = vshrl.u32 %v407, 7
      %v409 = vsub.s32 0, %v408
      %v410 = vrot.slane %v406, %v409
      %v411 = vmul.f32 %v398, %v410
      %v412 = vmul.f32 %v399, %v410
      %v413 = vmul.f32 %v400, %v410
      %v414 = vmul.f32 %v401, %v410
      %v415 = vmul.f32 %v402, %v410
      %v416 = vmul.f32 %v403, %v410
      %v417 = vmul.f32 %v404, %v410
      %v418 = vmul.f32 %v405, %v410
      %v419 = vadd.f32 %v389, %v411
      %v420 = vadd.f32 %v390, %v412
      %v421 = vadd.f32 %v391, %v413
      %v422 = vadd.f32 %v392, %v414
      %v423 = vadd.f32 %v393, %v415
      %v424 = vadd.f32 %v394, %v416
      %v425 = vadd.f32 %v395, %v417
      %v426 = vadd.f32 %v396, %v418
      %v427 = vld [vmem:[%s367 + $0x1] sm:$0xff]
      %v428 = vld [vmem:[%s367 + $0x11] sm:$0xff]
      %v429 = vld [vmem:[%s367 + $0x21] sm:$0xff]
      %v430 = vld [vmem:[%s367 + $0x31] sm:$0xff]
      %v431 = vld [vmem:[%s367 + $0x41] sm:$0xff]
      %v432 = vld [vmem:[%s367 + $0x51] sm:$0xff]
      %v433 = vld [vmem:[%s367 + $0x61] sm:$0xff]
      %v434 = vld [vmem:[%s367 + $0x71] sm:$0xff]
      %v435 = vld [vmem:[%s1 + $0x8] sm:$0x1]
      %v436 = vlaneseq
      %v437 = vshrl.u32 %v436, 7
      %v438 = vsub.s32 0, %v437
      %v439 = vrot.slane %v435, %v438
      %v440 = vmul.f32 %v427, %v439
      %v441 = vmul.f32 %v428, %v439
      %v442 = vmul.f32 %v429, %v439
      %v443 = vmul.f32 %v430, %v439
      %v444 = vmul.f32 %v431, %v439
      %v445 = vmul.f32 %v432, %v439
      %v446 = vmul.f32 %v433, %v439
      %v447 = vmul.f32 %v434, %v439
      %v448 = vadd.f32 %v419, %v440
      %v449 = vadd.f32 %v420, %v441
      %v450 = vadd.f32 %v421, %v442
      %v451 = vadd.f32 %v422, %v443
      %v452 = vadd.f32 %v423, %v444
      %v453 = vadd.f32 %v424, %v445
      %v454 = vadd.f32 %v425, %v446
      %v455 = vadd.f32 %v426, %v447
      %v456 = vld [vmem:[%s2] sm:$0x1]
      %v458 = vlaneseq
      %v459 = vshrl.u32 %v458, 7
      %v460 = vsub.s32 0, %v459
      %v461 = vrot.slane %v456, %v460
      %v463 = vmul.f32 %v448, %v461
      %v464 = vmul.f32 %v449, %v461
      %v465 = vmul.f32 %v450, %v461
      %v466 = vmul.f32 %v451, %v461
      %v467 = vmul.f32 %v452, %v461
      %v468 = vmul.f32 %v453, %v461
      %v469 = vmul.f32 %v454, %v461
      %v470 = vmul.f32 %v455, %v461
      %v471 = vld [vmem:[%s3] sm:$0x1]
      %v473 = vlaneseq
      %v474 = vshrl.u32 %v473, 7
      %v475 = vsub.s32 0, %v474
      %v476 = vrot.slane %v471, %v475
      %v478 = vadd.f32 %v463, %v476
      %v479 = vadd.f32 %v464, %v476
      %v480 = vadd.f32 %v465, %v476
      %v481 = vadd.f32 %v466, %v476
      %v482 = vadd.f32 %v467, %v476
      %v483 = vadd.f32 %v468, %v476
      %v484 = vadd.f32 %v469, %v476
      %v485 = vadd.f32 %v470, %v476
      %v486 = vsub.f32 0.0, %v478
      %v487 = vsub.f32 0.0, %v479
      %v488 = vsub.f32 0.0, %v480
      %v489 = vsub.f32 0.0, %v481
      %v490 = vsub.f32 0.0, %v482
      %v491 = vsub.f32 0.0, %v483
      %v492 = vsub.f32 0.0, %v484
      %v493 = vsub.f32 0.0, %v485
      %v494 = vmul.f32 %v486, 1.442695
      %v495 = vpow.pop %v494
      %v496 = vmul.f32 %v487, 1.442695
      %v497 = vpow.pop %v496
      %v498 = vmul.f32 %v488, 1.442695
      %v499 = vpow.pop %v498
      %v500 = vmul.f32 %v489, 1.442695
      %v501 = vpow.pop %v500
      %v502 = vmul.f32 %v490, 1.442695
      %v503 = vpow.pop %v502
      %v504 = vmul.f32 %v491, 1.442695
      %v505 = vpow.pop %v504
      %v506 = vmul.f32 %v492, 1.442695
      %v507 = vpow.pop %v506
      %v508 = vmul.f32 %v493, 1.442695
      %v509 = vpow.pop %v508
      %v510 = vadd.f32 %v495, 1.0
      %v511 = vadd.f32 %v497, 1.0
      %v512 = vadd.f32 %v499, 1.0
      %v513 = vadd.f32 %v501, 1.0
      %v514 = vadd.f32 %v503, 1.0
      %v515 = vadd.f32 %v505, 1.0
      %v516 = vadd.f32 %v507, 1.0
      %v517 = vadd.f32 %v509, 1.0
      %v518 = vrcp.pop %v510
      %v519 = vrcp.pop %v511
      %v520 = vrcp.pop %v512
      %v521 = vrcp.pop %v513
      %v522 = vrcp.pop %v514
      %v523 = vrcp.pop %v515
      %v524 = vrcp.pop %v516
      %v525 = vrcp.pop %v517
      %v526 = vmul.f32 %v478, %v518
      %v527 = vmul.f32 %v479, %v519
      %v528 = vmul.f32 %v480, %v520
      %v529 = vmul.f32 %v481, %v521
      %v530 = vmul.f32 %v482, %v522
      %v531 = vmul.f32 %v483, %v523
      %v532 = vmul.f32 %v484, %v524
      %v533 = vmul.f32 %v485, %v525
      %534 = vst [vmem:[%s197] sm:$0xff] %v526
      %535 = vst [vmem:[%s197 + $0x8] sm:$0xff] %v527
      %536 = vst [vmem:[%s197 + $0x10] sm:$0xff] %v528
      %537 = vst [vmem:[%s197 + $0x18] sm:$0xff] %v529
      %538 = vst [vmem:[%s197 + $0x20] sm:$0xff] %v530
      %539 = vst [vmem:[%s197 + $0x28] sm:$0xff] %v531
      %540 = vst [vmem:[%s197 + $0x30] sm:$0xff] %v532
      %541 = vst [vmem:[%s197 + $0x38] sm:$0xff] %v533
      %p542 = scmp.lt.s32.totalorder %s15, 1
      %s543 = scalar_select %p542, %s15, 1
      %s544 = smul.addr %s543, 8
      %s545 = smul.addr %s544, 8
      %s546 = scalar_lea.vmem %s4, %s545
      // Predicated region
      $region37: #{image_encoder_forward.11} parent=35 // pred_check
        %p547 = pneg %p122
      $region38: #{image_encoder_forward.11} parent=35 // pred_check_branch
        %549 = sbr.rel (%p547) target = $region40
      $region39: #{image_encoder_forward.11} parent=35 // pred_region
        _
      $region40: #{image_encoder_forward.11} parent=35 // pred_fallthru
        _
    $region36: #{image_encoder_forward.11} parent=5 // pred_fallthru
      _
    %p550 = scmp.le.s32.totalorder 2, %s10
    // Predicated region
    $region41: #{image_encoder_forward.11} parent=5 // pred_check
      %p551 = pneg %p550
    $region42: #{image_encoder_forward.11} parent=5 // pred_check_branch
      %553 = sbr.rel (%p551) target = $region44
    $region43: #{image_encoder_forward.11} parent=5 // pred_region
      %s554 = ssub.s32 %s10, 2
      // Predicated region
      $region45: #{image_encoder_forward.11} parent=43 // pred_check
        %p555 = pneg %p128
      $region46: #{image_encoder_forward.11} parent=43 // pred_check_branch
        %557 = sbr.rel (%p555) target = $region48
      $region47: #{image_encoder_forward.11} parent=43 // pred_region
        %p558 = scmp.lt.s32.totalorder %s16, 1
        %s559 = scalar_select %p558, %s16, 1
        %s560 = smul.addr %s559, 8
        %s561 = smul.addr %s560, 8
        %s562 = scalar_lea.vmem %s4, %s561
      $region48: #{image_encoder_forward.11} parent=43 // pred_fallthru
        _
    $region44: #{image_encoder_forward.11} parent=5 // pred_fallthru
      _
  $region6: #{image_encoder_forward.11} parent=0 // loop_footer
    %s14 = sadd.s32 1, %s10
  $region7: #{image_encoder_forward.11} parent=0 // loop_footer_branch
    %9 = sbr.rel target = $region3
  $region8: #{image_encoder_forward.11} parent=0 // loop_exit
    _

// kernel: image_encoder_forward.12
$region0: #{image_encoder_forward.12}
  #allocation0 [shape = 'u32[]', space=smem, size = 0x4, offset = 0x4, fixed_abs, tag = 'smem constant byte address 0x4 - core index']
  #allocation1 [shape = 'u32[144,128]{1,0:T(1,128)}', space=vmem, size = 0x12000, scoped, tag = 'internal scratch']
  #allocation2 [shape = 'f32[1,128]{1,0:T(1,128)}', space=vmem, size = 0x200, scoped, tag = 'scratch operand']
  %s0 = inlined_call_operand.vmem [shape: f32[2,64,128], index: 0, kind: input, shape index: {}]
  %s1 = inlined_call_operand.vmem [shape: f32[128,4], index: 1, kind: input, shape index: {}]
  %s2 = inlined_call_operand.vmem [shape: f32[1,4], index: 2, kind: input, shape index: {}]
  %s3 = inlined_call_operand.vmem [shape: f32[4,128], index: 3, kind: input, shape index: {}]
  %s4 = inlined_call_operand.vmem [shape: f32[1,128], index: 4, kind: input, shape index: {}]
  %s5 = inlined_call_operand.vmem [shape: f32[2,1,128], index: 5, kind: output, shape index: {}]
  %s6 = sld [smem:[#allocation0]]
  $region57: #{image_encoder_forward.12} parent=0
    _
  %s8 = ssub.s32 1, %s6
  %s9 = scalar_select 0, %s8, %s6
  loop: start=0, step=1, limit=4
  $region2: #{image_encoder_forward.12} parent=0 // loop_pre_header
    _
  $region3: #{image_encoder_forward.12} parent=0 // loop_header
    %s11 = sphi 0, %s15
    %p12 = scmp.ge.s32.totalorder %s11, 4
    %s18 = sphi 0, %s30
    %s19 = sphi 0, %s26
    %s20 = sphi 0, %s18
    %s21 = sphi 0, %s19
    %s22 = sphi 0, %s20
    %s23 = sphi 0, %s21
    %s35 = sphi 0, %s37
    %s38 = sphi 0, %s35
    %s39 = sphi 0, %s38
    %s55 = sphi 0, %s39
    %s59 = sphi 0, %s59
    %s61 = sphi 0, %s59
    %s62 = sphi 0, %s61
    %s76 = sphi 0, %s62
    %s80 = sphi 0, %s80
    %s82 = sphi 0, %s80
    %s83 = sphi 0, %s82
    %s97 = sphi 0, %s83
    %s101 = sphi 0, %s101
    %s103 = sphi 0, %s101
    %s104 = sphi 0, %s103
    %s118 = sphi 0, %s104
    %s122 = sphi 0, %s122
    %s124 = sphi 0, %s122
    %s125 = sphi 0, %s124
    %s139 = sphi 0, %s125
    %s145 = sphi 0, %s147
    %s148 = sphi 0, %s145
    %s149 = sphi 0, %s148
    %s165 = sphi 0, %s149
  $region4: #{image_encoder_forward.12} parent=0 // loop_header_branch
    %14 = sbr.rel (%p12) target = $region8
  $region5: #{image_encoder_forward.12} parent=0 // loop_body
    %s16 = ssub.s32 %s11, 1
    %s17 = ssub.s32 %s11, 2
    %s24 = sadd.s32 1, %s19
    %p25 = scmp.ge.s32.totalorder %s24, 1
    %s26 = scalar_select %p25, 0, %s24
    %s27 = sadd.s32 1, %s18
    %s28 = scalar_select %p25, %s27, %s18
    %p29 = scmp.ge.s32.totalorder %s28, 2
    %s30 = scalar_select %p29, 0, %s28
    %s31 = ssub.s32 %s18, %s30
    %s32 = ssub.s32 %s19, %s26
    %s33 = sor.u32 %s31, %s32
    %p34 = scmp.eq.s32.totalorder %s33, 0
    %s36 = sadd.s32 %s35, 1
    %s37 = scalar_select %p34, %s35, %s36
    %p40 = pneg %p34
    %p41 = scmp.eq.s32.totalorder %s11, 1
    %p42 = por %p40, %p41
    %p43 = scmp.ne.s32.totalorder %s35, %s38
    %p44 = scmp.eq.s32.totalorder %s11, 0
    %p45 = por %p43, %p44
    %p46 = scmp.ne.s32.totalorder %s35, %s38
    %p47 = scmp.eq.s32.totalorder %s16, 1
    %p48 = por %p46, %p47
    %p49 = scmp.ne.s32.totalorder %s38, %s39
    %p50 = scmp.eq.s32.totalorder %s16, 0
    %p51 = por %p49, %p50
    %p52 = scmp.ne.s32.totalorder %s38, %s39
    %p53 = scmp.eq.s32.totalorder %s17, 1
    %p54 = por %p52, %p53
    %p56 = scmp.ne.s32.totalorder %s39, %s55
    %p57 = scmp.eq.s32.totalorder %s17, 0
    %p58 = por %p56, %p57
    %s60 = sadd.s32 %s59, 1
    %p63 = scmp.eq.s32.totalorder %s11, 1
    %p64 = scmp.ne.s32.totalorder %s59, %s61
    %p65 = scmp.eq.s32.totalorder %s11, 0
    %p66 = por %p64, %p65
    %p67 = scmp.ne.s32.totalorder %s59, %s61
    %p68 = scmp.eq.s32.totalorder %s16, 1
    %p69 = por %p67, %p68
    %p70 = scmp.ne.s32.totalorder %s61, %s62
    %p71 = scmp.eq.s32.totalorder %s16, 0
    %p72 = por %p70, %p71
    %p73 = scmp.ne.s32.totalorder %s61, %s62
    %p74 = scmp.eq.s32.totalorder %s17, 1
    %p75 = por %p73, %p74
    %p77 = scmp.ne.s32.totalorder %s62, %s76
    %p78 = scmp.eq.s32.totalorder %s17, 0
    %p79 = por %p77, %p78
    %s81 = sadd.s32 %s80, 1
    %p84 = scmp.eq.s32.totalorder %s11, 1
    %p85 = scmp.ne.s32.totalorder %s80, %s82
    %p86 = scmp.eq.s32.totalorder %s11, 0
    %p87 = por %p85, %p86
    %p88 = scmp.ne.s32.totalorder %s80, %s82
    %p89 = scmp.eq.s32.totalorder %s16, 1
    %p90 = por %p88, %p89
    %p91 = scmp.ne.s32.totalorder %s82, %s83
    %p92 = scmp.eq.s32.totalorder %s16, 0
    %p93 = por %p91, %p92
    %p94 = scmp.ne.s32.totalorder %s82, %s83
    %p95 = scmp.eq.s32.totalorder %s17, 1
    %p96 = por %p94, %p95
    %p98 = scmp.ne.s32.totalorder %s83, %s97
    %p99 = scmp.eq.s32.totalorder %s17, 0
    %p100 = por %p98, %p99
    %s102 = sadd.s32 %s101, 1
    %p105 = scmp.eq.s32.totalorder %s11, 1
    %p106 = scmp.ne.s32.totalorder %s101, %s103
    %p107 = scmp.eq.s32.totalorder %s11, 0
    %p108 = por %p106, %p107
    %p109 = scmp.ne.s32.totalorder %s101, %s103
    %p110 = scmp.eq.s32.totalorder %s16, 1
    %p111 = por %p109, %p110
    %p112 = scmp.ne.s32.totalorder %s103, %s104
    %p113 = scmp.eq.s32.totalorder %s16, 0
    %p114 = por %p112, %p113
    %p115 = scmp.ne.s32.totalorder %s103, %s104
    %p116 = scmp.eq.s32.totalorder %s17, 1
    %p117 = por %p115, %p116
    %p119 = scmp.ne.s32.totalorder %s104, %s118
    %p120 = scmp.eq.s32.totalorder %s17, 0
    %p121 = por %p119, %p120
    %s123 = sadd.s32 %s122, 1
    %p126 = scmp.eq.s32.totalorder %s11, 1
    %p127 = scmp.ne.s32.totalorder %s122, %s124
    %p128 = scmp.eq.s32.totalorder %s11, 0
    %p129 = por %p127, %p128
    %p130 = scmp.ne.s32.totalorder %s122, %s124
    %p131 = scmp.eq.s32.totalorder %s16, 1
    %p132 = por %p130, %p131
    %p133 = scmp.ne.s32.totalorder %s124, %s125
    %p134 = scmp.eq.s32.totalorder %s16, 0
    %p135 = por %p133, %p134
    %p136 = scmp.ne.s32.totalorder %s124, %s125
    %p137 = scmp.eq.s32.totalorder %s17, 1
    %p138 = por %p136, %p137
    %p140 = scmp.ne.s32.totalorder %s125, %s139
    %p141 = scmp.eq.s32.totalorder %s17, 0
    %p142 = por %p140, %p141
    %s143 = ssub.s32 %s18, %s30
    %p144 = scmp.eq.s32.totalorder %s143, 0
    %s146 = sadd.s32 %s145, 1
    %s147 = scalar_select %p144, %s145, %s146
    %p150 = pneg %p144
    %p151 = scmp.eq.s32.totalorder %s11, 1
    %p152 = por %p150, %p151
    %p153 = scmp.ne.s32.totalorder %s145, %s148
    %p154 = scmp.eq.s32.totalorder %s11, 0
    %p155 = por %p153, %p154
    %p156 = scmp.ne.s32.totalorder %s145, %s148
    %p157 = scmp.eq.s32.totalorder %s16, 1
    %p158 = por %p156, %p157
    %p159 = scmp.ne.s32.totalorder %s148, %s149
    %p160 = scmp.eq.s32.totalorder %s16, 0
    %p161 = por %p159, %p160
    %p162 = scmp.ne.s32.totalorder %s148, %s149
    %p163 = scmp.eq.s32.totalorder %s17, 1
    %p164 = por %p162, %p163
    %p166 = scmp.ne.s32.totalorder %s149, %s165
    %p167 = scmp.eq.s32.totalorder %s17, 0
    %p168 = por %p166, %p167
    %p169 = scmp.le.s32.totalorder 1, %s11
    %p170 = scmp.lt.s32.totalorder %s11, 3
    %p171 = pnand %p169, %p170
    %p172 = pneg %p171
    // Predicated region
    $region9: #{image_encoder_forward.12} parent=5 // pred_check
      _
    $region10: #{image_encoder_forward.12} parent=5 // pred_check_branch
      %174 = sbr.rel (%p171) target = $region12
    $region11: #{image_encoder_forward.12} parent=5 // pred_region
      %s175 = ssub.s32 %s11, 1
      // Predicated region
      $region13: #{image_encoder_forward.12} parent=11 // pred_check
        %p176 = pneg %p72
      $region14: #{image_encoder_forward.12} parent=11 // pred_check_branch
        %178 = sbr.rel (%p176) target = $region16
      $region15: #{image_encoder_forward.12} parent=11 // pred_region
        _
      $region16: #{image_encoder_forward.12} parent=11 // pred_fallthru
        _
      // Predicated region
      $region17: #{image_encoder_forward.12} parent=11 // pred_check
        %p179 = pneg %p93
      $region18: #{image_encoder_forward.12} parent=11 // pred_check_branch
        %181 = sbr.rel (%p179) target = $region20
      $region19: #{image_encoder_forward.12} parent=11 // pred_region
        _
      $region20: #{image_encoder_forward.12} parent=11 // pred_fallthru
        _
      // Predicated region
      $region21: #{image_encoder_forward.12} parent=11 // pred_check
        %p182 = pneg %p114
      $region22: #{image_encoder_forward.12} parent=11 // pred_check_branch
        %184 = sbr.rel (%p182) target = $region24
      $region23: #{image_encoder_forward.12} parent=11 // pred_region
        _
      $region24: #{image_encoder_forward.12} parent=11 // pred_fallthru
        _
      // Predicated region
      $region25: #{image_encoder_forward.12} parent=11 // pred_check
        %p185 = pneg %p135
      $region26: #{image_encoder_forward.12} parent=11 // pred_check_branch
        %187 = sbr.rel (%p185) target = $region28
      $region27: #{image_encoder_forward.12} parent=11 // pred_region
        _
      $region28: #{image_encoder_forward.12} parent=11 // pred_fallthru
        _
    $region12: #{image_encoder_forward.12} parent=5 // pred_fallthru
      _
    %p188 = scmp.lt.s32.totalorder %s11, 2
    // Predicated region
    $region29: #{image_encoder_forward.12} parent=5 // pred_check
      %p189 = pneg %p188
    $region30: #{image_encoder_forward.12} parent=5 // pred_check_branch
      %191 = sbr.rel (%p189) target = $region32
    $region31: #{image_encoder_forward.12} parent=5 // pred_region
      // Predicated region
      $region33: #{image_encoder_forward.12} parent=31 // pred_check
        %p192 = pneg %p45
      $region34: #{image_encoder_forward.12} parent=31 // pred_check_branch
        %194 = sbr.rel (%p192) target = $region36
      $region35: #{image_encoder_forward.12} parent=31 // pred_region
        %s195 = smul.u32 8, %s19
        %p196 = scmp.lt.s32.totalorder %s18, 1
        %s197 = scalar_select %p196, %s18, 1
        %p198 = scmp.lt.s32.totalorder %s195, 7
        %s199 = scalar_select %p198, %s195, 7
        %s200 = smul.addr %s197, 8
        %s201 = sadd.s32 %s199, %s200
        %s202 = smul.addr %s201, 8
        %s203 = scalar_lea.vmem %s0, %s202
        %s204 = smul.u32 8, %s19
      $region36: #{image_encoder_forward.12} parent=31 // pred_fallthru
        _
    $region32: #{image_encoder_forward.12} parent=5 // pred_fallthru
      _
    %p205 = scmp.le.s32.totalorder 1, %s11
    %p206 = scmp.lt.s32.totalorder %s11, 3
    %p207 = pnand %p205, %p206
    %p208 = pneg %p207
    // Predicated region
    $region37: #{image_encoder_forward.12} parent=5 // pred_check
      _
    $region38: #{image_encoder_forward.12} parent=5 // pred_check_branch
      %210 = sbr.rel (%p207) target = $region40
    $region39: #{image_encoder_forward.12} parent=5 // pred_region
      %s211 = ssub.s32 %s11, 1
      %s212 = smul.u32 8, %s21
      %p213 = scmp.lt.s32.totalorder %s20, 1
      %s214 = scalar_select %p213, %s20, 1
      %p215 = scmp.lt.s32.totalorder %s212, 7
      %s216 = scalar_select %p215, %s212, 7
      %s217 = smul.addr %s214, 8
      %s218 = sadd.s32 %s216, %s217
      %s219 = smul.addr %s218, 8
      %s220 = scalar_lea.vmem %s0, %s219
      %p221 = pneg %p51
      %p222 = pneg %p48
      %p223 = pneg %p72
      %p224 = pneg %p69
      %p225 = pneg %p93
      %p226 = pneg %p90
      %p227 = pneg %p114
      %p228 = pneg %p111
      %p229 = pneg %p135
      %p230 = pneg %p132
      %p231 = pneg %p161
      %p232 = pneg %p158
      %p233 = scmp.lt.s32.totalorder %s20, 1
      %s234 = scalar_select %p233, %s20, 1
      %s235 = scalar_lea.vmem %s5, %s234
      %s236 = smul.u32 8, %s21
      %p237 = scmp.lt.s32.totalorder %s20, 1
      %s238 = scalar_select %p237, %s20, 1
      %p239 = scmp.lt.s32.totalorder %s236, 7
      %s240 = scalar_select %p239, %s236, 7
      %s241 = smul.addr %s238, 8
      %s242 = sadd.s32 %s240, %s241
      %s243 = smul.addr %s242, 8
      %s244 = scalar_lea.vmem %s0, %s243
      %s245 = smul.u32 8, %s21
      %p246 = scmp.lt.s32.totalorder %s20, 1
      %s247 = scalar_select %p246, %s20, 1
      %s248 = scalar_lea.vmem %s5, %s247
      %p249 = scmp.eq.s32.totalorder %s21, 0
      // Predicated region
      $region41: #{image_encoder_forward.12} parent=39 // pred_check
        %p250 = pneg %p249
      $region42: #{image_encoder_forward.12} parent=39 // pred_check_branch
        %252 = sbr.rel (%p250) target = $region44
      $region43: #{image_encoder_forward.12} parent=39 // pred_region
        %253 = vst [vmem:[#allocation2] sm:$0x1] 0.0
      $region44: #{image_encoder_forward.12} parent=39 // pred_fallthru
        _
      %v254 = vld [vmem:[#allocation2] sm:$0x1]
      %v255 = vld [vmem:[%s244] sm:$0xff]
      %v256 = vld [vmem:[%s244 + $0x8] sm:$0xff]
      %v257 = vld [vmem:[%s244 + $0x10] sm:$0xff]
      %v258 = vld [vmem:[%s244 + $0x18] sm:$0xff]
      %v259 = vld [vmem:[%s244 + $0x20] sm:$0xff]
      %v260 = vld [vmem:[%s244 + $0x28] sm:$0xff]
      %v261 = vld [vmem:[%s244 + $0x30] sm:$0xff]
      %v262 = vld [vmem:[%s244 + $0x38] sm:$0xff]
      %v263 = vadd.f32 %v255, %v256
      %v264 = vadd.f32 %v263, %v257
      %v265 = vadd.f32 %v264, %v258
      %v266 = vadd.f32 %v265, %v259
      %v267 = vadd.f32 %v266, %v260
      %v268 = vadd.f32 %v267, %v261
      %v269 = vadd.f32 %v268, %v262
      %v270 = vrot.slane %v269, 4
      %v271 = vadd.f32 %v269, %v270
      %v272 = vrot.slane %v271, 2
      %v273 = vadd.f32 %v271, %v272
      %v274 = vrot.slane %v273, 1
      %v275 = vadd.f32 %v273, %v274
      %v276 = vadd.f32 %v254, %v275
      %277 = vst [vmem:[#allocation2] sm:$0x1] %v276
      %v278 = vld [vmem:[#allocation2] sm:$0x1]
      %v279 = vmul.f32 %v278, 0.015625
      %v280 = vld [vmem:[%s1] sm:$0xff]
      %v281 = vld [vmem:[%s1 + $0x8] sm:$0xff]
      %v282 = vld [vmem:[%s1 + $0x10] sm:$0xff]
      %v283 = vld [vmem:[%s1 + $0x18] sm:$0xff]
      %v284 = vld [vmem:[%s1 + $0x20] sm:$0xff]
      %v285 = vld [vmem:[%s1 + $0x28] sm:$0xff]
      %v286 = vld [vmem:[%s1 + $0x30] sm:$0xff]
      %v287 = vld [vmem:[%s1 + $0x38] sm:$0xff]
      %v288 = vld [vmem:[%s1 + $0x40] sm:$0xff]
      %v289 = vld [vmem:[%s1 + $0x48] sm:$0xff]
      %v290 = vld [vmem:[%s1 + $0x50] sm:$0xff]
      %v291 = vld [vmem:[%s1 + $0x58] sm:$0xff]
      %v292 = vld [vmem:[%s1 + $0x60] sm:$0xff]
      %v293 = vld [vmem:[%s1 + $0x68] sm:$0xff]
      %v294 = vld [vmem:[%s1 + $0x70] sm:$0xff]
      %v295 = vld [vmem:[%s1 + $0x78] sm:$0xff]
      %v296 = vld [vmem:[%s2] sm:$0x1]
      %297 = vmatprep.subr.mxu0 0.0
      %298 = vmatpush1.msra.mxu0 %v295
      %299 = vmatprep.subr.mxu0 0.0
      %300 = vmatpush1.msra.mxu0 %v294
      %301 = vmatprep.subr.mxu0 0.0
      %302 = vmatpush1.msra.mxu0 %v293
      %303 = vmatprep.subr.mxu0 0.0
      %304 = vmatpush1.msra.mxu0 %v292
      %305 = vmatprep.subr.mxu0 0.0
      %306 = vmatpush1.msra.mxu0 %v291
      %307 = vmatprep.subr.mxu0 0.0
      %308 = vmatpush1.msra.mxu0 %v290
      %309 = vmatprep.subr.mxu0 0.0
      %310 = vmatpush1.msra.mxu0 %v289
      %311 = vmatprep.subr.mxu0 0.0
      %312 = vmatpush1.msra.mxu0 %v288
      %313 = vmatprep.subr.mxu0 0.0
      %314 = vmatpush1.msra.mxu0 %v287
      %315 = vmatprep.subr.mxu0 0.0
      %316 = vmatpush1.msra.mxu0 %v286
      %317 = vmatprep.subr.mxu0 0.0
      %318 = vmatpush1.msra.mxu0 %v285
      %319 = vmatprep.subr.mxu0 0.0
      %320 = vmatpush1.msra.mxu0 %v284
      %321 = vmatprep.subr.mxu0 0.0
      %322 = vmatpush1.msra.mxu0 %v283
      %323 = vmatprep.subr.mxu0 0.0
      %324 = vmatpush1.msra.mxu0 %v282
      %325 = vmatprep.subr.mxu0 0.0
      %326 = vmatpush1.msra.mxu0 %v281
      %327 = vmatprep.subr.mxu0 0.0
      %328 = vmatpush1.msra.mxu0 %v280
      %329 = vmatprep.subr.mxu0 0.0
      %330 = vmatpush2.msra.mxu0 0.0
      %331 = vmatprep.subr.mxu0 0.0
      %332 = vmatpush2.msra.mxu0 0.0
      %333 = vmatprep.subr.mxu0 0.0
      %334 = vmatpush2.msra.mxu0 0.0
      %335 = vmatprep.subr.mxu0 0.0
      %336 = vmatpush2.msra.mxu0 0.0
      %337 = vmatprep.subr.mxu0 0.0
      %338 = vmatpush2.msra.mxu0 0.0
      %339 = vmatprep.subr.mxu0 0.0
      %340 = vmatpush2.msra.mxu0 0.0
      %341 = vmatprep.subr.mxu0 0.0
      %342 = vmatpush2.msra.mxu0 0.0
      %343 = vmatprep.subr.mxu0 0.0
      %344 = vmatpush2.msra.mxu0 0.0
      %345 = vmatprep.subr.mxu0 0.0
      %346 = vmatpush2.msra.mxu0 0.0
      %347 = vmatprep.subr.mxu0 0.0
      %348 = vmatpush2.msra.mxu0 0.0
      %349 = vmatprep.subr.mxu0 0.0
      %350 = vmatpush2.msra.mxu0 0.0
      %351 = vmatprep.subr.mxu0 0.0
      %352 = vmatpush2.msra.mxu0 0.0
      %353 = vmatprep.subr.mxu0 0.0
      %354 = vmatpush2.msra.mxu0 0.0
      %355 = vmatprep.subr.mxu0 0.0
      %356 = vmatpush2.msra.mxu0 0.0
      %357 = vmatprep.subr.mxu0 0.0
      %358 = vmatpush2.msra.mxu0 0.0
      %359 = vmatprep.subr.mxu0 0.0
      %360 = vmatpush2.msra.mxu0 0.0
      %361 = vmatprep.mubr.f32.mxu0 0.0
      %362 = vmatmul.mubr.f32.gmra.mxu0 %v279
      %v363 = vpop.f32.mrf.mxu0
      %v364 = vadd.f32 %v296, %v363
      %v365 = vpop.f32.mrf.mxu0
      %366 = vdwg.mxu0
      %v367 = vsub.f32 0.0, %v364
      %v368 = vmul.f32 %v367, 1.442695
      %v369 = vpow.pop %v368
      %v370 = vadd.f32 %v369, 1.0
      %v371 = vrcp.pop %v370
      %v372 = vmul.f32 %v364, %v371
      %v373 = vld [vmem:[%s3] sm:$0xf]
      %v374 = vld [vmem:[%s4] sm:$0x1]
      %vm375 = vcmask 31744
      %v377 = vsel %vm375, %v372, 0
      %vm379 = vcmask 1043456
      %v381 = vsel %vm379, %v373, 0
      %383 = vmatprep.subr.mxu0 0.0
      %384 = vmatpush1.msra.mxu0 0.0
      %385 = vmatprep.subr.mxu0 0.0
      %386 = vmatpush1.msra.mxu0 0.0
      %387 = vmatprep.subr.mxu0 0.0
      %388 = vmatpush1.msra.mxu0 0.0
      %389 = vmatprep.subr.mxu0 0.0
      %390 = vmatpush1.msra.mxu0 0.0
      %391 = vmatprep.subr.mxu0 0.0
      %392 = vmatpush1.msra.mxu0 0.0
      %393 = vmatprep.subr.mxu0 0.0
      %394 = vmatpush1.msra.mxu0 0.0
      %395 = vmatprep.subr.mxu0 0.0
      %396 = vmatpush1.msra.mxu0 0.0
      %397 = vmatprep.subr.mxu0 0.0
      %398 = vmatpush1.msra.mxu0 0.0
      %399 = vmatprep.subr.mxu0 0.0
      %400 = vmatpush1.msra.mxu0 0.0
      %401 = vmatprep.subr.mxu0 0.0
      %402 = vmatpush1.msra.mxu0 0.0
      %403 = vmatprep.subr.mxu0 0.0
      %404 = vmatpush1.msra.mxu0 0.0
      %405 = vmatprep.subr.mxu0 0.0
      %406 = vmatpush1.msra.mxu0 0.0
      %407 = vmatprep.subr.mxu0 0.0
      %408 = vmatpush1.msra.mxu0 0.0
      %409 = vmatprep.subr.mxu0 0.0
      %410 = vmatpush1.msra.mxu0 0.0
      %411 = vmatprep.subr.mxu0 0.0
      %412 = vmatpush1.msra.mxu0 0.0
      %413 = vmatprep.subr.mxu0 0.0
      %414 = vmatpush1.msra.mxu0 %v381
      %415 = vmatprep.subr.mxu0 0.0
      %416 = vmatpush2.msra.mxu0 0.0
      %417 = vmatprep.subr.mxu0 0.0
      %418 = vmatpush2.msra.mxu0 0.0
      %419 = vmatprep.subr.mxu0 0.0
      %420 = vmatpush2.msra.mxu0 0.0
      %421 = vmatprep.subr.mxu0 0.0
      %422 = vmatpush2.msra.mxu0 0.0
      %423 = vmatprep.subr.mxu0 0.0
      %424 = vmatpush2.msra.mxu0 0.0
      %425 = vmatprep.subr.mxu0 0.0
      %426 = vmatpush2.msra.mxu0 0.0
      %427 = vmatprep.subr.mxu0 0.0
      %428 = vmatpush2.msra.mxu0 0.0
      %429 = vmatprep.subr.mxu0 0.0
      %430 = vmatpush2.msra.mxu0 0.0
      %431 = vmatprep.subr.mxu0 0.0
      %432 = vmatpush2.msra.mxu0 0.0
      %433 = vmatprep.subr.mxu0 0.0
      %434 = vmatpush2.msra.mxu0 0.0
      %435 = vmatprep.subr.mxu0 0.0
      %436 = vmatpush2.msra.mxu0 0.0
      %437 = vmatprep.subr.mxu0 0.0
      %438 = vmatpush2.msra.mxu0 0.0
      %439 = vmatprep.subr.mxu0 0.0
      %440 = vmatpush2.msra.mxu0 0.0
      %441 = vmatprep.subr.mxu0 0.0
      %442 = vmatpush2.msra.mxu0 0.0
      %443 = vmatprep.subr.mxu0 0.0
      %444 = vmatpush2.msra.mxu0 0.0
      %445 = vmatprep.subr.mxu0 0.0
      %446 = vmatpush2.msra.mxu0 0.0
      %447 = vmatprep.mubr.f32.mxu0 0.0
      %448 = vmatmul.mubr.f32.gmra.mxu0 %v377
      %v449 = vpop.f32.mrf.mxu0
      %v450 = vadd.f32 %v374, %v449
      %v451 = vpop.f32.mrf.mxu0
      %452 = vdwg.mxu0
      %v453 = vsub.f32 0.0, %v450
      %v454 = vmul.f32 %v453, 1.442695
      %v455 = vpow.pop %v454
      %v456 = vadd.f32 %v455, 1.0
      %v457 = vrcp.pop %v456
      %458 = vst [vmem:[%s248] sm:$0x1] %v457
      %p459 = scmp.lt.s32.totalorder %s20, 1
      %s460 = scalar_select %p459, %s20, 1
      %s461 = scalar_lea.vmem %s5, %s460
      // Predicated region
      $region45: #{image_encoder_forward.12} parent=39 // pred_check
        %p462 = pneg %p158
      $region46: #{image_encoder_forward.12} parent=39 // pred_check_branch
        %464 = sbr.rel (%p462) target = $region48
      $region47: #{image_encoder_forward.12} parent=39 // pred_region
        _
      $region48: #{image_encoder_forward.12} parent=39 // pred_fallthru
        _
    $region40: #{image_encoder_forward.12} parent=5 // pred_fallthru
      _
    %p465 = scmp.le.s32.totalorder 2, %s11
    // Predicated region
    $region49: #{image_encoder_forward.12} parent=5 // pred_check
      %p466 = pneg %p465
    $region50: #{image_encoder_forward.12} parent=5 // pred_check_branch
      %468 = sbr.rel (%p466) target = $region52
    $region51: #{image_encoder_forward.12} parent=5 // pred_region
      %s469 = ssub.s32 %s11, 2
      // Predicated region
      $region53: #{image_encoder_forward.12} parent=51 // pred_check
        %p470 = pneg %p164
      $region54: #{image_encoder_forward.12} parent=51 // pred_check_branch
        %472 = sbr.rel (%p470) target = $region56
      $region55: #{image_encoder_forward.12} parent=51 // pred_region
        %p473 = scmp.lt.s32.totalorder %s22, 1
        %s474 = scalar_select %p473, %s22, 1
        %s475 = scalar_lea.vmem %s5, %s474
      $region56: #{image_encoder_forward.12} parent=51 // pred_fallthru
        _
    $region52: #{image_encoder_forward.12} parent=5 // pred_fallthru
      _
  $region6: #{image_encoder_forward.12} parent=0 // loop_footer
    %s15 = sadd.s32 1, %s11
  $region7: #{image_encoder_forward.12} parent=0 // loop_footer_branch
    %10 = sbr.rel target = $region3
  $region8: #{image_encoder_forward.12} parent=0 // loop_exit
    _

// kernel: image_encoder_forward.13
$region0: #{image_encoder_forward.13}
  #allocation0 [shape = 'u32[]', space=smem, size = 0x4, offset = 0x4, fixed_abs, tag = 'smem constant byte address 0x4 - core index']
  #allocation1 [shape = 'u32[144,128]{1,0:T(1,128)}', space=vmem, size = 0x12000, scoped, tag = 'internal scratch']
  #allocation2 [shape = 'f32[1,1280]{1,0:T(1,128)}', space=vmem, size = 0x1400, scoped, tag = 'scratch operand']
  %s0 = inlined_call_operand.vmem [shape: f32[2,64,128], index: 0, kind: input, shape index: {}]
  %s1 = inlined_call_operand.vmem [shape: f32[2,1,128], index: 1, kind: input, shape index: {}]
  %s2 = inlined_call_operand.vmem [shape: bf16[128,24], index: 2, kind: input, shape index: {}]
  %s3 = inlined_call_operand.vmem [shape: f32[1,24], index: 3, kind: input, shape index: {}]
  %s4 = inlined_call_operand.vmem [shape: f32[1,24], index: 4, kind: input, shape index: {}]
  %s5 = inlined_call_operand.vmem [shape: bf16[24,1280], index: 5, kind: input, shape index: {}]
  %s6 = inlined_call_operand.vmem [shape: f32[1,1280], index: 6, kind: input, shape index: {}]
  %s7 = inlined_call_operand.vmem [shape: f32[1,1280], index: 7, kind: input, shape index: {}]
  %s8 = inlined_call_operand.vmem [shape: f32[2,1,1280], index: 8, kind: output, shape index: {}]
  %s9 = sld [smem:[#allocation0]]
  $region69: #{image_encoder_forward.13} parent=0
    _
  %s11 = ssub.s32 1, %s9
  %s12 = scalar_select 0, %s11, %s9
  loop: start=0, step=1, limit=4
  $region2: #{image_encoder_forward.13} parent=0 // loop_pre_header
    _
  $region3: #{image_encoder_forward.13} parent=0 // loop_header
    %s14 = sphi 0, %s18
    %p15 = scmp.ge.s32.totalorder %s14, 4
    %s21 = sphi 0, %s33
    %s22 = sphi 0, %s29
    %s23 = sphi 0, %s21
    %s24 = sphi 0, %s22
    %s25 = sphi 0, %s23
    %s26 = sphi 0, %s24
    %s38 = sphi 0, %s40
    %s41 = sphi 0, %s38
    %s42 = sphi 0, %s41
    %s58 = sphi 0, %s42
    %s64 = sphi 0, %s66
    %s67 = sphi 0, %s64
    %s68 = sphi 0, %s67
    %s84 = sphi 0, %s68
    %s88 = sphi 0, %s88
    %s90 = sphi 0, %s88
    %s91 = sphi 0, %s90
    %s105 = sphi 0, %s91
    %s109 = sphi 0, %s109
    %s111 = sphi 0, %s109
    %s112 = sphi 0, %s111
    %s126 = sphi 0, %s112
    %s130 = sphi 0, %s130
    %s132 = sphi 0, %s130
    %s133 = sphi 0, %s132
    %s147 = sphi 0, %s133
    %s151 = sphi 0, %s151
    %s153 = sphi 0, %s151
    %s154 = sphi 0, %s153
    %s168 = sphi 0, %s154
    %s172 = sphi 0, %s172
    %s174 = sphi 0, %s172
    %s175 = sphi 0, %s174
    %s189 = sphi 0, %s175
    %s193 = sphi 0, %s193
    %s195 = sphi 0, %s193
    %s196 = sphi 0, %s195
    %s210 = sphi 0, %s196
    %s216 = sphi 0, %s218
    %s219 = sphi 0, %s216
    %s220 = sphi 0, %s219
    %s236 = sphi 0, %s220
  $region4: #{image_encoder_forward.13} parent=0 // loop_header_branch
    %17 = sbr.rel (%p15) target = $region8
  $region5: #{image_encoder_forward.13} parent=0 // loop_body
    %s19 = ssub.s32 %s14, 1
    %s20 = ssub.s32 %s14, 2
    %s27 = sadd.s32 1, %s22
    %p28 = scmp.ge.s32.totalorder %s27, 1
    %s29 = scalar_select %p28, 0, %s27
    %s30 = sadd.s32 1, %s21
    %s31 = scalar_select %p28, %s30, %s21
    %p32 = scmp.ge.s32.totalorder %s31, 2
    %s33 = scalar_select %p32, 0, %s31
    %s34 = ssub.s32 %s21, %s33
    %s35 = ssub.s32 %s22, %s29
    %s36 = sor.u32 %s34, %s35
    %p37 = scmp.eq.s32.totalorder %s36, 0
    %s39 = sadd.s32 %s38, 1
    %s40 = scalar_select %p37, %s38, %s39
    %p43 = pneg %p37
    %p44 = scmp.eq.s32.totalorder %s14, 1
    %p45 = por %p43, %p44
    %p46 = scmp.ne.s32.totalorder %s38, %s41
    %p47 = scmp.eq.s32.totalorder %s14, 0
    %p48 = por %p46, %p47
    %p49 = scmp.ne.s32.totalorder %s38, %s41
    %p50 = scmp.eq.s32.totalorder %s19, 1
    %p51 = por %p49, %p50
    %p52 = scmp.ne.s32.totalorder %s41, %s42
    %p53 = scmp.eq.s32.totalorder %s19, 0
    %p54 = por %p52, %p53
    %p55 = scmp.ne.s32.totalorder %s41, %s42
    %p56 = scmp.eq.s32.totalorder %s20, 1
    %p57 = por %p55, %p56
    %p59 = scmp.ne.s32.totalorder %s42, %s58
    %p60 = scmp.eq.s32.totalorder %s20, 0
    %p61 = por %p59, %p60
    %s62 = ssub.s32 %s21, %s33
    %p63 = scmp.eq.s32.totalorder %s62, 0
    %s65 = sadd.s32 %s64, 1
    %s66 = scalar_select %p63, %s64, %s65
    %p69 = pneg %p63
    %p70 = scmp.eq.s32.totalorder %s14, 1
    %p71 = por %p69, %p70
    %p72 = scmp.ne.s32.totalorder %s64, %s67
    %p73 = scmp.eq.s32.totalorder %s14, 0
    %p74 = por %p72, %p73
    %p75 = scmp.ne.s32.totalorder %s64, %s67
    %p76 = scmp.eq.s32.totalorder %s19, 1
    %p77 = por %p75, %p76
    %p78 = scmp.ne.s32.totalorder %s67, %s68
    %p79 = scmp.eq.s32.totalorder %s19, 0
    %p80 = por %p78, %p79
    %p81 = scmp.ne.s32.totalorder %s67, %s68
    %p82 = scmp.eq.s32.totalorder %s20, 1
    %p83 = por %p81, %p82
    %p85 = scmp.ne.s32.totalorder %s68, %s84
    %p86 = scmp.eq.s32.totalorder %s20, 0
    %p87 = por %p85, %p86
    %s89 = sadd.s32 %s88, 1
    %p92 = scmp.eq.s32.totalorder %s14, 1
    %p93 = scmp.ne.s32.totalorder %s88, %s90
    %p94 = scmp.eq.s32.totalorder %s14, 0
    %p95 = por %p93, %p94
    %p96 = scmp.ne.s32.totalorder %s88, %s90
    %p97 = scmp.eq.s32.totalorder %s19, 1
    %p98 = por %p96, %p97
    %p99 = scmp.ne.s32.totalorder %s90, %s91
    %p100 = scmp.eq.s32.totalorder %s19, 0
    %p101 = por %p99, %p100
    %p102 = scmp.ne.s32.totalorder %s90, %s91
    %p103 = scmp.eq.s32.totalorder %s20, 1
    %p104 = por %p102, %p103
    %p106 = scmp.ne.s32.totalorder %s91, %s105
    %p107 = scmp.eq.s32.totalorder %s20, 0
    %p108 = por %p106, %p107
    %s110 = sadd.s32 %s109, 1
    %p113 = scmp.eq.s32.totalorder %s14, 1
    %p114 = scmp.ne.s32.totalorder %s109, %s111
    %p115 = scmp.eq.s32.totalorder %s14, 0
    %p116 = por %p114, %p115
    %p117 = scmp.ne.s32.totalorder %s109, %s111
    %p118 = scmp.eq.s32.totalorder %s19, 1
    %p119 = por %p117, %p118
    %p120 = scmp.ne.s32.totalorder %s111, %s112
    %p121 = scmp.eq.s32.totalorder %s19, 0
    %p122 = por %p120, %p121
    %p123 = scmp.ne.s32.totalorder %s111, %s112
    %p124 = scmp.eq.s32.totalorder %s20, 1
    %p125 = por %p123, %p124
    %p127 = scmp.ne.s32.totalorder %s112, %s126
    %p128 = scmp.eq.s32.totalorder %s20, 0
    %p129 = por %p127, %p128
    %s131 = sadd.s32 %s130, 1
    %p134 = scmp.eq.s32.totalorder %s14, 1
    %p135 = scmp.ne.s32.totalorder %s130, %s132
    %p136 = scmp.eq.s32.totalorder %s14, 0
    %p137 = por %p135, %p136
    %p138 = scmp.ne.s32.totalorder %s130, %s132
    %p139 = scmp.eq.s32.totalorder %s19, 1
    %p140 = por %p138, %p139
    %p141 = scmp.ne.s32.totalorder %s132, %s133
    %p142 = scmp.eq.s32.totalorder %s19, 0
    %p143 = por %p141, %p142
    %p144 = scmp.ne.s32.totalorder %s132, %s133
    %p145 = scmp.eq.s32.totalorder %s20, 1
    %p146 = por %p144, %p145
    %p148 = scmp.ne.s32.totalorder %s133, %s147
    %p149 = scmp.eq.s32.totalorder %s20, 0
    %p150 = por %p148, %p149
    %s152 = sadd.s32 %s151, 1
    %p155 = scmp.eq.s32.totalorder %s14, 1
    %p156 = scmp.ne.s32.totalorder %s151, %s153
    %p157 = scmp.eq.s32.totalorder %s14, 0
    %p158 = por %p156, %p157
    %p159 = scmp.ne.s32.totalorder %s151, %s153
    %p160 = scmp.eq.s32.totalorder %s19, 1
    %p161 = por %p159, %p160
    %p162 = scmp.ne.s32.totalorder %s153, %s154
    %p163 = scmp.eq.s32.totalorder %s19, 0
    %p164 = por %p162, %p163
    %p165 = scmp.ne.s32.totalorder %s153, %s154
    %p166 = scmp.eq.s32.totalorder %s20, 1
    %p167 = por %p165, %p166
    %p169 = scmp.ne.s32.totalorder %s154, %s168
    %p170 = scmp.eq.s32.totalorder %s20, 0
    %p171 = por %p169, %p170
    %s173 = sadd.s32 %s172, 1
    %p176 = scmp.eq.s32.totalorder %s14, 1
    %p177 = scmp.ne.s32.totalorder %s172, %s174
    %p178 = scmp.eq.s32.totalorder %s14, 0
    %p179 = por %p177, %p178
    %p180 = scmp.ne.s32.totalorder %s172, %s174
    %p181 = scmp.eq.s32.totalorder %s19, 1
    %p182 = por %p180, %p181
    %p183 = scmp.ne.s32.totalorder %s174, %s175
    %p184 = scmp.eq.s32.totalorder %s19, 0
    %p185 = por %p183, %p184
    %p186 = scmp.ne.s32.totalorder %s174, %s175
    %p187 = scmp.eq.s32.totalorder %s20, 1
    %p188 = por %p186, %p187
    %p190 = scmp.ne.s32.totalorder %s175, %s189
    %p191 = scmp.eq.s32.totalorder %s20, 0
    %p192 = por %p190, %p191
    %s194 = sadd.s32 %s193, 1
    %p197 = scmp.eq.s32.totalorder %s14, 1
    %p198 = scmp.ne.s32.totalorder %s193, %s195
    %p199 = scmp.eq.s32.totalorder %s14, 0
    %p200 = por %p198, %p199
    %p201 = scmp.ne.s32.totalorder %s193, %s195
    %p202 = scmp.eq.s32.totalorder %s19, 1
    %p203 = por %p201, %p202
    %p204 = scmp.ne.s32.totalorder %s195, %s196
    %p205 = scmp.eq.s32.totalorder %s19, 0
    %p206 = por %p204, %p205
    %p207 = scmp.ne.s32.totalorder %s195, %s196
    %p208 = scmp.eq.s32.totalorder %s20, 1
    %p209 = por %p207, %p208
    %p211 = scmp.ne.s32.totalorder %s196, %s210
    %p212 = scmp.eq.s32.totalorder %s20, 0
    %p213 = por %p211, %p212
    %s214 = ssub.s32 %s21, %s33
    %p215 = scmp.eq.s32.totalorder %s214, 0
    %s217 = sadd.s32 %s216, 1
    %s218 = scalar_select %p215, %s216, %s217
    %p221 = pneg %p215
    %p222 = scmp.eq.s32.totalorder %s14, 1
    %p223 = por %p221, %p222
    %p224 = scmp.ne.s32.totalorder %s216, %s219
    %p225 = scmp.eq.s32.totalorder %s14, 0
    %p226 = por %p224, %p225
    %p227 = scmp.ne.s32.totalorder %s216, %s219
    %p228 = scmp.eq.s32.totalorder %s19, 1
    %p229 = por %p227, %p228
    %p230 = scmp.ne.s32.totalorder %s219, %s220
    %p231 = scmp.eq.s32.totalorder %s19, 0
    %p232 = por %p230, %p231
    %p233 = scmp.ne.s32.totalorder %s219, %s220
    %p234 = scmp.eq.s32.totalorder %s20, 1
    %p235 = por %p233, %p234
    %p237 = scmp.ne.s32.totalorder %s220, %s236
    %p238 = scmp.eq.s32.totalorder %s20, 0
    %p239 = por %p237, %p238
    %p240 = scmp.le.s32.totalorder 1, %s14
    %p241 = scmp.lt.s32.totalorder %s14, 3
    %p242 = pnand %p240, %p241
    %p243 = pneg %p242
    // Predicated region
    $region9: #{image_encoder_forward.13} parent=5 // pred_check
      _
    $region10: #{image_encoder_forward.13} parent=5 // pred_check_branch
      %245 = sbr.rel (%p242) target = $region12
    $region11: #{image_encoder_forward.13} parent=5 // pred_region
      %s246 = ssub.s32 %s14, 1
      // Predicated region
      $region13: #{image_encoder_forward.13} parent=11 // pred_check
        %p247 = pneg %p101
      $region14: #{image_encoder_forward.13} parent=11 // pred_check_branch
        %249 = sbr.rel (%p247) target = $region16
      $region15: #{image_encoder_forward.13} parent=11 // pred_region
        _
      $region16: #{image_encoder_forward.13} parent=11 // pred_fallthru
        _
      // Predicated region
      $region17: #{image_encoder_forward.13} parent=11 // pred_check
        %p250 = pneg %p122
      $region18: #{image_encoder_forward.13} parent=11 // pred_check_branch
        %252 = sbr.rel (%p250) target = $region20
      $region19: #{image_encoder_forward.13} parent=11 // pred_region
        _
      $region20: #{image_encoder_forward.13} parent=11 // pred_fallthru
        _
      // Predicated region
      $region21: #{image_encoder_forward.13} parent=11 // pred_check
        %p253 = pneg %p143
      $region22: #{image_encoder_forward.13} parent=11 // pred_check_branch
        %255 = sbr.rel (%p253) target = $region24
      $region23: #{image_encoder_forward.13} parent=11 // pred_region
        _
      $region24: #{image_encoder_forward.13} parent=11 // pred_fallthru
        _
      // Predicated region
      $region25: #{image_encoder_forward.13} parent=11 // pred_check
        %p256 = pneg %p164
      $region26: #{image_encoder_forward.13} parent=11 // pred_check_branch
        %258 = sbr.rel (%p256) target = $region28
      $region27: #{image_encoder_forward.13} parent=11 // pred_region
        _
      $region28: #{image_encoder_forward.13} parent=11 // pred_fallthru
        _
      // Predicated region
      $region29: #{image_encoder_forward.13} parent=11 // pred_check
        %p259 = pneg %p185
      $region30: #{image_encoder_forward.13} parent=11 // pred_check_branch
        %261 = sbr.rel (%p259) target = $region32
      $region31: #{image_encoder_forward.13} parent=11 // pred_region
        _
      $region32: #{image_encoder_forward.13} parent=11 // pred_fallthru
        _
      // Predicated region
      $region33: #{image_encoder_forward.13} parent=11 // pred_check
        %p262 = pneg %p206
      $region34: #{image_encoder_forward.13} parent=11 // pred_check_branch
        %264 = sbr.rel (%p262) target = $region36
      $region35: #{image_encoder_forward.13} parent=11 // pred_region
        _
      $region36: #{image_encoder_forward.13} parent=11 // pred_fallthru
        _
    $region12: #{image_encoder_forward.13} parent=5 // pred_fallthru
      _
    %p265 = scmp.lt.s32.totalorder %s14, 2
    // Predicated region
    $region37: #{image_encoder_forward.13} parent=5 // pred_check
      %p266 = pneg %p265
    $region38: #{image_encoder_forward.13} parent=5 // pred_check_branch
      %268 = sbr.rel (%p266) target = $region40
    $region39: #{image_encoder_forward.13} parent=5 // pred_region
      // Predicated region
      $region41: #{image_encoder_forward.13} parent=39 // pred_check
        %p269 = pneg %p48
      $region42: #{image_encoder_forward.13} parent=39 // pred_check_branch
        %271 = sbr.rel (%p269) target = $region44
      $region43: #{image_encoder_forward.13} parent=39 // pred_region
        %s272 = smul.u32 8, %s22
        %p273 = scmp.lt.s32.totalorder %s21, 1
        %s274 = scalar_select %p273, %s21, 1
        %p275 = scmp.lt.s32.totalorder %s272, 7
        %s276 = scalar_select %p275, %s272, 7
        %s277 = smul.addr %s274, 8
        %s278 = sadd.s32 %s276, %s277
        %s279 = smul.addr %s278, 8
        %s280 = scalar_lea.vmem %s0, %s279
        %s281 = smul.u32 8, %s22
      $region44: #{image_encoder_forward.13} parent=39 // pred_fallthru
        _
      // Predicated region
      $region45: #{image_encoder_forward.13} parent=39 // pred_check
        %p282 = pneg %p74
      $region46: #{image_encoder_forward.13} parent=39 // pred_check_branch
        %284 = sbr.rel (%p282) target = $region48
      $region47: #{image_encoder_forward.13} parent=39 // pred_region
        %p285 = scmp.lt.s32.totalorder %s21, 1
        %s286 = scalar_select %p285, %s21, 1
        %s287 = scalar_lea.vmem %s1, %s286
      $region48: #{image_encoder_forward.13} parent=39 // pred_fallthru
        _
    $region40: #{image_encoder_forward.13} parent=5 // pred_fallthru
      _
    %p288 = scmp.le.s32.totalorder 1, %s14
    %p289 = scmp.lt.s32.totalorder %s14, 3
    %p290 = pnand %p288, %p289
    %p291 = pneg %p290
    // Predicated region
    $region49: #{image_encoder_forward.13} parent=5 // pred_check
      _
    $region50: #{image_encoder_forward.13} parent=5 // pred_check_branch
      %293 = sbr.rel (%p290) target = $region52
    $region51: #{image_encoder_forward.13} parent=5 // pred_region
      %s294 = ssub.s32 %s14, 1
      %s295 = smul.u32 8, %s24
      %p296 = scmp.lt.s32.totalorder %s23, 1
      %s297 = scalar_select %p296, %s23, 1
      %p298 = scmp.lt.s32.totalorder %s295, 7
      %s299 = scalar_select %p298, %s295, 7
      %s300 = smul.addr %s297, 8
      %s301 = sadd.s32 %s299, %s300
      %s302 = smul.addr %s301, 8
      %s303 = scalar_lea.vmem %s0, %s302
      %p304 = pneg %p54
      %p305 = pneg %p51
      %p306 = scmp.lt.s32.totalorder %s23, 1
      %s307 = scalar_select %p306, %s23, 1
      %s308 = scalar_lea.vmem %s1, %s307
      %p309 = pneg %p80
      %p310 = pneg %p77
      %p311 = pneg %p101
      %p312 = pneg %p98
      %p313 = pneg %p122
      %p314 = pneg %p119
      %p315 = pneg %p143
      %p316 = pneg %p140
      %p317 = pneg %p164
      %p318 = pneg %p161
      %p319 = pneg %p185
      %p320 = pneg %p182
      %p321 = pneg %p206
      %p322 = pneg %p203
      %p323 = pneg %p232
      %p324 = pneg %p229
      %p325 = scmp.lt.s32.totalorder %s23, 1
      %s326 = scalar_select %p325, %s23, 1
      %s327 = smul.addr %s326, 10
      %s328 = scalar_lea.vmem %s8, %s327
      %s329 = smul.u32 8, %s24
      %p330 = scmp.lt.s32.totalorder %s23, 1
      %s331 = scalar_select %p330, %s23, 1
      %p332 = scmp.lt.s32.totalorder %s329, 7
      %s333 = scalar_select %p332, %s329, 7
      %s334 = smul.addr %s331, 8
      %s335 = sadd.s32 %s333, %s334
      %s336 = smul.addr %s335, 8
      %s337 = scalar_lea.vmem %s0, %s336
      %s338 = smul.u32 8, %s24
      %p339 = scmp.lt.s32.totalorder %s23, 1
      %s340 = scalar_select %p339, %s23, 1
      %s341 = scalar_lea.vmem %s1, %s340
      %p342 = scmp.lt.s32.totalorder %s23, 1
      %s343 = scalar_select %p342, %s23, 1
      %s344 = smul.addr %s343, 10
      %s345 = scalar_lea.vmem %s8, %s344
      %p347 = scmp.eq.s32.totalorder %s24, 0
      // Predicated region
      $region53: #{image_encoder_forward.13} parent=51 // pred_check
        %p348 = pneg %p347
      $region54: #{image_encoder_forward.13} parent=51 // pred_check_branch
        %350 = sbr.rel (%p348) target = $region56
      $region55: #{image_encoder_forward.13} parent=51 // pred_region
        %351 = vst [vmem:[#allocation2] sm:$0xff] 0.0
        %v352 = vlaneseq
        %vm353 = vcmp.ge.s32.totalorder %v352, 0
        %vm354 = vcmp.lt.s32.totalorder %v352, 256
        %vm355 = vmand %vm353, %vm354
        %356 = vst.msk [vmem:[#allocation2 + $0x8] sm:$0x3] %vm355, 0.0
      $region56: #{image_encoder_forward.13} parent=51 // pred_fallthru
        _
      %v357 = vld [vmem:[%s337] sm:$0xff]
      %v358 = vld [vmem:[%s337 + $0x8] sm:$0xff]
      %v359 = vld [vmem:[%s337 + $0x10] sm:$0xff]
      %v360 = vld [vmem:[%s337 + $0x18] sm:$0xff]
      %v361 = vld [vmem:[%s337 + $0x20] sm:$0xff]
      %v362 = vld [vmem:[%s337 + $0x28] sm:$0xff]
      %v363 = vld [vmem:[%s337 + $0x30] sm:$0xff]
      %v364 = vld [vmem:[%s337 + $0x38] sm:$0xff]
      %v365 = vld [vmem:[%s341] sm:$0x1]
      %v367 = vlaneseq
      %v368 = vshrl.u32 %v367, 7
      %v369 = vsub.s32 0, %v368
      %v370 = vrot.slane %v365, %v369
      %v372 = vmul.f32 %v357, %v370
      %v373 = vmul.f32 %v358, %v370
      %v374 = vmul.f32 %v359, %v370
      %v375 = vmul.f32 %v360, %v370
      %v376 = vmul.f32 %v361, %v370
      %v377 = vmul.f32 %v362, %v370
      %v378 = vmul.f32 %v363, %v370
      %v379 = vmul.f32 %v364, %v370
      %v380 = vpack.c.bf16 %v373, %v372
      %v381 = vpack.c.bf16 %v375, %v374
      %v382 = vpack.c.bf16 %v377, %v376
      %v383 = vpack.c.bf16 %v379, %v378
      %v384 = vld [vmem:[%s2] sm:$0xf]
      %v385 = vld [vmem:[%s2 + $0x4] sm:$0xf]
      %v386 = vld [vmem:[%s2 + $0x8] sm:$0xf]
      %v387 = vld [vmem:[%s2 + $0xc] sm:$0xf]
      %v388 = vld [vmem:[%s2 + $0x10] sm:$0xf]
      %v389 = vld [vmem:[%s2 + $0x14] sm:$0xf]
      %v390 = vld [vmem:[%s2 + $0x18] sm:$0xf]
      %v391 = vld [vmem:[%s2 + $0x1c] sm:$0xf]
      %v392 = vld [vmem:[%s2 + $0x20] sm:$0xf]
      %v393 = vld [vmem:[%s2 + $0x24] sm:$0xf]
      %v394 = vld [vmem:[%s2 + $0x28] sm:$0xf]
      %v395 = vld [vmem:[%s2 + $0x2c] sm:$0xf]
      %v396 = vld [vmem:[%s2 + $0x30] sm:$0xf]
      %v397 = vld [vmem:[%s2 + $0x34] sm:$0xf]
      %v398 = vld [vmem:[%s2 + $0x38] sm:$0xf]
      %v399 = vld [vmem:[%s2 + $0x3c] sm:$0xf]
      %v416 = vunpack.c.l.b16 %v384
      %v417 = vunpack.c.l.b16 %v385
      %v418 = vunpack.c.l.b16 %v386
      %v419 = vunpack.c.l.b16 %v387
      %v420 = vunpack.c.l.b16 %v388
      %v421 = vunpack.c.l.b16 %v389
      %v422 = vunpack.c.l.b16 %v390
      %v423 = vunpack.c.l.b16 %v391
      %v424 = vunpack.c.l.b16 %v392
      %v425 = vunpack.c.l.b16 %v393
      %v426 = vunpack.c.l.b16 %v394
      %v427 = vunpack.c.l.b16 %v395
      %v428 = vunpack.c.l.b16 %v396
      %v429 = vunpack.c.l.b16 %v397
      %v430 = vunpack.c.l.b16 %v398
      %v431 = vunpack.c.l.b16 %v399
      %v432 = vpack.c.b16 %v417, %v416
      %v433 = vpack.c.b16 %v419, %v418
      %v434 = vpack.c.b16 %v421, %v420
      %v435 = vpack.c.b16 %v423, %v422
      %v436 = vpack.c.b16 %v425, %v424
      %v437 = vpack.c.b16 %v427, %v426
      %v438 = vpack.c.b16 %v429, %v428
      %v439 = vpack.c.b16 %v431, %v430
      %448 = vmatprep.subr.bf16.mxu0 0
      %449 = vmatpush1.bf16.msra.mxu0 %v439
      %450 = vmatprep.subr.bf16.mxu0 0
      %451 = vmatpush1.bf16.msra.mxu0 %v438
      %452 = vmatprep.subr.bf16.mxu0 0
      %453 = vmatpush1.bf16.msra.mxu0 %v437
      %454 = vmatprep.subr.bf16.mxu0 0
      %455 = vmatpush1.bf16.msra.mxu0 %v436
      %456 = vmatprep.subr.bf16.mxu0 0
      %457 = vmatpush1.bf16.msra.mxu0 %v435
      %458 = vmatprep.subr.bf16.mxu0 0
      %459 = vmatpush1.bf16.msra.mxu0 %v434
      %460 = vmatprep.subr.bf16.mxu0 0
      %461 = vmatpush1.bf16.msra.mxu0 %v433
      %462 = vmatprep.subr.bf16.mxu0 0
      %463 = vmatpush1.bf16.msra.mxu0 %v432
      %464 = vmatprep.subr.bf16.mxu0 0
      %465 = vmatpush2.bf16.msra.mxu0 0
      %466 = vmatprep.subr.bf16.mxu0 0
      %467 = vmatpush2.bf16.msra.mxu0 0
      %468 = vmatprep.subr.bf16.mxu0 0
      %469 = vmatpush2.bf16.msra.mxu0 0
      %470 = vmatprep.subr.bf16.mxu0 0
      %471 = vmatpush2.bf16.msra.mxu0 0
      %472 = vmatprep.subr.bf16.mxu0 0
      %473 = vmatpush2.bf16.msra.mxu0 0
      %474 = vmatprep.subr.bf16.mxu0 0
      %475 = vmatpush2.bf16.msra.mxu0 0
      %476 = vmatprep.subr.bf16.mxu0 0
      %477 = vmatpush2.bf16.msra.mxu0 0
      %478 = vmatprep.subr.bf16.mxu0 0
      %479 = vmatpush2.bf16.msra.mxu0 0
      %480 = vmatprep.mubr.bf16.mxu0 0
      %481 = vmatmul.mubr.bf16.gmra.mxu0 %v380
      %v482 = vpop.f32.mrf.mxu0
      %v483 = vadd.f32 0.0, %v482
      %v484 = vpop.f32.mrf.mxu0
      %v485 = vpop.f32.mrf.mxu0
      %v486 = vadd.f32 0.0, %v485
      %v487 = vpop.f32.mrf.mxu0
      %488 = vmatprep.mubr.bf16.mxu0 0
      %489 = vmatmul.mubr.bf16.gmra.mxu0 %v381
      %v490 = vpop.f32.mrf.mxu0
      %v491 = vadd.f32 0.0, %v490
      %v492 = vpop.f32.mrf.mxu0
      %v493 = vpop.f32.mrf.mxu0
      %v494 = vadd.f32 0.0, %v493
      %v495 = vpop.f32.mrf.mxu0
      %496 = vmatprep.mubr.bf16.mxu0 0
      %497 = vmatmul.mubr.bf16.gmra.mxu0 %v382
      %v498 = vpop.f32.mrf.mxu0
      %v499 = vadd.f32 0.0, %v498
      %v500 = vpop.f32.mrf.mxu0
      %v501 = vpop.f32.mrf.mxu0
      %v502 = vadd.f32 0.0, %v501
      %v503 = vpop.f32.mrf.mxu0
      %504 = vmatprep.mubr.bf16.mxu0 0
      %505 = vmatmul.mubr.bf16.gmra.mxu0 %v383
      %v506 = vpop.f32.mrf.mxu0
      %v507 = vadd.f32 0.0, %v506
      %v508 = vpop.f32.mrf.mxu0
      %v509 = vpop.f32.mrf.mxu0
      %v510 = vadd.f32 0.0, %v509
      %v511 = vpop.f32.mrf.mxu0
      %512 = vdwg.mxu0
      %v513 = vld [vmem:[%s3] sm:$0x1]
      %v515 = vlaneseq
      %v516 = vshrl.u32 %v515, 7
      %v517 = vsub.s32 0, %v516
      %v518 = vrot.slane %v513, %v517
      %v520 = vmul.f32 %v483, %v518
      %v521 = vmul.f32 %v486, %v518
      %v522 = vmul.f32 %v491, %v518
      %v523 = vmul.f32 %v494, %v518
      %v524 = vmul.f32 %v499, %v518
      %v525 = vmul.f32 %v502, %v518
      %v526 = vmul.f32 %v507, %v518
      %v527 = vmul.f32 %v510, %v518
      %v528 = vld [vmem:[%s4] sm:$0x1]
      %v530 = vlaneseq
      %v531 = vshrl.u32 %v530, 7
      %v532 = vsub.s32 0, %v531
      %v533 = vrot.slane %v528, %v532
      %v535 = vadd.f32 %v520, %v533
      %v536 = vadd.f32 %v521, %v533
      %v537 = vadd.f32 %v522, %v533
      %v538 = vadd.f32 %v523, %v533
      %v539 = vadd.f32 %v524, %v533
      %v540 = vadd.f32 %v525, %v533
      %v541 = vadd.f32 %v526, %v533
      %v542 = vadd.f32 %v527, %v533
      %v543 = vpack.c.bf16 %v536, %v535
      %v544 = vpack.c.bf16 %v538, %v537
      %v545 = vpack.c.bf16 %v540, %v539
      %v546 = vpack.c.bf16 %v542, %v541
      %v547 = vld [vmem:[%s5] sm:$0xff]
      %v548 = vld [vmem:[%s5 + $0x8] sm:$0xff]
      %v549 = vld [vmem:[%s5 + $0x10] sm:$0xff]
      %v550 = vld [vmem:[%s5 + $0x18] sm:$0xff]
      %v551 = vld [vmem:[%s5 + $0x20] sm:$0xff]
      %v552 = vld [vmem:[%s5 + $0x28] sm:$0xff]
      %v553 = vld [vmem:[%s5 + $0x30] sm:$0xff]
      %v554 = vld [vmem:[%s5 + $0x38] sm:$0xff]
      %v555 = vld [vmem:[%s5 + $0x40] sm:$0xff]
      %v556 = vld [vmem:[%s5 + $0x48] sm:$0xff]
      %v557 = vld [vmem:[%s5 + $0x50] sm:$0xff]
      %v558 = vld [vmem:[%s5 + $0x58] sm:$0xff]
      %v559 = vld [vmem:[%s5 + $0x60] sm:$0xff]
      %v560 = vld [vmem:[%s5 + $0x68] sm:$0xff]
      %v561 = vld [vmem:[%s5 + $0x70] sm:$0xff]
      %v577 = vunpack.c.l.b16 %v547
      %v578 = vunpack.c.h.b16 %v547
      %v579 = vunpack.c.l.b16 %v548
      %v580 = vunpack.c.h.b16 %v548
      %v581 = vunpack.c.l.b16 %v549
      %v582 = vunpack.c.h.b16 %v549
      %v583 = vunpack.c.l.b16 %v550
      %v584 = vunpack.c.h.b16 %v550
      %v585 = vunpack.c.l.b16 %v551
      %v586 = vunpack.c.h.b16 %v551
      %v587 = vunpack.c.l.b16 %v552
      %v588 = vunpack.c.h.b16 %v552
      %v589 = vunpack.c.l.b16 %v553
      %v590 = vunpack.c.h.b16 %v553
      %v591 = vunpack.c.l.b16 %v554
      %v592 = vunpack.c.h.b16 %v554
      %v593 = vunpack.c.l.b16 %v555
      %v594 = vunpack.c.h.b16 %v555
      %v595 = vunpack.c.l.b16 %v556
      %v596 = vunpack.c.h.b16 %v556
      %v597 = vunpack.c.l.b16 %v557
      %v598 = vunpack.c.h.b16 %v557
      %v599 = vunpack.c.l.b16 %v558
      %v600 = vunpack.c.h.b16 %v558
      %v601 = vunpack.c.l.b16 %v559
      %v602 = vunpack.c.h.b16 %v559
      %v603 = vunpack.c.l.b16 %v560
      %v604 = vunpack.c.h.b16 %v560
      %v605 = vunpack.c.l.b16 %v561
      %v606 = vunpack.c.h.b16 %v561
      %v607 = vpack.c.b16 %v587, %v577
      %v608 = vpack.c.b16 %v588, %v578
      %v609 = vpack.c.b16 %v589, %v579
      %v610 = vpack.c.b16 %v590, %v580
      %v611 = vpack.c.b16 %v591, %v581
      %v612 = vpack.c.b16 %v592, %v582
      %v613 = vpack.c.b16 %v593, %v583
      %v614 = vpack.c.b16 %v594, %v584
      %v615 = vpack.c.b16 %v595, %v585
      %v616 = vpack.c.b16 %v596, %v586
      %v617 = vpack.c.b16 %v597, %v597
      %v618 = vpack.c.b16 %v598, %v598
      %v619 = vpack.c.b16 %v599, %v599
      %v620 = vpack.c.b16 %v600, %v600
      %v621 = vpack.c.b16 %v601, %v601
      %v622 = vpack.c.b16 %v602, %v602
      %v623 = vpack.c.b16 %v603, %v603
      %v624 = vpack.c.b16 %v604, %v604
      %v625 = vpack.c.b16 %v605, %v605
      %v626 = vpack.c.b16 %v606, %v606
      %vm637 = vcmask 195584
      %v639 = vsel %vm637, %v543, 0
      %v642 = vsel %vm637, %v544, 0
      %v645 = vsel %vm637, %v545, 0
      %v648 = vsel %vm637, %v546, 0
      %vm650 = vcmask 1043456
      %v652 = vsel %vm650, %v617, 0
      %v655 = vsel %vm650, %v618, 0
      %v658 = vsel %vm650, %v619, 0
      %v661 = vsel %vm650, %v620, 0
      %v664 = vsel %vm650, %v621, 0
      %v667 = vsel %vm650, %v622, 0
      %v670 = vsel %vm650, %v623, 0
      %v673 = vsel %vm650, %v624, 0
      %v676 = vsel %vm650, %v625, 0
      %v679 = vsel %vm650, %v626, 0
      %681 = vmatprep.subr.bf16.mxu0 0
      %682 = vmatpush1.bf16.msra.mxu0 0
      %683 = vmatprep.subr.bf16.mxu0 0
      %684 = vmatpush1.bf16.msra.mxu0 0
      %685 = vmatprep.subr.bf16.mxu0 0
      %686 = vmatpush1.bf16.msra.mxu0 0
      %687 = vmatprep.subr.bf16.mxu0 0
      %688 = vmatpush1.bf16.msra.mxu0 0
      %689 = vmatprep.subr.bf16.mxu0 0
      %690 = vmatpush1.bf16.msra.mxu0 0
      %691 = vmatprep.subr.bf16.mxu0 0
      %692 = vmatpush1.bf16.msra.mxu0 0
      %693 = vmatprep.subr.bf16.mxu0 %v655
      %694 = vmatpush1.bf16.msra.mxu0 %v652
      %695 = vmatprep.subr.bf16.mxu0 %v608
      %696 = vmatpush1.bf16.msra.mxu0 %v607
      %697 = vmatprep.subr.bf16.mxu0 0
      %698 = vmatpush2.bf16.msra.mxu0 0
      %699 = vmatprep.subr.bf16.mxu0 0
      %700 = vmatpush2.bf16.msra.mxu0 0
      %701 = vmatprep.subr.bf16.mxu0 0
      %702 = vmatpush2.bf16.msra.mxu0 0
      %703 = vmatprep.subr.bf16.mxu0 0
      %704 = vmatpush2.bf16.msra.mxu0 0
      %705 = vmatprep.subr.bf16.mxu0 0
      %706 = vmatpush2.bf16.msra.mxu0 0
      %707 = vmatprep.subr.bf16.mxu0 0
      %708 = vmatpush2.bf16.msra.mxu0 0
      %709 = vmatprep.subr.bf16.mxu0 0
      %710 = vmatpush2.bf16.msra.mxu0 0
      %711 = vmatprep.subr.bf16.mxu0 0
      %712 = vmatpush2.bf16.msra.mxu0 0
      %713 = vmatprep.mubr.bf16.mxu0 0
      %714 = vmatmul.mubr.bf16.gmra.mxu0 %v639
      %v715 = vpop.f32.mrf.mxu0
      %v716 = vadd.f32 0.0, %v715
      %v717 = vpop.f32.mrf.mxu0
      %v718 = vadd.f32 0.0, %v717
      %v719 = vpop.f32.mrf.mxu0
      %v720 = vadd.f32 0.0, %v719
      %v721 = vpop.f32.mrf.mxu0
      %v722 = vadd.f32 0.0, %v721
      %723 = vmatprep.mubr.bf16.mxu0 0
      %724 = vmatmul.mubr.bf16.gmra.mxu0 %v642
      %v725 = vpop.f32.mrf.mxu0
      %v726 = vadd.f32 0.0, %v725
      %v727 = vpop.f32.mrf.mxu0
      %v728 = vadd.f32 0.0, %v727
      %v729 = vpop.f32.mrf.mxu0
      %v730 = vadd.f32 0.0, %v729
      %v731 = vpop.f32.mrf.mxu0
      %v732 = vadd.f32 0.0, %v731
      %733 = vmatprep.mubr.bf16.mxu0 0
      %734 = vmatmul.mubr.bf16.gmra.mxu0 %v645
      %v735 = vpop.f32.mrf.mxu0
      %v736 = vadd.f32 0.0, %v735
      %v737 = vpop.f32.mrf.mxu0
      %v738 = vadd.f32 0.0, %v737
      %v739 = vpop.f32.mrf.mxu0
      %v740 = vadd.f32 0.0, %v739
      %v741 = vpop.f32.mrf.mxu0
      %v742 = vadd.f32 0.0, %v741
      %743 = vmatprep.mubr.bf16.mxu0 0
      %744 = vmatmul.mubr.bf16.gmra.mxu0 %v648
      %v745 = vpop.f32.mrf.mxu0
      %v746 = vadd.f32 0.0, %v745
      %v747 = vpop.f32.mrf.mxu0
      %v748 = vadd.f32 0.0, %v747
      %v749 = vpop.f32.mrf.mxu0
      %v750 = vadd.f32 0.0, %v749
      %v751 = vpop.f32.mrf.mxu0
      %v752 = vadd.f32 0.0, %v751
      %753 = vdwg.mxu0
      %754 = vmatprep.subr.bf16.mxu0 0
      %755 = vmatpush1.bf16.msra.mxu0 0
      %756 = vmatprep.subr.bf16.mxu0 0
      %757 = vmatpush1.bf16.msra.mxu0 0
      %758 = vmatprep.subr.bf16.mxu0 0
      %759 = vmatpush1.bf16.msra.mxu0 0
      %760 = vmatprep.subr.bf16.mxu0 0
      %761 = vmatpush1.bf16.msra.mxu0 0
      %762 = vmatprep.subr.bf16.mxu0 0
      %763 = vmatpush1.bf16.msra.mxu0 0
      %764 = vmatprep.subr.bf16.mxu0 0
      %765 = vmatpush1.bf16.msra.mxu0 0
      %766 = vmatprep.subr.bf16.mxu0 %v661
      %767 = vmatpush1.bf16.msra.mxu0 %v658
      %768 = vmatprep.subr.bf16.mxu0 %v610
      %769 = vmatpush1.bf16.msra.mxu0 %v609
      %770 = vmatprep.subr.bf16.mxu0 0
      %771 = vmatpush2.bf16.msra.mxu0 0
      %772 = vmatprep.subr.bf16.mxu0 0
      %773 = vmatpush2.bf16.msra.mxu0 0
      %774 = vmatprep.subr.bf16.mxu0 0
      %775 = vmatpush2.bf16.msra.mxu0 0
      %776 = vmatprep.subr.bf16.mxu0 0
      %777 = vmatpush2.bf16.msra.mxu0 0
      %778 = vmatprep.subr.bf16.mxu0 0
      %779 = vmatpush2.bf16.msra.mxu0 0
      %780 = vmatprep.subr.bf16.mxu0 0
      %781 = vmatpush2.bf16.msra.mxu0 0
      %782 = vmatprep.subr.bf16.mxu0 0
      %783 = vmatpush2.bf16.msra.mxu0 0
      %784 = vmatprep.subr.bf16.mxu0 0
      %785 = vmatpush2.bf16.msra.mxu0 0
      %786 = vmatprep.mubr.bf16.mxu0 0
      %787 = vmatmul.mubr.bf16.gmra.mxu0 %v639
      %v788 = vpop.f32.mrf.mxu0
      %v789 = vadd.f32 0.0, %v788
      %v790 = vpop.f32.mrf.mxu0
      %v791 = vadd.f32 0.0, %v790
      %v792 = vpop.f32.mrf.mxu0
      %v793 = vadd.f32 0.0, %v792
      %v794 = vpop.f32.mrf.mxu0
      %v795 = vadd.f32 0.0, %v794
      %796 = vmatprep.mubr.bf16.mxu0 0
      %797 = vmatmul.mubr.bf16.gmra.mxu0 %v642
      %v798 = vpop.f32.mrf.mxu0
      %v799 = vadd.f32 0.0, %v798
      %v800 = vpop.f32.mrf.mxu0
      %v801 = vadd.f32 0.0, %v800
      %v802 = vpop.f32.mrf.mxu0
      %v803 = vadd.f32 0.0, %v802
      %v804 = vpop.f32.mrf.mxu0
      %v805 = vadd.f32 0.0, %v804
      %806 = vmatprep.mubr.bf16.mxu0 0
      %807 = vmatmul.mubr.bf16.gmra.mxu0 %v645
      %v808 = vpop.f32.mrf.mxu0
      %v809 = vadd.f32 0.0, %v808
      %v810 = vpop.f32.mrf.mxu0
      %v811 = vadd.f32 0.0, %v810
      %v812 = vpop.f32.mrf.mxu0
      %v813 = vadd.f32 0.0, %v812
      %v814 = vpop.f32.mrf.mxu0
      %v815 = vadd.f32 0.0, %v814
      %816 = vmatprep.mubr.bf16.mxu0 0
      %817 = vmatmul.mubr.bf16.gmra.mxu0 %v648
      %v818 = vpop.f32.mrf.mxu0
      %v819 = vadd.f32 0.0, %v818
      %v820 = vpop.f32.mrf.mxu0
      %v821 = vadd.f32 0.0, %v820
      %v822 = vpop.f32.mrf.mxu0
      %v823 = vadd.f32 0.0, %v822
      %v824 = vpop.f32.mrf.mxu0
      %v825 = vadd.f32 0.0, %v824
      %826 = vdwg.mxu0
      %827 = vmatprep.subr.bf16.mxu0 0
      %828 = vmatpush1.bf16.msra.mxu0 0
      %829 = vmatprep.subr.bf16.mxu0 0
      %830 = vmatpush1.bf16.msra.mxu0 0
      %831 = vmatprep.subr.bf16.mxu0 0
      %832 = vmatpush1.bf16.msra.mxu0 0
      %833 = vmatprep.subr.bf16.mxu0 0
      %834 = vmatpush1.bf16.msra.mxu0 0
      %835 = vmatprep.subr.bf16.mxu0 0
      %836 = vmatpush1.bf16.msra.mxu0 0
      %837 = vmatprep.subr.bf16.mxu0 0
      %838 = vmatpush1.bf16.msra.mxu0 0
      %839 = vmatprep.subr.bf16.mxu0 %v667
      %840 = vmatpush1.bf16.msra.mxu0 %v664
      %841 = vmatprep.subr.bf16.mxu0 %v612
      %842 = vmatpush1.bf16.msra.mxu0 %v611
      %843 = vmatprep.subr.bf16.mxu0 0
      %844 = vmatpush2.bf16.msra.mxu0 0
      %845 = vmatprep.subr.bf16.mxu0 0
      %846 = vmatpush2.bf16.msra.mxu0 0
      %847 = vmatprep.subr.bf16.mxu0 0
      %848 = vmatpush2.bf16.msra.mxu0 0
      %849 = vmatprep.subr.bf16.mxu0 0
      %850 = vmatpush2.bf16.msra.mxu0 0
      %851 = vmatprep.subr.bf16.mxu0 0
      %852 = vmatpush2.bf16.msra.mxu0 0
      %853 = vmatprep.subr.bf16.mxu0 0
      %854 = vmatpush2.bf16.msra.mxu0 0
      %855 = vmatprep.subr.bf16.mxu0 0
      %856 = vmatpush2.bf16.msra.mxu0 0
      %857 = vmatprep.subr.bf16.mxu0 0
      %858 = vmatpush2.bf16.msra.mxu0 0
      %859 = vmatprep.mubr.bf16.mxu0 0
      %860 = vmatmul.mubr.bf16.gmra.mxu0 %v639
      %v861 = vpop.f32.mrf.mxu0
      %v862 = vadd.f32 0.0, %v861
      %v863 = vpop.f32.mrf.mxu0
      %v864 = vadd.f32 0.0, %v863
      %v865 = vpop.f32.mrf.mxu0
      %v866 = vadd.f32 0.0, %v865
      %v867 = vpop.f32.mrf.mxu0
      %v868 = vadd.f32 0.0, %v867
      %869 = vmatprep.mubr.bf16.mxu0 0
      %870 = vmatmul.mubr.bf16.gmra.mxu0 %v642
      %v871 = vpop.f32.mrf.mxu0
      %v872 = vadd.f32 0.0, %v871
      %v873 = vpop.f32.mrf.mxu0
      %v874 = vadd.f32 0.0, %v873
      %v875 = vpop.f32.mrf.mxu0
      %v876 = vadd.f32 0.0, %v875
      %v877 = vpop.f32.mrf.mxu0
      %v878 = vadd.f32 0.0, %v877
      %879 = vmatprep.mubr.bf16.mxu0 0
      %880 = vmatmul.mubr.bf16.gmra.mxu0 %v645
      %v881 = vpop.f32.mrf.mxu0
      %v882 = vadd.f32 0.0, %v881
      %v883 = vpop.f32.mrf.mxu0
      %v884 = vadd.f32 0.0, %v883
      %v885 = vpop.f32.mrf.mxu0
      %v886 = vadd.f32 0.0, %v885
      %v887 = vpop.f32.mrf.mxu0
      %v888 = vadd.f32 0.0, %v887
      %889 = vmatprep.mubr.bf16.mxu0 0
      %890 = vmatmul.mubr.bf16.gmra.mxu0 %v648
      %v891 = vpop.f32.mrf.mxu0
      %v892 = vadd.f32 0.0, %v891
      %v893 = vpop.f32.mrf.mxu0
      %v894 = vadd.f32 0.0, %v893
      %v895 = vpop.f32.mrf.mxu0
      %v896 = vadd.f32 0.0, %v895
      %v897 = vpop.f32.mrf.mxu0
      %v898 = vadd.f32 0.0, %v897
      %899 = vdwg.mxu0
      %900 = vmatprep.subr.bf16.mxu0 0
      %901 = vmatpush1.bf16.msra.mxu0 0
      %902 = vmatprep.subr.bf16.mxu0 0
      %903 = vmatpush1.bf16.msra.mxu0 0
      %904 = vmatprep.subr.bf16.mxu0 0
      %905 = vmatpush1.bf16.msra.mxu0 0
      %906 = vmatprep.subr.bf16.mxu0 0
      %907 = vmatpush1.bf16.msra.mxu0 0
      %908 = vmatprep.subr.bf16.mxu0 0
      %909 = vmatpush1.bf16.msra.mxu0 0
      %910 = vmatprep.subr.bf16.mxu0 0
      %911 = vmatpush1.bf16.msra.mxu0 0
      %912 = vmatprep.subr.bf16.mxu0 %v673
      %913 = vmatpush1.bf16.msra.mxu0 %v670
      %914 = vmatprep.subr.bf16.mxu0 %v614
      %915 = vmatpush1.bf16.msra.mxu0 %v613
      %916 = vmatprep.subr.bf16.mxu0 0
      %917 = vmatpush2.bf16.msra.mxu0 0
      %918 = vmatprep.subr.bf16.mxu0 0
      %919 = vmatpush2.bf16.msra.mxu0 0
      %920 = vmatprep.subr.bf16.mxu0 0
      %921 = vmatpush2.bf16.msra.mxu0 0
      %922 = vmatprep.subr.bf16.mxu0 0
      %923 = vmatpush2.bf16.msra.mxu0 0
      %924 = vmatprep.subr.bf16.mxu0 0
      %925 = vmatpush2.bf16.msra.mxu0 0
      %926 = vmatprep.subr.bf16.mxu0 0
      %927 = vmatpush2.bf16.msra.mxu0 0
      %928 = vmatprep.subr.bf16.mxu0 0
      %929 = vmatpush2.bf16.msra.mxu0 0
      %930 = vmatprep.subr.bf16.mxu0 0
      %931 = vmatpush2.bf16.msra.mxu0 0
      %932 = vmatprep.mubr.bf16.mxu0 0
      %933 = vmatmul.mubr.bf16.gmra.mxu0 %v639
      %v934 = vpop.f32.mrf.mxu0
      %v935 = vadd.f32 0.0, %v934
      %v936 = vpop.f32.mrf.mxu0
      %v937 = vadd.f32 0.0, %v936
      %v938 = vpop.f32.mrf.mxu0
      %v939 = vadd.f32 0.0, %v938
      %v940 = vpop.f32.mrf.mxu0
      %v941 = vadd.f32 0.0, %v940
      %942 = vmatprep.mubr.bf16.mxu0 0
      %943 = vmatmul.mubr.bf16.gmra.mxu0 %v642
      %v944 = vpop.f32.mrf.mxu0
      %v945 = vadd.f32 0.0, %v944
      %v946 = vpop.f32.mrf.mxu0
      %v947 = vadd.f32 0.0, %v946
      %v948 = vpop.f32.mrf.mxu0
      %v949 = vadd.f32 0.0, %v948
      %v950 = vpop.f32.mrf.mxu0
      %v951 = vadd.f32 0.0, %v950
      %952 = vmatprep.mubr.bf16.mxu0 0
      %953 = vmatmul.mubr.bf16.gmra.mxu0 %v645
      %v954 = vpop.f32.mrf.mxu0
      %v955 = vadd.f32 0.0, %v954
      %v956 = vpop.f32.mrf.mxu0
      %v957 = vadd.f32 0.0, %v956
      %v958 = vpop.f32.mrf.mxu0
      %v959 = vadd.f32 0.0, %v958
      %v960 = vpop.f32.mrf.mxu0
      %v961 = vadd.f32 0.0, %v960
      %962 = vmatprep.mubr.bf16.mxu0 0
      %963 = vmatmul.mubr.bf16.gmra.mxu0 %v648
      %v964 = vpop.f32.mrf.mxu0
      %v965 = vadd.f32 0.0, %v964
      %v966 = vpop.f32.mrf.mxu0
      %v967 = vadd.f32 0.0, %v966
      %v968 = vpop.f32.mrf.mxu0
      %v969 = vadd.f32 0.0, %v968
      %v970 = vpop.f32.mrf.mxu0
      %v971 = vadd.f32 0.0, %v970
      %972 = vdwg.mxu0
      %973 = vmatprep.subr.bf16.mxu0 0
      %974 = vmatpush1.bf16.msra.mxu0 0
      %975 = vmatprep.subr.bf16.mxu0 0
      %976 = vmatpush1.bf16.msra.mxu0 0
      %977 = vmatprep.subr.bf16.mxu0 0
      %978 = vmatpush1.bf16.msra.mxu0 0
      %979 = vmatprep.subr.bf16.mxu0 0
      %980 = vmatpush1.bf16.msra.mxu0 0
      %981 = vmatprep.subr.bf16.mxu0 0
      %982 = vmatpush1.bf16.msra.mxu0 0
      %983 = vmatprep.subr.bf16.mxu0 0
      %984 = vmatpush1.bf16.msra.mxu0 0
      %985 = vmatprep.subr.bf16.mxu0 %v679
      %986 = vmatpush1.bf16.msra.mxu0 %v676
      %987 = vmatprep.subr.bf16.mxu0 %v616
      %988 = vmatpush1.bf16.msra.mxu0 %v615
      %989 = vmatprep.subr.bf16.mxu0 0
      %990 = vmatpush2.bf16.msra.mxu0 0
      %991 = vmatprep.subr.bf16.mxu0 0
      %992 = vmatpush2.bf16.msra.mxu0 0
      %993 = vmatprep.subr.bf16.mxu0 0
      %994 = vmatpush2.bf16.msra.mxu0 0
      %995 = vmatprep.subr.bf16.mxu0 0
      %996 = vmatpush2.bf16.msra.mxu0 0
      %997 = vmatprep.subr.bf16.mxu0 0
      %998 = vmatpush2.bf16.msra.mxu0 0
      %999 = vmatprep.subr.bf16.mxu0 0
      %1000 = vmatpush2.bf16.msra.mxu0 0
      %1001 = vmatprep.subr.bf16.mxu0 0
      %1002 = vmatpush2.bf16.msra.mxu0 0
      %1003 = vmatprep.subr.bf16.mxu0 0
      %1004 = vmatpush2.bf16.msra.mxu0 0
      %1005 = vmatprep.mubr.bf16.mxu0 0
      %1006 = vmatmul.mubr.bf16.gmra.mxu0 %v639
      %v1007 = vpop.f32.mrf.mxu0
      %v1008 = vadd.f32 0.0, %v1007
      %v1009 = vpop.f32.mrf.mxu0
      %v1010 = vadd.f32 0.0, %v1009
      %v1011 = vpop.f32.mrf.mxu0
      %v1012 = vadd.f32 0.0, %v1011
      %v1013 = vpop.f32.mrf.mxu0
      %v1014 = vadd.f32 0.0, %v1013
      %1015 = vmatprep.mubr.bf16.mxu0 0
      %1016 = vmatmul.mubr.bf16.gmra.mxu0 %v642
      %v1017 = vpop.f32.mrf.mxu0
      %v1018 = vadd.f32 0.0, %v1017
      %v1019 = vpop.f32.mrf.mxu0
      %v1020 = vadd.f32 0.0, %v1019
      %v1021 = vpop.f32.mrf.mxu0
      %v1022 = vadd.f32 0.0, %v1021
      %v1023 = vpop.f32.mrf.mxu0
      %v1024 = vadd.f32 0.0, %v1023
      %1025 = vmatprep.mubr.bf16.mxu0 0
      %1026 = vmatmul.mubr.bf16.gmra.mxu0 %v645
      %v1027 = vpop.f32.mrf.mxu0
      %v1028 = vadd.f32 0.0, %v1027
      %v1029 = vpop.f32.mrf.mxu0
      %v1030 = vadd.f32 0.0, %v1029
      %v1031 = vpop.f32.mrf.mxu0
      %v1032 = vadd.f32 0.0, %v1031
      %v1033 = vpop.f32.mrf.mxu0
      %v1034 = vadd.f32 0.0, %v1033
      %1035 = vmatprep.mubr.bf16.mxu0 0
      %1036 = vmatmul.mubr.bf16.gmra.mxu0 %v648
      %v1037 = vpop.f32.mrf.mxu0
      %v1038 = vadd.f32 0.0, %v1037
      %v1039 = vpop.f32.mrf.mxu0
      %v1040 = vadd.f32 0.0, %v1039
      %v1041 = vpop.f32.mrf.mxu0
      %v1042 = vadd.f32 0.0, %v1041
      %v1043 = vpop.f32.mrf.mxu0
      %v1044 = vadd.f32 0.0, %v1043
      %1045 = vdwg.mxu0
      %v1046 = vld [vmem:[%s6] sm:$0xff]
      %v1047 = vld [vmem:[%s6 + $0x8] sm:$0x3]
      %v1050 = vlaneseq
      %v1051 = vshrl.u32 %v1050, 7
      %v1052 = vsub.s32 0, %v1051
      %v1053 = vrot.slane %v1046, %v1052
      %v1054 = vlaneseq
      %v1055 = vshrl.u32 %v1054, 7
      %v1056 = vsub.s32 1, %v1055
      %v1057 = vrot.slane %v1046, %v1056
      %v1058 = vlaneseq
      %v1059 = vshrl.u32 %v1058, 7
      %v1060 = vsub.s32 2, %v1059
      %v1061 = vrot.slane %v1046, %v1060
      %v1062 = vlaneseq
      %v1063 = vshrl.u32 %v1062, 7
      %v1064 = vsub.s32 3, %v1063
      %v1065 = vrot.slane %v1046, %v1064
      %v1066 = vlaneseq
      %v1067 = vshrl.u32 %v1066, 7
      %v1068 = vsub.s32 4, %v1067
      %v1069 = vrot.slane %v1046, %v1068
      %v1070 = vlaneseq
      %v1071 = vshrl.u32 %v1070, 7
      %v1072 = vsub.s32 5, %v1071
      %v1073 = vrot.slane %v1046, %v1072
      %v1074 = vlaneseq
      %v1075 = vshrl.u32 %v1074, 7
      %v1076 = vsub.s32 6, %v1075
      %v1077 = vrot.slane %v1046, %v1076
      %v1078 = vlaneseq
      %v1079 = vshrl.u32 %v1078, 7
      %v1080 = vsub.s32 7, %v1079
      %v1081 = vrot.slane %v1046, %v1080
      %v1082 = vlaneseq
      %v1083 = vshrl.u32 %v1082, 7
      %v1084 = vsub.s32 0, %v1083
      %v1085 = vrot.slane %v1047, %v1084
      %v1086 = vlaneseq
      %v1087 = vshrl.u32 %v1086, 7
      %v1088 = vsub.s32 1, %v1087
      %v1089 = vrot.slane %v1047, %v1088
      %v1100 = vmul.f32 %v716, %v1053
      %v1101 = vmul.f32 %v718, %v1057
      %v1102 = vmul.f32 %v789, %v1061
      %v1103 = vmul.f32 %v791, %v1065
      %v1104 = vmul.f32 %v862, %v1069
      %v1105 = vmul.f32 %v864, %v1073
      %v1106 = vmul.f32 %v935, %v1077
      %v1107 = vmul.f32 %v937, %v1081
      %v1108 = vmul.f32 %v1008, %v1085
      %v1109 = vmul.f32 %v1010, %v1089
      %v1110 = vmul.f32 %v720, %v1053
      %v1111 = vmul.f32 %v722, %v1057
      %v1112 = vmul.f32 %v793, %v1061
      %v1113 = vmul.f32 %v795, %v1065
      %v1114 = vmul.f32 %v866, %v1069
      %v1115 = vmul.f32 %v868, %v1073
      %v1116 = vmul.f32 %v939, %v1077
      %v1117 = vmul.f32 %v941, %v1081
      %v1118 = vmul.f32 %v1012, %v1085
      %v1119 = vmul.f32 %v1014, %v1089
      %v1120 = vmul.f32 %v726, %v1053
      %v1121 = vmul.f32 %v728, %v1057
      %v1122 = vmul.f32 %v799, %v1061
      %v1123 = vmul.f32 %v801, %v1065
      %v1124 = vmul.f32 %v872, %v1069
      %v1125 = vmul.f32 %v874, %v1073
      %v1126 = vmul.f32 %v945, %v1077
      %v1127 = vmul.f32 %v947, %v1081
      %v1128 = vmul.f32 %v1018, %v1085
      %v1129 = vmul.f32 %v1020, %v1089
      %v1130 = vmul.f32 %v730, %v1053
      %v1131 = vmul.f32 %v732, %v1057
      %v1132 = vmul.f32 %v803, %v1061
      %v1133 = vmul.f32 %v805, %v1065
      %v1134 = vmul.f32 %v876, %v1069
      %v1135 = vmul.f32 %v878, %v1073
      %v1136 = vmul.f32 %v949, %v1077
      %v1137 = vmul.f32 %v951, %v1081
      %v1138 = vmul.f32 %v1022, %v1085
      %v1139 = vmul.f32 %v1024, %v1089
      %v1140 = vmul.f32 %v736, %v1053
      %v1141 = vmul.f32 %v738, %v1057
      %v1142 = vmul.f32 %v809, %v1061
      %v1143 = vmul.f32 %v811, %v1065
      %v1144 = vmul.f32 %v882, %v1069
      %v1145 = vmul.f32 %v884, %v1073
      %v1146 = vmul.f32 %v955, %v1077
      %v1147 = vmul.f32 %v957, %v1081
      %v1148 = vmul.f32 %v1028, %v1085
      %v1149 = vmul.f32 %v1030, %v1089
      %v1150 = vmul.f32 %v740, %v1053
      %v1151 = vmul.f32 %v742, %v1057
      %v1152 = vmul.f32 %v813, %v1061
      %v1153 = vmul.f32 %v815, %v1065
      %v1154 = vmul.f32 %v886, %v1069
      %v1155 = vmul.f32 %v888, %v1073
      %v1156 = vmul.f32 %v959, %v1077
      %v1157 = vmul.f32 %v961, %v1081
      %v1158 = vmul.f32 %v1032, %v1085
      %v1159 = vmul.f32 %v1034, %v1089
      %v1160 = vmul.f32 %v746, %v1053
      %v1161 = vmul.f32 %v748, %v1057
      %v1162 = vmul.f32 %v819, %v1061
      %v1163 = vmul.f32 %v821, %v1065
      %v1164 = vmul.f32 %v892, %v1069
      %v1165 = vmul.f32 %v894, %v1073
      %v1166 = vmul.f32 %v965, %v1077
      %v1167 = vmul.f32 %v967, %v1081
      %v1168 = vmul.f32 %v1038, %v1085
      %v1169 = vmul.f32 %v1040, %v1089
      %v1170 = vmul.f32 %v750, %v1053
      %v1171 = vmul.f32 %v752, %v1057
      %v1172 = vmul.f32 %v823, %v1061
      %v1173 = vmul.f32 %v825, %v1065
      %v1174 = vmul.f32 %v896, %v1069
      %v1175 = vmul.f32 %v898, %v1073
      %v1176 = vmul.f32 %v969, %v1077
      %v1177 = vmul.f32 %v971, %v1081
      %v1178 = vmul.f32 %v1042, %v1085
      %v1179 = vmul.f32 %v1044, %v1089
      %v1180 = vld [vmem:[%s7] sm:$0xff]
      %v1181 = vld [vmem:[%s7 + $0x8] sm:$0x3]
      %v1184 = vlaneseq
      %v1185 = vshrl.u32 %v1184, 7
      %v1186 = vsub.s32 0, %v1185
      %v1187 = vrot.slane %v1180, %v1186
      %v1188 = vlaneseq
      %v1189 = vshrl.u32 %v1188, 7
      %v1190 = vsub.s32 1, %v1189
      %v1191 = vrot.slane %v1180, %v1190
      %v1192 = vlaneseq
      %v1193 = vshrl.u32 %v1192, 7
      %v1194 = vsub.s32 2, %v1193
      %v1195 = vrot.slane %v1180, %v1194
      %v1196 = vlaneseq
      %v1197 = vshrl.u32 %v1196, 7
      %v1198 = vsub.s32 3, %v1197
      %v1199 = vrot.slane %v1180, %v1198
      %v1200 = vlaneseq
      %v1201 = vshrl.u32 %v1200, 7
      %v1202 = vsub.s32 4, %v1201
      %v1203 = vrot.slane %v1180, %v1202
      %v1204 = vlaneseq
      %v1205 = vshrl.u32 %v1204, 7
      %v1206 = vsub.s32 5, %v1205
      %v1207 = vrot.slane %v1180, %v1206
      %v1208 = vlaneseq
      %v1209 = vshrl.u32 %v1208, 7
      %v1210 = vsub.s32 6, %v1209
      %v1211 = vrot.slane %v1180, %v1210
      %v1212 = vlaneseq
      %v1213 = vshrl.u32 %v1212, 7
      %v1214 = vsub.s32 7, %v1213
      %v1215 = vrot.slane %v1180, %v1214
      %v1216 = vlaneseq
      %v1217 = vshrl.u32 %v1216, 7
      %v1218 = vsub.s32 0, %v1217
      %v1219 = vrot.slane %v1181, %v1218
      %v1220 = vlaneseq
      %v1221 = vshrl.u32 %v1220, 7
      %v1222 = vsub.s32 1, %v1221
      %v1223 = vrot.slane %v1181, %v1222
      %v1234 = vadd.f32 %v1100, %v1187
      %v1235 = vadd.f32 %v1101, %v1191
      %v1236 = vadd.f32 %v1102, %v1195
      %v1237 = vadd.f32 %v1103, %v1199
      %v1238 = vadd.f32 %v1104, %v1203
      %v1239 = vadd.f32 %v1105, %v1207
      %v1240 = vadd.f32 %v1106, %v1211
      %v1241 = vadd.f32 %v1107, %v1215
      %v1242 = vadd.f32 %v1108, %v1219
      %v1243 = vadd.f32 %v1109, %v1223
      %v1244 = vadd.f32 %v1110, %v1187
      %v1245 = vadd.f32 %v1111, %v1191
      %v1246 = vadd.f32 %v1112, %v1195
      %v1247 = vadd.f32 %v1113, %v1199
      %v1248 = vadd.f32 %v1114, %v1203
      %v1249 = vadd.f32 %v1115, %v1207
      %v1250 = vadd.f32 %v1116, %v1211
      %v1251 = vadd.f32 %v1117, %v1215
      %v1252 = vadd.f32 %v1118, %v1219
      %v1253 = vadd.f32 %v1119, %v1223
      %v1254 = vadd.f32 %v1120, %v1187
      %v1255 = vadd.f32 %v1121, %v1191
      %v1256 = vadd.f32 %v1122, %v1195
      %v1257 = vadd.f32 %v1123, %v1199
      %v1258 = vadd.f32 %v1124, %v1203
      %v1259 = vadd.f32 %v1125, %v1207
      %v1260 = vadd.f32 %v1126, %v1211
      %v1261 = vadd.f32 %v1127, %v1215
      %v1262 = vadd.f32 %v1128, %v1219
      %v1263 = vadd.f32 %v1129, %v1223
      %v1264 = vadd.f32 %v1130, %v1187
      %v1265 = vadd.f32 %v1131, %v1191
      %v1266 = vadd.f32 %v1132, %v1195
      %v1267 = vadd.f32 %v1133, %v1199
      %v1268 = vadd.f32 %v1134, %v1203
      %v1269 = vadd.f32 %v1135, %v1207
      %v1270 = vadd.f32 %v1136, %v1211
      %v1271 = vadd.f32 %v1137, %v1215
      %v1272 = vadd.f32 %v1138, %v1219
      %v1273 = vadd.f32 %v1139, %v1223
      %v1274 = vadd.f32 %v1140, %v1187
      %v1275 = vadd.f32 %v1141, %v1191
      %v1276 = vadd.f32 %v1142, %v1195
      %v1277 = vadd.f32 %v1143, %v1199
      %v1278 = vadd.f32 %v1144, %v1203
      %v1279 = vadd.f32 %v1145, %v1207
      %v1280 = vadd.f32 %v1146, %v1211
      %v1281 = vadd.f32 %v1147, %v1215
      %v1282 = vadd.f32 %v1148, %v1219
      %v1283 = vadd.f32 %v1149, %v1223
      %v1284 = vadd.f32 %v1150, %v1187
      %v1285 = vadd.f32 %v1151, %v1191
      %v1286 = vadd.f32 %v1152, %v1195
      %v1287 = vadd.f32 %v1153, %v1199
      %v1288 = vadd.f32 %v1154, %v1203
      %v1289 = vadd.f32 %v1155, %v1207
      %v1290 = vadd.f32 %v1156, %v1211
      %v1291 = vadd.f32 %v1157, %v1215
      %v1292 = vadd.f32 %v1158, %v1219
      %v1293 = vadd.f32 %v1159, %v1223
      %v1294 = vadd.f32 %v1160, %v1187
      %v1295 = vadd.f32 %v1161, %v1191
      %v1296 = vadd.f32 %v1162, %v1195
      %v1297 = vadd.f32 %v1163, %v1199
      %v1298 = vadd.f32 %v1164, %v1203
      %v1299 = vadd.f32 %v1165, %v1207
      %v1300 = vadd.f32 %v1166, %v1211
      %v1301 = vadd.f32 %v1167, %v1215
      %v1302 = vadd.f32 %v1168, %v1219
      %v1303 = vadd.f32 %v1169, %v1223
      %v1304 = vadd.f32 %v1170, %v1187
      %v1305 = vadd.f32 %v1171, %v1191
      %v1306 = vadd.f32 %v1172, %v1195
      %v1307 = vadd.f32 %v1173, %v1199
      %v1308 = vadd.f32 %v1174, %v1203
      %v1309 = vadd.f32 %v1175, %v1207
      %v1310 = vadd.f32 %v1176, %v1211
      %v1311 = vadd.f32 %v1177, %v1215
      %v1312 = vadd.f32 %v1178, %v1219
      %v1313 = vadd.f32 %v1179, %v1223
      %v1314 = vsub.f32 0.0, %v1234
      %v1315 = vsub.f32 0.0, %v1235
      %v1316 = vsub.f32 0.0, %v1236
      %v1317 = vsub.f32 0.0, %v1237
      %v1318 = vsub.f32 0.0, %v1238
      %v1319 = vsub.f32 0.0, %v1239
      %v1320 = vsub.f32 0.0, %v1240
      %v1321 = vsub.f32 0.0, %v1241
      %v1322 = vsub.f32 0.0, %v1242
      %v1323 = vsub.f32 0.0, %v1243
      %v1324 = vsub.f32 0.0, %v1244
      %v1325 = vsub.f32 0.0, %v1245
      %v1326 = vsub.f32 0.0, %v1246
      %v1327 = vsub.f32 0.0, %v1247
      %v1328 = vsub.f32 0.0, %v1248
      %v1329 = vsub.f32 0.0, %v1249
      %v1330 = vsub.f32 0.0, %v1250
      %v1331 = vsub.f32 0.0, %v1251
      %v1332 = vsub.f32 0.0, %v1252
      %v1333 = vsub.f32 0.0, %v1253
      %v1334 = vsub.f32 0.0, %v1254
      %v1335 = vsub.f32 0.0, %v1255
      %v1336 = vsub.f32 0.0, %v1256
      %v1337 = vsub.f32 0.0, %v1257
      %v1338 = vsub.f32 0.0, %v1258
      %v1339 = vsub.f32 0.0, %v1259
      %v1340 = vsub.f32 0.0, %v1260
      %v1341 = vsub.f32 0.0, %v1261
      %v1342 = vsub.f32 0.0, %v1262
      %v1343 = vsub.f32 0.0, %v1263
      %v1344 = vsub.f32 0.0, %v1264
      %v1345 = vsub.f32 0.0, %v1265
      %v1346 = vsub.f32 0.0, %v1266
      %v1347 = vsub.f32 0.0, %v1267
      %v1348 = vsub.f32 0.0, %v1268
      %v1349 = vsub.f32 0.0, %v1269
      %v1350 = vsub.f32 0.0, %v1270
      %v1351 = vsub.f32 0.0, %v1271
      %v1352 = vsub.f32 0.0, %v1272
      %v1353 = vsub.f32 0.0, %v1273
      %v1354 = vsub.f32 0.0, %v1274
      %v1355 = vsub.f32 0.0, %v1275
      %v1356 = vsub.f32 0.0, %v1276
      %v1357 = vsub.f32 0.0, %v1277
      %v1358 = vsub.f32 0.0, %v1278
      %v1359 = vsub.f32 0.0, %v1279
      %v1360 = vsub.f32 0.0, %v1280
      %v1361 = vsub.f32 0.0, %v1281
      %v1362 = vsub.f32 0.0, %v1282
      %v1363 = vsub.f32 0.0, %v1283
      %v1364 = vsub.f32 0.0, %v1284
      %v1365 = vsub.f32 0.0, %v1285
      %v1366 = vsub.f32 0.0, %v1286
      %v1367 = vsub.f32 0.0, %v1287
      %v1368 = vsub.f32 0.0, %v1288
      %v1369 = vsub.f32 0.0, %v1289
      %v1370 = vsub.f32 0.0, %v1290
      %v1371 = vsub.f32 0.0, %v1291
      %v1372 = vsub.f32 0.0, %v1292
      %v1373 = vsub.f32 0.0, %v1293
      %v1374 = vsub.f32 0.0, %v1294
      %v1375 = vsub.f32 0.0, %v1295
      %v1376 = vsub.f32 0.0, %v1296
      %v1377 = vsub.f32 0.0, %v1297
      %v1378 = vsub.f32 0.0, %v1298
      %v1379 = vsub.f32 0.0, %v1299
      %v1380 = vsub.f32 0.0, %v1300
      %v1381 = vsub.f32 0.0, %v1301
      %v1382 = vsub.f32 0.0, %v1302
      %v1383 = vsub.f32 0.0, %v1303
      %v1384 = vsub.f32 0.0, %v1304
      %v1385 = vsub.f32 0.0, %v1305
      %v1386 = vsub.f32 0.0, %v1306
      %v1387 = vsub.f32 0.0, %v1307
      %v1388 = vsub.f32 0.0, %v1308
      %v1389 = vsub.f32 0.0, %v1309
      %v1390 = vsub.f32 0.0, %v1310
      %v1391 = vsub.f32 0.0, %v1311
      %v1392 = vsub.f32 0.0, %v1312
      %v1393 = vsub.f32 0.0, %v1313
      %v1394 = vmul.f32 %v1314, 1.442695
      %v1395 = vpow.pop %v1394
      %v1396 = vmul.f32 %v1315, 1.442695
      %v1397 = vpow.pop %v1396
      %v1398 = vmul.f32 %v1316, 1.442695
      %v1399 = vpow.pop %v1398
      %v1400 = vmul.f32 %v1317, 1.442695
      %v1401 = vpow.pop %v1400
      %v1402 = vmul.f32 %v1318, 1.442695
      %v1403 = vpow.pop %v1402
      %v1404 = vmul.f32 %v1319, 1.442695
      %v1405 = vpow.pop %v1404
      %v1406 = vmul.f32 %v1320, 1.442695
      %v1407 = vpow.pop %v1406
      %v1408 = vmul.f32 %v1321, 1.442695
      %v1409 = vpow.pop %v1408
      %v1410 = vmul.f32 %v1322, 1.442695
      %v1411 = vpow.pop %v1410
      %v1412 = vmul.f32 %v1323, 1.442695
      %v1413 = vpow.pop %v1412
      %v1414 = vmul.f32 %v1324, 1.442695
      %v1415 = vpow.pop %v1414
      %v1416 = vmul.f32 %v1325, 1.442695
      %v1417 = vpow.pop %v1416
      %v1418 = vmul.f32 %v1326, 1.442695
      %v1419 = vpow.pop %v1418
      %v1420 = vmul.f32 %v1327, 1.442695
      %v1421 = vpow.pop %v1420
      %v1422 = vmul.f32 %v1328, 1.442695
      %v1423 = vpow.pop %v1422
      %v1424 = vmul.f32 %v1329, 1.442695
      %v1425 = vpow.pop %v1424
      %v1426 = vmul.f32 %v1330, 1.442695
      %v1427 = vpow.pop %v1426
      %v1428 = vmul.f32 %v1331, 1.442695
      %v1429 = vpow.pop %v1428
      %v1430 = vmul.f32 %v1332, 1.442695
      %v1431 = vpow.pop %v1430
      %v1432 = vmul.f32 %v1333, 1.442695
      %v1433 = vpow.pop %v1432
      %v1434 = vmul.f32 %v1334, 1.442695
      %v1435 = vpow.pop %v1434
      %v1436 = vmul.f32 %v1335, 1.442695
      %v1437 = vpow.pop %v1436
      %v1438 = vmul.f32 %v1336, 1.442695
      %v1439 = vpow.pop %v1438
      %v1440 = vmul.f32 %v1337, 1.442695
      %v1441 = vpow.pop %v1440
      %v1442 = vmul.f32 %v1338, 1.442695
      %v1443 = vpow.pop %v1442
      %v1444 = vmul.f32 %v1339, 1.442695
      %v1445 = vpow.pop %v1444
      %v1446 = vmul.f32 %v1340, 1.442695
      %v1447 = vpow.pop %v1446
      %v1448 = vmul.f32 %v1341, 1.442695
      %v1449 = vpow.pop %v1448
      %v1450 = vmul.f32 %v1342, 1.442695
      %v1451 = vpow.pop %v1450
      %v1452 = vmul.f32 %v1343, 1.442695
      %v1453 = vpow.pop %v1452
      %v1454 = vmul.f32 %v1344, 1.442695
      %v1455 = vpow.pop %v1454
      %v1456 = vmul.f32 %v1345, 1.442695
      %v1457 = vpow.pop %v1456
      %v1458 = vmul.f32 %v1346, 1.442695
      %v1459 = vpow.pop %v1458
      %v1460 = vmul.f32 %v1347, 1.442695
      %v1461 = vpow.pop %v1460
      %v1462 = vmul.f32 %v1348, 1.442695
      %v1463 = vpow.pop %v1462
      %v1464 = vmul.f32 %v1349, 1.442695
      %v1465 = vpow.pop %v1464
      %v1466 = vmul.f32 %v1350, 1.442695
      %v1467 = vpow.pop %v1466
      %v1468 = vmul.f32 %v1351, 1.442695
      %v1469 = vpow.pop %v1468
      %v1470 = vmul.f32 %v1352, 1.442695
      %v1471 = vpow.pop %v1470
      %v1472 = vmul.f32 %v1353, 1.442695
      %v1473 = vpow.pop %v1472
      %v1474 = vmul.f32 %v1354, 1.442695
      %v1475 = vpow.pop %v1474
      %v1476 = vmul.f32 %v1355, 1.442695
      %v1477 = vpow.pop %v1476
      %v1478 = vmul.f32 %v1356, 1.442695
      %v1479 = vpow.pop %v1478
      %v1480 = vmul.f32 %v1357, 1.442695
      %v1481 = vpow.pop %v1480
      %v1482 = vmul.f32 %v1358, 1.442695
      %v1483 = vpow.pop %v1482
      %v1484 = vmul.f32 %v1359, 1.442695
      %v1485 = vpow.pop %v1484
      %v1486 = vmul.f32 %v1360, 1.442695
      %v1487 = vpow.pop %v1486
      %v1488 = vmul.f32 %v1361, 1.442695
      %v1489 = vpow.pop %v1488
      %v1490 = vmul.f32 %v1362, 1.442695
      %v1491 = vpow.pop %v1490
      %v1492 = vmul.f32 %v1363, 1.442695
      %v1493 = vpow.pop %v1492
      %v1494 = vmul.f32 %v1364, 1.442695
      %v1495 = vpow.pop %v1494
      %v1496 = vmul.f32 %v1365, 1.442695
      %v1497 = vpow.pop %v1496
      %v1498 = vmul.f32 %v1366, 1.442695
      %v1499 = vpow.pop %v1498
      %v1500 = vmul.f32 %v1367, 1.442695
      %v1501 = vpow.pop %v1500
      %v1502 = vmul.f32 %v1368, 1.442695
      %v1503 = vpow.pop %v1502
      %v1504 = vmul.f32 %v1369, 1.442695
      %v1505 = vpow.pop %v1504
      %v1506 = vmul.f32 %v1370, 1.442695
      %v1507 = vpow.pop %v1506
      %v1508 = vmul.f32 %v1371, 1.442695
      %v1509 = vpow.pop %v1508
      %v1510 = vmul.f32 %v1372, 1.442695
      %v1511 = vpow.pop %v1510
      %v1512 = vmul.f32 %v1373, 1.442695
      %v1513 = vpow.pop %v1512
      %v1514 = vmul.f32 %v1374, 1.442695
      %v1515 = vpow.pop %v1514
      %v1516 = vmul.f32 %v1375, 1.442695
      %v1517 = vpow.pop %v1516
      %v1518 = vmul.f32 %v1376, 1.442695
      %v1519 = vpow.pop %v1518
      %v1520 = vmul.f32 %v1377, 1.442695
      %v1521 = vpow.pop %v1520
      %v1522 = vmul.f32 %v1378, 1.442695
      %v1523 = vpow.pop %v1522
      %v1524 = vmul.f32 %v1379, 1.442695
      %v1525 = vpow.pop %v1524
      %v1526 = vmul.f32 %v1380, 1.442695
      %v1527 = vpow.pop %v1526
      %v1528 = vmul.f32 %v1381, 1.442695
      %v1529 = vpow.pop %v1528
      %v1530 = vmul.f32 %v1382, 1.442695
      %v1531 = vpow.pop %v1530
      %v1532 = vmul.f32 %v1383, 1.442695
      %v1533 = vpow.pop %v1532
      %v1534 = vmul.f32 %v1384, 1.442695
      %v1535 = vpow.pop %v1534
      %v1536 = vmul.f32 %v1385, 1.442695
      %v1537 = vpow.pop %v1536
      %v1538 = vmul.f32 %v1386, 1.442695
      %v1539 = vpow.pop %v1538
      %v1540 = vmul.f32 %v1387, 1.442695
      %v1541 = vpow.pop %v1540
      %v1542 = vmul.f32 %v1388, 1.442695
      %v1543 = vpow.pop %v1542
      %v1544 = vmul.f32 %v1389, 1.442695
      %v1545 = vpow.pop %v1544
      %v1546 = vmul.f32 %v1390, 1.442695
      %v1547 = vpow.pop %v1546
      %v1548 = vmul.f32 %v1391, 1.442695
      %v1549 = vpow.pop %v1548
      %v1550 = vmul.f32 %v1392, 1.442695
      %v1551 = vpow.pop %v1550
      %v1552 = vmul.f32 %v1393, 1.442695
      %v1553 = vpow.pop %v1552
      %v1554 = vadd.f32 %v1395, 1.0
      %v1555 = vadd.f32 %v1397, 1.0
      %v1556 = vadd.f32 %v1399, 1.0
      %v1557 = vadd.f32 %v1401, 1.0
      %v1558 = vadd.f32 %v1403, 1.0
      %v1559 = vadd.f32 %v1405, 1.0
      %v1560 = vadd.f32 %v1407, 1.0
      %v1561 = vadd.f32 %v1409, 1.0
      %v1562 = vadd.f32 %v1411, 1.0
      %v1563 = vadd.f32 %v1413, 1.0
      %v1564 = vadd.f32 %v1415, 1.0
      %v1565 = vadd.f32 %v1417, 1.0
      %v1566 = vadd.f32 %v1419, 1.0
      %v1567 = vadd.f32 %v1421, 1.0
      %v1568 = vadd.f32 %v1423, 1.0
      %v1569 = vadd.f32 %v1425, 1.0
      %v1570 = vadd.f32 %v1427, 1.0
      %v1571 = vadd.f32 %v1429, 1.0
      %v1572 = vadd.f32 %v1431, 1.0
      %v1573 = vadd.f32 %v1433, 1.0
      %v1574 = vadd.f32 %v1435, 1.0
      %v1575 = vadd.f32 %v1437, 1.0
      %v1576 = vadd.f32 %v1439, 1.0
      %v1577 = vadd.f32 %v1441, 1.0
      %v1578 = vadd.f32 %v1443, 1.0
      %v1579 = vadd.f32 %v1445, 1.0
      %v1580 = vadd.f32 %v1447, 1.0
      %v1581 = vadd.f32 %v1449, 1.0
      %v1582 = vadd.f32 %v1451, 1.0
      %v1583 = vadd.f32 %v1453, 1.0
      %v1584 = vadd.f32 %v1455, 1.0
      %v1585 = vadd.f32 %v1457, 1.0
      %v1586 = vadd.f32 %v1459, 1.0
      %v1587 = vadd.f32 %v1461, 1.0
      %v1588 = vadd.f32 %v1463, 1.0
      %v1589 = vadd.f32 %v1465, 1.0
      %v1590 = vadd.f32 %v1467, 1.0
      %v1591 = vadd.f32 %v1469, 1.0
      %v1592 = vadd.f32 %v1471, 1.0
      %v1593 = vadd.f32 %v1473, 1.0
      %v1594 = vadd.f32 %v1475, 1.0
      %v1595 = vadd.f32 %v1477, 1.0
      %v1596 = vadd.f32 %v1479, 1.0
      %v1597 = vadd.f32 %v1481, 1.0
      %v1598 = vadd.f32 %v1483, 1.0
      %v1599 = vadd.f32 %v1485, 1.0
      %v1600 = vadd.f32 %v1487, 1.0
      %v1601 = vadd.f32 %v1489, 1.0
      %v1602 = vadd.f32 %v1491, 1.0
      %v1603 = vadd.f32 %v1493, 1.0
      %v1604 = vadd.f32 %v1495, 1.0
      %v1605 = vadd.f32 %v1497, 1.0
      %v1606 = vadd.f32 %v1499, 1.0
      %v1607 = vadd.f32 %v1501, 1.0
      %v1608 = vadd.f32 %v1503, 1.0
      %v1609 = vadd.f32 %v1505, 1.0
      %v1610 = vadd.f32 %v1507, 1.0
      %v1611 = vadd.f32 %v1509, 1.0
      %v1612 = vadd.f32 %v1511, 1.0
      %v1613 = vadd.f32 %v1513, 1.0
      %v1614 = vadd.f32 %v1515, 1.0
      %v1615 = vadd.f32 %v1517, 1.0
      %v1616 = vadd.f32 %v1519, 1.0
      %v1617 = vadd.f32 %v1521, 1.0
      %v1618 = vadd.f32 %v1523, 1.0
      %v1619 = vadd.f32 %v1525, 1.0
      %v1620 = vadd.f32 %v1527, 1.0
      %v1621 = vadd.f32 %v1529, 1.0
      %v1622 = vadd.f32 %v1531, 1.0
      %v1623 = vadd.f32 %v1533, 1.0
      %v1624 = vadd.f32 %v1535, 1.0
      %v1625 = vadd.f32 %v1537, 1.0
      %v1626 = vadd.f32 %v1539, 1.0
      %v1627 = vadd.f32 %v1541, 1.0
      %v1628 = vadd.f32 %v1543, 1.0
      %v1629 = vadd.f32 %v1545, 1.0
      %v1630 = vadd.f32 %v1547, 1.0
      %v1631 = vadd.f32 %v1549, 1.0
      %v1632 = vadd.f32 %v1551, 1.0
      %v1633 = vadd.f32 %v1553, 1.0
      %v1634 = vrcp.pop %v1554
      %v1635 = vrcp.pop %v1555
      %v1636 = vrcp.pop %v1556
      %v1637 = vrcp.pop %v1557
      %v1638 = vrcp.pop %v1558
      %v1639 = vrcp.pop %v1559
      %v1640 = vrcp.pop %v1560
      %v1641 = vrcp.pop %v1561
      %v1642 = vrcp.pop %v1562
      %v1643 = vrcp.pop %v1563
      %v1644 = vrcp.pop %v1564
      %v1645 = vrcp.pop %v1565
      %v1646 = vrcp.pop %v1566
      %v1647 = vrcp.pop %v1567
      %v1648 = vrcp.pop %v1568
      %v1649 = vrcp.pop %v1569
      %v1650 = vrcp.pop %v1570
      %v1651 = vrcp.pop %v1571
      %v1652 = vrcp.pop %v1572
      %v1653 = vrcp.pop %v1573
      %v1654 = vrcp.pop %v1574
      %v1655 = vrcp.pop %v1575
      %v1656 = vrcp.pop %v1576
      %v1657 = vrcp.pop %v1577
      %v1658 = vrcp.pop %v1578
      %v1659 = vrcp.pop %v1579
      %v1660 = vrcp.pop %v1580
      %v1661 = vrcp.pop %v1581
      %v1662 = vrcp.pop %v1582
      %v1663 = vrcp.pop %v1583
      %v1664 = vrcp.pop %v1584
      %v1665 = vrcp.pop %v1585
      %v1666 = vrcp.pop %v1586
      %v1667 = vrcp.pop %v1587
      %v1668 = vrcp.pop %v1588
      %v1669 = vrcp.pop %v1589
      %v1670 = vrcp.pop %v1590
      %v1671 = vrcp.pop %v1591
      %v1672 = vrcp.pop %v1592
      %v1673 = vrcp.pop %v1593
      %v1674 = vrcp.pop %v1594
      %v1675 = vrcp.pop %v1595
      %v1676 = vrcp.pop %v1596
      %v1677 = vrcp.pop %v1597
      %v1678 = vrcp.pop %v1598
      %v1679 = vrcp.pop %v1599
      %v1680 = vrcp.pop %v1600
      %v1681 = vrcp.pop %v1601
      %v1682 = vrcp.pop %v1602
      %v1683 = vrcp.pop %v1603
      %v1684 = vrcp.pop %v1604
      %v1685 = vrcp.pop %v1605
      %v1686 = vrcp.pop %v1606
      %v1687 = vrcp.pop %v1607
      %v1688 = vrcp.pop %v1608
      %v1689 = vrcp.pop %v1609
      %v1690 = vrcp.pop %v1610
      %v1691 = vrcp.pop %v1611
      %v1692 = vrcp.pop %v1612
      %v1693 = vrcp.pop %v1613
      %v1694 = vrcp.pop %v1614
      %v1695 = vrcp.pop %v1615
      %v1696 = vrcp.pop %v1616
      %v1697 = vrcp.pop %v1617
      %v1698 = vrcp.pop %v1618
      %v1699 = vrcp.pop %v1619
      %v1700 = vrcp.pop %v1620
      %v1701 = vrcp.pop %v1621
      %v1702 = vrcp.pop %v1622
      %v1703 = vrcp.pop %v1623
      %v1704 = vrcp.pop %v1624
      %v1705 = vrcp.pop %v1625
      %v1706 = vrcp.pop %v1626
      %v1707 = vrcp.pop %v1627
      %v1708 = vrcp.pop %v1628
      %v1709 = vrcp.pop %v1629
      %v1710 = vrcp.pop %v1630
      %v1711 = vrcp.pop %v1631
      %v1712 = vrcp.pop %v1632
      %v1713 = vrcp.pop %v1633
      %v1714 = vmul.f32 %v1234, %v1634
      %v1715 = vmul.f32 %v1235, %v1635
      %v1716 = vmul.f32 %v1236, %v1636
      %v1717 = vmul.f32 %v1237, %v1637
      %v1718 = vmul.f32 %v1238, %v1638
      %v1719 = vmul.f32 %v1239, %v1639
      %v1720 = vmul.f32 %v1240, %v1640
      %v1721 = vmul.f32 %v1241, %v1641
      %v1722 = vmul.f32 %v1242, %v1642
      %v1723 = vmul.f32 %v1243, %v1643
      %v1724 = vmul.f32 %v1244, %v1644
      %v1725 = vmul.f32 %v1245, %v1645
      %v1726 = vmul.f32 %v1246, %v1646
      %v1727 = vmul.f32 %v1247, %v1647
      %v1728 = vmul.f32 %v1248, %v1648
      %v1729 = vmul.f32 %v1249, %v1649
      %v1730 = vmul.f32 %v1250, %v1650
      %v1731 = vmul.f32 %v1251, %v1651
      %v1732 = vmul.f32 %v1252, %v1652
      %v1733 = vmul.f32 %v1253, %v1653
      %v1734 = vmul.f32 %v1254, %v1654
      %v1735 = vmul.f32 %v1255, %v1655
      %v1736 = vmul.f32 %v1256, %v1656
      %v1737 = vmul.f32 %v1257, %v1657
      %v1738 = vmul.f32 %v1258, %v1658
      %v1739 = vmul.f32 %v1259, %v1659
      %v1740 = vmul.f32 %v1260, %v1660
      %v1741 = vmul.f32 %v1261, %v1661
      %v1742 = vmul.f32 %v1262, %v1662
      %v1743 = vmul.f32 %v1263, %v1663
      %v1744 = vmul.f32 %v1264, %v1664
      %v1745 = vmul.f32 %v1265, %v1665
      %v1746 = vmul.f32 %v1266, %v1666
      %v1747 = vmul.f32 %v1267, %v1667
      %v1748 = vmul.f32 %v1268, %v1668
      %v1749 = vmul.f32 %v1269, %v1669
      %v1750 = vmul.f32 %v1270, %v1670
      %v1751 = vmul.f32 %v1271, %v1671
      %v1752 = vmul.f32 %v1272, %v1672
      %v1753 = vmul.f32 %v1273, %v1673
      %v1754 = vmul.f32 %v1274, %v1674
      %v1755 = vmul.f32 %v1275, %v1675
      %v1756 = vmul.f32 %v1276, %v1676
      %v1757 = vmul.f32 %v1277, %v1677
      %v1758 = vmul.f32 %v1278, %v1678
      %v1759 = vmul.f32 %v1279, %v1679
      %v1760 = vmul.f32 %v1280, %v1680
      %v1761 = vmul.f32 %v1281, %v1681
      %v1762 = vmul.f32 %v1282, %v1682
      %v1763 = vmul.f32 %v1283, %v1683
      %v1764 = vmul.f32 %v1284, %v1684
      %v1765 = vmul.f32 %v1285, %v1685
      %v1766 = vmul.f32 %v1286, %v1686
      %v1767 = vmul.f32 %v1287, %v1687
      %v1768 = vmul.f32 %v1288, %v1688
      %v1769 = vmul.f32 %v1289, %v1689
      %v1770 = vmul.f32 %v1290, %v1690
      %v1771 = vmul.f32 %v1291, %v1691
      %v1772 = vmul.f32 %v1292, %v1692
      %v1773 = vmul.f32 %v1293, %v1693
      %v1774 = vmul.f32 %v1294, %v1694
      %v1775 = vmul.f32 %v1295, %v1695
      %v1776 = vmul.f32 %v1296, %v1696
      %v1777 = vmul.f32 %v1297, %v1697
      %v1778 = vmul.f32 %v1298, %v1698
      %v1779 = vmul.f32 %v1299, %v1699
      %v1780 = vmul.f32 %v1300, %v1700
      %v1781 = vmul.f32 %v1301, %v1701
      %v1782 = vmul.f32 %v1302, %v1702
      %v1783 = vmul.f32 %v1303, %v1703
      %v1784 = vmul.f32 %v1304, %v1704
      %v1785 = vmul.f32 %v1305, %v1705
      %v1786 = vmul.f32 %v1306, %v1706
      %v1787 = vmul.f32 %v1307, %v1707
      %v1788 = vmul.f32 %v1308, %v1708
      %v1789 = vmul.f32 %v1309, %v1709
      %v1790 = vmul.f32 %v1310, %v1710
      %v1791 = vmul.f32 %v1311, %v1711
      %v1792 = vmul.f32 %v1312, %v1712
      %v1793 = vmul.f32 %v1313, %v1713
      %v1794 = vld [vmem:[#allocation2] sm:$0xff]
      %v1795 = vld [vmem:[#allocation2 + $0x8] sm:$0x3]
      %v1796 = vadd.f32 %v1714, %v1724
      %v1797 = vadd.f32 %v1796, %v1734
      %v1798 = vadd.f32 %v1797, %v1744
      %v1799 = vadd.f32 %v1798, %v1754
      %v1800 = vadd.f32 %v1799, %v1764
      %v1801 = vadd.f32 %v1800, %v1774
      %v1802 = vadd.f32 %v1801, %v1784
      %v1803 = vrot.slane %v1802, 4
      %v1804 = vadd.f32 %v1802, %v1803
      %v1805 = vrot.slane %v1804, 2
      %v1806 = vadd.f32 %v1804, %v1805
      %v1807 = vrot.slane %v1806, 1
      %v1808 = vadd.f32 %v1806, %v1807
      %v1809 = vadd.f32 %v1715, %v1725
      %v1810 = vadd.f32 %v1809, %v1735
      %v1811 = vadd.f32 %v1810, %v1745
      %v1812 = vadd.f32 %v1811, %v1755
      %v1813 = vadd.f32 %v1812, %v1765
      %v1814 = vadd.f32 %v1813, %v1775
      %v1815 = vadd.f32 %v1814, %v1785
      %v1816 = vrot.slane %v1815, 4
      %v1817 = vadd.f32 %v1815, %v1816
      %v1818 = vrot.slane %v1817, 2
      %v1819 = vadd.f32 %v1817, %v1818
      %v1820 = vrot.slane %v1819, 1
      %v1821 = vadd.f32 %v1819, %v1820
      %v1822 = vadd.f32 %v1716, %v1726
      %v1823 = vadd.f32 %v1822, %v1736
      %v1824 = vadd.f32 %v1823, %v1746
      %v1825 = vadd.f32 %v1824, %v1756
      %v1826 = vadd.f32 %v1825, %v1766
      %v1827 = vadd.f32 %v1826, %v1776
      %v1828 = vadd.f32 %v1827, %v1786
      %v1829 = vrot.slane %v1828, 4
      %v1830 = vadd.f32 %v1828, %v1829
      %v1831 = vrot.slane %v1830, 2
      %v1832 = vadd.f32 %v1830, %v1831
      %v1833 = vrot.slane %v1832, 1
      %v1834 = vadd.f32 %v1832, %v1833
      %v1835 = vadd.f32 %v1717, %v1727
      %v1836 = vadd.f32 %v1835, %v1737
      %v1837 = vadd.f32 %v1836, %v1747
      %v1838 = vadd.f32 %v1837, %v1757
      %v1839 = vadd.f32 %v1838, %v1767
      %v1840 = vadd.f32 %v1839, %v1777
      %v1841 = vadd.f32 %v1840, %v1787
      %v1842 = vrot.slane %v1841, 4
      %v1843 = vadd.f32 %v1841, %v1842
      %v1844 = vrot.slane %v1843, 2
      %v1845 = vadd.f32 %v1843, %v1844
      %v1846 = vrot.slane %v1845, 1
      %v1847 = vadd.f32 %v1845, %v1846
      %v1848 = vadd.f32 %v1718, %v1728
      %v1849 = vadd.f32 %v1848, %v1738
      %v1850 = vadd.f32 %v1849, %v1748
      %v1851 = vadd.f32 %v1850, %v1758
      %v1852 = vadd.f32 %v1851, %v1768
      %v1853 = vadd.f32 %v1852, %v1778
      %v1854 = vadd.f32 %v1853, %v1788
      %v1855 = vrot.slane %v1854, 4
      %v1856 = vadd.f32 %v1854, %v1855
      %v1857 = vrot.slane %v1856, 2
      %v1858 = vadd.f32 %v1856, %v1857
      %v1859 = vrot.slane %v1858, 1
      %v1860 = vadd.f32 %v1858, %v1859
      %v1861 = vadd.f32 %v1719, %v1729
      %v1862 = vadd.f32 %v1861, %v1739
      %v1863 = vadd.f32 %v1862, %v1749
      %v1864 = vadd.f32 %v1863, %v1759
      %v1865 = vadd.f32 %v1864, %v1769
      %v1866 = vadd.f32 %v1865, %v1779
      %v1867 = vadd.f32 %v1866, %v1789
      %v1868 = vrot.slane %v1867, 4
      %v1869 = vadd.f32 %v1867, %v1868
      %v1870 = vrot.slane %v1869, 2
      %v1871 = vadd.f32 %v1869, %v1870
      %v1872 = vrot.slane %v1871, 1
      %v1873 = vadd.f32 %v1871, %v1872
      %v1874 = vadd.f32 %v1720, %v1730
      %v1875 = vadd.f32 %v1874, %v1740
      %v1876 = vadd.f32 %v1875, %v1750
      %v1877 = vadd.f32 %v1876, %v1760
      %v1878 = vadd.f32 %v1877, %v1770
      %v1879 = vadd.f32 %v1878, %v1780
      %v1880 = vadd.f32 %v1879, %v1790
      %v1881 = vrot.slane %v1880, 4
      %v1882 = vadd.f32 %v1880, %v1881
      %v1883 = vrot.slane %v1882, 2
      %v1884 = vadd.f32 %v1882, %v1883
      %v1885 = vrot.slane %v1884, 1
      %v1886 = vadd.f32 %v1884, %v1885
      %v1887 = vadd.f32 %v1721, %v1731
      %v1888 = vadd.f32 %v1887, %v1741
      %v1889 = vadd.f32 %v1888, %v1751
      %v1890 = vadd.f32 %v1889, %v1761
      %v1891 = vadd.f32 %v1890, %v1771
      %v1892 = vadd.f32 %v1891, %v1781
      %v1893 = vadd.f32 %v1892, %v1791
      %v1894 = vrot.slane %v1893, 4
      %v1895 = vadd.f32 %v1893, %v1894
      %v1896 = vrot.slane %v1895, 2
      %v1897 = vadd.f32 %v1895, %v1896
      %v1898 = vrot.slane %v1897, 1
      %v1899 = vadd.f32 %v1897, %v1898
      %v1900 = vadd.f32 %v1722, %v1732
      %v1901 = vadd.f32 %v1900, %v1742
      %v1902 = vadd.f32 %v1901, %v1752
      %v1903 = vadd.f32 %v1902, %v1762
      %v1904 = vadd.f32 %v1903, %v1772
      %v1905 = vadd.f32 %v1904, %v1782
      %v1906 = vadd.f32 %v1905, %v1792
      %v1907 = vrot.slane %v1906, 4
      %v1908 = vadd.f32 %v1906, %v1907
      %v1909 = vrot.slane %v1908, 2
      %v1910 = vadd.f32 %v1908, %v1909
      %v1911 = vrot.slane %v1910, 1
      %v1912 = vadd.f32 %v1910, %v1911
      %v1913 = vadd.f32 %v1723, %v1733
      %v1914 = vadd.f32 %v1913, %v1743
      %v1915 = vadd.f32 %v1914, %v1753
      %v1916 = vadd.f32 %v1915, %v1763
      %v1917 = vadd.f32 %v1916, %v1773
      %v1918 = vadd.f32 %v1917, %v1783
      %v1919 = vadd.f32 %v1918, %v1793
      %v1920 = vrot.slane %v1919, 4
      %v1921 = vadd.f32 %v1919, %v1920
      %v1922 = vrot.slane %v1921, 2
      %v1923 = vadd.f32 %v1921, %v1922
      %v1924 = vrot.slane %v1923, 1
      %v1925 = vadd.f32 %v1923, %v1924
      %v1936 = vcombine.low %v1808, %v1821
      %v1937 = vcombine.low %v1834, %v1847
      %v1938 = vcombine.low %v1860, %v1873
      %v1939 = vcombine.low %v1886, %v1899
      %v1941 = vunpack.c.l.s4 1966171168
      %v1942 = vunpack.c.0.s8 %v1941
      %v1943 = vlaneseq
      %v1944 = vshrl.u32 %v1943, 7
      %v1945 = vsub.s32 %v1942, %v1944
      %v1946 = vrot.slane %v1936, %v1945
      %v1948 = vunpack.c.l.s4 1966171168
      %v1949 = vunpack.c.0.s8 %v1948
      %v1950 = vlaneseq
      %v1951 = vshrl.u32 %v1950, 7
      %v1952 = vsub.s32 %v1949, %v1951
      %v1953 = vrot.slane %v1937, %v1952
      %v1955 = vunpack.c.l.s4 1966171168
      %v1956 = vunpack.c.0.s8 %v1955
      %v1957 = vlaneseq
      %v1958 = vshrl.u32 %v1957, 7
      %v1959 = vsub.s32 %v1956, %v1958
      %v1960 = vrot.slane %v1938, %v1959
      %v1962 = vunpack.c.l.s4 1966171168
      %v1963 = vunpack.c.0.s8 %v1962
      %v1964 = vlaneseq
      %v1965 = vshrl.u32 %v1964, 7
      %v1966 = vsub.s32 %v1963, %v1965
      %v1967 = vrot.slane %v1939, %v1966
      %v1968 = vcombine.low %v1946, %v1953
      %v1969 = vcombine.low %v1960, %v1967
      %v1971 = vunpack.c.l.s4 1966171168
      %v1972 = vunpack.c.0.s8 %v1971
      %v1973 = vlaneseq
      %v1974 = vshrl.u32 %v1973, 7
      %v1975 = vsub.s32 %v1972, %v1974
      %v1976 = vrot.slane %v1968, %v1975
      %v1978 = vunpack.c.l.s4 1966171168
      %v1979 = vunpack.c.0.s8 %v1978
      %v1980 = vlaneseq
      %v1981 = vshrl.u32 %v1980, 7
      %v1982 = vsub.s32 %v1979, %v1981
      %v1983 = vrot.slane %v1969, %v1982
      %v1984 = vcombine.low %v1976, %v1983
      %v1985 = vcombine.low %v1912, %v1925
      %v1987 = vunpack.c.l.s4 1966171168
      %v1988 = vunpack.c.0.s8 %v1987
      %v1989 = vlaneseq
      %v1990 = vshrl.u32 %v1989, 7
      %v1991 = vsub.s32 %v1988, %v1990
      %v1992 = vrot.slane %v1985, %v1991
      %v1994 = vunpack.c.l.s4 1966171168
      %v1995 = vunpack.c.0.s8 %v1994
      %v1996 = vlaneseq
      %v1997 = vshrl.u32 %v1996, 7
      %v1998 = vsub.s32 %v1995, %v1997
      %v1999 = vrot.slane %v1992, %v1998
      %v2002 = vadd.f32 %v1794, %v1984
      %v2003 = vadd.f32 %v1795, %v1999
      %2004 = vst [vmem:[#allocation2] sm:$0xff] %v2002
      %v2005 = vlaneseq
      %vm2006 = vcmp.ge.s32.totalorder %v2005, 0
      %vm2007 = vcmp.lt.s32.totalorder %v2005, 256
      %vm2008 = vmand %vm2006, %vm2007
      %2009 = vst.msk [vmem:[#allocation2 + $0x8] sm:$0x3] %vm2008, %v2003
      %v2010 = vld [vmem:[#allocation2] sm:$0xff]
      %v2011 = vld [vmem:[#allocation2 + $0x8] sm:$0x3]
      %v2012 = vmul.f32 %v2010, 0.015625
      %v2013 = vmul.f32 %v2011, 0.015625
      %2014 = vst [vmem:[%s345] sm:$0xff] %v2012
      %2015 = vst.msk [vmem:[%s345 + $0x8] sm:$0x3] %vm2008, %v2013
      %p2016 = scmp.lt.s32.totalorder %s23, 1
      %s2017 = scalar_select %p2016, %s23, 1
      %s2018 = smul.addr %s2017, 10
      %s2019 = scalar_lea.vmem %s8, %s2018
      // Predicated region
      $region57: #{image_encoder_forward.13} parent=51 // pred_check
        %p2020 = pneg %p229
      $region58: #{image_encoder_forward.13} parent=51 // pred_check_branch
        %2022 = sbr.rel (%p2020) target = $region60
      $region59: #{image_encoder_forward.13} parent=51 // pred_region
        _
      $region60: #{image_encoder_forward.13} parent=51 // pred_fallthru
        _
    $region52: #{image_encoder_forward.13} parent=5 // pred_fallthru
      _
    %p2023 = scmp.le.s32.totalorder 2, %s14
    // Predicated region
    $region61: #{image_encoder_forward.13} parent=5 // pred_check
      %p2024 = pneg %p2023
    $region62: #{image_encoder_forward.13} parent=5 // pred_check_branch
      %2026 = sbr.rel (%p2024) target = $region64
    $region63: #{image_encoder_forward.13} parent=5 // pred_region
      %s2027 = ssub.s32 %s14, 2
      // Predicated region
      $region65: #{image_encoder_forward.13} parent=63 // pred_check
        %p2028 = pneg %p235
      $region66: #{image_encoder_forward.13} parent=63 // pred_check_branch
        %2030 = sbr.rel (%p2028) target = $region68
      $region67: #{image_encoder_forward.13} parent=63 // pred_region
        %p2031 = scmp.lt.s32.totalorder %s25, 1
        %s2032 = scalar_select %p2031, %s25, 1
        %s2033 = smul.addr %s2032, 10
        %s2034 = scalar_lea.vmem %s8, %s2033
      $region68: #{image_encoder_forward.13} parent=63 // pred_fallthru
        _
    $region64: #{image_encoder_forward.13} parent=5 // pred_fallthru
      _
  $region6: #{image_encoder_forward.13} parent=0 // loop_footer
    %s18 = sadd.s32 1, %s14
  $region7: #{image_encoder_forward.13} parent=0 // loop_footer_branch
    %13 = sbr.rel target = $region3
  $region8: #{image_encoder_forward.13} parent=0 // loop_exit
    _

</llo_original>
